<compile_context>
chip_gen: v5e
topology: v5e:2x2
jax: 0.10.0
libtpu: 0.0.40
codegen_flags: <defaults>
</compile_context>

<pallas_src>
import functools
from types import SimpleNamespace

import numpy as np
import jax
import jax.numpy as jnp
from jax.experimental import pallas as pl
from jax.experimental.pallas import tpu as pltpu


# ----------------------------------------------------------------------------
# Small helpers
# ----------------------------------------------------------------------------
_VMEM_LIMIT = 32 * 1024 * 1024  # v7x-safe scoped VMEM cap (plenty for these blocks)


def _cparams(sem):
    return pltpu.CompilerParams(dimension_semantics=sem, vmem_limit_bytes=_VMEM_LIMIT)


def _cdiv(a, b):
    return -(-a // b)


def _round_up(x, m):
    return ((x + m - 1) // m) * m


def _row_tile_cfg(M, max_tile=1024):
    """Row tiles for 'parallel' axes: minimal padding, >=2 blocks when M > 8."""
    M = max(int(M), 1)
    num = _cdiv(M, max_tile)
    if M > 8:
        num = max(num, 2)                      # keep both v7x TensorCores busy
    tile = _round_up(_cdiv(M, num), 8)
    num = _cdiv(M, tile)
    return tile, tile * num


def _lane_tile_cfg(M, max_tile=1024):
    """Tiles for axes that also appear as the lane dim of a (1, tile) idx block:
    single full-width block when possible, else a multiple of 128 (layout-legal)."""
    M = max(int(M), 1)
    if M <= max_tile:
        t = _round_up(M, 8)
        return t, t
    num = _cdiv(M, max_tile)
    tile = _round_up(_cdiv(M, num), 128)
    num = _cdiv(M, tile)
    return tile, tile * num


def _pad_rows(x, m_pad, value=0.0):
    M = x.shape[0]
    if M == m_pad:
        return x
    pad = ((0, m_pad - M),) + ((0, 0),) * (x.ndim - 1)
    return jnp.pad(x, pad, constant_values=value)


def _pad_idx(idx, m_pad):
    E = idx.shape[0]
    return jnp.pad(idx.astype(jnp.int32), (0, m_pad - E),
                   constant_values=-1).reshape(1, m_pad)


def _tile_minmax(idx_row, num_tiles, tile):
    """Per-m-tile [min, max] segment id (padding = -1 ignored for min)."""
    idx2 = idx_row.reshape(num_tiles, tile)
    lo = jnp.min(jnp.where(idx2 >= 0, idx2, jnp.int32(2 ** 30)), axis=1).astype(jnp.int32)
    hi = jnp.max(idx2, axis=1).astype(jnp.int32)
    return lo, hi


def _bf16(x):
    return x.astype(jnp.bfloat16)


def _envelope(d, p):
    # NOTE: real edges always have d > 0 (no self edges); padded rows use d == 1.0
    # so the where() zeroes them out and 1/d stays finite.
    a = -(p + 1) * (p + 2) / 2.0
    b = p * (p + 2.0)
    c = -p * (p + 1) / 2.0
    env = 1.0 / d + a * d ** (p - 1) + b * d ** p + c * d ** (p + 1)
    return jnp.where(d < 1.0, env, 0.0)


# ----------------------------------------------------------------------------
# Fused embedding block: swish(lin([h_i, h_j, swish(lin_rbf(rbf(dist)))]))
# ----------------------------------------------------------------------------
def _embedding_kernel(dist_ref, hi_ref, hj_ref, freq_ref, wrbf_ref, brbf_ref,
                      wi_ref, wj_ref, wr_ref, bemb_ref, o_ref, *, cutoff, p):
    d = dist_ref[...] * (1.0 / cutoff)
    rbf = _envelope(d, p) * jnp.sin(freq_ref[...] * d)
    rbf_e = jnp.dot(_bf16(rbf), wrbf_ref[...],
                    preferred_element_type=jnp.float32) + brbf_ref[...]
    rbf_e = rbf_e * jax.nn.sigmoid(rbf_e)
    y = (jnp.dot(_bf16(hi_ref[...]), wi_ref[...], preferred_element_type=jnp.float32)
         + jnp.dot(_bf16(hj_ref[...]), wj_ref[...], preferred_element_type=jnp.float32)
         + jnp.dot(_bf16(rbf_e), wr_ref[...], preferred_element_type=jnp.float32)
         + bemb_ref[...])
    o_ref[...] = y * jax.nn.sigmoid(y)


def pallas_embedding(h_i, h_j, dist, freq, emb, cutoff, p, max_tile=1024):
    E, H = h_i.shape
    R = freq.shape[1]
    tile, m_pad = _row_tile_cfg(E, max_tile)
    out = pl.pallas_call(
        functools.partial(_embedding_kernel, cutoff=float(cutoff), p=int(p)),
        out_shape=jax.ShapeDtypeStruct((m_pad, H), jnp.float32),
        grid=(m_pad // tile,),
        in_specs=[pl.BlockSpec((tile, 1), lambda m: (m, 0)),
                  pl.BlockSpec((tile, H), lambda m: (m, 0)),
                  pl.BlockSpec((tile, H), lambda m: (m, 0)),
                  pl.BlockSpec((1, R), lambda m: (0, 0)),
                  pl.BlockSpec((R, H), lambda m: (0, 0)),
                  pl.BlockSpec((1, H), lambda m: (0, 0)),
                  pl.BlockSpec((H, H), lambda m: (0, 0)),
                  pl.BlockSpec((H, H), lambda m: (0, 0)),
                  pl.BlockSpec((H, H), lambda m: (0, 0)),
                  pl.BlockSpec((1, H), lambda m: (0, 0))],
        out_specs=pl.BlockSpec((tile, H), lambda m: (m, 0)),
        compiler_params=_cparams(("parallel",)),
    )(_pad_rows(dist.reshape(E, 1), m_pad, float(cutoff)),
      _pad_rows(h_i, m_pad), _pad_rows(h_j, m_pad),
      freq, emb['w_rbf'], emb['b_rbf'], emb['w_i'], emb['w_j'], emb['w_r'], emb['b'])
    return out[:E]


# ----------------------------------------------------------------------------
# Fused interaction edge prep: [swish(lin_ji(x)) | swish(lin_kj(x)) * lin_rbf(rbf)]
# emitted as one lane-dense (tile, 2H) slab
# ----------------------------------------------------------------------------
def _edge_prep_kernel(x_ref, dist_ref, freq_ref, wcat_ref, bcat_ref, wrbf2_ref,
                      lmask_ref, o_ref, *, cutoff, p):
    d = dist_ref[...] * (1.0 / cutoff)
    rbf = _envelope(d, p) * jnp.sin(freq_ref[...] * d)
    y = jnp.dot(_bf16(x_ref[...]), wcat_ref[...],
                preferred_element_type=jnp.float32) + bcat_ref[...]
    y = y * jax.nn.sigmoid(y)
    # mult = [1...1 | rbf @ w_rbf]  (wrbf2 is [0 | w_rbf], lmask is [1 | 0])
    mult = jnp.dot(_bf16(rbf), wrbf2_ref[...],
                   preferred_element_type=jnp.float32) + lmask_ref[...]
    o_ref[...] = y * mult


def pallas_edge_prep(x_edge, dist, freq, pib, cutoff, p, max_tile=1024):
    E, H = x_edge.shape
    R = freq.shape[1]
    tile, m_pad = _row_tile_cfg(E, max_tile)
    out = pl.pallas_call(
        functools.partial(_edge_prep_kernel, cutoff=float(cutoff), p=int(p)),
        out_shape=jax.ShapeDtypeStruct((m_pad, 2 * H), jnp.float32),
        grid=(m_pad // tile,),
        in_specs=[pl.BlockSpec((tile, H), lambda m: (m, 0)),
                  pl.BlockSpec((tile, 1), lambda m: (m, 0)),
                  pl.BlockSpec((1, R), lambda m: (0, 0)),
                  pl.BlockSpec((H, 2 * H), lambda m: (0, 0)),
                  pl.BlockSpec((1, 2 * H), lambda m: (0, 0)),
                  pl.BlockSpec((R, 2 * H), lambda m: (0, 0)),
                  pl.BlockSpec((1, 2 * H), lambda m: (0, 0))],
        out_specs=pl.BlockSpec((tile, 2 * H), lambda m: (m, 0)),
        compiler_params=_cparams(("parallel",)),
    )(_pad_rows(x_edge, m_pad), _pad_rows(dist.reshape(E, 1), m_pad, float(cutoff)),
      freq, pib['w_cat'], pib['b_cat'], pib['wrbf2'], pib['lmask'])
    return out[:E]


# ----------------------------------------------------------------------------
# Fused bilinear (lin_sbf + restructured einsum) + scatter-add over idx_ji
# with sorted-index tile skipping (scalar-prefetched per-tile min/max segment)
# ----------------------------------------------------------------------------
def _bilinear_segsum_kernel(lo_ref, hi_ref, idx_ref, sbf_ref, x_ref,
                            wsbf_ref, wr_ref, exp_ref, red_ref, o_ref, *, tile_s):
    s = pl.program_id(0)
    m = pl.program_id(1)

    @pl.when(m == 0)
    def _():
        o_ref[...] = jnp.zeros_like(o_ref)

    s_lo = s * tile_s

    @pl.when((hi_ref[m] >= s_lo) & (lo_ref[m] < s_lo + tile_s))
    def _():
        sbf_h = jnp.dot(_bf16(sbf_ref[...]), wsbf_ref[...],
                        preferred_element_type=jnp.float32)              # (tt, NB)
        y = jnp.dot(_bf16(x_ref[...]), wr_ref[...],
                    preferred_element_type=jnp.float32)                  # (tt, NB*H)
        sbf_exp = jnp.dot(_bf16(sbf_h), exp_ref[...],
                          preferred_element_type=jnp.float32)            # (tt, NB*H)
        bil = jnp.dot(_bf16(y * sbf_exp), red_ref[...],
                      preferred_element_type=jnp.float32)                # (tt, H)
        seg = s_lo + jax.lax.broadcasted_iota(jnp.int32, (tile_s, 1), 0)
        mask = (idx_ref[...] == seg).astype(jnp.bfloat16)                # (ts, tt)
        o_ref[...] += jnp.dot(mask, _bf16(bil),
                              preferred_element_type=jnp.float32)


def pallas_bilinear_segsum(sbf, x_kj_t, idx_ji, pib, num_segments,
                           max_tile_t=1024, max_tile_s=1024):
    T, SR = sbf.shape
    H = x_kj_t.shape[1]
    NB = pib['w_sbf'].shape[1]
    NBH = pib['wr'].shape[1]
    tile_t, t_pad = _lane_tile_cfg(T, max_tile_t)
    tile_s, s_pad = _row_tile_cfg(num_segments, max_tile_s)
    num_t = t_pad // tile_t
    idx_p = _pad_idx(idx_ji, t_pad)
    lo, hi = _tile_minmax(idx_p, num_t, tile_t)

    gs = pltpu.PrefetchScalarGridSpec(
        num_scalar_prefetch=2,
        grid=(s_pad // tile_s, num_t),
        in_specs=[pl.BlockSpec((1, tile_t), lambda s, m, lo, hi: (0, m)),
                  pl.BlockSpec((tile_t, SR), lambda s, m, lo, hi: (m, 0)),
                  pl.BlockSpec((tile_t, H), lambda s, m, lo, hi: (m, 0)),
                  pl.BlockSpec((SR, NB), lambda s, m, lo, hi: (0, 0)),
                  pl.BlockSpec((H, NBH), lambda s, m, lo, hi: (0, 0)),
                  pl.BlockSpec((NB, NBH), lambda s, m, lo, hi: (0, 0)),
                  pl.BlockSpec((NBH, H), lambda s, m, lo, hi: (0, 0))],
        out_specs=pl.BlockSpec((tile_s, H), lambda s, m, lo, hi: (s, 0)))
    out = pl.pallas_call(
        functools.partial(_bilinear_segsum_kernel, tile_s=tile_s),
        out_shape=jax.ShapeDtypeStruct((s_pad, H), jnp.float32),
        grid_spec=gs,
        compiler_params=_cparams(("parallel", "arbitrary")),
    )(lo, hi, idx_p, _pad_rows(sbf, t_pad), _pad_rows(x_kj_t, t_pad),
      pib['w_sbf'], pib['wr'], pib['expand'], pib['reduce'])
    return out[:num_segments]


# ----------------------------------------------------------------------------
# Fused interaction post-processing: before_skip / lin / after_skip in one kernel
# ----------------------------------------------------------------------------
def _interaction_post_kernel(xji_ref, xkje_ref, xedge_ref, *refs, num_before, num_after):
    o_ref = refs[-1]
    wb = refs[:-1]

    def lin_swish(h, ptr):
        y = jnp.dot(_bf16(h), wb[ptr][...],
                    preferred_element_type=jnp.float32) + wb[ptr + 1][...]
        return y * jax.nn.sigmoid(y)

    h = xji_ref[...] + xkje_ref[...]
    ptr = 0
    for _ in range(num_before):
        t = lin_swish(h, ptr); ptr += 2
        t = lin_swish(t, ptr); ptr += 2
        h = h + t
    h = lin_swish(h, ptr) + xedge_ref[...]; ptr += 2
    for _ in range(num_after):
        t = lin_swish(h, ptr); ptr += 2
        t = lin_swish(t, ptr); ptr += 2
        h = h + t
    o_ref[...] = h


def pallas_interaction_post(x_ji, x_kj_e, x_edge, pib, max_tile=1024):
    E, H = x_edge.shape
    tile, m_pad = _row_tile_cfg(E, max_tile)
    post_arrays = pib['post_arrays']
    row_spec = pl.BlockSpec((tile, H), lambda m: (m, 0))
    wb_specs = [pl.BlockSpec(a.shape, lambda m: (0, 0)) for a in post_arrays]
    out = pl.pallas_call(
        functools.partial(_interaction_post_kernel,
                          num_before=pib['num_before'], num_after=pib['num_after']),
        out_shape=jax.ShapeDtypeStruct((m_pad, H), jnp.float32),
        grid=(m_pad // tile,),
        in_specs=[row_spec, row_spec, row_spec] + wb_specs,
        out_specs=row_spec,
        compiler_params=_cparams(("parallel",)),
    )(_pad_rows(x_ji, m_pad), _pad_rows(x_kj_e, m_pad), _pad_rows(x_edge, m_pad),
      *post_arrays)
    return out[:E]


# ----------------------------------------------------------------------------
# Fused output block: scatter_i( lin_rbf(rbf(dist)) * x_edge ) + MLP chain finalize
# ----------------------------------------------------------------------------
def _output_block_kernel(lo_ref, hi_ref, idx_ref, dist_ref, x_ref, freq_ref,
                         wrbf_ref, *refs, n_lins, tile_s, cutoff, p):
    o_ref = refs[-2]
    acc_ref = refs[-1]
    lins = refs[:-2]
    s = pl.program_id(0)
    m = pl.program_id(1)

    @pl.when(m == 0)
    def _():
        acc_ref[...] = jnp.zeros_like(acc_ref)

    s_lo = s * tile_s

    @pl.when((hi_ref[m] >= s_lo) & (lo_ref[m] < s_lo + tile_s))
    def _():
        d = dist_ref[...] * (1.0 / cutoff)
        rbf = _envelope(d, p) * jnp.sin(freq_ref[...] * d)
        g = jnp.dot(_bf16(rbf), wrbf_ref[...],
                    preferred_element_type=jnp.float32) * x_ref[...]
        seg = s_lo + jax.lax.broadcasted_iota(jnp.int32, (tile_s, 1), 0)
        mask = (idx_ref[...] == seg).astype(jnp.bfloat16)
        acc_ref[...] += jnp.dot(mask, _bf16(g), preferred_element_type=jnp.float32)

    @pl.when(m == pl.num_programs(1) - 1)
    def _():
        h = acc_ref[...]
        ptr = 0
        for _ in range(n_lins):
            h = jnp.dot(_bf16(h), lins[ptr][...],
                        preferred_element_type=jnp.float32) + lins[ptr + 1][...]
            h = h * jax.nn.sigmoid(h)
            ptr += 2
        o_ref[...] = jnp.dot(_bf16(h), lins[ptr][...],
                             preferred_element_type=jnp.float32)


def pallas_output_block(dist, x_edge, idx, freq, pob, num_nodes, cutoff, p,
                        max_tile_m=1024, max_tile_s=1024):
    E, H = x_edge.shape
    R = freq.shape[1]
    out_ch = pob['w_out'].shape[1]
    tile_m, m_pad = _lane_tile_cfg(E, max_tile_m)
    tile_s, s_pad = _row_tile_cfg(num_nodes, max_tile_s)
    num_m = m_pad // tile_m
    idx_p = _pad_idx(idx, m_pad)
    lo, hi = _tile_minmax(idx_p, num_m, tile_m)

    lin_arrays, lin_specs = [], []
    for w_bf, b in zip(pob['lin_ws'], pob['lin_bs']):
        lin_arrays += [w_bf, b.reshape(1, -1)]
        lin_specs += [pl.BlockSpec(w_bf.shape, lambda s, m, lo, hi: (0, 0)),
                      pl.BlockSpec((1, w_bf.shape[1]), lambda s, m, lo, hi: (0, 0))]
    lin_arrays.append(pob['w_out'])
    lin_specs.append(pl.BlockSpec(pob['w_out'].shape, lambda s, m, lo, hi: (0, 0)))

    gs = pltpu.PrefetchScalarGridSpec(
        num_scalar_prefetch=2,
        grid=(s_pad // tile_s, num_m),
        in_specs=[pl.BlockSpec((1, tile_m), lambda s, m, lo, hi: (0, m)),
                  pl.BlockSpec((tile_m, 1), lambda s, m, lo, hi: (m, 0)),
                  pl.BlockSpec((tile_m, H), lambda s, m, lo, hi: (m, 0)),
                  pl.BlockSpec((1, R), lambda s, m, lo, hi: (0, 0)),
                  pl.BlockSpec((R, H), lambda s, m, lo, hi: (0, 0))] + lin_specs,
        out_specs=pl.BlockSpec((tile_s, out_ch), lambda s, m, lo, hi: (s, 0)),
        scratch_shapes=[pltpu.VMEM((tile_s, H), jnp.float32)])
    out = pl.pallas_call(
        functools.partial(_output_block_kernel, n_lins=len(pob['lin_ws']),
                          tile_s=tile_s, cutoff=float(cutoff), p=int(p)),
        out_shape=jax.ShapeDtypeStruct((s_pad, out_ch), jnp.float32),
        grid_spec=gs,
        compiler_params=_cparams(("parallel", "arbitrary")),
    )(lo, hi, idx_p, _pad_rows(dist.reshape(E, 1), m_pad, float(cutoff)),
      _pad_rows(x_edge, m_pad), freq, pob['w_rbf'], *lin_arrays)
    return out[:num_nodes]


# ----------------------------------------------------------------------------
# Generic tiled segment sum (used only for the tiny final per-graph readout)
# ----------------------------------------------------------------------------
def _segment_sum_kernel(idx_ref, val_ref, o_ref, *, tile_s):
    m = pl.program_id(1)

    @pl.when(m == 0)
    def _():
        o_ref[...] = jnp.zeros_like(o_ref)

    seg = pl.program_id(0) * tile_s + jax.lax.broadcasted_iota(jnp.int32, (tile_s, 1), 0)
    mask = (idx_ref[...] == seg).astype(jnp.bfloat16)
    o_ref[...] += jnp.dot(mask, _bf16(val_ref[...]),
                          preferred_element_type=jnp.float32)


def pallas_segment_sum(values, idx, num_segments, max_tile_m=1024, max_tile_s=1024):
    M, C = values.shape
    tile_m, m_pad = _lane_tile_cfg(M, max_tile_m)
    tile_s, s_pad = _row_tile_cfg(num_segments, max_tile_s)
    idx_p = _pad_idx(idx, m_pad)
    out = pl.pallas_call(
        functools.partial(_segment_sum_kernel, tile_s=tile_s),
        out_shape=jax.ShapeDtypeStruct((s_pad, C), jnp.float32),
        grid=(s_pad // tile_s, m_pad // tile_m),
        in_specs=[pl.BlockSpec((1, tile_m), lambda s, m: (0, m)),
                  pl.BlockSpec((tile_m, C), lambda s, m: (m, 0))],
        out_specs=pl.BlockSpec((tile_s, C), lambda s, m: (s, 0)),
        compiler_params=_cparams(("parallel", "arbitrary")),
    )(idx_p, _pad_rows(values, m_pad))
    return out[:num_segments]


# ----------------------------------------------------------------------------
# Spherical basis helpers (sympy-free re-implementation of PyG's SphericalBasisLayer)
# ----------------------------------------------------------------------------
def _sph_jn_np(n, r):
    r = np.asarray(r, dtype=np.float64)
    j0 = np.sin(r) / r
    if n == 0:
        return j0
    j1 = np.sin(r) / r ** 2 - np.cos(r) / r
    if n == 1:
        return j1
    jm, jc = j0, j1
    for l in range(2, n + 1):
        jm, jc = jc, (2 * l - 1) / r * jc - jm
    return jc


def _bisect_root(f, lo, hi, iters=100):
    flo = f(lo)
    for _ in range(iters):
        mid = 0.5 * (lo + hi)
        fm = f(mid)
        if flo * fm <= 0:
            hi = mid
        else:
            lo, flo = mid, fm
    return 0.5 * (lo + hi)


def _sph_bessel_zeros(n_sph, n_rad):
    zeros = np.zeros((n_sph, n_rad))
    zeros[0] = np.arange(1, n_rad + 1) * np.pi
    points = np.arange(1, n_rad + n_sph) * np.pi
    racines = np.zeros(n_rad + n_sph - 1)
    for order in range(1, n_sph):
        for j in range(n_rad + n_sph - 1 - order):
            racines[j] = _bisect_root(lambda r: _sph_jn_np(order, r),
                                      points[j], points[j + 1])
        points = racines.copy()
        zeros[order, :n_rad] = racines[:n_rad]
    return zeros


def _sph_bessel_norms(zeros):
    n_sph, n_rad = zeros.shape
    norms = np.zeros_like(zeros)
    for l in range(n_sph):
        for n in range(n_rad):
            norms[l, n] = 1.0 / np.sqrt(0.5 * _sph_jn_np(l + 1, zeros[l, n]) ** 2)
    return norms


def _sph_jn_jax(l, x):
    j0 = jnp.sin(x) / x
    if l == 0:
        return j0
    j1 = jnp.sin(x) / x ** 2 - jnp.cos(x) / x
    if l == 1:
        return j1
    jm, jc = j0, j1
    for n in range(2, l + 1):
        jm, jc = jc, (2 * n - 1) / x * jc - jm
    return jc


def compute_sbf(dist, angle, idx_kj, zeros, norms, cutoff, envelope_exponent):
    # TODO(synk): SBF is cheap per-triplet elementwise feature construction; kept in
    # plain JAX (the downstream fused bilinear / segment-sum hot path is a Pallas kernel).
    n_sph, n_rad = zeros.shape
    x = dist / cutoff
    env = _envelope(x, envelope_exponent + 1)
    parts = []
    for l in range(n_sph):
        arg = zeros[l][None, :] * x[:, None]
        parts.append(norms[l][None, :] * _sph_jn_jax(l, arg))
    rbf = jnp.concatenate(parts, axis=1) * env[:, None]
    ct = jnp.cos(angle)
    P = [jnp.ones_like(ct), ct]
    for l in range(2, n_sph):
        P.append(((2 * l - 1) * ct * P[-1] - (l - 1) * P[-2]) / l)
    cbf = jnp.stack([np.sqrt((2 * l + 1) / (4 * np.pi)) * P[l]
                     for l in range(n_sph)], axis=1)
    out = rbf[idx_kj].reshape(-1, n_sph, n_rad) * cbf[:, :, None]
    return out.reshape(-1, n_sph * n_rad)


# ----------------------------------------------------------------------------
# Graph construction (host-side glue, mirrors radius_graph + DimeNet.triplets)
# ----------------------------------------------------------------------------
def build_graph_and_triplets(pos_np, batch_np, cutoff):
    # TODO(synk): max_num_neighbors truncation of radius_graph is not applied
    # (all neighbors within the cutoff are kept).
    N = pos_np.shape[0]
    src, dst = [], []
    for a in range(N):
        for b in range(N):
            if a == b or batch_np[a] != batch_np[b]:
                continue
            if np.linalg.norm(pos_np[a] - pos_np[b]) < cutoff:
                src.append(a)   # j (source)
                dst.append(b)   # i (target)
    row = np.asarray(src, np.int32)   # j
    col = np.asarray(dst, np.int32)   # i
    E = row.shape[0]
    in_edges = [np.nonzero(col == t)[0] for t in range(N)]
    idx_i, idx_j, idx_k, idx_kj, idx_ji = [], [], [], [], []
    for e in range(E):
        j, i = int(row[e]), int(col[e])
        for e2 in in_edges[j]:
            k = int(row[e2])
            if k == i:
                continue
            idx_i.append(i); idx_j.append(j); idx_k.append(k)
            idx_kj.append(int(e2)); idx_ji.append(e)
    return dict(i=col, j=row,
                idx_i=np.asarray(idx_i, np.int32),
                idx_j=np.asarray(idx_j, np.int32),
                idx_k=np.asarray(idx_k, np.int32),
                idx_kj=np.asarray(idx_kj, np.int32),
                idx_ji=np.asarray(idx_ji, np.int32))


# ----------------------------------------------------------------------------
# Parameters (deterministic synthetic init; shapes follow torch_geometric DimeNet)
# ----------------------------------------------------------------------------
def init_params(key, hidden, out_ch, num_blocks, num_bilinear, num_spherical,
                num_radial, num_before_skip, num_after_skip, num_output_layers):
    keys = iter(jax.random.split(key, 4096))

    def dense(fan_in, fan_out, bias=True):
        w = jax.random.normal(next(keys), (fan_in, fan_out), jnp.float32) / np.sqrt(fan_in)
        b = jnp.zeros((fan_out,), jnp.float32) if bias else None
        return dict(w=w, b=b)

    p = {}
    p['rbf_freq'] = jnp.asarray(np.pi * np.arange(1, num_radial + 1), jnp.float32)
    p['emb_weight'] = jax.random.uniform(next(keys), (95, hidden), jnp.float32,
                                         -np.sqrt(3.0), np.sqrt(3.0))
    p['emb_lin_rbf'] = dense(num_radial, hidden)
    p['emb_lin'] = dense(3 * hidden, hidden)
    p['output_blocks'] = []
    for _ in range(num_blocks + 1):
        p['output_blocks'].append(dict(
            lin_rbf=dense(num_radial, hidden, bias=False),
            lins=[dense(hidden, hidden) for _ in range(num_output_layers)],
            lin=dense(hidden, out_ch, bias=False)))
    p['interaction_blocks'] = []
    for _ in range(num_blocks):
        p['interaction_blocks'].append(dict(
            lin_rbf=dense(num_radial, hidden, bias=False),
            lin_sbf=dense(num_spherical * num_radial, num_bilinear, bias=False),
            lin_kj=dense(hidden, hidden),
            lin_ji=dense(hidden, hidden),
            W=jax.random.normal(next(keys), (num_bilinear, hidden, hidden),
                                jnp.float32) * (2.0 / num_bilinear),
            before_skip=[[dense(hidden, hidden), dense(hidden, hidden)]
                         for _ in range(num_before_skip)],
            lin=dense(hidden, hidden),
            after_skip=[[dense(hidden, hidden), dense(hidden, hidden)]
                        for _ in range(num_after_skip)]))
    return p


def prepare_params(params):
    """One-time host-side prep: bf16 weight casts, concatenations, bilinear restructure."""
    pp = {}
    R = params['rbf_freq'].shape[0]
    H = params['emb_lin_rbf']['w'].shape[1]
    pp['freq'] = params['rbf_freq'].reshape(1, R)
    pp['emb'] = dict(
        w_rbf=_bf16(params['emb_lin_rbf']['w']),
        b_rbf=params['emb_lin_rbf']['b'].reshape(1, -1),
        w_i=_bf16(params['emb_lin']['w'][0:H]),
        w_j=_bf16(params['emb_lin']['w'][H:2 * H]),
        w_r=_bf16(params['emb_lin']['w'][2 * H:3 * H]),
        b=params['emb_lin']['b'].reshape(1, -1))

    pp['output_blocks'] = []
    for ob in params['output_blocks']:
        pp['output_blocks'].append(dict(
            w_rbf=_bf16(ob['lin_rbf']['w']),
            lin_ws=[_bf16(l['w']) for l in ob['lins']],
            lin_bs=[l['b'] for l in ob['lins']],
            w_out=_bf16(ob['lin']['w'])))

    pp['interaction_blocks'] = []
    for ib in params['interaction_blocks']:
        NB, Hh, Ho = ib['W'].shape
        wrbf2 = jnp.concatenate([jnp.zeros_like(ib['lin_rbf']['w']),
                                 ib['lin_rbf']['w']], axis=1)
        lmask = jnp.concatenate([jnp.ones((1, Hh), jnp.float32),
                                 jnp.zeros((1, Ho), jnp.float32)], axis=1)
        # Bilinear restructure: out[t,i] = sum_{b,h} sbf_h[t,b] x[t,h] W[b,h,i]
        #   Wr[h, b*Ho+i] = W[b,h,i];  expand[b, b'*Ho+i] = delta_bb';  reduce[b*Ho+i, i'] = delta_ii'
        wr = _bf16(jnp.transpose(ib['W'], (1, 0, 2)).reshape(Hh, NB * Ho))
        expand = _bf16(jnp.asarray(np.kron(np.eye(NB), np.ones((1, Ho))), jnp.float32))
        reduce_m = _bf16(jnp.asarray(np.kron(np.ones((NB, 1)), np.eye(Ho)), jnp.float32))
        post = []
        for pair in ib['before_skip']:
            post += [pair[0], pair[1]]
        post.append(ib['lin'])
        for pair in ib['after_skip']:
            post += [pair[0], pair[1]]
        post_arrays = []
        for l in post:
            post_arrays += [_bf16(l['w']), l['b'].reshape(1, -1)]
        pp['interaction_blocks'].append(dict(
            w_cat=_bf16(jnp.concatenate([ib['lin_ji']['w'], ib['lin_kj']['w']], axis=1)),
            b_cat=jnp.concatenate([ib['lin_ji']['b'], ib['lin_kj']['b']]).reshape(1, -1),
            wrbf2=_bf16(wrbf2), lmask=lmask,
            w_sbf=_bf16(ib['lin_sbf']['w']), wr=wr, expand=expand, reduce=reduce_m,
            post_arrays=post_arrays,
            num_before=len(ib['before_skip']), num_after=len(ib['after_skip'])))
    return pp


# ----------------------------------------------------------------------------
# DimeNet forward (semantics of torch_geometric.nn.DimeNet.forward)
# ----------------------------------------------------------------------------
def interaction_block(pib, x_edge, dist, sbf, idx_kj, idx_ji, freq, cutoff, p):
    E, H = x_edge.shape
    xcat = pallas_edge_prep(x_edge, dist, freq, pib, cutoff, p)
    x_ji = xcat[:, :H]
    x_kj = xcat[:, H:]
    # TODO(synk): per-triplet row gather kept as a plain-JAX take (data-dependent
    # gather; could be moved in-kernel with a DMA gather in a future revision).
    x_kj_t = jnp.take(x_kj, idx_kj, axis=0)
    x_kj_e = pallas_bilinear_segsum(sbf, x_kj_t, idx_ji, pib, E)
    return pallas_interaction_post(x_ji, x_kj_e, x_edge, pib)


def dimenet_forward(params, pp, z, pos, batch, graph, cfg):
    i, j = graph['i'], graph['j']
    idx_i, idx_j, idx_k = graph['idx_i'], graph['idx_j'], graph['idx_k']
    idx_kj, idx_ji = graph['idx_kj'], graph['idx_ji']
    N = pos.shape[0]
    cutoff = cfg['cutoff']
    p_env = cfg['envelope_exponent'] + 1
    freq = pp['freq']

    dist = jnp.sqrt(jnp.sum((pos[i] - pos[j]) ** 2, axis=-1))
    pos_i = pos[idx_i]
    pos_ji = pos[idx_j] - pos_i
    pos_ki = pos[idx_k] - pos_i
    a = jnp.sum(pos_ji * pos_ki, axis=-1)
    b = jnp.linalg.norm(jnp.cross(pos_ji, pos_ki), axis=-1)
    angle = jnp.arctan2(b, a)

    sbf = compute_sbf(dist, angle, idx_kj, cfg['sbf_zeros'], cfg['sbf_norms'],
                      cutoff, cfg['envelope_exponent'])

    # Embedding block (fused kernel; rbf recomputed in-kernel from dist)
    # TODO(synk): h_z[i]/h_z[j] node gathers kept as plain-JAX takes.
    h_z = jnp.take(params['emb_weight'], z, axis=0)
    x_edge = pallas_embedding(jnp.take(h_z, i, axis=0), jnp.take(h_z, j, axis=0),
                              dist, freq, pp['emb'], cutoff, p_env)

    P = pallas_output_block(dist, x_edge, i, freq, pp['output_blocks'][0],
                            N, cutoff, p_env)
    for pib, pob in zip(pp['interaction_blocks'], pp['output_blocks'][1:]):
        x_edge = interaction_block(pib, x_edge, dist, sbf, idx_kj, idx_ji,
                                   freq, cutoff, p_env)
        P = P + pallas_output_block(dist, x_edge, i, freq, pob, N, cutoff, p_env)

    return pallas_segment_sum(P, batch, cfg['num_graphs'])             # (G, out)


# ----------------------------------------------------------------------------
if __name__ == "__main__":
    key = jax.random.PRNGKey(0)
    N, num_graphs = 12, 2
    hidden, out_ch = 32, 4
    num_blocks, num_bilinear, num_spherical, num_radial = 2, 8, 3, 6
    cutoff, envelope_exponent = 5.0, 5
    num_before_skip, num_after_skip, num_output_layers = 1, 2, 3

    k_x, k_pos, k_par = jax.random.split(key, 3)
    # batch_data (RotomerDimeNet.forward only actually uses x[:, 1], pos, batch)
    z_feat = jax.random.randint(k_x, (N,), 1, 20)
    x_in = jnp.stack([jnp.zeros((N,), jnp.float32),
                      z_feat.astype(jnp.float32),
                      jnp.zeros((N,), jnp.float32)], axis=1)           # (N, 3)
    pos = jax.random.uniform(k_pos, (N, 3), jnp.float32, 0.0, 3.0)
    batch = jnp.repeat(jnp.arange(num_graphs, dtype=jnp.int32), N // num_graphs)
    batch_data = SimpleNamespace(x=x_in, pos=pos,
                                 edge_index=jnp.zeros((2, 1), jnp.int32),   # unused
                                 batch=batch,
                                 edge_attr=jnp.zeros((1, 1), jnp.float32))  # unused

    # ---- RotomerDimeNet.forward: DimeNet(x[:, 1].long(), pos, batch) ----
    z = batch_data.x[:, 1].astype(jnp.int32)
    pos = batch_data.pos
    batch = batch_data.batch

    # TODO(synk): radius_graph + triplets are data-dependent dynamic-shape graph
    # construction; done on host with numpy (glue), not inside the Pallas kernels.
    graph_np = build_graph_and_triplets(np.asarray(pos), np.asarray(batch), cutoff)
    graph = {k: jnp.asarray(v) for k, v in graph_np.items()}

    zeros = _sph_bessel_zeros(num_spherical, num_radial)
    norms = _sph_bessel_norms(zeros)
    cfg = dict(cutoff=cutoff, envelope_exponent=envelope_exponent,
               num_graphs=num_graphs,
               sbf_zeros=jnp.asarray(zeros, jnp.float32),
               sbf_norms=jnp.asarray(norms, jnp.float32))

    params = init_params(k_par, hidden, out_ch, num_blocks, num_bilinear,
                         num_spherical, num_radial, num_before_skip,
                         num_after_skip, num_output_layers)
    pp = prepare_params(params)   # one-time bf16 casts / restructured weights

    fwd = jax.jit(lambda z_, pos_, batch_: dimenet_forward(params, pp, z_, pos_,
                                                           batch_, graph, cfg))
    out = jax.block_until_ready(fwd(z, pos, batch))
    assert out.shape == (num_graphs, out_ch)
    assert bool(jnp.all(jnp.isfinite(out)))
    print("KERNEL_OK")
</pallas_src>

<mosaic_0001>
module attributes {stable_mosaic.version = 11 : i64} {
  func.func @_embedding_kernel(%arg0: i32, %arg1: memref<32x1xf32, #tpu.memory_space<vmem>>, %arg2: memref<32x32xf32, #tpu.memory_space<vmem>>, %arg3: memref<32x32xf32, #tpu.memory_space<vmem>>, %arg4: memref<1x6xf32, #tpu.memory_space<vmem>>, %arg5: memref<6x32xbf16, #tpu.memory_space<vmem>>, %arg6: memref<1x32xf32, #tpu.memory_space<vmem>>, %arg7: memref<32x32xbf16, #tpu.memory_space<vmem>>, %arg8: memref<32x32xbf16, #tpu.memory_space<vmem>>, %arg9: memref<32x32xbf16, #tpu.memory_space<vmem>>, %arg10: memref<1x32xf32, #tpu.memory_space<vmem>>, %arg11: memref<32x32xf32, #tpu.memory_space<vmem>>) attributes {dimension_semantics = [#tpu.dimension_semantics<parallel>], iteration_bounds = array<i64: 2>, scalar_prefetch = 0 : i64, scratch_operands = 0 : i64, tpu.core_type = #tpu.core_type<tc>, window_params = [{transform_indices = @transform_0, window_bounds = array<i64: 32, 1>}, {transform_indices = @transform_1, window_bounds = array<i64: 32, 32>}, {transform_indices = @transform_2, window_bounds = array<i64: 32, 32>}, {pipeline_mode = #tpu.pipeline_mode<synchronous>, transform_indices = @transform_3, window_bounds = array<i64: 1, 6>}, {pipeline_mode = #tpu.pipeline_mode<synchronous>, transform_indices = @transform_4, window_bounds = array<i64: 6, 32>}, {pipeline_mode = #tpu.pipeline_mode<synchronous>, transform_indices = @transform_5, window_bounds = array<i64: 1, 32>}, {pipeline_mode = #tpu.pipeline_mode<synchronous>, transform_indices = @transform_6, window_bounds = array<i64: 32, 32>}, {pipeline_mode = #tpu.pipeline_mode<synchronous>, transform_indices = @transform_7, window_bounds = array<i64: 32, 32>}, {pipeline_mode = #tpu.pipeline_mode<synchronous>, transform_indices = @transform_8, window_bounds = array<i64: 32, 32>}, {pipeline_mode = #tpu.pipeline_mode<synchronous>, transform_indices = @transform_9, window_bounds = array<i64: 1, 32>}, {transform_indices = @transform_10, window_bounds = array<i64: 32, 32>}]} {
    %c0 = arith.constant 0 : index
    %c0_0 = arith.constant 0 : index
    %0 = vector.load %arg1[%c0, %c0_0] : memref<32x1xf32, #tpu.memory_space<vmem>>, vector<32x1xf32>
    %cst = arith.constant 2.000000e-01 : f32
    %1 = vector.broadcast %cst : f32 to vector<32x1xf32>
    %2 = arith.mulf %0, %1 : vector<32x1xf32>
    %cst_1 = arith.constant 1.000000e+00 : f32
    %3 = vector.broadcast %cst_1 : f32 to vector<32x1xf32>
    %4 = arith.divf %3, %2 : vector<32x1xf32>
    %5 = arith.mulf %2, %2 : vector<32x1xf32>
    %6 = arith.mulf %5, %5 : vector<32x1xf32>
    %7 = arith.mulf %2, %6 : vector<32x1xf32>
    %cst_2 = arith.constant -2.800000e+01 : f32
    %8 = vector.broadcast %cst_2 : f32 to vector<32x1xf32>
    %9 = arith.mulf %8, %7 : vector<32x1xf32>
    %10 = arith.addf %4, %9 : vector<32x1xf32>
    %11 = arith.mulf %2, %2 : vector<32x1xf32>
    %12 = arith.mulf %11, %11 : vector<32x1xf32>
    %13 = arith.mulf %11, %12 : vector<32x1xf32>
    %cst_3 = arith.constant 4.800000e+01 : f32
    %14 = vector.broadcast %cst_3 : f32 to vector<32x1xf32>
    %15 = arith.mulf %14, %13 : vector<32x1xf32>
    %16 = arith.addf %10, %15 : vector<32x1xf32>
    %17 = arith.mulf %2, %2 : vector<32x1xf32>
    %18 = arith.mulf %2, %17 : vector<32x1xf32>
    %19 = arith.mulf %17, %17 : vector<32x1xf32>
    %20 = arith.mulf %18, %19 : vector<32x1xf32>
    %cst_4 = arith.constant -2.100000e+01 : f32
    %21 = vector.broadcast %cst_4 : f32 to vector<32x1xf32>
    %22 = arith.mulf %21, %20 : vector<32x1xf32>
    %23 = arith.addf %16, %22 : vector<32x1xf32>
    %cst_5 = arith.constant 1.000000e+00 : f32
    %24 = vector.broadcast %cst_5 : f32 to vector<32x1xf32>
    %25 = arith.cmpf olt, %2, %24 : vector<32x1xf32>
    %cst_6 = arith.constant 0.000000e+00 : f32
    %26 = vector.broadcast %cst_6 : f32 to vector<32x1xf32>
    %27 = arith.select %25, %23, %26 : vector<32x1xi1>, vector<32x1xf32>
    %c0_7 = arith.constant 0 : index
    %c0_8 = arith.constant 0 : index
    %28 = vector.load %arg4[%c0_7, %c0_8] : memref<1x6xf32, #tpu.memory_space<vmem>>, vector<1x6xf32>
    %29 = vector.broadcast %28 : vector<1x6xf32> to vector<32x6xf32>
    %30 = vector.broadcast %2 : vector<32x1xf32> to vector<32x6xf32>
    %31 = arith.mulf %29, %30 : vector<32x6xf32>
    %32 = math.sin %31 : vector<32x6xf32>
    %33 = vector.broadcast %27 : vector<32x1xf32> to vector<32x6xf32>
    %34 = arith.mulf %33, %32 : vector<32x6xf32>
    %35 = arith.truncf %34 : vector<32x6xf32> to vector<32x6xbf16>
    %c0_9 = arith.constant 0 : index
    %c0_10 = arith.constant 0 : index
    %36 = vector.load %arg5[%c0_9, %c0_10] : memref<6x32xbf16, #tpu.memory_space<vmem>>, vector<6x32xbf16>
    %cst_11 = arith.constant dense<0.000000e+00> : vector<32x32xf32>
    %37 = tpu.matmul %35, %36, %cst_11 {dimension_numbers = #tpu.dot_dimension_numbers<[1], [0], [0], [1], [0, 0, 1, 1], [], []>} : vector<32x6xbf16>, vector<6x32xbf16>, vector<32x32xf32> -> vector<32x32xf32>
    %c0_12 = arith.constant 0 : index
    %c0_13 = arith.constant 0 : index
    %38 = vector.load %arg6[%c0_12, %c0_13] : memref<1x32xf32, #tpu.memory_space<vmem>>, vector<1x32xf32>
    %39 = vector.broadcast %38 : vector<1x32xf32> to vector<32x32xf32>
    %40 = arith.addf %37, %39 : vector<32x32xf32>
    %41 = arith.negf %40 : vector<32x32xf32>
    %42 = math.exp %41 : vector<32x32xf32>
    %cst_14 = arith.constant 1.000000e+00 : f32
    %43 = vector.broadcast %cst_14 : f32 to vector<32x32xf32>
    %44 = arith.addf %43, %42 : vector<32x32xf32>
    %45 = arith.divf %43, %44 : vector<32x32xf32>
    %46 = arith.mulf %40, %45 : vector<32x32xf32>
    %c0_15 = arith.constant 0 : index
    %c0_16 = arith.constant 0 : index
    %47 = vector.load %arg2[%c0_15, %c0_16] : memref<32x32xf32, #tpu.memory_space<vmem>>, vector<32x32xf32>
    %48 = arith.truncf %47 : vector<32x32xf32> to vector<32x32xbf16>
    %c0_17 = arith.constant 0 : index
    %c0_18 = arith.constant 0 : index
    %49 = vector.load %arg7[%c0_17, %c0_18] : memref<32x32xbf16, #tpu.memory_space<vmem>>, vector<32x32xbf16>
    %cst_19 = arith.constant dense<0.000000e+00> : vector<32x32xf32>
    %50 = tpu.matmul %48, %49, %cst_19 {dimension_numbers = #tpu.dot_dimension_numbers<[1], [0], [0], [1], [0, 0, 1, 1], [], []>} : vector<32x32xbf16>, vector<32x32xbf16>, vector<32x32xf32> -> vector<32x32xf32>
    %c0_20 = arith.constant 0 : index
    %c0_21 = arith.constant 0 : index
    %51 = vector.load %arg3[%c0_20, %c0_21] : memref<32x32xf32, #tpu.memory_space<vmem>>, vector<32x32xf32>
    %52 = arith.truncf %51 : vector<32x32xf32> to vector<32x32xbf16>
    %c0_22 = arith.constant 0 : index
    %c0_23 = arith.constant 0 : index
    %53 = vector.load %arg8[%c0_22, %c0_23] : memref<32x32xbf16, #tpu.memory_space<vmem>>, vector<32x32xbf16>
    %cst_24 = arith.constant dense<0.000000e+00> : vector<32x32xf32>
    %54 = tpu.matmul %52, %53, %cst_24 {dimension_numbers = #tpu.dot_dimension_numbers<[1], [0], [0], [1], [0, 0, 1, 1], [], []>} : vector<32x32xbf16>, vector<32x32xbf16>, vector<32x32xf32> -> vector<32x32xf32>
    %55 = arith.addf %50, %54 : vector<32x32xf32>
    %56 = arith.truncf %46 : vector<32x32xf32> to vector<32x32xbf16>
    %c0_25 = arith.constant 0 : index
    %c0_26 = arith.constant 0 : index
    %57 = vector.load %arg9[%c0_25, %c0_26] : memref<32x32xbf16, #tpu.memory_space<vmem>>, vector<32x32xbf16>
    %cst_27 = arith.constant dense<0.000000e+00> : vector<32x32xf32>
    %58 = tpu.matmul %56, %57, %cst_27 {dimension_numbers = #tpu.dot_dimension_numbers<[1], [0], [0], [1], [0, 0, 1, 1], [], []>} : vector<32x32xbf16>, vector<32x32xbf16>, vector<32x32xf32> -> vector<32x32xf32>
    %59 = arith.addf %55, %58 : vector<32x32xf32>
    %c0_28 = arith.constant 0 : index
    %c0_29 = arith.constant 0 : index
    %60 = vector.load %arg10[%c0_28, %c0_29] : memref<1x32xf32, #tpu.memory_space<vmem>>, vector<1x32xf32>
    %61 = vector.broadcast %60 : vector<1x32xf32> to vector<32x32xf32>
    %62 = arith.addf %59, %61 : vector<32x32xf32>
    %63 = arith.negf %62 : vector<32x32xf32>
    %64 = math.exp %63 : vector<32x32xf32>
    %cst_30 = arith.constant 1.000000e+00 : f32
    %65 = vector.broadcast %cst_30 : f32 to vector<32x32xf32>
    %66 = arith.addf %65, %64 : vector<32x32xf32>
    %67 = arith.divf %65, %66 : vector<32x32xf32>
    %68 = arith.mulf %62, %67 : vector<32x32xf32>
    %c0_31 = arith.constant 0 : index
    %c0_32 = arith.constant 0 : index
    %69 = vector.load %arg11[%c0_31, %c0_32] : memref<32x32xf32, #tpu.memory_space<vmem>>, vector<32x32xf32>
    tpu.vector_store %arg11[%c0_31, %c0_32], %68 {strides = array<i32>} : memref<32x32xf32, #tpu.memory_space<vmem>>, vector<32x32xf32>,
    return
  }
  func.func @transform_0(%arg0: i32) -> (i32, i32) {
    %c0_i32 = arith.constant 0 : i32
    %c0_i32_0 = arith.constant 0 : i32
    return %arg0, %c0_i32 : i32, i32
  }
  func.func @transform_1(%arg0: i32) -> (i32, i32) {
    %c0_i32 = arith.constant 0 : i32
    %c0_i32_0 = arith.constant 0 : i32
    return %arg0, %c0_i32 : i32, i32
  }
  func.func @transform_2(%arg0: i32) -> (i32, i32) {
    %c0_i32 = arith.constant 0 : i32
    %c0_i32_0 = arith.constant 0 : i32
    return %arg0, %c0_i32 : i32, i32
  }
  func.func @transform_3(%arg0: i32) -> (i32, i32) {
    %c0_i32 = arith.constant 0 : i32
    %c0_i32_0 = arith.constant 0 : i32
    %c0_i32_1 = arith.constant 0 : i32
    return %c0_i32, %c0_i32_0 : i32, i32
  }
  func.func @transform_4(%arg0: i32) -> (i32, i32) {
    %c0_i32 = arith.constant 0 : i32
    %c0_i32_0 = arith.constant 0 : i32
    %c0_i32_1 = arith.constant 0 : i32
    return %c0_i32, %c0_i32_0 : i32, i32
  }
  func.func @transform_5(%arg0: i32) -> (i32, i32) {
    %c0_i32 = arith.constant 0 : i32
    %c0_i32_0 = arith.constant 0 : i32
    %c0_i32_1 = arith.constant 0 : i32
    return %c0_i32, %c0_i32_0 : i32, i32
  }
  func.func @transform_6(%arg0: i32) -> (i32, i32) {
    %c0_i32 = arith.constant 0 : i32
    %c0_i32_0 = arith.constant 0 : i32
    %c0_i32_1 = arith.constant 0 : i32
    return %c0_i32, %c0_i32_0 : i32, i32
  }
  func.func @transform_7(%arg0: i32) -> (i32, i32) {
    %c0_i32 = arith.constant 0 : i32
    %c0_i32_0 = arith.constant 0 : i32
    %c0_i32_1 = arith.constant 0 : i32
    return %c0_i32, %c0_i32_0 : i32, i32
  }
  func.func @transform_8(%arg0: i32) -> (i32, i32) {
    %c0_i32 = arith.constant 0 : i32
    %c0_i32_0 = arith.constant 0 : i32
    %c0_i32_1 = arith.constant 0 : i32
    return %c0_i32, %c0_i32_0 : i32, i32
  }
  func.func @transform_9(%arg0: i32) -> (i32, i32) {
    %c0_i32 = arith.constant 0 : i32
    %c0_i32_0 = arith.constant 0 : i32
    %c0_i32_1 = arith.constant 0 : i32
    return %c0_i32, %c0_i32_0 : i32, i32
  }
  func.func @transform_10(%arg0: i32) -> (i32, i32) {
    %c0_i32 = arith.constant 0 : i32
    %c0_i32_0 = arith.constant 0 : i32
    return %arg0, %c0_i32 : i32, i32
  }
}

module attributes {stable_mosaic.version = 11 : i64} {
  func.func @_bilinear_segsum_kernel(%arg0: i32, %arg1: i32, %arg2: memref<1xi32, #tpu.memory_space<smem>>, %arg3: memref<1xi32, #tpu.memory_space<smem>>, %arg4: memref<1x240xi32, #tpu.memory_space<vmem>>, %arg5: memref<240x18xf32, #tpu.memory_space<vmem>>, %arg6: memref<240x32xf32, #tpu.memory_space<vmem>>, %arg7: memref<18x8xbf16, #tpu.memory_space<vmem>>, %arg8: memref<32x256xbf16, #tpu.memory_space<vmem>>, %arg9: memref<8x256xbf16, #tpu.memory_space<vmem>>, %arg10: memref<256x32xbf16, #tpu.memory_space<vmem>>, %arg11: memref<32x32xf32, #tpu.memory_space<vmem>>) attributes {dimension_semantics = [#tpu.dimension_semantics<parallel>, #tpu.dimension_semantics<arbitrary>], iteration_bounds = array<i64: 2, 1>, scalar_prefetch = 2 : i64, scratch_operands = 0 : i64, tpu.core_type = #tpu.core_type<tc>, window_params = [{transform_indices = @transform_0, window_bounds = array<i64: 1, 240>}, {transform_indices = @transform_1, window_bounds = array<i64: 240, 18>}, {transform_indices = @transform_2, window_bounds = array<i64: 240, 32>}, {pipeline_mode = #tpu.pipeline_mode<synchronous>, transform_indices = @transform_3, window_bounds = array<i64: 18, 8>}, {pipeline_mode = #tpu.pipeline_mode<synchronous>, transform_indices = @transform_4, window_bounds = array<i64: 32, 256>}, {pipeline_mode = #tpu.pipeline_mode<synchronous>, transform_indices = @transform_5, window_bounds = array<i64: 8, 256>}, {pipeline_mode = #tpu.pipeline_mode<synchronous>, transform_indices = @transform_6, window_bounds = array<i64: 256, 32>}, {transform_indices = @transform_7, window_bounds = array<i64: 32, 32>}]} {
    %c0_i32 = arith.constant 0 : i32
    %0 = arith.cmpi eq, %arg1, %c0_i32 : i32
    %1 = arith.extui %0 : i1 to i32
    %c0_i32_0 = arith.constant 0 : i32
    %2 = arith.cmpi ne, %1, %c0_i32_0 : i32
    scf.if %2 {
      %cst = arith.constant 0.000000e+00 : f32
      %14 = vector.broadcast %cst : f32 to vector<32x32xf32>
      %c0 = arith.constant 0 : index
      %c0_3 = arith.constant 0 : index
      %15 = vector.load %arg11[%c0, %c0_3] : memref<32x32xf32, #tpu.memory_space<vmem>>, vector<32x32xf32>
      tpu.vector_store %arg11[%c0, %c0_3], %14 {strides = array<i32>} : memref<32x32xf32, #tpu.memory_space<vmem>>, vector<32x32xf32>,
    } else {
    }
    %c32_i32 = arith.constant 32 : i32
    %3 = arith.muli %arg0, %c32_i32 : i32
    %4 = arith.index_cast %arg1 : i32 to index
    %5 = memref.load %arg3[%4] : memref<1xi32, #tpu.memory_space<smem>>
    %6 = arith.cmpi sge, %5, %3 : i32
    %7 = arith.index_cast %arg1 : i32 to index
    %8 = memref.load %arg2[%7] : memref<1xi32, #tpu.memory_space<smem>>
    %c32_i32_1 = arith.constant 32 : i32
    %9 = arith.addi %3, %c32_i32_1 : i32
    %10 = arith.cmpi slt, %8, %9 : i32
    %11 = arith.andi %6, %10 : i1
    %12 = arith.extui %11 : i1 to i32
    %c0_i32_2 = arith.constant 0 : i32
    %13 = arith.cmpi ne, %12, %c0_i32_2 : i32
    scf.if %13 {
      %c0 = arith.constant 0 : index
      %c0_3 = arith.constant 0 : index
      %14 = vector.load %arg5[%c0, %c0_3] : memref<240x18xf32, #tpu.memory_space<vmem>>, vector<240x18xf32>
      %15 = arith.truncf %14 : vector<240x18xf32> to vector<240x18xbf16>
      %c0_4 = arith.constant 0 : index
      %c0_5 = arith.constant 0 : index
      %16 = vector.load %arg7[%c0_4, %c0_5] : memref<18x8xbf16, #tpu.memory_space<vmem>>, vector<18x8xbf16>
      %cst = arith.constant dense<0.000000e+00> : vector<240x8xf32>
      %17 = tpu.matmul %15, %16, %cst {dimension_numbers = #tpu.dot_dimension_numbers<[1], [0], [0], [1], [0, 0, 1, 1], [], []>} : vector<240x18xbf16>, vector<18x8xbf16>, vector<240x8xf32> -> vector<240x8xf32>
      %c0_6 = arith.constant 0 : index
      %c0_7 = arith.constant 0 : index
      %18 = vector.load %arg6[%c0_6, %c0_7] : memref<240x32xf32, #tpu.memory_space<vmem>>, vector<240x32xf32>
      %19 = arith.truncf %18 : vector<240x32xf32> to vector<240x32xbf16>
      %c0_8 = arith.constant 0 : index
      %c0_9 = arith.constant 0 : index
      %20 = vector.load %arg8[%c0_8, %c0_9] : memref<32x256xbf16, #tpu.memory_space<vmem>>, vector<32x256xbf16>
      %cst_10 = arith.constant dense<0.000000e+00> : vector<240x256xf32>
      %21 = tpu.matmul %19, %20, %cst_10 {dimension_numbers = #tpu.dot_dimension_numbers<[1], [0], [0], [1], [0, 0, 1, 1], [], []>} : vector<240x32xbf16>, vector<32x256xbf16>, vector<240x256xf32> -> vector<240x256xf32>
      %22 = arith.truncf %17 : vector<240x8xf32> to vector<240x8xbf16>
      %c0_11 = arith.constant 0 : index
      %c0_12 = arith.constant 0 : index
      %23 = vector.load %arg9[%c0_11, %c0_12] : memref<8x256xbf16, #tpu.memory_space<vmem>>, vector<8x256xbf16>
      %cst_13 = arith.constant dense<0.000000e+00> : vector<240x256xf32>
      %24 = tpu.matmul %22, %23, %cst_13 {dimension_numbers = #tpu.dot_dimension_numbers<[1], [0], [0], [1], [0, 0, 1, 1], [], []>} : vector<240x8xbf16>, vector<8x256xbf16>, vector<240x256xf32> -> vector<240x256xf32>
      %25 = arith.mulf %21, %24 : vector<240x256xf32>
      %26 = arith.truncf %25 : vector<240x256xf32> to vector<240x256xbf16>
      %c0_14 = arith.constant 0 : index
      %c0_15 = arith.constant 0 : index
      %27 = vector.load %arg10[%c0_14, %c0_15] : memref<256x32xbf16, #tpu.memory_space<vmem>>, vector<256x32xbf16>
      %cst_16 = arith.constant dense<0.000000e+00> : vector<240x32xf32>
      %28 = tpu.matmul %26, %27, %cst_16 {dimension_numbers = #tpu.dot_dimension_numbers<[1], [0], [0], [1], [0, 0, 1, 1], [], []>} : vector<240x256xbf16>, vector<256x32xbf16>, vector<240x32xf32> -> vector<240x32xf32>
      %29 = tpu.iota {dimensions = array<i32: 0>} : vector<32x1xi32>
      %30 = vector.broadcast %3 : i32 to vector<32x1xi32>
      %31 = arith.addi %30, %29 : vector<32x1xi32>
      %c0_17 = arith.constant 0 : index
      %c0_18 = arith.constant 0 : index
      %32 = vector.load %arg4[%c0_17, %c0_18] : memref<1x240xi32, #tpu.memory_space<vmem>>, vector<1x240xi32>
      %33 = vector.broadcast %32 : vector<1x240xi32> to vector<32x240xi32>
      %34 = vector.broadcast %31 : vector<32x1xi32> to vector<32x240xi32>
      %35 = arith.cmpi eq, %33, %34 : vector<32x240xi32>
      %36 = arith.extui %35 : vector<32x240xi1> to vector<32x240xi32>
      %37 = arith.sitofp %36 : vector<32x240xi32> to vector<32x240xf32>
      %38 = arith.truncf %37 : vector<32x240xf32> to vector<32x240xbf16>
      %c0_19 = arith.constant 0 : index
      %c0_20 = arith.constant 0 : index
      %39 = vector.load %arg11[%c0_19, %c0_20] : memref<32x32xf32, #tpu.memory_space<vmem>>, vector<32x32xf32>
      %40 = arith.truncf %28 : vector<240x32xf32> to vector<240x32xbf16>
      %cst_21 = arith.constant dense<0.000000e+00> : vector<32x32xf32>
      %41 = tpu.matmul %38, %40, %cst_21 {dimension_numbers = #tpu.dot_dimension_numbers<[1], [0], [0], [1], [0, 0, 1, 1], [], []>} : vector<32x240xbf16>, vector<240x32xbf16>, vector<32x32xf32> -> vector<32x32xf32>
      %42 = arith.addf %39, %41 : vector<32x32xf32>
      %c0_22 = arith.constant 0 : index
      %c0_23 = arith.constant 0 : index
      %43 = vector.load %arg11[%c0_22, %c0_23] : memref<32x32xf32, #tpu.memory_space<vmem>>, vector<32x32xf32>
      tpu.vector_store %arg11[%c0_22, %c0_23], %42 {strides = array<i32>} : memref<32x32xf32, #tpu.memory_space<vmem>>, vector<32x32xf32>,
    } else {
    }
    return
  }
  func.func @transform_0(%arg0: i32, %arg1: i32, %arg2: memref<1xi32, #tpu.memory_space<smem>>, %arg3: memref<1xi32, #tpu.memory_space<smem>>) -> (i32, i32) {
    %c0_i32 = arith.constant 0 : i32
    %c0_i32_0 = arith.constant 0 : i32
    return %c0_i32, %arg1 : i32, i32
  }
  func.func @transform_1(%arg0: i32, %arg1: i32, %arg2: memref<1xi32, #tpu.memory_space<smem>>, %arg3: memref<1xi32, #tpu.memory_space<smem>>) -> (i32, i32) {
    %c0_i32 = arith.constant 0 : i32
    %c0_i32_0 = arith.constant 0 : i32
    return %arg1, %c0_i32 : i32, i32
  }
  func.func @transform_2(%arg0: i32, %arg1: i32, %arg2: memref<1xi32, #tpu.memory_space<smem>>, %arg3: memref<1xi32, #tpu.memory_space<smem>>) -> (i32, i32) {
    %c0_i32 = arith.constant 0 : i32
    %c0_i32_0 = arith.constant 0 : i32
    return %arg1, %c0_i32 : i32, i32
  }
  func.func @transform_3(%arg0: i32, %arg1: i32, %arg2: memref<1xi32, #tpu.memory_space<smem>>, %arg3: memref<1xi32, #tpu.memory_space<smem>>) -> (i32, i32) {
    %c0_i32 = arith.constant 0 : i32
    %c0_i32_0 = arith.constant 0 : i32
    %c0_i32_1 = arith.constant 0 : i32
    return %c0_i32, %c0_i32_0 : i32, i32
  }
  func.func @transform_4(%arg0: i32, %arg1: i32, %arg2: memref<1xi32, #tpu.memory_space<smem>>, %arg3: memref<1xi32, #tpu.memory_space<smem>>) -> (i32, i32) {
    %c0_i32 = arith.constant 0 : i32
    %c0_i32_0 = arith.constant 0 : i32
    %c0_i32_1 = arith.constant 0 : i32
    return %c0_i32, %c0_i32_0 : i32, i32
  }
  func.func @transform_5(%arg0: i32, %arg1: i32, %arg2: memref<1xi32, #tpu.memory_space<smem>>, %arg3: memref<1xi32, #tpu.memory_space<smem>>) -> (i32, i32) {
    %c0_i32 = arith.constant 0 : i32
    %c0_i32_0 = arith.constant 0 : i32
    %c0_i32_1 = arith.constant 0 : i32
    return %c0_i32, %c0_i32_0 : i32, i32
  }
  func.func @transform_6(%arg0: i32, %arg1: i32, %arg2: memref<1xi32, #tpu.memory_space<smem>>, %arg3: memref<1xi32, #tpu.memory_space<smem>>) -> (i32, i32) {
    %c0_i32 = arith.constant 0 : i32
    %c0_i32_0 = arith.constant 0 : i32
    %c0_i32_1 = arith.constant 0 : i32
    return %c0_i32, %c0_i32_0 : i32, i32
  }
  func.func @transform_7(%arg0: i32, %arg1: i32, %arg2: memref<1xi32, #tpu.memory_space<smem>>, %arg3: memref<1xi32, #tpu.memory_space<smem>>) -> (i32, i32) {
    %c0_i32 = arith.constant 0 : i32
    %c0_i32_0 = arith.constant 0 : i32
    return %arg0, %c0_i32 : i32, i32
  }
}

module attributes {stable_mosaic.version = 11 : i64} {
  func.func @_edge_prep_kernel(%arg0: i32, %arg1: memref<32x32xf32, #tpu.memory_space<vmem>>, %arg2: memref<32x1xf32, #tpu.memory_space<vmem>>, %arg3: memref<1x6xf32, #tpu.memory_space<vmem>>, %arg4: memref<32x64xbf16, #tpu.memory_space<vmem>>, %arg5: memref<1x64xf32, #tpu.memory_space<vmem>>, %arg6: memref<6x64xbf16, #tpu.memory_space<vmem>>, %arg7: memref<1x64xf32, #tpu.memory_space<vmem>>, %arg8: memref<32x64xf32, #tpu.memory_space<vmem>>) attributes {dimension_semantics = [#tpu.dimension_semantics<parallel>], iteration_bounds = array<i64: 2>, scalar_prefetch = 0 : i64, scratch_operands = 0 : i64, tpu.core_type = #tpu.core_type<tc>, window_params = [{transform_indices = @transform_0, window_bounds = array<i64: 32, 32>}, {transform_indices = @transform_1, window_bounds = array<i64: 32, 1>}, {pipeline_mode = #tpu.pipeline_mode<synchronous>, transform_indices = @transform_2, window_bounds = array<i64: 1, 6>}, {pipeline_mode = #tpu.pipeline_mode<synchronous>, transform_indices = @transform_3, window_bounds = array<i64: 32, 64>}, {pipeline_mode = #tpu.pipeline_mode<synchronous>, transform_indices = @transform_4, window_bounds = array<i64: 1, 64>}, {pipeline_mode = #tpu.pipeline_mode<synchronous>, transform_indices = @transform_5, window_bounds = array<i64: 6, 64>}, {pipeline_mode = #tpu.pipeline_mode<synchronous>, transform_indices = @transform_6, window_bounds = array<i64: 1, 64>}, {transform_indices = @transform_7, window_bounds = array<i64: 32, 64>}]} {
    %c0 = arith.constant 0 : index
    %c0_0 = arith.constant 0 : index
    %0 = vector.load %arg2[%c0, %c0_0] : memref<32x1xf32, #tpu.memory_space<vmem>>, vector<32x1xf32>
    %cst = arith.constant 2.000000e-01 : f32
    %1 = vector.broadcast %cst : f32 to vector<32x1xf32>
    %2 = arith.mulf %0, %1 : vector<32x1xf32>
    %cst_1 = arith.constant 1.000000e+00 : f32
    %3 = vector.broadcast %cst_1 : f32 to vector<32x1xf32>
    %4 = arith.divf %3, %2 : vector<32x1xf32>
    %5 = arith.mulf %2, %2 : vector<32x1xf32>
    %6 = arith.mulf %5, %5 : vector<32x1xf32>
    %7 = arith.mulf %2, %6 : vector<32x1xf32>
    %cst_2 = arith.constant -2.800000e+01 : f32
    %8 = vector.broadcast %cst_2 : f32 to vector<32x1xf32>
    %9 = arith.mulf %8, %7 : vector<32x1xf32>
    %10 = arith.addf %4, %9 : vector<32x1xf32>
    %11 = arith.mulf %2, %2 : vector<32x1xf32>
    %12 = arith.mulf %11, %11 : vector<32x1xf32>
    %13 = arith.mulf %11, %12 : vector<32x1xf32>
    %cst_3 = arith.constant 4.800000e+01 : f32
    %14 = vector.broadcast %cst_3 : f32 to vector<32x1xf32>
    %15 = arith.mulf %14, %13 : vector<32x1xf32>
    %16 = arith.addf %10, %15 : vector<32x1xf32>
    %17 = arith.mulf %2, %2 : vector<32x1xf32>
    %18 = arith.mulf %2, %17 : vector<32x1xf32>
    %19 = arith.mulf %17, %17 : vector<32x1xf32>
    %20 = arith.mulf %18, %19 : vector<32x1xf32>
    %cst_4 = arith.constant -2.100000e+01 : f32
    %21 = vector.broadcast %cst_4 : f32 to vector<32x1xf32>
    %22 = arith.mulf %21, %20 : vector<32x1xf32>
    %23 = arith.addf %16, %22 : vector<32x1xf32>
    %cst_5 = arith.constant 1.000000e+00 : f32
    %24 = vector.broadcast %cst_5 : f32 to vector<32x1xf32>
    %25 = arith.cmpf olt, %2, %24 : vector<32x1xf32>
    %cst_6 = arith.constant 0.000000e+00 : f32
    %26 = vector.broadcast %cst_6 : f32 to vector<32x1xf32>
    %27 = arith.select %25, %23, %26 : vector<32x1xi1>, vector<32x1xf32>
    %c0_7 = arith.constant 0 : index
    %c0_8 = arith.constant 0 : index
    %28 = vector.load %arg3[%c0_7, %c0_8] : memref<1x6xf32, #tpu.memory_space<vmem>>, vector<1x6xf32>
    %29 = vector.broadcast %28 : vector<1x6xf32> to vector<32x6xf32>
    %30 = vector.broadcast %2 : vector<32x1xf32> to vector<32x6xf32>
    %31 = arith.mulf %29, %30 : vector<32x6xf32>
    %32 = math.sin %31 : vector<32x6xf32>
    %33 = vector.broadcast %27 : vector<32x1xf32> to vector<32x6xf32>
    %34 = arith.mulf %33, %32 : vector<32x6xf32>
    %c0_9 = arith.constant 0 : index
    %c0_10 = arith.constant 0 : index
    %35 = vector.load %arg1[%c0_9, %c0_10] : memref<32x32xf32, #tpu.memory_space<vmem>>, vector<32x32xf32>
    %36 = arith.truncf %35 : vector<32x32xf32> to vector<32x32xbf16>
    %c0_11 = arith.constant 0 : index
    %c0_12 = arith.constant 0 : index
    %37 = vector.load %arg4[%c0_11, %c0_12] : memref<32x64xbf16, #tpu.memory_space<vmem>>, vector<32x64xbf16>
    %cst_13 = arith.constant dense<0.000000e+00> : vector<32x64xf32>
    %38 = tpu.matmul %36, %37, %cst_13 {dimension_numbers = #tpu.dot_dimension_numbers<[1], [0], [0], [1], [0, 0, 1, 1], [], []>} : vector<32x32xbf16>, vector<32x64xbf16>, vector<32x64xf32> -> vector<32x64xf32>
    %c0_14 = arith.constant 0 : index
    %c0_15 = arith.constant 0 : index
    %39 = vector.load %arg5[%c0_14, %c0_15] : memref<1x64xf32, #tpu.memory_space<vmem>>, vector<1x64xf32>
    %40 = vector.broadcast %39 : vector<1x64xf32> to vector<32x64xf32>
    %41 = arith.addf %38, %40 : vector<32x64xf32>
    %42 = arith.negf %41 : vector<32x64xf32>
    %43 = math.exp %42 : vector<32x64xf32>
    %cst_16 = arith.constant 1.000000e+00 : f32
    %44 = vector.broadcast %cst_16 : f32 to vector<32x64xf32>
    %45 = arith.addf %44, %43 : vector<32x64xf32>
    %46 = arith.divf %44, %45 : vector<32x64xf32>
    %47 = arith.mulf %41, %46 : vector<32x64xf32>
    %48 = arith.truncf %34 : vector<32x6xf32> to vector<32x6xbf16>
    %c0_17 = arith.constant 0 : index
    %c0_18 = arith.constant 0 : index
    %49 = vector.load %arg6[%c0_17, %c0_18] : memref<6x64xbf16, #tpu.memory_space<vmem>>, vector<6x64xbf16>
    %cst_19 = arith.constant dense<0.000000e+00> : vector<32x64xf32>
    %50 = tpu.matmul %48, %49, %cst_19 {dimension_numbers = #tpu.dot_dimension_numbers<[1], [0], [0], [1], [0, 0, 1, 1], [], []>} : vector<32x6xbf16>, vector<6x64xbf16>, vector<32x64xf32> -> vector<32x64xf32>
    %c0_20 = arith.constant 0 : index
    %c0_21 = arith.constant 0 : index
    %51 = vector.load %arg7[%c0_20, %c0_21] : memref<1x64xf32, #tpu.memory_space<vmem>>, vector<1x64xf32>
    %52 = vector.broadcast %51 : vector<1x64xf32> to vector<32x64xf32>
    %53 = arith.addf %50, %52 : vector<32x64xf32>
    %54 = arith.mulf %47, %53 : vector<32x64xf32>
    %c0_22 = arith.constant 0 : index
    %c0_23 = arith.constant 0 : index
    %55 = vector.load %arg8[%c0_22, %c0_23] : memref<32x64xf32, #tpu.memory_space<vmem>>, vector<32x64xf32>
    tpu.vector_store %arg8[%c0_22, %c0_23], %54 {strides = array<i32>} : memref<32x64xf32, #tpu.memory_space<vmem>>, vector<32x64xf32>,
    return
  }
  func.func @transform_0(%arg0: i32) -> (i32, i32) {
    %c0_i32 = arith.constant 0 : i32
    %c0_i32_0 = arith.constant 0 : i32
    return %arg0, %c0_i32 : i32, i32
  }
  func.func @transform_1(%arg0: i32) -> (i32, i32) {
    %c0_i32 = arith.constant 0 : i32
    %c0_i32_0 = arith.constant 0 : i32
    return %arg0, %c0_i32 : i32, i32
  }
  func.func @transform_2(%arg0: i32) -> (i32, i32) {
    %c0_i32 = arith.constant 0 : i32
    %c0_i32_0 = arith.constant 0 : i32
    %c0_i32_1 = arith.constant 0 : i32
    return %c0_i32, %c0_i32_0 : i32, i32
  }
  func.func @transform_3(%arg0: i32) -> (i32, i32) {
    %c0_i32 = arith.constant 0 : i32
    %c0_i32_0 = arith.constant 0 : i32
    %c0_i32_1 = arith.constant 0 : i32
    return %c0_i32, %c0_i32_0 : i32, i32
  }
  func.func @transform_4(%arg0: i32) -> (i32, i32) {
    %c0_i32 = arith.constant 0 : i32
    %c0_i32_0 = arith.constant 0 : i32
    %c0_i32_1 = arith.constant 0 : i32
    return %c0_i32, %c0_i32_0 : i32, i32
  }
  func.func @transform_5(%arg0: i32) -> (i32, i32) {
    %c0_i32 = arith.constant 0 : i32
    %c0_i32_0 = arith.constant 0 : i32
    %c0_i32_1 = arith.constant 0 : i32
    return %c0_i32, %c0_i32_0 : i32, i32
  }
  func.func @transform_6(%arg0: i32) -> (i32, i32) {
    %c0_i32 = arith.constant 0 : i32
    %c0_i32_0 = arith.constant 0 : i32
    %c0_i32_1 = arith.constant 0 : i32
    return %c0_i32, %c0_i32_0 : i32, i32
  }
  func.func @transform_7(%arg0: i32) -> (i32, i32) {
    %c0_i32 = arith.constant 0 : i32
    %c0_i32_0 = arith.constant 0 : i32
    return %arg0, %c0_i32 : i32, i32
  }
}

module attributes {stable_mosaic.version = 11 : i64} {
  func.func @_interaction_post_kernel(%arg0: i32, %arg1: memref<32x32xf32, #tpu.memory_space<vmem>>, %arg2: memref<32x32xf32, #tpu.memory_space<vmem>>, %arg3: memref<32x32xf32, #tpu.memory_space<vmem>>, %arg4: memref<32x32xbf16, #tpu.memory_space<vmem>>, %arg5: memref<1x32xf32, #tpu.memory_space<vmem>>, %arg6: memref<32x32xbf16, #tpu.memory_space<vmem>>, %arg7: memref<1x32xf32, #tpu.memory_space<vmem>>, %arg8: memref<32x32xbf16, #tpu.memory_space<vmem>>, %arg9: memref<1x32xf32, #tpu.memory_space<vmem>>, %arg10: memref<32x32xbf16, #tpu.memory_space<vmem>>, %arg11: memref<1x32xf32, #tpu.memory_space<vmem>>, %arg12: memref<32x32xbf16, #tpu.memory_space<vmem>>, %arg13: memref<1x32xf32, #tpu.memory_space<vmem>>, %arg14: memref<32x32xbf16, #tpu.memory_space<vmem>>, %arg15: memref<1x32xf32, #tpu.memory_space<vmem>>, %arg16: memref<32x32xbf16, #tpu.memory_space<vmem>>, %arg17: memref<1x32xf32, #tpu.memory_space<vmem>>, %arg18: memref<32x32xf32, #tpu.memory_space<vmem>>) attributes {dimension_semantics = [#tpu.dimension_semantics<parallel>], iteration_bounds = array<i64: 2>, scalar_prefetch = 0 : i64, scratch_operands = 0 : i64, tpu.core_type = #tpu.core_type<tc>, window_params = [{transform_indices = @transform_0, window_bounds = array<i64: 32, 32>}, {transform_indices = @transform_1, window_bounds = array<i64: 32, 32>}, {transform_indices = @transform_2, window_bounds = array<i64: 32, 32>}, {pipeline_mode = #tpu.pipeline_mode<synchronous>, transform_indices = @transform_3, window_bounds = array<i64: 32, 32>}, {pipeline_mode = #tpu.pipeline_mode<synchronous>, transform_indices = @transform_4, window_bounds = array<i64: 1, 32>}, {pipeline_mode = #tpu.pipeline_mode<synchronous>, transform_indices = @transform_5, window_bounds = array<i64: 32, 32>}, {pipeline_mode = #tpu.pipeline_mode<synchronous>, transform_indices = @transform_6, window_bounds = array<i64: 1, 32>}, {pipeline_mode = #tpu.pipeline_mode<synchronous>, transform_indices = @transform_7, window_bounds = array<i64: 32, 32>}, {pipeline_mode = #tpu.pipeline_mode<synchronous>, transform_indices = @transform_8, window_bounds = array<i64: 1, 32>}, {pipeline_mode = #tpu.pipeline_mode<synchronous>, transform_indices = @transform_9, window_bounds = array<i64: 32, 32>}, {pipeline_mode = #tpu.pipeline_mode<synchronous>, transform_indices = @transform_10, window_bounds = array<i64: 1, 32>}, {pipeline_mode = #tpu.pipeline_mode<synchronous>, transform_indices = @transform_11, window_bounds = array<i64: 32, 32>}, {pipeline_mode = #tpu.pipeline_mode<synchronous>, transform_indices = @transform_12, window_bounds = array<i64: 1, 32>}, {pipeline_mode = #tpu.pipeline_mode<synchronous>, transform_indices = @transform_13, window_bounds = array<i64: 32, 32>}, {pipeline_mode = #tpu.pipeline_mode<synchronous>, transform_indices = @transform_14, window_bounds = array<i64: 1, 32>}, {pipeline_mode = #tpu.pipeline_mode<synchronous>, transform_indices = @transform_15, window_bounds = array<i64: 32, 32>}, {pipeline_mode = #tpu.pipeline_mode<synchronous>, transform_indices = @transform_16, window_bounds = array<i64: 1, 32>}, {transform_indices = @transform_17, window_bounds = array<i64: 32, 32>}]} {
    %c0 = arith.constant 0 : index
    %c0_0 = arith.constant 0 : index
    %0 = vector.load %arg1[%c0, %c0_0] : memref<32x32xf32, #tpu.memory_space<vmem>>, vector<32x32xf32>
    %c0_1 = arith.constant 0 : index
    %c0_2 = arith.constant 0 : index
    %1 = vector.load %arg2[%c0_1, %c0_2] : memref<32x32xf32, #tpu.memory_space<vmem>>, vector<32x32xf32>
    %2 = arith.addf %0, %1 : vector<32x32xf32>
    %3 = arith.truncf %2 : vector<32x32xf32> to vector<32x32xbf16>
    %c0_3 = arith.constant 0 : index
    %c0_4 = arith.constant 0 : index
    %4 = vector.load %arg4[%c0_3, %c0_4] : memref<32x32xbf16, #tpu.memory_space<vmem>>, vector<32x32xbf16>
    %cst = arith.constant dense<0.000000e+00> : vector<32x32xf32>
    %5 = tpu.matmul %3, %4, %cst {dimension_numbers = #tpu.dot_dimension_numbers<[1], [0], [0], [1], [0, 0, 1, 1], [], []>} : vector<32x32xbf16>, vector<32x32xbf16>, vector<32x32xf32> -> vector<32x32xf32>
    %c0_5 = arith.constant 0 : index
    %c0_6 = arith.constant 0 : index
    %6 = vector.load %arg5[%c0_5, %c0_6] : memref<1x32xf32, #tpu.memory_space<vmem>>, vector<1x32xf32>
    %7 = vector.broadcast %6 : vector<1x32xf32> to vector<32x32xf32>
    %8 = arith.addf %5, %7 : vector<32x32xf32>
    %9 = arith.negf %8 : vector<32x32xf32>
    %10 = math.exp %9 : vector<32x32xf32>
    %cst_7 = arith.constant 1.000000e+00 : f32
    %11 = vector.broadcast %cst_7 : f32 to vector<32x32xf32>
    %12 = arith.addf %11, %10 : vector<32x32xf32>
    %13 = arith.divf %11, %12 : vector<32x32xf32>
    %14 = arith.mulf %8, %13 : vector<32x32xf32>
    %15 = arith.truncf %14 : vector<32x32xf32> to vector<32x32xbf16>
    %c0_8 = arith.constant 0 : index
    %c0_9 = arith.constant 0 : index
    %16 = vector.load %arg6[%c0_8, %c0_9] : memref<32x32xbf16, #tpu.memory_space<vmem>>, vector<32x32xbf16>
    %cst_10 = arith.constant dense<0.000000e+00> : vector<32x32xf32>
    %17 = tpu.matmul %15, %16, %cst_10 {dimension_numbers = #tpu.dot_dimension_numbers<[1], [0], [0], [1], [0, 0, 1, 1], [], []>} : vector<32x32xbf16>, vector<32x32xbf16>, vector<32x32xf32> -> vector<32x32xf32>
    %c0_11 = arith.constant 0 : index
    %c0_12 = arith.constant 0 : index
    %18 = vector.load %arg7[%c0_11, %c0_12] : memref<1x32xf32, #tpu.memory_space<vmem>>, vector<1x32xf32>
    %19 = vector.broadcast %18 : vector<1x32xf32> to vector<32x32xf32>
    %20 = arith.addf %17, %19 : vector<32x32xf32>
    %21 = arith.negf %20 : vector<32x32xf32>
    %22 = math.exp %21 : vector<32x32xf32>
    %cst_13 = arith.constant 1.000000e+00 : f32
    %23 = vector.broadcast %cst_13 : f32 to vector<32x32xf32>
    %24 = arith.addf %23, %22 : vector<32x32xf32>
    %25 = arith.divf %23, %24 : vector<32x32xf32>
    %26 = arith.mulf %20, %25 : vector<32x32xf32>
    %27 = arith.addf %2, %26 : vector<32x32xf32>
    %28 = arith.truncf %27 : vector<32x32xf32> to vector<32x32xbf16>
    %c0_14 = arith.constant 0 : index
    %c0_15 = arith.constant 0 : index
    %29 = vector.load %arg8[%c0_14, %c0_15] : memref<32x32xbf16, #tpu.memory_space<vmem>>, vector<32x32xbf16>
    %cst_16 = arith.constant dense<0.000000e+00> : vector<32x32xf32>
    %30 = tpu.matmul %28, %29, %cst_16 {dimension_numbers = #tpu.dot_dimension_numbers<[1], [0], [0], [1], [0, 0, 1, 1], [], []>} : vector<32x32xbf16>, vector<32x32xbf16>, vector<32x32xf32> -> vector<32x32xf32>
    %c0_17 = arith.constant 0 : index
    %c0_18 = arith.constant 0 : index
    %31 = vector.load %arg9[%c0_17, %c0_18] : memref<1x32xf32, #tpu.memory_space<vmem>>, vector<1x32xf32>
    %32 = vector.broadcast %31 : vector<1x32xf32> to vector<32x32xf32>
    %33 = arith.addf %30, %32 : vector<32x32xf32>
    %34 = arith.negf %33 : vector<32x32xf32>
    %35 = math.exp %34 : vector<32x32xf32>
    %cst_19 = arith.constant 1.000000e+00 : f32
    %36 = vector.broadcast %cst_19 : f32 to vector<32x32xf32>
    %37 = arith.addf %36, %35 : vector<32x32xf32>
    %38 = arith.divf %36, %37 : vector<32x32xf32>
    %39 = arith.mulf %33, %38 : vector<32x32xf32>
    %c0_20 = arith.constant 0 : index
    %c0_21 = arith.constant 0 : index
    %40 = vector.load %arg3[%c0_20, %c0_21] : memref<32x32xf32, #tpu.memory_space<vmem>>, vector<32x32xf32>
    %41 = arith.addf %39, %40 : vector<32x32xf32>
    %42 = arith.truncf %41 : vector<32x32xf32> to vector<32x32xbf16>
    %c0_22 = arith.constant 0 : index
    %c0_23 = arith.constant 0 : index
    %43 = vector.load %arg10[%c0_22, %c0_23] : memref<32x32xbf16, #tpu.memory_space<vmem>>, vector<32x32xbf16>
    %cst_24 = arith.constant dense<0.000000e+00> : vector<32x32xf32>
    %44 = tpu.matmul %42, %43, %cst_24 {dimension_numbers = #tpu.dot_dimension_numbers<[1], [0], [0], [1], [0, 0, 1, 1], [], []>} : vector<32x32xbf16>, vector<32x32xbf16>, vector<32x32xf32> -> vector<32x32xf32>
    %c0_25 = arith.constant 0 : index
    %c0_26 = arith.constant 0 : index
    %45 = vector.load %arg11[%c0_25, %c0_26] : memref<1x32xf32, #tpu.memory_space<vmem>>, vector<1x32xf32>
    %46 = vector.broadcast %45 : vector<1x32xf32> to vector<32x32xf32>
    %47 = arith.addf %44, %46 : vector<32x32xf32>
    %48 = arith.negf %47 : vector<32x32xf32>
    %49 = math.exp %48 : vector<32x32xf32>
    %cst_27 = arith.constant 1.000000e+00 : f32
    %50 = vector.broadcast %cst_27 : f32 to vector<32x32xf32>
    %51 = arith.addf %50, %49 : vector<32x32xf32>
    %52 = arith.divf %50, %51 : vector<32x32xf32>
    %53 = arith.mulf %47, %52 : vector<32x32xf32>
    %54 = arith.truncf %53 : vector<32x32xf32> to vector<32x32xbf16>
    %c0_28 = arith.constant 0 : index
    %c0_29 = arith.constant 0 : index
    %55 = vector.load %arg12[%c0_28, %c0_29] : memref<32x32xbf16, #tpu.memory_space<vmem>>, vector<32x32xbf16>
    %cst_30 = arith.constant dense<0.000000e+00> : vector<32x32xf32>
    %56 = tpu.matmul %54, %55, %cst_30 {dimension_numbers = #tpu.dot_dimension_numbers<[1], [0], [0], [1], [0, 0, 1, 1], [], []>} : vector<32x32xbf16>, vector<32x32xbf16>, vector<32x32xf32> -> vector<32x32xf32>
    %c0_31 = arith.constant 0 : index
    %c0_32 = arith.constant 0 : index
    %57 = vector.load %arg13[%c0_31, %c0_32] : memref<1x32xf32, #tpu.memory_space<vmem>>, vector<1x32xf32>
    %58 = vector.broadcast %57 : vector<1x32xf32> to vector<32x32xf32>
    %59 = arith.addf %56, %58 : vector<32x32xf32>
    %60 = arith.negf %59 : vector<32x32xf32>
    %61 = math.exp %60 : vector<32x32xf32>
    %cst_33 = arith.constant 1.000000e+00 : f32
    %62 = vector.broadcast %cst_33 : f32 to vector<32x32xf32>
    %63 = arith.addf %62, %61 : vector<32x32xf32>
    %64 = arith.divf %62, %63 : vector<32x32xf32>
    %65 = arith.mulf %59, %64 : vector<32x32xf32>
    %66 = arith.addf %41, %65 : vector<32x32xf32>
    %67 = arith.truncf %66 : vector<32x32xf32> to vector<32x32xbf16>
    %c0_34 = arith.constant 0 : index
    %c0_35 = arith.constant 0 : index
    %68 = vector.load %arg14[%c0_34, %c0_35] : memref<32x32xbf16, #tpu.memory_space<vmem>>, vector<32x32xbf16>
    %cst_36 = arith.constant dense<0.000000e+00> : vector<32x32xf32>
    %69 = tpu.matmul %67, %68, %cst_36 {dimension_numbers = #tpu.dot_dimension_numbers<[1], [0], [0], [1], [0, 0, 1, 1], [], []>} : vector<32x32xbf16>, vector<32x32xbf16>, vector<32x32xf32> -> vector<32x32xf32>
    %c0_37 = arith.constant 0 : index
    %c0_38 = arith.constant 0 : index
    %70 = vector.load %arg15[%c0_37, %c0_38] : memref<1x32xf32, #tpu.memory_space<vmem>>, vector<1x32xf32>
    %71 = vector.broadcast %70 : vector<1x32xf32> to vector<32x32xf32>
    %72 = arith.addf %69, %71 : vector<32x32xf32>
    %73 = arith.negf %72 : vector<32x32xf32>
    %74 = math.exp %73 : vector<32x32xf32>
    %cst_39 = arith.constant 1.000000e+00 : f32
    %75 = vector.broadcast %cst_39 : f32 to vector<32x32xf32>
    %76 = arith.addf %75, %74 : vector<32x32xf32>
    %77 = arith.divf %75, %76 : vector<32x32xf32>
    %78 = arith.mulf %72, %77 : vector<32x32xf32>
    %79 = arith.truncf %78 : vector<32x32xf32> to vector<32x32xbf16>
    %c0_40 = arith.constant 0 : index
    %c0_41 = arith.constant 0 : index
    %80 = vector.load %arg16[%c0_40, %c0_41] : memref<32x32xbf16, #tpu.memory_space<vmem>>, vector<32x32xbf16>
    %cst_42 = arith.constant dense<0.000000e+00> : vector<32x32xf32>
    %81 = tpu.matmul %79, %80, %cst_42 {dimension_numbers = #tpu.dot_dimension_numbers<[1], [0], [0], [1], [0, 0, 1, 1], [], []>} : vector<32x32xbf16>, vector<32x32xbf16>, vector<32x32xf32> -> vector<32x32xf32>
    %c0_43 = arith.constant 0 : index
    %c0_44 = arith.constant 0 : index
    %82 = vector.load %arg17[%c0_43, %c0_44] : memref<1x32xf32, #tpu.memory_space<vmem>>, vector<1x32xf32>
    %83 = vector.broadcast %82 : vector<1x32xf32> to vector<32x32xf32>
    %84 = arith.addf %81, %83 : vector<32x32xf32>
    %85 = arith.negf %84 : vector<32x32xf32>
    %86 = math.exp %85 : vector<32x32xf32>
    %cst_45 = arith.constant 1.000000e+00 : f32
    %87 = vector.broadcast %cst_45 : f32 to vector<32x32xf32>
    %88 = arith.addf %87, %86 : vector<32x32xf32>
    %89 = arith.divf %87, %88 : vector<32x32xf32>
    %90 = arith.mulf %84, %89 : vector<32x32xf32>
    %91 = arith.addf %66, %90 : vector<32x32xf32>
    %c0_46 = arith.constant 0 : index
    %c0_47 = arith.constant 0 : index
    %92 = vector.load %arg18[%c0_46, %c0_47] : memref<32x32xf32, #tpu.memory_space<vmem>>, vector<32x32xf32>
    tpu.vector_store %arg18[%c0_46, %c0_47], %91 {strides = array<i32>} : memref<32x32xf32, #tpu.memory_space<vmem>>, vector<32x32xf32>,
    return
  }
  func.func @transform_0(%arg0: i32) -> (i32, i32) {
    %c0_i32 = arith.constant 0 : i32
    %c0_i32_0 = arith.constant 0 : i32
    return %arg0, %c0_i32 : i32, i32
  }
  func.func @transform_1(%arg0: i32) -> (i32, i32) {
    %c0_i32 = arith.constant 0 : i32
    %c0_i32_0 = arith.constant 0 : i32
    return %arg0, %c0_i32 : i32, i32
  }
  func.func @transform_2(%arg0: i32) -> (i32, i32) {
    %c0_i32 = arith.constant 0 : i32
    %c0_i32_0 = arith.constant 0 : i32
    return %arg0, %c0_i32 : i32, i32
  }
  func.func @transform_3(%arg0: i32) -> (i32, i32) {
    %c0_i32 = arith.constant 0 : i32
    %c0_i32_0 = arith.constant 0 : i32
    %c0_i32_1 = arith.constant 0 : i32
    return %c0_i32, %c0_i32_0 : i32, i32
  }
  func.func @transform_4(%arg0: i32) -> (i32, i32) {
    %c0_i32 = arith.constant 0 : i32
    %c0_i32_0 = arith.constant 0 : i32
    %c0_i32_1 = arith.constant 0 : i32
    return %c0_i32, %c0_i32_0 : i32, i32
  }
  func.func @transform_5(%arg0: i32) -> (i32, i32) {
    %c0_i32 = arith.constant 0 : i32
    %c0_i32_0 = arith.constant 0 : i32
    %c0_i32_1 = arith.constant 0 : i32
    return %c0_i32, %c0_i32_0 : i32, i32
  }
  func.func @transform_6(%arg0: i32) -> (i32, i32) {
    %c0_i32 = arith.constant 0 : i32
    %c0_i32_0 = arith.constant 0 : i32
    %c0_i32_1 = arith.constant 0 : i32
    return %c0_i32, %c0_i32_0 : i32, i32
  }
  func.func @transform_7(%arg0: i32) -> (i32, i32) {
    %c0_i32 = arith.constant 0 : i32
    %c0_i32_0 = arith.constant 0 : i32
    %c0_i32_1 = arith.constant 0 : i32
    return %c0_i32, %c0_i32_0 : i32, i32
  }
  func.func @transform_8(%arg0: i32) -> (i32, i32) {
    %c0_i32 = arith.constant 0 : i32
    %c0_i32_0 = arith.constant 0 : i32
    %c0_i32_1 = arith.constant 0 : i32
    return %c0_i32, %c0_i32_0 : i32, i32
  }
  func.func @transform_9(%arg0: i32) -> (i32, i32) {
    %c0_i32 = arith.constant 0 : i32
    %c0_i32_0 = arith.constant 0 : i32
    %c0_i32_1 = arith.constant 0 : i32
    return %c0_i32, %c0_i32_0 : i32, i32
  }
  func.func @transform_10(%arg0: i32) -> (i32, i32) {
    %c0_i32 = arith.constant 0 : i32
    %c0_i32_0 = arith.constant 0 : i32
    %c0_i32_1 = arith.constant 0 : i32
    return %c0_i32, %c0_i32_0 : i32, i32
  }
  func.func @transform_11(%arg0: i32) -> (i32, i32) {
    %c0_i32 = arith.constant 0 : i32
    %c0_i32_0 = arith.constant 0 : i32
    %c0_i32_1 = arith.constant 0 : i32
    return %c0_i32, %c0_i32_0 : i32, i32
  }
  func.func @transform_12(%arg0: i32) -> (i32, i32) {
    %c0_i32 = arith.constant 0 : i32
    %c0_i32_0 = arith.constant 0 : i32
    %c0_i32_1 = arith.constant 0 : i32
    return %c0_i32, %c0_i32_0 : i32, i32
  }
  func.func @transform_13(%arg0: i32) -> (i32, i32) {
    %c0_i32 = arith.constant 0 : i32
    %c0_i32_0 = arith.constant 0 : i32
    %c0_i32_1 = arith.constant 0 : i32
    return %c0_i32, %c0_i32_0 : i32, i32
  }
  func.func @transform_14(%arg0: i32) -> (i32, i32) {
    %c0_i32 = arith.constant 0 : i32
    %c0_i32_0 = arith.constant 0 : i32
    %c0_i32_1 = arith.constant 0 : i32
    return %c0_i32, %c0_i32_0 : i32, i32
  }
  func.func @transform_15(%arg0: i32) -> (i32, i32) {
    %c0_i32 = arith.constant 0 : i32
    %c0_i32_0 = arith.constant 0 : i32
    %c0_i32_1 = arith.constant 0 : i32
    return %c0_i32, %c0_i32_0 : i32, i32
  }
  func.func @transform_16(%arg0: i32) -> (i32, i32) {
    %c0_i32 = arith.constant 0 : i32
    %c0_i32_0 = arith.constant 0 : i32
    %c0_i32_1 = arith.constant 0 : i32
    return %c0_i32, %c0_i32_0 : i32, i32
  }
  func.func @transform_17(%arg0: i32) -> (i32, i32) {
    %c0_i32 = arith.constant 0 : i32
    %c0_i32_0 = arith.constant 0 : i32
    return %arg0, %c0_i32 : i32, i32
  }
}

module attributes {stable_mosaic.version = 11 : i64} {
  func.func @_output_block_kernel(%arg0: i32, %arg1: i32, %arg2: memref<1xi32, #tpu.memory_space<smem>>, %arg3: memref<1xi32, #tpu.memory_space<smem>>, %arg4: memref<1x64xi32, #tpu.memory_space<vmem>>, %arg5: memref<64x1xf32, #tpu.memory_space<vmem>>, %arg6: memref<64x32xf32, #tpu.memory_space<vmem>>, %arg7: memref<1x6xf32, #tpu.memory_space<vmem>>, %arg8: memref<6x32xbf16, #tpu.memory_space<vmem>>, %arg9: memref<32x32xbf16, #tpu.memory_space<vmem>>, %arg10: memref<1x32xf32, #tpu.memory_space<vmem>>, %arg11: memref<32x32xbf16, #tpu.memory_space<vmem>>, %arg12: memref<1x32xf32, #tpu.memory_space<vmem>>, %arg13: memref<32x32xbf16, #tpu.memory_space<vmem>>, %arg14: memref<1x32xf32, #tpu.memory_space<vmem>>, %arg15: memref<32x4xbf16, #tpu.memory_space<vmem>>, %arg16: memref<8x4xf32, #tpu.memory_space<vmem>>, %arg17: memref<8x32xf32, #tpu.memory_space<vmem>>) attributes {dimension_semantics = [#tpu.dimension_semantics<parallel>, #tpu.dimension_semantics<arbitrary>], iteration_bounds = array<i64: 2, 1>, scalar_prefetch = 2 : i64, scratch_operands = 1 : i64, tpu.core_type = #tpu.core_type<tc>, window_params = [{transform_indices = @transform_0, window_bounds = array<i64: 1, 64>}, {transform_indices = @transform_1, window_bounds = array<i64: 64, 1>}, {transform_indices = @transform_2, window_bounds = array<i64: 64, 32>}, {pipeline_mode = #tpu.pipeline_mode<synchronous>, transform_indices = @transform_3, window_bounds = array<i64: 1, 6>}, {pipeline_mode = #tpu.pipeline_mode<synchronous>, transform_indices = @transform_4, window_bounds = array<i64: 6, 32>}, {pipeline_mode = #tpu.pipeline_mode<synchronous>, transform_indices = @transform_5, window_bounds = array<i64: 32, 32>}, {pipeline_mode = #tpu.pipeline_mode<synchronous>, transform_indices = @transform_6, window_bounds = array<i64: 1, 32>}, {pipeline_mode = #tpu.pipeline_mode<synchronous>, transform_indices = @transform_7, window_bounds = array<i64: 32, 32>}, {pipeline_mode = #tpu.pipeline_mode<synchronous>, transform_indices = @transform_8, window_bounds = array<i64: 1, 32>}, {pipeline_mode = #tpu.pipeline_mode<synchronous>, transform_indices = @transform_9, window_bounds = array<i64: 32, 32>}, {pipeline_mode = #tpu.pipeline_mode<synchronous>, transform_indices = @transform_10, window_bounds = array<i64: 1, 32>}, {pipeline_mode = #tpu.pipeline_mode<synchronous>, transform_indices = @transform_11, window_bounds = array<i64: 32, 4>}, {transform_indices = @transform_12, window_bounds = array<i64: 8, 4>}]} {
    %c0_i32 = arith.constant 0 : i32
    %0 = arith.cmpi eq, %arg1, %c0_i32 : i32
    %1 = arith.extui %0 : i1 to i32
    %c0_i32_0 = arith.constant 0 : i32
    %2 = arith.cmpi ne, %1, %c0_i32_0 : i32
    scf.if %2 {
      %cst = arith.constant 0.000000e+00 : f32
      %17 = vector.broadcast %cst : f32 to vector<8x32xf32>
      %c0 = arith.constant 0 : index
      %c0_5 = arith.constant 0 : index
      %18 = vector.load %arg17[%c0, %c0_5] : memref<8x32xf32, #tpu.memory_space<vmem>>, vector<8x32xf32>
      tpu.vector_store %arg17[%c0, %c0_5], %17 {strides = array<i32>} : memref<8x32xf32, #tpu.memory_space<vmem>>, vector<8x32xf32>,
    } else {
    }
    %c8_i32 = arith.constant 8 : i32
    %3 = arith.muli %arg0, %c8_i32 : i32
    %4 = arith.index_cast %arg1 : i32 to index
    %5 = memref.load %arg3[%4] : memref<1xi32, #tpu.memory_space<smem>>
    %6 = arith.cmpi sge, %5, %3 : i32
    %7 = arith.index_cast %arg1 : i32 to index
    %8 = memref.load %arg2[%7] : memref<1xi32, #tpu.memory_space<smem>>
    %c8_i32_1 = arith.constant 8 : i32
    %9 = arith.addi %3, %c8_i32_1 : i32
    %10 = arith.cmpi slt, %8, %9 : i32
    %11 = arith.andi %6, %10 : i1
    %12 = arith.extui %11 : i1 to i32
    %c0_i32_2 = arith.constant 0 : i32
    %13 = arith.cmpi ne, %12, %c0_i32_2 : i32
    scf.if %13 {
      %c0 = arith.constant 0 : index
      %c0_5 = arith.constant 0 : index
      %17 = vector.load %arg5[%c0, %c0_5] : memref<64x1xf32, #tpu.memory_space<vmem>>, vector<64x1xf32>
      %cst = arith.constant 2.000000e-01 : f32
      %18 = vector.broadcast %cst : f32 to vector<64x1xf32>
      %19 = arith.mulf %17, %18 : vector<64x1xf32>
      %cst_6 = arith.constant 1.000000e+00 : f32
      %20 = vector.broadcast %cst_6 : f32 to vector<64x1xf32>
      %21 = arith.divf %20, %19 : vector<64x1xf32>
      %22 = arith.mulf %19, %19 : vector<64x1xf32>
      %23 = arith.mulf %22, %22 : vector<64x1xf32>
      %24 = arith.mulf %19, %23 : vector<64x1xf32>
      %cst_7 = arith.constant -2.800000e+01 : f32
      %25 = vector.broadcast %cst_7 : f32 to vector<64x1xf32>
      %26 = arith.mulf %25, %24 : vector<64x1xf32>
      %27 = arith.addf %21, %26 : vector<64x1xf32>
      %28 = arith.mulf %19, %19 : vector<64x1xf32>
      %29 = arith.mulf %28, %28 : vector<64x1xf32>
      %30 = arith.mulf %28, %29 : vector<64x1xf32>
      %cst_8 = arith.constant 4.800000e+01 : f32
      %31 = vector.broadcast %cst_8 : f32 to vector<64x1xf32>
      %32 = arith.mulf %31, %30 : vector<64x1xf32>
      %33 = arith.addf %27, %32 : vector<64x1xf32>
      %34 = arith.mulf %19, %19 : vector<64x1xf32>
      %35 = arith.mulf %19, %34 : vector<64x1xf32>
      %36 = arith.mulf %34, %34 : vector<64x1xf32>
      %37 = arith.mulf %35, %36 : vector<64x1xf32>
      %cst_9 = arith.constant -2.100000e+01 : f32
      %38 = vector.broadcast %cst_9 : f32 to vector<64x1xf32>
      %39 = arith.mulf %38, %37 : vector<64x1xf32>
      %40 = arith.addf %33, %39 : vector<64x1xf32>
      %cst_10 = arith.constant 1.000000e+00 : f32
      %41 = vector.broadcast %cst_10 : f32 to vector<64x1xf32>
      %42 = arith.cmpf olt, %19, %41 : vector<64x1xf32>
      %cst_11 = arith.constant 0.000000e+00 : f32
      %43 = vector.broadcast %cst_11 : f32 to vector<64x1xf32>
      %44 = arith.select %42, %40, %43 : vector<64x1xi1>, vector<64x1xf32>
      %c0_12 = arith.constant 0 : index
      %c0_13 = arith.constant 0 : index
      %45 = vector.load %arg7[%c0_12, %c0_13] : memref<1x6xf32, #tpu.memory_space<vmem>>, vector<1x6xf32>
      %46 = vector.broadcast %45 : vector<1x6xf32> to vector<64x6xf32>
      %47 = vector.broadcast %19 : vector<64x1xf32> to vector<64x6xf32>
      %48 = arith.mulf %46, %47 : vector<64x6xf32>
      %49 = math.sin %48 : vector<64x6xf32>
      %50 = vector.broadcast %44 : vector<64x1xf32> to vector<64x6xf32>
      %51 = arith.mulf %50, %49 : vector<64x6xf32>
      %52 = arith.truncf %51 : vector<64x6xf32> to vector<64x6xbf16>
      %c0_14 = arith.constant 0 : index
      %c0_15 = arith.constant 0 : index
      %53 = vector.load %arg8[%c0_14, %c0_15] : memref<6x32xbf16, #tpu.memory_space<vmem>>, vector<6x32xbf16>
      %cst_16 = arith.constant dense<0.000000e+00> : vector<64x32xf32>
      %54 = tpu.matmul %52, %53, %cst_16 {dimension_numbers = #tpu.dot_dimension_numbers<[1], [0], [0], [1], [0, 0, 1, 1], [], []>} : vector<64x6xbf16>, vector<6x32xbf16>, vector<64x32xf32> -> vector<64x32xf32>
      %c0_17 = arith.constant 0 : index
      %c0_18 = arith.constant 0 : index
      %55 = vector.load %arg6[%c0_17, %c0_18] : memref<64x32xf32, #tpu.memory_space<vmem>>, vector<64x32xf32>
      %56 = arith.mulf %54, %55 : vector<64x32xf32>
      %57 = tpu.iota {dimensions = array<i32: 0>} : vector<8x1xi32>
      %58 = vector.broadcast %3 : i32 to vector<8x1xi32>
      %59 = arith.addi %58, %57 : vector<8x1xi32>
      %c0_19 = arith.constant 0 : index
      %c0_20 = arith.constant 0 : index
      %60 = vector.load %arg4[%c0_19, %c0_20] : memref<1x64xi32, #tpu.memory_space<vmem>>, vector<1x64xi32>
      %61 = vector.broadcast %60 : vector<1x64xi32> to vector<8x64xi32>
      %62 = vector.broadcast %59 : vector<8x1xi32> to vector<8x64xi32>
      %63 = arith.cmpi eq, %61, %62 : vector<8x64xi32>
      %64 = arith.extui %63 : vector<8x64xi1> to vector<8x64xi32>
      %65 = arith.sitofp %64 : vector<8x64xi32> to vector<8x64xf32>
      %66 = arith.truncf %65 : vector<8x64xf32> to vector<8x64xbf16>
      %c0_21 = arith.constant 0 : index
      %c0_22 = arith.constant 0 : index
      %67 = vector.load %arg17[%c0_21, %c0_22] : memref<8x32xf32, #tpu.memory_space<vmem>>, vector<8x32xf32>
      %68 = arith.truncf %56 : vector<64x32xf32> to vector<64x32xbf16>
      %cst_23 = arith.constant dense<0.000000e+00> : vector<8x32xf32>
      %69 = tpu.matmul %66, %68, %cst_23 {dimension_numbers = #tpu.dot_dimension_numbers<[1], [0], [0], [1], [0, 0, 1, 1], [], []>} : vector<8x64xbf16>, vector<64x32xbf16>, vector<8x32xf32> -> vector<8x32xf32>
      %70 = arith.addf %67, %69 : vector<8x32xf32>
      %c0_24 = arith.constant 0 : index
      %c0_25 = arith.constant 0 : index
      %71 = vector.load %arg17[%c0_24, %c0_25] : memref<8x32xf32, #tpu.memory_space<vmem>>, vector<8x32xf32>
      tpu.vector_store %arg17[%c0_24, %c0_25], %70 {strides = array<i32>} : memref<8x32xf32, #tpu.memory_space<vmem>>, vector<8x32xf32>,
    } else {
    }
    %c0_i32_3 = arith.constant 0 : i32
    %14 = arith.cmpi eq, %arg1, %c0_i32_3 : i32
    %15 = arith.extui %14 : i1 to i32
    %c0_i32_4 = arith.constant 0 : i32
    %16 = arith.cmpi ne, %15, %c0_i32_4 : i32
    scf.if %16 {
      %c0 = arith.constant 0 : index
      %c0_5 = arith.constant 0 : index
      %17 = vector.load %arg17[%c0, %c0_5] : memref<8x32xf32, #tpu.memory_space<vmem>>, vector<8x32xf32>
      %18 = arith.truncf %17 : vector<8x32xf32> to vector<8x32xbf16>
      %c0_6 = arith.constant 0 : index
      %c0_7 = arith.constant 0 : index
      %19 = vector.load %arg9[%c0_6, %c0_7] : memref<32x32xbf16, #tpu.memory_space<vmem>>, vector<32x32xbf16>
      %cst = arith.constant dense<0.000000e+00> : vector<8x32xf32>
      %20 = tpu.matmul %18, %19, %cst {dimension_numbers = #tpu.dot_dimension_numbers<[1], [0], [0], [1], [0, 0, 1, 1], [], []>} : vector<8x32xbf16>, vector<32x32xbf16>, vector<8x32xf32> -> vector<8x32xf32>
      %c0_8 = arith.constant 0 : index
      %c0_9 = arith.constant 0 : index
      %21 = vector.load %arg10[%c0_8, %c0_9] : memref<1x32xf32, #tpu.memory_space<vmem>>, vector<1x32xf32>
      %22 = vector.broadcast %21 : vector<1x32xf32> to vector<8x32xf32>
      %23 = arith.addf %20, %22 : vector<8x32xf32>
      %24 = arith.negf %23 : vector<8x32xf32>
      %25 = math.exp %24 : vector<8x32xf32>
      %cst_10 = arith.constant 1.000000e+00 : f32
      %26 = vector.broadcast %cst_10 : f32 to vector<8x32xf32>
      %27 = arith.addf %26, %25 : vector<8x32xf32>
      %28 = arith.divf %26, %27 : vector<8x32xf32>
      %29 = arith.mulf %23, %28 : vector<8x32xf32>
      %30 = arith.truncf %29 : vector<8x32xf32> to vector<8x32xbf16>
      %c0_11 = arith.constant 0 : index
      %c0_12 = arith.constant 0 : index
      %31 = vector.load %arg11[%c0_11, %c0_12] : memref<32x32xbf16, #tpu.memory_space<vmem>>, vector<32x32xbf16>
      %cst_13 = arith.constant dense<0.000000e+00> : vector<8x32xf32>
      %32 = tpu.matmul %30, %31, %cst_13 {dimension_numbers = #tpu.dot_dimension_numbers<[1], [0], [0], [1], [0, 0, 1, 1], [], []>} : vector<8x32xbf16>, vector<32x32xbf16>, vector<8x32xf32> -> vector<8x32xf32>
      %c0_14 = arith.constant 0 : index
      %c0_15 = arith.constant 0 : index
      %33 = vector.load %arg12[%c0_14, %c0_15] : memref<1x32xf32, #tpu.memory_space<vmem>>, vector<1x32xf32>
      %34 = vector.broadcast %33 : vector<1x32xf32> to vector<8x32xf32>
      %35 = arith.addf %32, %34 : vector<8x32xf32>
      %36 = arith.negf %35 : vector<8x32xf32>
      %37 = math.exp %36 : vector<8x32xf32>
      %cst_16 = arith.constant 1.000000e+00 : f32
      %38 = vector.broadcast %cst_16 : f32 to vector<8x32xf32>
      %39 = arith.addf %38, %37 : vector<8x32xf32>
      %40 = arith.divf %38, %39 : vector<8x32xf32>
      %41 = arith.mulf %35, %40 : vector<8x32xf32>
      %42 = arith.truncf %41 : vector<8x32xf32> to vector<8x32xbf16>
      %c0_17 = arith.constant 0 : index
      %c0_18 = arith.constant 0 : index
      %43 = vector.load %arg13[%c0_17, %c0_18] : memref<32x32xbf16, #tpu.memory_space<vmem>>, vector<32x32xbf16>
      %cst_19 = arith.constant dense<0.000000e+00> : vector<8x32xf32>
      %44 = tpu.matmul %42, %43, %cst_19 {dimension_numbers = #tpu.dot_dimension_numbers<[1], [0], [0], [1], [0, 0, 1, 1], [], []>} : vector<8x32xbf16>, vector<32x32xbf16>, vector<8x32xf32> -> vector<8x32xf32>
      %c0_20 = arith.constant 0 : index
      %c0_21 = arith.constant 0 : index
      %45 = vector.load %arg14[%c0_20, %c0_21] : memref<1x32xf32, #tpu.memory_space<vmem>>, vector<1x32xf32>
      %46 = vector.broadcast %45 : vector<1x32xf32> to vector<8x32xf32>
      %47 = arith.addf %44, %46 : vector<8x32xf32>
      %48 = arith.negf %47 : vector<8x32xf32>
      %49 = math.exp %48 : vector<8x32xf32>
      %cst_22 = arith.constant 1.000000e+00 : f32
      %50 = vector.broadcast %cst_22 : f32 to vector<8x32xf32>
      %51 = arith.addf %50, %49 : vector<8x32xf32>
      %52 = arith.divf %50, %51 : vector<8x32xf32>
      %53 = arith.mulf %47, %52 : vector<8x32xf32>
      %54 = arith.truncf %53 : vector<8x32xf32> to vector<8x32xbf16>
      %c0_23 = arith.constant 0 : index
      %c0_24 = arith.constant 0 : index
      %55 = vector.load %arg15[%c0_23, %c0_24] : memref<32x4xbf16, #tpu.memory_space<vmem>>, vector<32x4xbf16>
      %cst_25 = arith.constant dense<0.000000e+00> : vector<8x4xf32>
      %56 = tpu.matmul %54, %55, %cst_25 {dimension_numbers = #tpu.dot_dimension_numbers<[1], [0], [0], [1], [0, 0, 1, 1], [], []>} : vector<8x32xbf16>, vector<32x4xbf16>, vector<8x4xf32> -> vector<8x4xf32>
      %c0_26 = arith.constant 0 : index
      %c0_27 = arith.constant 0 : index
      %57 = vector.load %arg16[%c0_26, %c0_27] : memref<8x4xf32, #tpu.memory_space<vmem>>, vector<8x4xf32>
      tpu.vector_store %arg16[%c0_26, %c0_27], %56 {strides = array<i32>} : memref<8x4xf32, #tpu.memory_space<vmem>>, vector<8x4xf32>,
    } else {
    }
    return
  }
  func.func @transform_0(%arg0: i32, %arg1: i32, %arg2: memref<1xi32, #tpu.memory_space<smem>>, %arg3: memref<1xi32, #tpu.memory_space<smem>>) -> (i32, i32) {
    %c0_i32 = arith.constant 0 : i32
    %c0_i32_0 = arith.constant 0 : i32
    return %c0_i32, %arg1 : i32, i32
  }
  func.func @transform_1(%arg0: i32, %arg1: i32, %arg2: memref<1xi32, #tpu.memory_space<smem>>, %arg3: memref<1xi32, #tpu.memory_space<smem>>) -> (i32, i32) {
    %c0_i32 = arith.constant 0 : i32
    %c0_i32_0 = arith.constant 0 : i32
    return %arg1, %c0_i32 : i32, i32
  }
  func.func @transform_2(%arg0: i32, %arg1: i32, %arg2: memref<1xi32, #tpu.memory_space<smem>>, %arg3: memref<1xi32, #tpu.memory_space<smem>>) -> (i32, i32) {
    %c0_i32 = arith.constant 0 : i32
    %c0_i32_0 = arith.constant 0 : i32
    return %arg1, %c0_i32 : i32, i32
  }
  func.func @transform_3(%arg0: i32, %arg1: i32, %arg2: memref<1xi32, #tpu.memory_space<smem>>, %arg3: memref<1xi32, #tpu.memory_space<smem>>) -> (i32, i32) {
    %c0_i32 = arith.constant 0 : i32
    %c0_i32_0 = arith.constant 0 : i32
    %c0_i32_1 = arith.constant 0 : i32
    return %c0_i32, %c0_i32_0 : i32, i32
  }
  func.func @transform_4(%arg0: i32, %arg1: i32, %arg2: memref<1xi32, #tpu.memory_space<smem>>, %arg3: memref<1xi32, #tpu.memory_space<smem>>) -> (i32, i32) {
    %c0_i32 = arith.constant 0 : i32
    %c0_i32_0 = arith.constant 0 : i32
    %c0_i32_1 = arith.constant 0 : i32
    return %c0_i32, %c0_i32_0 : i32, i32
  }
  func.func @transform_5(%arg0: i32, %arg1: i32, %arg2: memref<1xi32, #tpu.memory_space<smem>>, %arg3: memref<1xi32, #tpu.memory_space<smem>>) -> (i32, i32) {
    %c0_i32 = arith.constant 0 : i32
    %c0_i32_0 = arith.constant 0 : i32
    %c0_i32_1 = arith.constant 0 : i32
    return %c0_i32, %c0_i32_0 : i32, i32
  }
  func.func @transform_6(%arg0: i32, %arg1: i32, %arg2: memref<1xi32, #tpu.memory_space<smem>>, %arg3: memref<1xi32, #tpu.memory_space<smem>>) -> (i32, i32) {
    %c0_i32 = arith.constant 0 : i32
    %c0_i32_0 = arith.constant 0 : i32
    %c0_i32_1 = arith.constant 0 : i32
    return %c0_i32, %c0_i32_0 : i32, i32
  }
  func.func @transform_7(%arg0: i32, %arg1: i32, %arg2: memref<1xi32, #tpu.memory_space<smem>>, %arg3: memref<1xi32, #tpu.memory_space<smem>>) -> (i32, i32) {
    %c0_i32 = arith.constant 0 : i32
    %c0_i32_0 = arith.constant 0 : i32
    %c0_i32_1 = arith.constant 0 : i32
    return %c0_i32, %c0_i32_0 : i32, i32
  }
  func.func @transform_8(%arg0: i32, %arg1: i32, %arg2: memref<1xi32, #tpu.memory_space<smem>>, %arg3: memref<1xi32, #tpu.memory_space<smem>>) -> (i32, i32) {
    %c0_i32 = arith.constant 0 : i32
    %c0_i32_0 = arith.constant 0 : i32
    %c0_i32_1 = arith.constant 0 : i32
    return %c0_i32, %c0_i32_0 : i32, i32
  }
  func.func @transform_9(%arg0: i32, %arg1: i32, %arg2: memref<1xi32, #tpu.memory_space<smem>>, %arg3: memref<1xi32, #tpu.memory_space<smem>>) -> (i32, i32) {
    %c0_i32 = arith.constant 0 : i32
    %c0_i32_0 = arith.constant 0 : i32
    %c0_i32_1 = arith.constant 0 : i32
    return %c0_i32, %c0_i32_0 : i32, i32
  }
  func.func @transform_10(%arg0: i32, %arg1: i32, %arg2: memref<1xi32, #tpu.memory_space<smem>>, %arg3: memref<1xi32, #tpu.memory_space<smem>>) -> (i32, i32) {
    %c0_i32 = arith.constant 0 : i32
    %c0_i32_0 = arith.constant 0 : i32
    %c0_i32_1 = arith.constant 0 : i32
    return %c0_i32, %c0_i32_0 : i32, i32
  }
  func.func @transform_11(%arg0: i32, %arg1: i32, %arg2: memref<1xi32, #tpu.memory_space<smem>>, %arg3: memref<1xi32, #tpu.memory_space<smem>>) -> (i32, i32) {
    %c0_i32 = arith.constant 0 : i32
    %c0_i32_0 = arith.constant 0 : i32
    %c0_i32_1 = arith.constant 0 : i32
    return %c0_i32, %c0_i32_0 : i32, i32
  }
  func.func @transform_12(%arg0: i32, %arg1: i32, %arg2: memref<1xi32, #tpu.memory_space<smem>>, %arg3: memref<1xi32, #tpu.memory_space<smem>>) -> (i32, i32) {
    %c0_i32 = arith.constant 0 : i32
    %c0_i32_0 = arith.constant 0 : i32
    return %arg0, %c0_i32 : i32, i32
  }
}

module attributes {stable_mosaic.version = 11 : i64} {
  func.func @_segment_sum_kernel(%arg0: i32, %arg1: i32, %arg2: memref<1x16xi32, #tpu.memory_space<vmem>>, %arg3: memref<16x4xf32, #tpu.memory_space<vmem>>, %arg4: memref<8x4xf32, #tpu.memory_space<vmem>>) attributes {dimension_semantics = [#tpu.dimension_semantics<parallel>, #tpu.dimension_semantics<arbitrary>], iteration_bounds = array<i64: 1, 1>, scalar_prefetch = 0 : i64, scratch_operands = 0 : i64, tpu.core_type = #tpu.core_type<tc>, window_params = [{transform_indices = @transform_0, window_bounds = array<i64: 1, 16>}, {transform_indices = @transform_1, window_bounds = array<i64: 16, 4>}, {transform_indices = @transform_2, window_bounds = array<i64: 8, 4>}]} {
    %c0_i32 = arith.constant 0 : i32
    %0 = arith.cmpi eq, %arg1, %c0_i32 : i32
    %1 = arith.extui %0 : i1 to i32
    %c0_i32_0 = arith.constant 0 : i32
    %2 = arith.cmpi ne, %1, %c0_i32_0 : i32
    scf.if %2 {
      %cst_8 = arith.constant 0.000000e+00 : f32
      %20 = vector.broadcast %cst_8 : f32 to vector<8x4xf32>
      %c0_9 = arith.constant 0 : index
      %c0_10 = arith.constant 0 : index
      %21 = vector.load %arg4[%c0_9, %c0_10] : memref<8x4xf32, #tpu.memory_space<vmem>>, vector<8x4xf32>
      tpu.vector_store %arg4[%c0_9, %c0_10], %20 {strides = array<i32>} : memref<8x4xf32, #tpu.memory_space<vmem>>, vector<8x4xf32>,
    } else {
    }
    %c8_i32 = arith.constant 8 : i32
    %3 = arith.muli %arg0, %c8_i32 : i32
    %4 = tpu.iota {dimensions = array<i32: 0>} : vector<8x1xi32>
    %5 = vector.broadcast %3 : i32 to vector<8x1xi32>
    %6 = arith.addi %5, %4 : vector<8x1xi32>
    %c0 = arith.constant 0 : index
    %c0_1 = arith.constant 0 : index
    %7 = vector.load %arg2[%c0, %c0_1] : memref<1x16xi32, #tpu.memory_space<vmem>>, vector<1x16xi32>
    %8 = vector.broadcast %7 : vector<1x16xi32> to vector<8x16xi32>
    %9 = vector.broadcast %6 : vector<8x1xi32> to vector<8x16xi32>
    %10 = arith.cmpi eq, %8, %9 : vector<8x16xi32>
    %11 = arith.extui %10 : vector<8x16xi1> to vector<8x16xi32>
    %12 = arith.sitofp %11 : vector<8x16xi32> to vector<8x16xf32>
    %13 = arith.truncf %12 : vector<8x16xf32> to vector<8x16xbf16>
    %c0_2 = arith.constant 0 : index
    %c0_3 = arith.constant 0 : index
    %14 = vector.load %arg4[%c0_2, %c0_3] : memref<8x4xf32, #tpu.memory_space<vmem>>, vector<8x4xf32>
    %c0_4 = arith.constant 0 : index
    %c0_5 = arith.constant 0 : index
    %15 = vector.load %arg3[%c0_4, %c0_5] : memref<16x4xf32, #tpu.memory_space<vmem>>, vector<16x4xf32>
    %16 = arith.truncf %15 : vector<16x4xf32> to vector<16x4xbf16>
    %cst = arith.constant dense<0.000000e+00> : vector<8x4xf32>
    %17 = tpu.matmul %13, %16, %cst {dimension_numbers = #tpu.dot_dimension_numbers<[1], [0], [0], [1], [0, 0, 1, 1], [], []>} : vector<8x16xbf16>, vector<16x4xbf16>, vector<8x4xf32> -> vector<8x4xf32>
    %18 = arith.addf %14, %17 : vector<8x4xf32>
    %c0_6 = arith.constant 0 : index
    %c0_7 = arith.constant 0 : index
    %19 = vector.load %arg4[%c0_6, %c0_7] : memref<8x4xf32, #tpu.memory_space<vmem>>, vector<8x4xf32>
    tpu.vector_store %arg4[%c0_6, %c0_7], %18 {strides = array<i32>} : memref<8x4xf32, #tpu.memory_space<vmem>>, vector<8x4xf32>,
    return
  }
  func.func @transform_0(%arg0: i32, %arg1: i32) -> (i32, i32) {
    %c0_i32 = arith.constant 0 : i32
    %c0_i32_0 = arith.constant 0 : i32
    return %c0_i32, %arg1 : i32, i32
  }
  func.func @transform_1(%arg0: i32, %arg1: i32) -> (i32, i32) {
    %c0_i32 = arith.constant 0 : i32
    %c0_i32_0 = arith.constant 0 : i32
    return %arg1, %c0_i32 : i32, i32
  }
  func.func @transform_2(%arg0: i32, %arg1: i32) -> (i32, i32) {
    %c0_i32 = arith.constant 0 : i32
    %c0_i32_0 = arith.constant 0 : i32
    return %arg0, %c0_i32 : i32, i32
  }
}

</mosaic_0001>

<llo_original>
// kernel: mul.33
$region0: #{mul.33}
  #allocation0 [shape = 's32[1]{0}', space=sflag, size = 0x4, scoped, tag = 'scoped memory for mul.33']
  %s0 = inlined_call_operand.vmem [shape: f32[240,18], index: 0, kind: input, shape index: {}]
  %s1 = inlined_call_operand.vmem [shape: f32[240,18], index: 1, kind: input, shape index: {}]
  %s2 = inlined_call_operand.vmem [shape: f32[240,18], index: 2, kind: output, shape index: {}]
  %v3 = vld [vmem:[%s0] sm:$0xff]
  %v4 = vld [vmem:[%s1] sm:$0xff]
  %5 = xla_tuple %v3, %v4
  %6 = xla_tuple %5
  %v7 = vmul.f32 %v3, %v4
  %8 = xla_tuple %v7
  %9 = vst [vmem:[%s2] sm:$0xff] %v7
  %s10 = scalar_lea.vmem %s0, 8
  %v11 = vld [vmem:[%s10] sm:$0xff]
  %s12 = scalar_lea.vmem %s1, 8
  %v13 = vld [vmem:[%s12] sm:$0xff]
  %14 = xla_tuple %v11, %v13
  %15 = xla_tuple %14
  %v16 = vmul.f32 %v11, %v13
  %17 = xla_tuple %v16
  %s18 = scalar_lea.vmem %s2, 8
  %19 = vst [vmem:[%s18] sm:$0xff] %v16
  %s20 = scalar_lea.vmem %s0, 16
  %v21 = vld [vmem:[%s20] sm:$0xff]
  %s22 = scalar_lea.vmem %s1, 16
  %v23 = vld [vmem:[%s22] sm:$0xff]
  %24 = xla_tuple %v21, %v23
  %25 = xla_tuple %24
  %v26 = vmul.f32 %v21, %v23
  %27 = xla_tuple %v26
  %s28 = scalar_lea.vmem %s2, 16
  %29 = vst [vmem:[%s28] sm:$0xff] %v26
  %s30 = scalar_lea.vmem %s0, 24
  %v31 = vld [vmem:[%s30] sm:$0xff]
  %s32 = scalar_lea.vmem %s1, 24
  %v33 = vld [vmem:[%s32] sm:$0xff]
  %34 = xla_tuple %v31, %v33
  %35 = xla_tuple %34
  %v36 = vmul.f32 %v31, %v33
  %37 = xla_tuple %v36
  %s38 = scalar_lea.vmem %s2, 24
  %39 = vst [vmem:[%s38] sm:$0xff] %v36
  %s40 = scalar_lea.vmem %s0, 32
  %v41 = vld [vmem:[%s40] sm:$0xff]
  %s42 = scalar_lea.vmem %s1, 32
  %v43 = vld [vmem:[%s42] sm:$0xff]
  %44 = xla_tuple %v41, %v43
  %45 = xla_tuple %44
  %v46 = vmul.f32 %v41, %v43
  %47 = xla_tuple %v46
  %s48 = scalar_lea.vmem %s2, 32
  %49 = vst [vmem:[%s48] sm:$0xff] %v46
  %s50 = scalar_lea.vmem %s0, 40
  %v51 = vld [vmem:[%s50] sm:$0xff]
  %s52 = scalar_lea.vmem %s1, 40
  %v53 = vld [vmem:[%s52] sm:$0xff]
  %54 = xla_tuple %v51, %v53
  %55 = xla_tuple %54
  %v56 = vmul.f32 %v51, %v53
  %57 = xla_tuple %v56
  %s58 = scalar_lea.vmem %s2, 40
  %59 = vst [vmem:[%s58] sm:$0xff] %v56
  %s60 = scalar_lea.vmem %s0, 48
  %v61 = vld [vmem:[%s60] sm:$0xff]
  %s62 = scalar_lea.vmem %s1, 48
  %v63 = vld [vmem:[%s62] sm:$0xff]
  %64 = xla_tuple %v61, %v63
  %65 = xla_tuple %64
  %v66 = vmul.f32 %v61, %v63
  %67 = xla_tuple %v66
  %s68 = scalar_lea.vmem %s2, 48
  %69 = vst [vmem:[%s68] sm:$0xff] %v66
  %s70 = scalar_lea.vmem %s0, 56
  %v71 = vld [vmem:[%s70] sm:$0xff]
  %s72 = scalar_lea.vmem %s1, 56
  %v73 = vld [vmem:[%s72] sm:$0xff]
  %74 = xla_tuple %v71, %v73
  %75 = xla_tuple %74
  %v76 = vmul.f32 %v71, %v73
  %77 = xla_tuple %v76
  %s78 = scalar_lea.vmem %s2, 56
  %79 = vst [vmem:[%s78] sm:$0xff] %v76
  %s80 = scalar_lea.vmem %s0, 64
  %v81 = vld [vmem:[%s80] sm:$0xff]
  %s82 = scalar_lea.vmem %s1, 64
  %v83 = vld [vmem:[%s82] sm:$0xff]
  %84 = xla_tuple %v81, %v83
  %85 = xla_tuple %84
  %v86 = vmul.f32 %v81, %v83
  %87 = xla_tuple %v86
  %s88 = scalar_lea.vmem %s2, 64
  %89 = vst [vmem:[%s88] sm:$0xff] %v86
  %s90 = scalar_lea.vmem %s0, 72
  %v91 = vld [vmem:[%s90] sm:$0xff]
  %s92 = scalar_lea.vmem %s1, 72
  %v93 = vld [vmem:[%s92] sm:$0xff]
  %94 = xla_tuple %v91, %v93
  %95 = xla_tuple %94
  %v96 = vmul.f32 %v91, %v93
  %97 = xla_tuple %v96
  %s98 = scalar_lea.vmem %s2, 72
  %99 = vst [vmem:[%s98] sm:$0xff] %v96
  %s100 = scalar_lea.vmem %s0, 80
  %v101 = vld [vmem:[%s100] sm:$0xff]
  %s102 = scalar_lea.vmem %s1, 80
  %v103 = vld [vmem:[%s102] sm:$0xff]
  %104 = xla_tuple %v101, %v103
  %105 = xla_tuple %104
  %v106 = vmul.f32 %v101, %v103
  %107 = xla_tuple %v106
  %s108 = scalar_lea.vmem %s2, 80
  %109 = vst [vmem:[%s108] sm:$0xff] %v106
  %s110 = scalar_lea.vmem %s0, 88
  %v111 = vld [vmem:[%s110] sm:$0xff]
  %s112 = scalar_lea.vmem %s1, 88
  %v113 = vld [vmem:[%s112] sm:$0xff]
  %114 = xla_tuple %v111, %v113
  %115 = xla_tuple %114
  %v116 = vmul.f32 %v111, %v113
  %117 = xla_tuple %v116
  %s118 = scalar_lea.vmem %s2, 88
  %119 = vst [vmem:[%s118] sm:$0xff] %v116
  %s120 = scalar_lea.vmem %s0, 96
  %v121 = vld [vmem:[%s120] sm:$0xff]
  %s122 = scalar_lea.vmem %s1, 96
  %v123 = vld [vmem:[%s122] sm:$0xff]
  %124 = xla_tuple %v121, %v123
  %125 = xla_tuple %124
  %v126 = vmul.f32 %v121, %v123
  %127 = xla_tuple %v126
  %s128 = scalar_lea.vmem %s2, 96
  %129 = vst [vmem:[%s128] sm:$0xff] %v126
  %s130 = scalar_lea.vmem %s0, 104
  %v131 = vld [vmem:[%s130] sm:$0xff]
  %s132 = scalar_lea.vmem %s1, 104
  %v133 = vld [vmem:[%s132] sm:$0xff]
  %134 = xla_tuple %v131, %v133
  %135 = xla_tuple %134
  %v136 = vmul.f32 %v131, %v133
  %137 = xla_tuple %v136
  %s138 = scalar_lea.vmem %s2, 104
  %139 = vst [vmem:[%s138] sm:$0xff] %v136
  %s140 = scalar_lea.vmem %s0, 112
  %v141 = vld [vmem:[%s140] sm:$0xff]
  %s142 = scalar_lea.vmem %s1, 112
  %v143 = vld [vmem:[%s142] sm:$0xff]
  %144 = xla_tuple %v141, %v143
  %145 = xla_tuple %144
  %v146 = vmul.f32 %v141, %v143
  %147 = xla_tuple %v146
  %s148 = scalar_lea.vmem %s2, 112
  %149 = vst [vmem:[%s148] sm:$0xff] %v146
  %s150 = scalar_lea.vmem %s0, 120
  %v151 = vld [vmem:[%s150] sm:$0xff]
  %s152 = scalar_lea.vmem %s1, 120
  %v153 = vld [vmem:[%s152] sm:$0xff]
  %154 = xla_tuple %v151, %v153
  %155 = xla_tuple %154
  %v156 = vmul.f32 %v151, %v153
  %157 = xla_tuple %v156
  %s158 = scalar_lea.vmem %s2, 120
  %159 = vst [vmem:[%s158] sm:$0xff] %v156
  %s160 = scalar_lea.vmem %s0, 128
  %v161 = vld [vmem:[%s160] sm:$0xff]
  %s162 = scalar_lea.vmem %s1, 128
  %v163 = vld [vmem:[%s162] sm:$0xff]
  %164 = xla_tuple %v161, %v163
  %165 = xla_tuple %164
  %v166 = vmul.f32 %v161, %v163
  %167 = xla_tuple %v166
  %s168 = scalar_lea.vmem %s2, 128
  %169 = vst [vmem:[%s168] sm:$0xff] %v166
  %s170 = scalar_lea.vmem %s0, 136
  %v171 = vld [vmem:[%s170] sm:$0xff]
  %s172 = scalar_lea.vmem %s1, 136
  %v173 = vld [vmem:[%s172] sm:$0xff]
  %174 = xla_tuple %v171, %v173
  %175 = xla_tuple %174
  %v176 = vmul.f32 %v171, %v173
  %177 = xla_tuple %v176
  %s178 = scalar_lea.vmem %s2, 136
  %179 = vst [vmem:[%s178] sm:$0xff] %v176
  %s180 = scalar_lea.vmem %s0, 144
  %v181 = vld [vmem:[%s180] sm:$0xff]
  %s182 = scalar_lea.vmem %s1, 144
  %v183 = vld [vmem:[%s182] sm:$0xff]
  %184 = xla_tuple %v181, %v183
  %185 = xla_tuple %184
  %v186 = vmul.f32 %v181, %v183
  %187 = xla_tuple %v186
  %s188 = scalar_lea.vmem %s2, 144
  %189 = vst [vmem:[%s188] sm:$0xff] %v186
  %s190 = scalar_lea.vmem %s0, 152
  %v191 = vld [vmem:[%s190] sm:$0xff]
  %s192 = scalar_lea.vmem %s1, 152
  %v193 = vld [vmem:[%s192] sm:$0xff]
  %194 = xla_tuple %v191, %v193
  %195 = xla_tuple %194
  %v196 = vmul.f32 %v191, %v193
  %197 = xla_tuple %v196
  %s198 = scalar_lea.vmem %s2, 152
  %199 = vst [vmem:[%s198] sm:$0xff] %v196
  %s200 = scalar_lea.vmem %s0, 160
  %v201 = vld [vmem:[%s200] sm:$0xff]
  %s202 = scalar_lea.vmem %s1, 160
  %v203 = vld [vmem:[%s202] sm:$0xff]
  %204 = xla_tuple %v201, %v203
  %205 = xla_tuple %204
  %v206 = vmul.f32 %v201, %v203
  %207 = xla_tuple %v206
  %s208 = scalar_lea.vmem %s2, 160
  %209 = vst [vmem:[%s208] sm:$0xff] %v206
  %s210 = scalar_lea.vmem %s0, 168
  %v211 = vld [vmem:[%s210] sm:$0xff]
  %s212 = scalar_lea.vmem %s1, 168
  %v213 = vld [vmem:[%s212] sm:$0xff]
  %214 = xla_tuple %v211, %v213
  %215 = xla_tuple %214
  %v216 = vmul.f32 %v211, %v213
  %217 = xla_tuple %v216
  %s218 = scalar_lea.vmem %s2, 168
  %219 = vst [vmem:[%s218] sm:$0xff] %v216
  %s220 = scalar_lea.vmem %s0, 176
  %v221 = vld [vmem:[%s220] sm:$0xff]
  %s222 = scalar_lea.vmem %s1, 176
  %v223 = vld [vmem:[%s222] sm:$0xff]
  %224 = xla_tuple %v221, %v223
  %225 = xla_tuple %224
  %v226 = vmul.f32 %v221, %v223
  %227 = xla_tuple %v226
  %s228 = scalar_lea.vmem %s2, 176
  %229 = vst [vmem:[%s228] sm:$0xff] %v226
  %s230 = scalar_lea.vmem %s0, 184
  %v231 = vld [vmem:[%s230] sm:$0xff]
  %s232 = scalar_lea.vmem %s1, 184
  %v233 = vld [vmem:[%s232] sm:$0xff]
  %234 = xla_tuple %v231, %v233
  %235 = xla_tuple %234
  %v236 = vmul.f32 %v231, %v233
  %237 = xla_tuple %v236
  %s238 = scalar_lea.vmem %s2, 184
  %239 = vst [vmem:[%s238] sm:$0xff] %v236
  %s240 = scalar_lea.vmem %s0, 192
  %v241 = vld [vmem:[%s240] sm:$0xff]
  %s242 = scalar_lea.vmem %s1, 192
  %v243 = vld [vmem:[%s242] sm:$0xff]
  %244 = xla_tuple %v241, %v243
  %245 = xla_tuple %244
  %v246 = vmul.f32 %v241, %v243
  %247 = xla_tuple %v246
  %s248 = scalar_lea.vmem %s2, 192
  %249 = vst [vmem:[%s248] sm:$0xff] %v246
  %s250 = scalar_lea.vmem %s0, 200
  %v251 = vld [vmem:[%s250] sm:$0xff]
  %s252 = scalar_lea.vmem %s1, 200
  %v253 = vld [vmem:[%s252] sm:$0xff]
  %254 = xla_tuple %v251, %v253
  %255 = xla_tuple %254
  %v256 = vmul.f32 %v251, %v253
  %257 = xla_tuple %v256
  %s258 = scalar_lea.vmem %s2, 200
  %259 = vst [vmem:[%s258] sm:$0xff] %v256
  %s260 = scalar_lea.vmem %s0, 208
  %v261 = vld [vmem:[%s260] sm:$0xff]
  %s262 = scalar_lea.vmem %s1, 208
  %v263 = vld [vmem:[%s262] sm:$0xff]
  %264 = xla_tuple %v261, %v263
  %265 = xla_tuple %264
  %v266 = vmul.f32 %v261, %v263
  %267 = xla_tuple %v266
  %s268 = scalar_lea.vmem %s2, 208
  %269 = vst [vmem:[%s268] sm:$0xff] %v266
  %s270 = scalar_lea.vmem %s0, 216
  %v271 = vld [vmem:[%s270] sm:$0xff]
  %s272 = scalar_lea.vmem %s1, 216
  %v273 = vld [vmem:[%s272] sm:$0xff]
  %274 = xla_tuple %v271, %v273
  %275 = xla_tuple %274
  %v276 = vmul.f32 %v271, %v273
  %277 = xla_tuple %v276
  %s278 = scalar_lea.vmem %s2, 216
  %279 = vst [vmem:[%s278] sm:$0xff] %v276
  %s280 = scalar_lea.vmem %s0, 224
  %v281 = vld [vmem:[%s280] sm:$0xff]
  %s282 = scalar_lea.vmem %s1, 224
  %v283 = vld [vmem:[%s282] sm:$0xff]
  %284 = xla_tuple %v281, %v283
  %285 = xla_tuple %284
  %v286 = vmul.f32 %v281, %v283
  %287 = xla_tuple %v286
  %s288 = scalar_lea.vmem %s2, 224
  %289 = vst [vmem:[%s288] sm:$0xff] %v286
  %s290 = scalar_lea.vmem %s0, 232
  %v291 = vld [vmem:[%s290] sm:$0xff]
  %s292 = scalar_lea.vmem %s1, 232
  %v293 = vld [vmem:[%s292] sm:$0xff]
  %294 = xla_tuple %v291, %v293
  %295 = xla_tuple %294
  %v296 = vmul.f32 %v291, %v293
  %297 = xla_tuple %v296
  %s298 = scalar_lea.vmem %s2, 232
  %299 = vst [vmem:[%s298] sm:$0xff] %v296

// kernel: _lambda_.13
$region0: #{_lambda_.13}
  #allocation0 [shape = 'u32[]', space=smem, size = 0x4, offset = 0x4, fixed_abs, tag = 'smem constant byte address 0x4 - core index']
  #allocation1 [shape = 'u32[72,128]{1,0:T(1,128)}', space=vmem, size = 0x9000, scoped, tag = 'internal scratch']
  %s0 = inlined_call_operand.vmem [shape: f32[64,32], index: 0, kind: input, shape index: {}]
  %s1 = inlined_call_operand.vmem [shape: f32[64,1], index: 1, kind: input, shape index: {}]
  %s2 = inlined_call_operand.vmem [shape: f32[1,6], index: 2, kind: input, shape index: {}]
  %s3 = inlined_call_operand.vmem [shape: bf16[32,64], index: 3, kind: input, shape index: {}]
  %s4 = inlined_call_operand.vmem [shape: f32[1,64], index: 4, kind: input, shape index: {}]
  %s5 = inlined_call_operand.vmem [shape: bf16[6,64], index: 5, kind: input, shape index: {}]
  %s6 = inlined_call_operand.vmem [shape: f32[1,64], index: 6, kind: input, shape index: {}]
  %s7 = inlined_call_operand.vmem [shape: f32[64,64], index: 7, kind: output, shape index: {}]
  %s8 = sld [smem:[#allocation0]]
  $region61: #{_lambda_.13} parent=0
    _
  %s10 = ssub.s32 1, %s8
  %s11 = scalar_select 0, %s10, %s8
  loop: start=0, step=1, limit=4
  $region2: #{_lambda_.13} parent=0 // loop_pre_header
    _
  $region3: #{_lambda_.13} parent=0 // loop_header
    %s13 = sphi 0, %s17
    %p14 = scmp.ge.s32.totalorder %s13, 4
    %s23 = sphi 0, %s25
    %s26 = sphi 0, %s23
    %s27 = sphi 0, %s26
    %s43 = sphi 0, %s27
    %s49 = sphi 0, %s51
    %s52 = sphi 0, %s49
    %s53 = sphi 0, %s52
    %s69 = sphi 0, %s53
    %s73 = sphi 0, %s73
    %s75 = sphi 0, %s73
    %s76 = sphi 0, %s75
    %s90 = sphi 0, %s76
    %s94 = sphi 0, %s94
    %s96 = sphi 0, %s94
    %s97 = sphi 0, %s96
    %s111 = sphi 0, %s97
    %s115 = sphi 0, %s115
    %s117 = sphi 0, %s115
    %s118 = sphi 0, %s117
    %s132 = sphi 0, %s118
    %s136 = sphi 0, %s136
    %s138 = sphi 0, %s136
    %s139 = sphi 0, %s138
    %s153 = sphi 0, %s139
    %s157 = sphi 0, %s157
    %s159 = sphi 0, %s157
    %s160 = sphi 0, %s159
    %s174 = sphi 0, %s160
    %s180 = sphi 0, %s182
    %s183 = sphi 0, %s180
    %s184 = sphi 0, %s183
    %s200 = sphi 0, %s184
  $region4: #{_lambda_.13} parent=0 // loop_header_branch
    %16 = sbr.rel (%p14) target = $region8
  $region5: #{_lambda_.13} parent=0 // loop_body
    %s18 = ssub.s32 %s13, 1
    %s19 = ssub.s32 %s13, 2
    %s20 = sadd.s32 %s13, 1
    %s21 = ssub.s32 %s13, %s20
    %p22 = scmp.eq.s32.totalorder %s21, 0
    %s24 = sadd.s32 %s23, 1
    %s25 = scalar_select %p22, %s23, %s24
    %p28 = pneg %p22
    %p29 = scmp.eq.s32.totalorder %s13, 1
    %p30 = por %p28, %p29
    %p31 = scmp.ne.s32.totalorder %s23, %s26
    %p32 = scmp.eq.s32.totalorder %s13, 0
    %p33 = por %p31, %p32
    %p34 = scmp.ne.s32.totalorder %s23, %s26
    %p35 = scmp.eq.s32.totalorder %s18, 1
    %p36 = por %p34, %p35
    %p37 = scmp.ne.s32.totalorder %s26, %s27
    %p38 = scmp.eq.s32.totalorder %s18, 0
    %p39 = por %p37, %p38
    %p40 = scmp.ne.s32.totalorder %s26, %s27
    %p41 = scmp.eq.s32.totalorder %s19, 1
    %p42 = por %p40, %p41
    %p44 = scmp.ne.s32.totalorder %s27, %s43
    %p45 = scmp.eq.s32.totalorder %s19, 0
    %p46 = por %p44, %p45
    %s47 = ssub.s32 %s13, %s20
    %p48 = scmp.eq.s32.totalorder %s47, 0
    %s50 = sadd.s32 %s49, 1
    %s51 = scalar_select %p48, %s49, %s50
    %p54 = pneg %p48
    %p55 = scmp.eq.s32.totalorder %s13, 1
    %p56 = por %p54, %p55
    %p57 = scmp.ne.s32.totalorder %s49, %s52
    %p58 = scmp.eq.s32.totalorder %s13, 0
    %p59 = por %p57, %p58
    %p60 = scmp.ne.s32.totalorder %s49, %s52
    %p61 = scmp.eq.s32.totalorder %s18, 1
    %p62 = por %p60, %p61
    %p63 = scmp.ne.s32.totalorder %s52, %s53
    %p64 = scmp.eq.s32.totalorder %s18, 0
    %p65 = por %p63, %p64
    %p66 = scmp.ne.s32.totalorder %s52, %s53
    %p67 = scmp.eq.s32.totalorder %s19, 1
    %p68 = por %p66, %p67
    %p70 = scmp.ne.s32.totalorder %s53, %s69
    %p71 = scmp.eq.s32.totalorder %s19, 0
    %p72 = por %p70, %p71
    %s74 = sadd.s32 %s73, 1
    %p77 = scmp.eq.s32.totalorder %s13, 1
    %p78 = scmp.ne.s32.totalorder %s73, %s75
    %p79 = scmp.eq.s32.totalorder %s13, 0
    %p80 = por %p78, %p79
    %p81 = scmp.ne.s32.totalorder %s73, %s75
    %p82 = scmp.eq.s32.totalorder %s18, 1
    %p83 = por %p81, %p82
    %p84 = scmp.ne.s32.totalorder %s75, %s76
    %p85 = scmp.eq.s32.totalorder %s18, 0
    %p86 = por %p84, %p85
    %p87 = scmp.ne.s32.totalorder %s75, %s76
    %p88 = scmp.eq.s32.totalorder %s19, 1
    %p89 = por %p87, %p88
    %p91 = scmp.ne.s32.totalorder %s76, %s90
    %p92 = scmp.eq.s32.totalorder %s19, 0
    %p93 = por %p91, %p92
    %s95 = sadd.s32 %s94, 1
    %p98 = scmp.eq.s32.totalorder %s13, 1
    %p99 = scmp.ne.s32.totalorder %s94, %s96
    %p100 = scmp.eq.s32.totalorder %s13, 0
    %p101 = por %p99, %p100
    %p102 = scmp.ne.s32.totalorder %s94, %s96
    %p103 = scmp.eq.s32.totalorder %s18, 1
    %p104 = por %p102, %p103
    %p105 = scmp.ne.s32.totalorder %s96, %s97
    %p106 = scmp.eq.s32.totalorder %s18, 0
    %p107 = por %p105, %p106
    %p108 = scmp.ne.s32.totalorder %s96, %s97
    %p109 = scmp.eq.s32.totalorder %s19, 1
    %p110 = por %p108, %p109
    %p112 = scmp.ne.s32.totalorder %s97, %s111
    %p113 = scmp.eq.s32.totalorder %s19, 0
    %p114 = por %p112, %p113
    %s116 = sadd.s32 %s115, 1
    %p119 = scmp.eq.s32.totalorder %s13, 1
    %p120 = scmp.ne.s32.totalorder %s115, %s117
    %p121 = scmp.eq.s32.totalorder %s13, 0
    %p122 = por %p120, %p121
    %p123 = scmp.ne.s32.totalorder %s115, %s117
    %p124 = scmp.eq.s32.totalorder %s18, 1
    %p125 = por %p123, %p124
    %p126 = scmp.ne.s32.totalorder %s117, %s118
    %p127 = scmp.eq.s32.totalorder %s18, 0
    %p128 = por %p126, %p127
    %p129 = scmp.ne.s32.totalorder %s117, %s118
    %p130 = scmp.eq.s32.totalorder %s19, 1
    %p131 = por %p129, %p130
    %p133 = scmp.ne.s32.totalorder %s118, %s132
    %p134 = scmp.eq.s32.totalorder %s19, 0
    %p135 = por %p133, %p134
    %s137 = sadd.s32 %s136, 1
    %p140 = scmp.eq.s32.totalorder %s13, 1
    %p141 = scmp.ne.s32.totalorder %s136, %s138
    %p142 = scmp.eq.s32.totalorder %s13, 0
    %p143 = por %p141, %p142
    %p144 = scmp.ne.s32.totalorder %s136, %s138
    %p145 = scmp.eq.s32.totalorder %s18, 1
    %p146 = por %p144, %p145
    %p147 = scmp.ne.s32.totalorder %s138, %s139
    %p148 = scmp.eq.s32.totalorder %s18, 0
    %p149 = por %p147, %p148
    %p150 = scmp.ne.s32.totalorder %s138, %s139
    %p151 = scmp.eq.s32.totalorder %s19, 1
    %p152 = por %p150, %p151
    %p154 = scmp.ne.s32.totalorder %s139, %s153
    %p155 = scmp.eq.s32.totalorder %s19, 0
    %p156 = por %p154, %p155
    %s158 = sadd.s32 %s157, 1
    %p161 = scmp.eq.s32.totalorder %s13, 1
    %p162 = scmp.ne.s32.totalorder %s157, %s159
    %p163 = scmp.eq.s32.totalorder %s13, 0
    %p164 = por %p162, %p163
    %p165 = scmp.ne.s32.totalorder %s157, %s159
    %p166 = scmp.eq.s32.totalorder %s18, 1
    %p167 = por %p165, %p166
    %p168 = scmp.ne.s32.totalorder %s159, %s160
    %p169 = scmp.eq.s32.totalorder %s18, 0
    %p170 = por %p168, %p169
    %p171 = scmp.ne.s32.totalorder %s159, %s160
    %p172 = scmp.eq.s32.totalorder %s19, 1
    %p173 = por %p171, %p172
    %p175 = scmp.ne.s32.totalorder %s160, %s174
    %p176 = scmp.eq.s32.totalorder %s19, 0
    %p177 = por %p175, %p176
    %s178 = ssub.s32 %s13, %s20
    %p179 = scmp.eq.s32.totalorder %s178, 0
    %s181 = sadd.s32 %s180, 1
    %s182 = scalar_select %p179, %s180, %s181
    %p185 = pneg %p179
    %p186 = scmp.eq.s32.totalorder %s13, 1
    %p187 = por %p185, %p186
    %p188 = scmp.ne.s32.totalorder %s180, %s183
    %p189 = scmp.eq.s32.totalorder %s13, 0
    %p190 = por %p188, %p189
    %p191 = scmp.ne.s32.totalorder %s180, %s183
    %p192 = scmp.eq.s32.totalorder %s18, 1
    %p193 = por %p191, %p192
    %p194 = scmp.ne.s32.totalorder %s183, %s184
    %p195 = scmp.eq.s32.totalorder %s18, 0
    %p196 = por %p194, %p195
    %p197 = scmp.ne.s32.totalorder %s183, %s184
    %p198 = scmp.eq.s32.totalorder %s19, 1
    %p199 = por %p197, %p198
    %p201 = scmp.ne.s32.totalorder %s184, %s200
    %p202 = scmp.eq.s32.totalorder %s19, 0
    %p203 = por %p201, %p202
    %p204 = scmp.le.s32.totalorder 1, %s13
    %p205 = scmp.lt.s32.totalorder %s13, 3
    %p206 = pnand %p204, %p205
    %p207 = pneg %p206
    // Predicated region
    $region9: #{_lambda_.13} parent=5 // pred_check
      _
    $region10: #{_lambda_.13} parent=5 // pred_check_branch
      %209 = sbr.rel (%p206) target = $region12
    $region11: #{_lambda_.13} parent=5 // pred_region
      %s210 = ssub.s32 %s13, 1
      // Predicated region
      $region13: #{_lambda_.13} parent=11 // pred_check
        %p211 = pneg %p86
      $region14: #{_lambda_.13} parent=11 // pred_check_branch
        %213 = sbr.rel (%p211) target = $region16
      $region15: #{_lambda_.13} parent=11 // pred_region
        _
      $region16: #{_lambda_.13} parent=11 // pred_fallthru
        _
      // Predicated region
      $region17: #{_lambda_.13} parent=11 // pred_check
        %p214 = pneg %p107
      $region18: #{_lambda_.13} parent=11 // pred_check_branch
        %216 = sbr.rel (%p214) target = $region20
      $region19: #{_lambda_.13} parent=11 // pred_region
        _
      $region20: #{_lambda_.13} parent=11 // pred_fallthru
        _
      // Predicated region
      $region21: #{_lambda_.13} parent=11 // pred_check
        %p217 = pneg %p128
      $region22: #{_lambda_.13} parent=11 // pred_check_branch
        %219 = sbr.rel (%p217) target = $region24
      $region23: #{_lambda_.13} parent=11 // pred_region
        _
      $region24: #{_lambda_.13} parent=11 // pred_fallthru
        _
      // Predicated region
      $region25: #{_lambda_.13} parent=11 // pred_check
        %p220 = pneg %p149
      $region26: #{_lambda_.13} parent=11 // pred_check_branch
        %222 = sbr.rel (%p220) target = $region28
      $region27: #{_lambda_.13} parent=11 // pred_region
        _
      $region28: #{_lambda_.13} parent=11 // pred_fallthru
        _
      // Predicated region
      $region29: #{_lambda_.13} parent=11 // pred_check
        %p223 = pneg %p170
      $region30: #{_lambda_.13} parent=11 // pred_check_branch
        %225 = sbr.rel (%p223) target = $region32
      $region31: #{_lambda_.13} parent=11 // pred_region
        _
      $region32: #{_lambda_.13} parent=11 // pred_fallthru
        _
    $region12: #{_lambda_.13} parent=5 // pred_fallthru
      _
    %p226 = scmp.lt.s32.totalorder %s13, 2
    // Predicated region
    $region33: #{_lambda_.13} parent=5 // pred_check
      %p227 = pneg %p226
    $region34: #{_lambda_.13} parent=5 // pred_check_branch
      %229 = sbr.rel (%p227) target = $region36
    $region35: #{_lambda_.13} parent=5 // pred_region
      // Predicated region
      $region37: #{_lambda_.13} parent=35 // pred_check
        %p230 = pneg %p33
      $region38: #{_lambda_.13} parent=35 // pred_check_branch
        %232 = sbr.rel (%p230) target = $region40
      $region39: #{_lambda_.13} parent=35 // pred_region
        %s233 = smul.u32 4, %s13
        %p234 = scmp.lt.s32.totalorder %s233, 7
        %s235 = scalar_select %p234, %s233, 7
        %s236 = smul.addr %s235, 8
        %s237 = scalar_lea.vmem %s0, %s236
        %s238 = smul.u32 4, %s13
      $region40: #{_lambda_.13} parent=35 // pred_fallthru
        _
      // Predicated region
      $region41: #{_lambda_.13} parent=35 // pred_check
        %p239 = pneg %p59
      $region42: #{_lambda_.13} parent=35 // pred_check_branch
        %241 = sbr.rel (%p239) target = $region44
      $region43: #{_lambda_.13} parent=35 // pred_region
        %s242 = smul.u32 4, %s13
        %p243 = scmp.lt.s32.totalorder %s242, 7
        %s244 = scalar_select %p243, %s242, 7
        %s245 = smul.addr %s244, 8
        %s246 = scalar_lea.vmem %s1, %s245
        %s247 = smul.u32 4, %s13
      $region44: #{_lambda_.13} parent=35 // pred_fallthru
        _
    $region36: #{_lambda_.13} parent=5 // pred_fallthru
      _
    %p248 = scmp.le.s32.totalorder 1, %s13
    %p249 = scmp.lt.s32.totalorder %s13, 3
    %p250 = pnand %p248, %p249
    %p251 = pneg %p250
    // Predicated region
    $region45: #{_lambda_.13} parent=5 // pred_check
      _
    $region46: #{_lambda_.13} parent=5 // pred_check_branch
      %253 = sbr.rel (%p250) target = $region48
    $region47: #{_lambda_.13} parent=5 // pred_region
      %s254 = ssub.s32 %s13, 1
      %s255 = smul.u32 4, %s18
      %p256 = scmp.lt.s32.totalorder %s255, 7
      %s257 = scalar_select %p256, %s255, 7
      %s258 = smul.addr %s257, 8
      %s259 = scalar_lea.vmem %s0, %s258
      %p260 = pneg %p39
      %p261 = pneg %p36
      %s262 = smul.u32 4, %s18
      %p263 = scmp.lt.s32.totalorder %s262, 7
      %s264 = scalar_select %p263, %s262, 7
      %s265 = smul.addr %s264, 8
      %s266 = scalar_lea.vmem %s1, %s265
      %p267 = pneg %p65
      %p268 = pneg %p62
      %p269 = pneg %p86
      %p270 = pneg %p83
      %p271 = pneg %p107
      %p272 = pneg %p104
      %p273 = pneg %p128
      %p274 = pneg %p125
      %p275 = pneg %p149
      %p276 = pneg %p146
      %p277 = pneg %p170
      %p278 = pneg %p167
      %p279 = pneg %p196
      %p280 = pneg %p193
      %s281 = smul.u32 4, %s18
      %p282 = scmp.lt.s32.totalorder %s281, 7
      %s283 = scalar_select %p282, %s281, 7
      %s284 = smul.addr %s283, 8
      %s285 = scalar_lea.vmem %s7, %s284
      %s286 = smul.u32 4, %s18
      %p287 = scmp.lt.s32.totalorder %s286, 7
      %s288 = scalar_select %p287, %s286, 7
      %s289 = smul.addr %s288, 8
      %s290 = scalar_lea.vmem %s0, %s289
      %s291 = smul.u32 4, %s18
      %s292 = smul.u32 4, %s18
      %p293 = scmp.lt.s32.totalorder %s292, 7
      %s294 = scalar_select %p293, %s292, 7
      %s295 = smul.addr %s294, 8
      %s296 = scalar_lea.vmem %s1, %s295
      %s297 = smul.u32 4, %s18
      %s298 = smul.u32 4, %s18
      %p299 = scmp.lt.s32.totalorder %s298, 7
      %s300 = scalar_select %p299, %s298, 7
      %s301 = smul.addr %s300, 8
      %s302 = scalar_lea.vmem %s7, %s301
      %s303 = smul.u32 4, %s18
      %v305 = vld [vmem:[%s296] sm:$0xff]
      %v306 = vld [vmem:[%s296 + $0x8] sm:$0xff]
      %v307 = vld [vmem:[%s296 + $0x10] sm:$0xff]
      %v308 = vld [vmem:[%s296 + $0x18] sm:$0xff]
      %v309 = vmul.f32 %v305, 0.2
      %v310 = vmul.f32 %v306, 0.2
      %v311 = vmul.f32 %v307, 0.2
      %v312 = vmul.f32 %v308, 0.2
      %v313 = vrcp.pop %v309
      %v314 = vmul.f32 %v309, %v313
      %v315 = vsub.f32 1.0, %v314
      %v316 = vmul.f32 %v313, %v315
      %v317 = vadd.f32 %v313, %v316
      %vm318 = vweird.f32 %v309
      %vm319 = vweird.f32 %v313
      %vm320 = vmor %vm318, %vm319
      %v321 = vsel %vm320, %v313, %v317
      %v322 = vand.u32 2147483647, %v309
      %vm323 = vcmp.eq.f32.partialorder %v322, 8.507059e+37
      %v324 = vand.u32 %v309, 2147483648
      %v325 = vor.u32 1.1754944e-38, %v324
      %v326 = vsel %vm323, %v325, %v321
      %v327 = vmul.f32 1.0, %v326
      %v328 = vrcp.pop %v310
      %v329 = vmul.f32 %v310, %v328
      %v330 = vsub.f32 1.0, %v329
      %v331 = vmul.f32 %v328, %v330
      %v332 = vadd.f32 %v328, %v331
      %vm333 = vweird.f32 %v310
      %vm334 = vweird.f32 %v328
      %vm335 = vmor %vm333, %vm334
      %v336 = vsel %vm335, %v328, %v332
      %v337 = vand.u32 2147483647, %v310
      %vm338 = vcmp.eq.f32.partialorder %v337, 8.507059e+37
      %v339 = vand.u32 %v310, 2147483648
      %v340 = vor.u32 1.1754944e-38, %v339
      %v341 = vsel %vm338, %v340, %v336
      %v342 = vmul.f32 1.0, %v341
      %v343 = vrcp.pop %v311
      %v344 = vmul.f32 %v311, %v343
      %v345 = vsub.f32 1.0, %v344
      %v346 = vmul.f32 %v343, %v345
      %v347 = vadd.f32 %v343, %v346
      %vm348 = vweird.f32 %v311
      %vm349 = vweird.f32 %v343
      %vm350 = vmor %vm348, %vm349
      %v351 = vsel %vm350, %v343, %v347
      %v352 = vand.u32 2147483647, %v311
      %vm353 = vcmp.eq.f32.partialorder %v352, 8.507059e+37
      %v354 = vand.u32 %v311, 2147483648
      %v355 = vor.u32 1.1754944e-38, %v354
      %v356 = vsel %vm353, %v355, %v351
      %v357 = vmul.f32 1.0, %v356
      %v358 = vrcp.pop %v312
      %v359 = vmul.f32 %v312, %v358
      %v360 = vsub.f32 1.0, %v359
      %v361 = vmul.f32 %v358, %v360
      %v362 = vadd.f32 %v358, %v361
      %vm363 = vweird.f32 %v312
      %vm364 = vweird.f32 %v358
      %vm365 = vmor %vm363, %vm364
      %v366 = vsel %vm365, %v358, %v362
      %v367 = vand.u32 2147483647, %v312
      %vm368 = vcmp.eq.f32.partialorder %v367, 8.507059e+37
      %v369 = vand.u32 %v312, 2147483648
      %v370 = vor.u32 1.1754944e-38, %v369
      %v371 = vsel %vm368, %v370, %v366
      %v372 = vmul.f32 1.0, %v371
      %v373 = vmul.f32 %v309, %v309
      %v374 = vmul.f32 %v310, %v310
      %v375 = vmul.f32 %v311, %v311
      %v376 = vmul.f32 %v312, %v312
      %v377 = vmul.f32 %v373, %v373
      %v378 = vmul.f32 %v374, %v374
      %v379 = vmul.f32 %v375, %v375
      %v380 = vmul.f32 %v376, %v376
      %v381 = vmul.f32 %v309, %v377
      %v382 = vmul.f32 %v310, %v378
      %v383 = vmul.f32 %v311, %v379
      %v384 = vmul.f32 %v312, %v380
      %v385 = vmul.f32 %v381, -28.0
      %v386 = vmul.f32 %v382, -28.0
      %v387 = vmul.f32 %v383, -28.0
      %v388 = vmul.f32 %v384, -28.0
      %v389 = vadd.f32 %v327, %v385
      %v390 = vadd.f32 %v342, %v386
      %v391 = vadd.f32 %v357, %v387
      %v392 = vadd.f32 %v372, %v388
      %v393 = vmul.f32 %v373, %v377
      %v394 = vmul.f32 %v374, %v378
      %v395 = vmul.f32 %v375, %v379
      %v396 = vmul.f32 %v376, %v380
      %v397 = vmul.f32 %v393, 48.0
      %v398 = vmul.f32 %v394, 48.0
      %v399 = vmul.f32 %v395, 48.0
      %v400 = vmul.f32 %v396, 48.0
      %v401 = vadd.f32 %v389, %v397
      %v402 = vadd.f32 %v390, %v398
      %v403 = vadd.f32 %v391, %v399
      %v404 = vadd.f32 %v392, %v400
      %v405 = vmul.f32 %v309, %v373
      %v406 = vmul.f32 %v310, %v374
      %v407 = vmul.f32 %v311, %v375
      %v408 = vmul.f32 %v312, %v376
      %v409 = vmul.f32 %v405, %v377
      %v410 = vmul.f32 %v406, %v378
      %v411 = vmul.f32 %v407, %v379
      %v412 = vmul.f32 %v408, %v380
      %v413 = vmul.f32 %v409, -21.0
      %v414 = vmul.f32 %v410, -21.0
      %v415 = vmul.f32 %v411, -21.0
      %v416 = vmul.f32 %v412, -21.0
      %v417 = vadd.f32 %v401, %v413
      %v418 = vadd.f32 %v402, %v414
      %v419 = vadd.f32 %v403, %v415
      %v420 = vadd.f32 %v404, %v416
      %vm421 = vcmp.lt.f32.partialorder %v309, 1.0
      %vm422 = vcmp.lt.f32.partialorder %v310, 1.0
      %vm423 = vcmp.lt.f32.partialorder %v311, 1.0
      %vm424 = vcmp.lt.f32.partialorder %v312, 1.0
      %v425 = vsel %vm421, %v417, 0.0
      %v426 = vsel %vm422, %v418, 0.0
      %v427 = vsel %vm423, %v419, 0.0
      %v428 = vsel %vm424, %v420, 0.0
      %v429 = vld [vmem:[%s2] sm:$0x1]
      %v431 = vperm.slane %v429, 0
      %434 = vset.pattern.permute.xlu0 0
      %435 = vperm.xlu0 %434, %v309
      %v436 = vpop.permute.xlu0 %435
      %439 = vset.pattern.permute.xlu0 0
      %440 = vperm.xlu0 %439, %v310
      %v441 = vpop.permute.xlu0 %440
      %444 = vset.pattern.permute.xlu0 0
      %445 = vperm.xlu0 %444, %v311
      %v446 = vpop.permute.xlu0 %445
      %449 = vset.pattern.permute.xlu0 0
      %450 = vperm.xlu0 %449, %v312
      %v451 = vpop.permute.xlu0 %450
      %v453 = vmul.f32 %v431, %v436
      %v454 = vmul.f32 %v431, %v441
      %v455 = vmul.f32 %v431, %v446
      %v456 = vmul.f32 %v431, %v451
      %v457 = vand.u32 2147483647, %v453
      %vm458 = vcmp.le.f32.partialorder %v457, 0.7853982
      %vm459 = vcmp.lt.s32.totalorder %v453, 0
      %v460 = vand.u32 %v453, 2139095040
      %v461 = vshrl.u32 %v460, 23
      %v462 = vsub.s32 %v461, 127
      %v463 = vand.u32 2147483647, %v453
      %v464 = vand.u32 %v463, 8388607
      %v465 = vor.u32 %v464, 8388608
      %v466 = vsub.s32 0, %v465
      %v467 = vadd.s32 %v462, 1
      %vm468 = vcmp.gt.s32.totalorder %v467, 0
      %v469 = vsel %vm468, %v467, 0
      %v470 = vshrl.u32 %v469, 5
      %v471 = vand.u32 %v469, 31
      %v472 = vsub.s32 32, %v471
      %v473 = vshrl.u32 683565275, %v472
      %v474 = vshll.u32 683565275, %v471
      %v475 = vshrl.u32 2475754826, %v472
      %v476 = vor.u32 %v474, %v475
      %v477 = vshll.u32 2475754826, %v471
      %v478 = vshrl.u32 2131351028, %v472
      %v479 = vor.u32 %v477, %v478
      %v480 = vshll.u32 2131351028, %v471
      %v481 = vshrl.u32 2102212464, %v472
      %v482 = vor.u32 %v480, %v481
      %v483 = vshll.u32 2102212464, %v471
      %v484 = vshrl.u32 920167782, %v472
      %v485 = vor.u32 %v483, %v484
      %v486 = vshll.u32 920167782, %v471
      %v487 = vshrl.u32 1326507024, %v472
      %v488 = vor.u32 %v486, %v487
      %vm489 = vcmp.lt.s32.totalorder %v470, 1
      %vm490 = vcmp.lt.s32.totalorder %v470, 2
      %vm491 = vcmp.lt.s32.totalorder %v470, 3
      %vm492 = vcmp.lt.s32.totalorder %v470, 4
      %v493 = vsel %vm489, %v473, %v476
      %v494 = vsel %vm492, %v482, 2102212464
      %v495 = vsel %vm491, %v479, %v494
      %v496 = vsel %vm490, %v493, %v495
      %v497 = vsel %vm489, %v476, %v479
      %v498 = vsel %vm492, %v485, 920167782
      %v499 = vsel %vm491, %v482, %v498
      %v500 = vsel %vm490, %v497, %v499
      %v501 = vsel %vm489, %v479, %v482
      %v502 = vsel %vm492, %v488, 1326507024
      %v503 = vsel %vm491, %v485, %v502
      %v504 = vsel %vm490, %v501, %v503
      %v505 = vshll.u32 %v465, 8
      %v506 = vand.u32 %v505, 65535
      %v507 = vshrl.u32 %v505, 16
      %v508 = vand.u32 %v504, 65535
      %v509 = vshrl.u32 %v504, 16
      %v510 = vmul.u32 %v506, %v508
      %v511 = vmul.u32 %v506, %v509
      %v512 = vmul.u32 %v507, %v508
      %v513 = vmul.u32 %v507, %v509
      %v514 = vshll.u32 %v511, 16
      %v515 = vshrl.u32 %v511, 16
      %v516 = vshll.u32 %v512, 16
      %v517 = vshrl.u32 %v512, 16
      %vm518 = vc.u32 %v510, %v514
      %v519 = vsel %vm518, 1, 0
      %v520 = vadd.s32 %v510, %v514
      %v521 = vadd.s32 %v513, %v519
      %vm522 = vc.u32 %v520, %v516
      %v523 = vsel %vm522, 1, 0
      %v524 = vadd.s32 %v520, %v516
      %v525 = vadd.s32 %v521, %v523
      %v526 = vadd.s32 %v525, %v515
      %v527 = vadd.s32 %v526, %v517
      %v528 = vand.u32 %v505, 65535
      %v529 = vshrl.u32 %v505, 16
      %v530 = vand.u32 %v500, 65535
      %v531 = vshrl.u32 %v500, 16
      %v532 = vmul.u32 %v528, %v530
      %v533 = vmul.u32 %v528, %v531
      %v534 = vmul.u32 %v529, %v530
      %v535 = vmul.u32 %v529, %v531
      %v536 = vshll.u32 %v533, 16
      %v537 = vshrl.u32 %v533, 16
      %v538 = vshll.u32 %v534, 16
      %v539 = vshrl.u32 %v534, 16
      %vm540 = vc.u32 %v532, %v536
      %v541 = vsel %vm540, 1, 0
      %v542 = vadd.s32 %v532, %v536
      %v543 = vadd.s32 %v535, %v541
      %vm544 = vc.u32 %v542, %v538
      %v545 = vsel %vm544, 1, 0
      %v546 = vadd.s32 %v542, %v538
      %v547 = vadd.s32 %v543, %v545
      %v548 = vadd.s32 %v547, %v537
      %v549 = vadd.s32 %v548, %v539
      %v550 = vmul.u32 %v505, %v496
      %v551 = vadd.s32 %v527, %v546
      %vm552 = vc.u32 %v527, %v546
      %v553 = vadd.s32 %v549, 1
      %v554 = vsel %vm552, %v553, %v549
      %v555 = vadd.s32 %v550, %v554
      %v556 = vadd.s32 %v555, 536870912
      %v557 = vshrl.u32 %v556, 30
      %v558 = vshll.u32 %v557, 30
      %v559 = vsub.s32 %v555, %v558
      %vm560 = vcmp.lt.s32.totalorder %v559, 0
      %v561 = vsub.s32 0, %v559
      %v562 = vsel %vm560, %v561, %v559
      %v563 = vclz %v562
      %v564 = vsub.s32 %v563, 2
      %vm565 = vcmp.gt.s32.totalorder 0, %v564
      %v566 = vsel %vm565, 0, %v564
      %v567 = vsub.s32 32, %v566
      %v568 = vshll.u32 %v559, %v566
      %v569 = vshrl.u32 %v551, %v567
      %v570 = vor.u32 %v568, %v569
      %v571 = vsub.s32 4294967266, %v566
      %v572 = vadd.s32 %v571, 127
      %v573 = vshll.u32 %v572, 23
      %v574 = vor.u32 4788187, %v573
      %v575 = vand.u32 2147483647, %v574
      %v577 = vcvt.s32.f32 %v570
      %v578 = vmul.f32 %v577, %v575
      %v579 = vxor.u32 %v578, 2147483648
      %v580 = vsel %vm459, %v579, %v578
      %v581 = vsub.s32 4, %v557
      %v582 = vsel %vm459, %v581, %v557
      %v583 = vsel %vm458, %v453, %v580
      %v584 = vsel %vm458, 0, %v582
      %v585 = vmul.f32 %v583, %v583
      %v586 = vmul.f32 %v585, -0.001358992
      %v587 = vadd.f32 %v586, 0.041655596
      %v588 = vmul.f32 %v585, %v587
      %v589 = vadd.f32 %v588, -0.4999988
      %v590 = vmul.f32 %v585, %v589
      %v591 = vadd.f32 1.0, %v590
      %v592 = vmul.f32 %v583, %v583
      %v593 = vmul.f32 %v592, -0.00019511016
      %v594 = vadd.f32 %v593, 0.008332121
      %v595 = vmul.f32 %v592, %v594
      %v596 = vadd.f32 %v595, -0.16666654
      %v597 = vmul.f32 %v592, %v596
      %v598 = vadd.f32 %v597, 1.0
      %v599 = vmul.f32 %v598, %v583
      %vm600 = vweird.f32 %v453
      %v601 = vadd.s32 %v584, 3
      %v602 = vand.u32 %v601, 3
      %vm603 = vcmp.lt.s32.totalorder %v602, 2
      %vm604 = vcmp.eq.s32.totalorder %v602, 0
      %v605 = vxor.u32 %v599, 2147483648
      %v606 = vsel %vm604, %v591, %v605
      %vm607 = vcmp.eq.s32.totalorder %v602, 2
      %v608 = vxor.u32 %v591, 2147483648
      %v609 = vsel %vm607, %v608, %v599
      %v610 = vsel %vm603, %v606, %v609
      %v611 = vsel %vm600, nan, %v610
      %v612 = vand.u32 2147483647, %v454
      %vm613 = vcmp.le.f32.partialorder %v612, 0.7853982
      %vm614 = vcmp.lt.s32.totalorder %v454, 0
      %v615 = vand.u32 %v454, 2139095040
      %v616 = vshrl.u32 %v615, 23
      %v617 = vsub.s32 %v616, 127
      %v618 = vand.u32 2147483647, %v454
      %v619 = vand.u32 %v618, 8388607
      %v620 = vor.u32 %v619, 8388608
      %v621 = vsub.s32 0, %v620
      %v622 = vadd.s32 %v617, 1
      %vm623 = vcmp.gt.s32.totalorder %v622, 0
      %v624 = vsel %vm623, %v622, 0
      %v625 = vshrl.u32 %v624, 5
      %v626 = vand.u32 %v624, 31
      %v627 = vsub.s32 32, %v626
      %v628 = vshrl.u32 683565275, %v627
      %v629 = vshll.u32 683565275, %v626
      %v630 = vshrl.u32 2475754826, %v627
      %v631 = vor.u32 %v629, %v630
      %v632 = vshll.u32 2475754826, %v626
      %v633 = vshrl.u32 2131351028, %v627
      %v634 = vor.u32 %v632, %v633
      %v635 = vshll.u32 2131351028, %v626
      %v636 = vshrl.u32 2102212464, %v627
      %v637 = vor.u32 %v635, %v636
      %v638 = vshll.u32 2102212464, %v626
      %v639 = vshrl.u32 920167782, %v627
      %v640 = vor.u32 %v638, %v639
      %v641 = vshll.u32 920167782, %v626
      %v642 = vshrl.u32 1326507024, %v627
      %v643 = vor.u32 %v641, %v642
      %vm644 = vcmp.lt.s32.totalorder %v625, 1
      %vm645 = vcmp.lt.s32.totalorder %v625, 2
      %vm646 = vcmp.lt.s32.totalorder %v625, 3
      %vm647 = vcmp.lt.s32.totalorder %v625, 4
      %v648 = vsel %vm644, %v628, %v631
      %v649 = vsel %vm647, %v637, 2102212464
      %v650 = vsel %vm646, %v634, %v649
      %v651 = vsel %vm645, %v648, %v650
      %v652 = vsel %vm644, %v631, %v634
      %v653 = vsel %vm647, %v640, 920167782
      %v654 = vsel %vm646, %v637, %v653
      %v655 = vsel %vm645, %v652, %v654
      %v656 = vsel %vm644, %v634, %v637
      %v657 = vsel %vm647, %v643, 1326507024
      %v658 = vsel %vm646, %v640, %v657
      %v659 = vsel %vm645, %v656, %v658
      %v660 = vshll.u32 %v620, 8
      %v661 = vand.u32 %v660, 65535
      %v662 = vshrl.u32 %v660, 16
      %v663 = vand.u32 %v659, 65535
      %v664 = vshrl.u32 %v659, 16
      %v665 = vmul.u32 %v661, %v663
      %v666 = vmul.u32 %v661, %v664
      %v667 = vmul.u32 %v662, %v663
      %v668 = vmul.u32 %v662, %v664
      %v669 = vshll.u32 %v666, 16
      %v670 = vshrl.u32 %v666, 16
      %v671 = vshll.u32 %v667, 16
      %v672 = vshrl.u32 %v667, 16
      %vm673 = vc.u32 %v665, %v669
      %v674 = vsel %vm673, 1, 0
      %v675 = vadd.s32 %v665, %v669
      %v676 = vadd.s32 %v668, %v674
      %vm677 = vc.u32 %v675, %v671
      %v678 = vsel %vm677, 1, 0
      %v679 = vadd.s32 %v675, %v671
      %v680 = vadd.s32 %v676, %v678
      %v681 = vadd.s32 %v680, %v670
      %v682 = vadd.s32 %v681, %v672
      %v683 = vand.u32 %v660, 65535
      %v684 = vshrl.u32 %v660, 16
      %v685 = vand.u32 %v655, 65535
      %v686 = vshrl.u32 %v655, 16
      %v687 = vmul.u32 %v683, %v685
      %v688 = vmul.u32 %v683, %v686
      %v689 = vmul.u32 %v684, %v685
      %v690 = vmul.u32 %v684, %v686
      %v691 = vshll.u32 %v688, 16
      %v692 = vshrl.u32 %v688, 16
      %v693 = vshll.u32 %v689, 16
      %v694 = vshrl.u32 %v689, 16
      %vm695 = vc.u32 %v687, %v691
      %v696 = vsel %vm695, 1, 0
      %v697 = vadd.s32 %v687, %v691
      %v698 = vadd.s32 %v690, %v696
      %vm699 = vc.u32 %v697, %v693
      %v700 = vsel %vm699, 1, 0
      %v701 = vadd.s32 %v697, %v693
      %v702 = vadd.s32 %v698, %v700
      %v703 = vadd.s32 %v702, %v692
      %v704 = vadd.s32 %v703, %v694
      %v705 = vmul.u32 %v660, %v651
      %v706 = vadd.s32 %v682, %v701
      %vm707 = vc.u32 %v682, %v701
      %v708 = vadd.s32 %v704, 1
      %v709 = vsel %vm707, %v708, %v704
      %v710 = vadd.s32 %v705, %v709
      %v711 = vadd.s32 %v710, 536870912
      %v712 = vshrl.u32 %v711, 30
      %v713 = vshll.u32 %v712, 30
      %v714 = vsub.s32 %v710, %v713
      %vm715 = vcmp.lt.s32.totalorder %v714, 0
      %v716 = vsub.s32 0, %v714
      %v717 = vsel %vm715, %v716, %v714
      %v718 = vclz %v717
      %v719 = vsub.s32 %v718, 2
      %vm720 = vcmp.gt.s32.totalorder 0, %v719
      %v721 = vsel %vm720, 0, %v719
      %v722 = vsub.s32 32, %v721
      %v723 = vshll.u32 %v714, %v721
      %v724 = vshrl.u32 %v706, %v722
      %v725 = vor.u32 %v723, %v724
      %v726 = vsub.s32 4294967266, %v721
      %v727 = vadd.s32 %v726, 127
      %v728 = vshll.u32 %v727, 23
      %v729 = vor.u32 4788187, %v728
      %v730 = vand.u32 2147483647, %v729
      %v732 = vcvt.s32.f32 %v725
      %v733 = vmul.f32 %v732, %v730
      %v734 = vxor.u32 %v733, 2147483648
      %v735 = vsel %vm614, %v734, %v733
      %v736 = vsub.s32 4, %v712
      %v737 = vsel %vm614, %v736, %v712
      %v738 = vsel %vm613, %v454, %v735
      %v739 = vsel %vm613, 0, %v737
      %v740 = vmul.f32 %v738, %v738
      %v741 = vmul.f32 %v740, -0.001358992
      %v742 = vadd.f32 %v741, 0.041655596
      %v743 = vmul.f32 %v740, %v742
      %v744 = vadd.f32 %v743, -0.4999988
      %v745 = vmul.f32 %v740, %v744
      %v746 = vadd.f32 1.0, %v745
      %v747 = vmul.f32 %v738, %v738
      %v748 = vmul.f32 %v747, -0.00019511016
      %v749 = vadd.f32 %v748, 0.008332121
      %v750 = vmul.f32 %v747, %v749
      %v751 = vadd.f32 %v750, -0.16666654
      %v752 = vmul.f32 %v747, %v751
      %v753 = vadd.f32 %v752, 1.0
      %v754 = vmul.f32 %v753, %v738
      %vm755 = vweird.f32 %v454
      %v756 = vadd.s32 %v739, 3
      %v757 = vand.u32 %v756, 3
      %vm758 = vcmp.lt.s32.totalorder %v757, 2
      %vm759 = vcmp.eq.s32.totalorder %v757, 0
      %v760 = vxor.u32 %v754, 2147483648
      %v761 = vsel %vm759, %v746, %v760
      %vm762 = vcmp.eq.s32.totalorder %v757, 2
      %v763 = vxor.u32 %v746, 2147483648
      %v764 = vsel %vm762, %v763, %v754
      %v765 = vsel %vm758, %v761, %v764
      %v766 = vsel %vm755, nan, %v765
      %v767 = vand.u32 2147483647, %v455
      %vm768 = vcmp.le.f32.partialorder %v767, 0.7853982
      %vm769 = vcmp.lt.s32.totalorder %v455, 0
      %v770 = vand.u32 %v455, 2139095040
      %v771 = vshrl.u32 %v770, 23
      %v772 = vsub.s32 %v771, 127
      %v773 = vand.u32 2147483647, %v455
      %v774 = vand.u32 %v773, 8388607
      %v775 = vor.u32 %v774, 8388608
      %v776 = vsub.s32 0, %v775
      %v777 = vadd.s32 %v772, 1
      %vm778 = vcmp.gt.s32.totalorder %v777, 0
      %v779 = vsel %vm778, %v777, 0
      %v780 = vshrl.u32 %v779, 5
      %v781 = vand.u32 %v779, 31
      %v782 = vsub.s32 32, %v781
      %v783 = vshrl.u32 683565275, %v782
      %v784 = vshll.u32 683565275, %v781
      %v785 = vshrl.u32 2475754826, %v782
      %v786 = vor.u32 %v784, %v785
      %v787 = vshll.u32 2475754826, %v781
      %v788 = vshrl.u32 2131351028, %v782
      %v789 = vor.u32 %v787, %v788
      %v790 = vshll.u32 2131351028, %v781
      %v791 = vshrl.u32 2102212464, %v782
      %v792 = vor.u32 %v790, %v791
      %v793 = vshll.u32 2102212464, %v781
      %v794 = vshrl.u32 920167782, %v782
      %v795 = vor.u32 %v793, %v794
      %v796 = vshll.u32 920167782, %v781
      %v797 = vshrl.u32 1326507024, %v782
      %v798 = vor.u32 %v796, %v797
      %vm799 = vcmp.lt.s32.totalorder %v780, 1
      %vm800 = vcmp.lt.s32.totalorder %v780, 2
      %vm801 = vcmp.lt.s32.totalorder %v780, 3
      %vm802 = vcmp.lt.s32.totalorder %v780, 4
      %v803 = vsel %vm799, %v783, %v786
      %v804 = vsel %vm802, %v792, 2102212464
      %v805 = vsel %vm801, %v789, %v804
      %v806 = vsel %vm800, %v803, %v805
      %v807 = vsel %vm799, %v786, %v789
      %v808 = vsel %vm802, %v795, 920167782
      %v809 = vsel %vm801, %v792, %v808
      %v810 = vsel %vm800, %v807, %v809
      %v811 = vsel %vm799, %v789, %v792
      %v812 = vsel %vm802, %v798, 1326507024
      %v813 = vsel %vm801, %v795, %v812
      %v814 = vsel %vm800, %v811, %v813
      %v815 = vshll.u32 %v775, 8
      %v816 = vand.u32 %v815, 65535
      %v817 = vshrl.u32 %v815, 16
      %v818 = vand.u32 %v814, 65535
      %v819 = vshrl.u32 %v814, 16
      %v820 = vmul.u32 %v816, %v818
      %v821 = vmul.u32 %v816, %v819
      %v822 = vmul.u32 %v817, %v818
      %v823 = vmul.u32 %v817, %v819
      %v824 = vshll.u32 %v821, 16
      %v825 = vshrl.u32 %v821, 16
      %v826 = vshll.u32 %v822, 16
      %v827 = vshrl.u32 %v822, 16
      %vm828 = vc.u32 %v820, %v824
      %v829 = vsel %vm828, 1, 0
      %v830 = vadd.s32 %v820, %v824
      %v831 = vadd.s32 %v823, %v829
      %vm832 = vc.u32 %v830, %v826
      %v833 = vsel %vm832, 1, 0
      %v834 = vadd.s32 %v830, %v826
      %v835 = vadd.s32 %v831, %v833
      %v836 = vadd.s32 %v835, %v825
      %v837 = vadd.s32 %v836, %v827
      %v838 = vand.u32 %v815, 65535
      %v839 = vshrl.u32 %v815, 16
      %v840 = vand.u32 %v810, 65535
      %v841 = vshrl.u32 %v810, 16
      %v842 = vmul.u32 %v838, %v840
      %v843 = vmul.u32 %v838, %v841
      %v844 = vmul.u32 %v839, %v840
      %v845 = vmul.u32 %v839, %v841
      %v846 = vshll.u32 %v843, 16
      %v847 = vshrl.u32 %v843, 16
      %v848 = vshll.u32 %v844, 16
      %v849 = vshrl.u32 %v844, 16
      %vm850 = vc.u32 %v842, %v846
      %v851 = vsel %vm850, 1, 0
      %v852 = vadd.s32 %v842, %v846
      %v853 = vadd.s32 %v845, %v851
      %vm854 = vc.u32 %v852, %v848
      %v855 = vsel %vm854, 1, 0
      %v856 = vadd.s32 %v852, %v848
      %v857 = vadd.s32 %v853, %v855
      %v858 = vadd.s32 %v857, %v847
      %v859 = vadd.s32 %v858, %v849
      %v860 = vmul.u32 %v815, %v806
      %v861 = vadd.s32 %v837, %v856
      %vm862 = vc.u32 %v837, %v856
      %v863 = vadd.s32 %v859, 1
      %v864 = vsel %vm862, %v863, %v859
      %v865 = vadd.s32 %v860, %v864
      %v866 = vadd.s32 %v865, 536870912
      %v867 = vshrl.u32 %v866, 30
      %v868 = vshll.u32 %v867, 30
      %v869 = vsub.s32 %v865, %v868
      %vm870 = vcmp.lt.s32.totalorder %v869, 0
      %v871 = vsub.s32 0, %v869
      %v872 = vsel %vm870, %v871, %v869
      %v873 = vclz %v872
      %v874 = vsub.s32 %v873, 2
      %vm875 = vcmp.gt.s32.totalorder 0, %v874
      %v876 = vsel %vm875, 0, %v874
      %v877 = vsub.s32 32, %v876
      %v878 = vshll.u32 %v869, %v876
      %v879 = vshrl.u32 %v861, %v877
      %v880 = vor.u32 %v878, %v879
      %v881 = vsub.s32 4294967266, %v876
      %v882 = vadd.s32 %v881, 127
      %v883 = vshll.u32 %v882, 23
      %v884 = vor.u32 4788187, %v883
      %v885 = vand.u32 2147483647, %v884
      %v887 = vcvt.s32.f32 %v880
      %v888 = vmul.f32 %v887, %v885
      %v889 = vxor.u32 %v888, 2147483648
      %v890 = vsel %vm769, %v889, %v888
      %v891 = vsub.s32 4, %v867
      %v892 = vsel %vm769, %v891, %v867
      %v893 = vsel %vm768, %v455, %v890
      %v894 = vsel %vm768, 0, %v892
      %v895 = vmul.f32 %v893, %v893
      %v896 = vmul.f32 %v895, -0.001358992
      %v897 = vadd.f32 %v896, 0.041655596
      %v898 = vmul.f32 %v895, %v897
      %v899 = vadd.f32 %v898, -0.4999988
      %v900 = vmul.f32 %v895, %v899
      %v901 = vadd.f32 1.0, %v900
      %v902 = vmul.f32 %v893, %v893
      %v903 = vmul.f32 %v902, -0.00019511016
      %v904 = vadd.f32 %v903, 0.008332121
      %v905 = vmul.f32 %v902, %v904
      %v906 = vadd.f32 %v905, -0.16666654
      %v907 = vmul.f32 %v902, %v906
      %v908 = vadd.f32 %v907, 1.0
      %v909 = vmul.f32 %v908, %v893
      %vm910 = vweird.f32 %v455
      %v911 = vadd.s32 %v894, 3
      %v912 = vand.u32 %v911, 3
      %vm913 = vcmp.lt.s32.totalorder %v912, 2
      %vm914 = vcmp.eq.s32.totalorder %v912, 0
      %v915 = vxor.u32 %v909, 2147483648
      %v916 = vsel %vm914, %v901, %v915
      %vm917 = vcmp.eq.s32.totalorder %v912, 2
      %v918 = vxor.u32 %v901, 2147483648
      %v919 = vsel %vm917, %v918, %v909
      %v920 = vsel %vm913, %v916, %v919
      %v921 = vsel %vm910, nan, %v920
      %v922 = vand.u32 2147483647, %v456
      %vm923 = vcmp.le.f32.partialorder %v922, 0.7853982
      %vm924 = vcmp.lt.s32.totalorder %v456, 0
      %v925 = vand.u32 %v456, 2139095040
      %v926 = vshrl.u32 %v925, 23
      %v927 = vsub.s32 %v926, 127
      %v928 = vand.u32 2147483647, %v456
      %v929 = vand.u32 %v928, 8388607
      %v930 = vor.u32 %v929, 8388608
      %v931 = vsub.s32 0, %v930
      %v932 = vadd.s32 %v927, 1
      %vm933 = vcmp.gt.s32.totalorder %v932, 0
      %v934 = vsel %vm933, %v932, 0
      %v935 = vshrl.u32 %v934, 5
      %v936 = vand.u32 %v934, 31
      %v937 = vsub.s32 32, %v936
      %v938 = vshrl.u32 683565275, %v937
      %v939 = vshll.u32 683565275, %v936
      %v940 = vshrl.u32 2475754826, %v937
      %v941 = vor.u32 %v939, %v940
      %v942 = vshll.u32 2475754826, %v936
      %v943 = vshrl.u32 2131351028, %v937
      %v944 = vor.u32 %v942, %v943
      %v945 = vshll.u32 2131351028, %v936
      %v946 = vshrl.u32 2102212464, %v937
      %v947 = vor.u32 %v945, %v946
      %v948 = vshll.u32 2102212464, %v936
      %v949 = vshrl.u32 920167782, %v937
      %v950 = vor.u32 %v948, %v949
      %v951 = vshll.u32 920167782, %v936
      %v952 = vshrl.u32 1326507024, %v937
      %v953 = vor.u32 %v951, %v952
      %vm954 = vcmp.lt.s32.totalorder %v935, 1
      %vm955 = vcmp.lt.s32.totalorder %v935, 2
      %vm956 = vcmp.lt.s32.totalorder %v935, 3
      %vm957 = vcmp.lt.s32.totalorder %v935, 4
      %v958 = vsel %vm954, %v938, %v941
      %v959 = vsel %vm957, %v947, 2102212464
      %v960 = vsel %vm956, %v944, %v959
      %v961 = vsel %vm955, %v958, %v960
      %v962 = vsel %vm954, %v941, %v944
      %v963 = vsel %vm957, %v950, 920167782
      %v964 = vsel %vm956, %v947, %v963
      %v965 = vsel %vm955, %v962, %v964
      %v966 = vsel %vm954, %v944, %v947
      %v967 = vsel %vm957, %v953, 1326507024
      %v968 = vsel %vm956, %v950, %v967
      %v969 = vsel %vm955, %v966, %v968
      %v970 = vshll.u32 %v930, 8
      %v971 = vand.u32 %v970, 65535
      %v972 = vshrl.u32 %v970, 16
      %v973 = vand.u32 %v969, 65535
      %v974 = vshrl.u32 %v969, 16
      %v975 = vmul.u32 %v971, %v973
      %v976 = vmul.u32 %v971, %v974
      %v977 = vmul.u32 %v972, %v973
      %v978 = vmul.u32 %v972, %v974
      %v979 = vshll.u32 %v976, 16
      %v980 = vshrl.u32 %v976, 16
      %v981 = vshll.u32 %v977, 16
      %v982 = vshrl.u32 %v977, 16
      %vm983 = vc.u32 %v975, %v979
      %v984 = vsel %vm983, 1, 0
      %v985 = vadd.s32 %v975, %v979
      %v986 = vadd.s32 %v978, %v984
      %vm987 = vc.u32 %v985, %v981
      %v988 = vsel %vm987, 1, 0
      %v989 = vadd.s32 %v985, %v981
      %v990 = vadd.s32 %v986, %v988
      %v991 = vadd.s32 %v990, %v980
      %v992 = vadd.s32 %v991, %v982
      %v993 = vand.u32 %v970, 65535
      %v994 = vshrl.u32 %v970, 16
      %v995 = vand.u32 %v965, 65535
      %v996 = vshrl.u32 %v965, 16
      %v997 = vmul.u32 %v993, %v995
      %v998 = vmul.u32 %v993, %v996
      %v999 = vmul.u32 %v994, %v995
      %v1000 = vmul.u32 %v994, %v996
      %v1001 = vshll.u32 %v998, 16
      %v1002 = vshrl.u32 %v998, 16
      %v1003 = vshll.u32 %v999, 16
      %v1004 = vshrl.u32 %v999, 16
      %vm1005 = vc.u32 %v997, %v1001
      %v1006 = vsel %vm1005, 1, 0
      %v1007 = vadd.s32 %v997, %v1001
      %v1008 = vadd.s32 %v1000, %v1006
      %vm1009 = vc.u32 %v1007, %v1003
      %v1010 = vsel %vm1009, 1, 0
      %v1011 = vadd.s32 %v1007, %v1003
      %v1012 = vadd.s32 %v1008, %v1010
      %v1013 = vadd.s32 %v1012, %v1002
      %v1014 = vadd.s32 %v1013, %v1004
      %v1015 = vmul.u32 %v970, %v961
      %v1016 = vadd.s32 %v992, %v1011
      %vm1017 = vc.u32 %v992, %v1011
      %v1018 = vadd.s32 %v1014, 1
      %v1019 = vsel %vm1017, %v1018, %v1014
      %v1020 = vadd.s32 %v1015, %v1019
      %v1021 = vadd.s32 %v1020, 536870912
      %v1022 = vshrl.u32 %v1021, 30
      %v1023 = vshll.u32 %v1022, 30
      %v1024 = vsub.s32 %v1020, %v1023
      %vm1025 = vcmp.lt.s32.totalorder %v1024, 0
      %v1026 = vsub.s32 0, %v1024
      %v1027 = vsel %vm1025, %v1026, %v1024
      %v1028 = vclz %v1027
      %v1029 = vsub.s32 %v1028, 2
      %vm1030 = vcmp.gt.s32.totalorder 0, %v1029
      %v1031 = vsel %vm1030, 0, %v1029
      %v1032 = vsub.s32 32, %v1031
      %v1033 = vshll.u32 %v1024, %v1031
      %v1034 = vshrl.u32 %v1016, %v1032
      %v1035 = vor.u32 %v1033, %v1034
      %v1036 = vsub.s32 4294967266, %v1031
      %v1037 = vadd.s32 %v1036, 127
      %v1038 = vshll.u32 %v1037, 23
      %v1039 = vor.u32 4788187, %v1038
      %v1040 = vand.u32 2147483647, %v1039
      %v1042 = vcvt.s32.f32 %v1035
      %v1043 = vmul.f32 %v1042, %v1040
      %v1044 = vxor.u32 %v1043, 2147483648
      %v1045 = vsel %vm924, %v1044, %v1043
      %v1046 = vsub.s32 4, %v1022
      %v1047 = vsel %vm924, %v1046, %v1022
      %v1048 = vsel %vm923, %v456, %v1045
      %v1049 = vsel %vm923, 0, %v1047
      %v1050 = vmul.f32 %v1048, %v1048
      %v1051 = vmul.f32 %v1050, -0.001358992
      %v1052 = vadd.f32 %v1051, 0.041655596
      %v1053 = vmul.f32 %v1050, %v1052
      %v1054 = vadd.f32 %v1053, -0.4999988
      %v1055 = vmul.f32 %v1050, %v1054
      %v1056 = vadd.f32 1.0, %v1055
      %v1057 = vmul.f32 %v1048, %v1048
      %v1058 = vmul.f32 %v1057, -0.00019511016
      %v1059 = vadd.f32 %v1058, 0.008332121
      %v1060 = vmul.f32 %v1057, %v1059
      %v1061 = vadd.f32 %v1060, -0.16666654
      %v1062 = vmul.f32 %v1057, %v1061
      %v1063 = vadd.f32 %v1062, 1.0
      %v1064 = vmul.f32 %v1063, %v1048
      %vm1065 = vweird.f32 %v456
      %v1066 = vadd.s32 %v1049, 3
      %v1067 = vand.u32 %v1066, 3
      %vm1068 = vcmp.lt.s32.totalorder %v1067, 2
      %vm1069 = vcmp.eq.s32.totalorder %v1067, 0
      %v1070 = vxor.u32 %v1064, 2147483648
      %v1071 = vsel %vm1069, %v1056, %v1070
      %vm1072 = vcmp.eq.s32.totalorder %v1067, 2
      %v1073 = vxor.u32 %v1056, 2147483648
      %v1074 = vsel %vm1072, %v1073, %v1064
      %v1075 = vsel %vm1068, %v1071, %v1074
      %v1076 = vsel %vm1065, nan, %v1075
      %1078 = vset.pattern.permute.xlu0 0
      %1079 = vperm.xlu0 %1078, %v425
      %v1080 = vpop.permute.xlu0 %1079
      %1083 = vset.pattern.permute.xlu0 0
      %1084 = vperm.xlu0 %1083, %v426
      %v1085 = vpop.permute.xlu0 %1084
      %1088 = vset.pattern.permute.xlu0 0
      %1089 = vperm.xlu0 %1088, %v427
      %v1090 = vpop.permute.xlu0 %1089
      %1093 = vset.pattern.permute.xlu0 0
      %1094 = vperm.xlu0 %1093, %v428
      %v1095 = vpop.permute.xlu0 %1094
      %v1097 = vmul.f32 %v1080, %v611
      %v1098 = vmul.f32 %v1085, %v766
      %v1099 = vmul.f32 %v1090, %v921
      %v1100 = vmul.f32 %v1095, %v1076
      %v1101 = vld [vmem:[%s290] sm:$0xff]
      %v1102 = vld [vmem:[%s290 + $0x8] sm:$0xff]
      %v1103 = vld [vmem:[%s290 + $0x10] sm:$0xff]
      %v1104 = vld [vmem:[%s290 + $0x18] sm:$0xff]
      %v1105 = vpack.c.bf16 %v1102, %v1101
      %v1106 = vpack.c.bf16 %v1104, %v1103
      %v1107 = vld [vmem:[%s3] sm:$0xf]
      %v1108 = vld [vmem:[%s3 + $0x4] sm:$0xf]
      %v1109 = vld [vmem:[%s3 + $0x8] sm:$0xf]
      %v1110 = vld [vmem:[%s3 + $0xc] sm:$0xf]
      %v1111 = vld [vmem:[%s4] sm:$0x1]
      %v1113 = vperm.slane %v1111, 0
      %v1119 = vunpack.c.l.b16 %v1107
      %v1120 = vunpack.c.l.b16 %v1108
      %v1121 = vunpack.c.l.b16 %v1109
      %v1122 = vunpack.c.l.b16 %v1110
      %v1123 = vpack.c.b16 %v1120, %v1119
      %v1124 = vpack.c.b16 %v1122, %v1121
      %vm1127 = vcmask 261120
      %v1129 = vsel %vm1127, %v1105, 0
      %v1132 = vsel %vm1127, %v1106, 0
      %1134 = vmatpush.bf16.msra.mxu0 0
      %1135 = vmatpush.bf16.msra.mxu0 0
      %1136 = vmatpush.bf16.msra.mxu0 0
      %1137 = vmatpush.bf16.msra.mxu0 0
      %1138 = vmatpush.bf16.msra.mxu0 0
      %1139 = vmatpush.bf16.msra.mxu0 0
      %1140 = vmatpush.bf16.msra.mxu0 %v1124
      %1141 = vmatpush.bf16.msra.mxu0 %v1123
      %1142 = vmatmul.bf16.gmra.mxu0 %v1129
      %v1143 = vpop.f32.mrf.mxu0
      %v1144 = vadd.f32 %v1113, %v1143
      %v1145 = vpop.f32.mrf.mxu0
      %v1146 = vadd.f32 %v1113, %v1145
      %1147 = vmatmul.bf16.gmra.mxu0 %v1132
      %v1148 = vpop.f32.mrf.mxu0
      %v1149 = vadd.f32 %v1113, %v1148
      %v1150 = vpop.f32.mrf.mxu0
      %v1151 = vadd.f32 %v1113, %v1150
      %1152 = vdwg.mxu0
      %v1153 = vxor.u32 %v1144, 2147483648
      %v1154 = vxor.u32 %v1146, 2147483648
      %v1155 = vxor.u32 %v1149, 2147483648
      %v1156 = vxor.u32 %v1151, 2147483648
      %v1157 = vmul.f32 %v1153, 1.442695
      %v1158 = vpow.pop %v1157
      %v1159 = vmul.f32 %v1154, 1.442695
      %v1160 = vpow.pop %v1159
      %v1161 = vmul.f32 %v1155, 1.442695
      %v1162 = vpow.pop %v1161
      %v1163 = vmul.f32 %v1156, 1.442695
      %v1164 = vpow.pop %v1163
      %v1165 = vadd.f32 %v1158, 1.0
      %v1166 = vadd.f32 %v1160, 1.0
      %v1167 = vadd.f32 %v1162, 1.0
      %v1168 = vadd.f32 %v1164, 1.0
      %v1169 = vrcp.pop %v1165
      %v1170 = vmul.f32 %v1165, %v1169
      %v1171 = vsub.f32 1.0, %v1170
      %v1172 = vmul.f32 %v1169, %v1171
      %v1173 = vadd.f32 %v1169, %v1172
      %vm1174 = vweird.f32 %v1165
      %vm1175 = vweird.f32 %v1169
      %vm1176 = vmor %vm1174, %vm1175
      %v1177 = vsel %vm1176, %v1169, %v1173
      %v1178 = vand.u32 2147483647, %v1165
      %vm1179 = vcmp.eq.f32.partialorder %v1178, 8.507059e+37
      %v1180 = vand.u32 %v1165, 2147483648
      %v1181 = vor.u32 1.1754944e-38, %v1180
      %v1182 = vsel %vm1179, %v1181, %v1177
      %v1183 = vmul.f32 1.0, %v1182
      %v1184 = vrcp.pop %v1166
      %v1185 = vmul.f32 %v1166, %v1184
      %v1186 = vsub.f32 1.0, %v1185
      %v1187 = vmul.f32 %v1184, %v1186
      %v1188 = vadd.f32 %v1184, %v1187
      %vm1189 = vweird.f32 %v1166
      %vm1190 = vweird.f32 %v1184
      %vm1191 = vmor %vm1189, %vm1190
      %v1192 = vsel %vm1191, %v1184, %v1188
      %v1193 = vand.u32 2147483647, %v1166
      %vm1194 = vcmp.eq.f32.partialorder %v1193, 8.507059e+37
      %v1195 = vand.u32 %v1166, 2147483648
      %v1196 = vor.u32 1.1754944e-38, %v1195
      %v1197 = vsel %vm1194, %v1196, %v1192
      %v1198 = vmul.f32 1.0, %v1197
      %v1199 = vrcp.pop %v1167
      %v1200 = vmul.f32 %v1167, %v1199
      %v1201 = vsub.f32 1.0, %v1200
      %v1202 = vmul.f32 %v1199, %v1201
      %v1203 = vadd.f32 %v1199, %v1202
      %vm1204 = vweird.f32 %v1167
      %vm1205 = vweird.f32 %v1199
      %vm1206 = vmor %vm1204, %vm1205
      %v1207 = vsel %vm1206, %v1199, %v1203
      %v1208 = vand.u32 2147483647, %v1167
      %vm1209 = vcmp.eq.f32.partialorder %v1208, 8.507059e+37
      %v1210 = vand.u32 %v1167, 2147483648
      %v1211 = vor.u32 1.1754944e-38, %v1210
      %v1212 = vsel %vm1209, %v1211, %v1207
      %v1213 = vmul.f32 1.0, %v1212
      %v1214 = vrcp.pop %v1168
      %v1215 = vmul.f32 %v1168, %v1214
      %v1216 = vsub.f32 1.0, %v1215
      %v1217 = vmul.f32 %v1214, %v1216
      %v1218 = vadd.f32 %v1214, %v1217
      %vm1219 = vweird.f32 %v1168
      %vm1220 = vweird.f32 %v1214
      %vm1221 = vmor %vm1219, %vm1220
      %v1222 = vsel %vm1221, %v1214, %v1218
      %v1223 = vand.u32 2147483647, %v1168
      %vm1224 = vcmp.eq.f32.partialorder %v1223, 8.507059e+37
      %v1225 = vand.u32 %v1168, 2147483648
      %v1226 = vor.u32 1.1754944e-38, %v1225
      %v1227 = vsel %vm1224, %v1226, %v1222
      %v1228 = vmul.f32 1.0, %v1227
      %v1229 = vmul.f32 %v1144, %v1183
      %v1230 = vmul.f32 %v1146, %v1198
      %v1231 = vmul.f32 %v1149, %v1213
      %v1232 = vmul.f32 %v1151, %v1228
      %v1233 = vpack.c.bf16 %v1098, %v1097
      %v1234 = vpack.c.bf16 %v1100, %v1099
      %v1235 = vld [vmem:[%s5] sm:$0x7]
      %v1236 = vld [vmem:[%s6] sm:$0x1]
      %v1238 = vperm.slane %v1236, 0
      %vm1240 = vcmask 48128
      %v1242 = vsel %vm1240, %v1233, 0
      %v1245 = vsel %vm1240, %v1234, 0
      %vm1247 = vcmask 1042432
      %v1249 = vsel %vm1247, %v1235, 0
      %1251 = vmatpush.bf16.msra.mxu0 0
      %1252 = vmatpush.bf16.msra.mxu0 0
      %1253 = vmatpush.bf16.msra.mxu0 0
      %1254 = vmatpush.bf16.msra.mxu0 0
      %1255 = vmatpush.bf16.msra.mxu0 0
      %1256 = vmatpush.bf16.msra.mxu0 0
      %1257 = vmatpush.bf16.msra.mxu0 0
      %1258 = vmatpush.bf16.msra.mxu0 %v1249
      %1259 = vmatmul.bf16.gmra.mxu0 %v1242
      %v1260 = vpop.f32.mrf.mxu0
      %v1261 = vadd.f32 %v1238, %v1260
      %v1262 = vpop.f32.mrf.mxu0
      %v1263 = vadd.f32 %v1238, %v1262
      %1264 = vmatmul.bf16.gmra.mxu0 %v1245
      %v1265 = vpop.f32.mrf.mxu0
      %v1266 = vadd.f32 %v1238, %v1265
      %v1267 = vpop.f32.mrf.mxu0
      %v1268 = vadd.f32 %v1238, %v1267
      %1269 = vdwg.mxu0
      %v1270 = vmul.f32 %v1229, %v1261
      %v1271 = vmul.f32 %v1230, %v1263
      %v1272 = vmul.f32 %v1231, %v1266
      %v1273 = vmul.f32 %v1232, %v1268
      %vm1274 = vcmask 523264
      %1275 = vst.msk [vmem:[%s302] sm:$0xff] %vm1274, %v1270
      %1276 = vst.msk [vmem:[%s302 + $0x8] sm:$0xff] %vm1274, %v1271
      %1277 = vst.msk [vmem:[%s302 + $0x10] sm:$0xff] %vm1274, %v1272
      %1278 = vst.msk [vmem:[%s302 + $0x18] sm:$0xff] %vm1274, %v1273
      %s1279 = smul.u32 4, %s18
      %p1280 = scmp.lt.s32.totalorder %s1279, 7
      %s1281 = scalar_select %p1280, %s1279, 7
      %s1282 = smul.addr %s1281, 8
      %s1283 = scalar_lea.vmem %s7, %s1282
      // Predicated region
      $region49: #{_lambda_.13} parent=47 // pred_check
        %p1284 = pneg %p193
      $region50: #{_lambda_.13} parent=47 // pred_check_branch
        %1286 = sbr.rel (%p1284) target = $region52
      $region51: #{_lambda_.13} parent=47 // pred_region
        %s1287 = smul.u32 4, %s18
      $region52: #{_lambda_.13} parent=47 // pred_fallthru
        _
    $region48: #{_lambda_.13} parent=5 // pred_fallthru
      _
    %p1288 = scmp.le.s32.totalorder 2, %s13
    // Predicated region
    $region53: #{_lambda_.13} parent=5 // pred_check
      %p1289 = pneg %p1288
    $region54: #{_lambda_.13} parent=5 // pred_check_branch
      %1291 = sbr.rel (%p1289) target = $region56
    $region55: #{_lambda_.13} parent=5 // pred_region
      %s1292 = ssub.s32 %s13, 2
      // Predicated region
      $region57: #{_lambda_.13} parent=55 // pred_check
        %p1293 = pneg %p199
      $region58: #{_lambda_.13} parent=55 // pred_check_branch
        %1295 = sbr.rel (%p1293) target = $region60
      $region59: #{_lambda_.13} parent=55 // pred_region
        %s1296 = smul.u32 4, %s19
        %p1297 = scmp.lt.s32.totalorder %s1296, 7
        %s1298 = scalar_select %p1297, %s1296, 7
        %s1299 = smul.addr %s1298, 8
        %s1300 = scalar_lea.vmem %s7, %s1299
      $region60: #{_lambda_.13} parent=55 // pred_fallthru
        _
    $region56: #{_lambda_.13} parent=5 // pred_fallthru
      _
  $region6: #{_lambda_.13} parent=0 // loop_footer
    %s17 = sadd.s32 1, %s13
  $region7: #{_lambda_.13} parent=0 // loop_footer_branch
    %12 = sbr.rel target = $region3
  $region8: #{_lambda_.13} parent=0 // loop_exit
    _

// kernel: _lambda_.11
$region0: #{_lambda_.11}
  #allocation0 [shape = 'u32[]', space=smem, size = 0x4, offset = 0x4, fixed_abs, tag = 'smem constant byte address 0x4 - core index']
  #allocation1 [shape = 'u32[72,128]{1,0:T(1,128)}', space=vmem, size = 0x9000, scoped, tag = 'internal scratch']
  %s0 = inlined_call_operand.vmem [shape: f32[64,1], index: 0, kind: input, shape index: {}]
  %s1 = inlined_call_operand.vmem [shape: f32[64,32], index: 1, kind: input, shape index: {}]
  %s2 = inlined_call_operand.vmem [shape: f32[64,32], index: 2, kind: input, shape index: {}]
  %s3 = inlined_call_operand.vmem [shape: f32[1,6], index: 3, kind: input, shape index: {}]
  %s4 = inlined_call_operand.vmem [shape: bf16[6,32], index: 4, kind: input, shape index: {}]
  %s5 = inlined_call_operand.vmem [shape: f32[1,32], index: 5, kind: input, shape index: {}, may-alias: {5,9}]
  %s6 = inlined_call_operand.vmem [shape: bf16[32,32], index: 6, kind: input, shape index: {}]
  %s7 = inlined_call_operand.vmem [shape: bf16[32,32], index: 7, kind: input, shape index: {}]
  %s8 = inlined_call_operand.vmem [shape: bf16[32,32], index: 8, kind: input, shape index: {}]
  %s9 = inlined_call_operand.vmem [shape: f32[1,32], index: 9, kind: input, shape index: {}, may-alias: {5,9}]
  %s10 = inlined_call_operand.vmem [shape: f32[64,32], index: 10, kind: output, shape index: {}]
  %s11 = sld [smem:[#allocation0]]
  $region73: #{_lambda_.11} parent=0
    _
  %s13 = ssub.s32 1, %s11
  %s14 = scalar_select 0, %s13, %s11
  loop: start=0, step=1, limit=4
  $region2: #{_lambda_.11} parent=0 // loop_pre_header
    _
  $region3: #{_lambda_.11} parent=0 // loop_header
    %s16 = sphi 0, %s20
    %p17 = scmp.ge.s32.totalorder %s16, 4
    %s26 = sphi 0, %s28
    %s29 = sphi 0, %s26
    %s30 = sphi 0, %s29
    %s46 = sphi 0, %s30
    %s52 = sphi 0, %s54
    %s55 = sphi 0, %s52
    %s56 = sphi 0, %s55
    %s72 = sphi 0, %s56
    %s78 = sphi 0, %s80
    %s81 = sphi 0, %s78
    %s82 = sphi 0, %s81
    %s98 = sphi 0, %s82
    %s102 = sphi 0, %s102
    %s104 = sphi 0, %s102
    %s105 = sphi 0, %s104
    %s119 = sphi 0, %s105
    %s123 = sphi 0, %s123
    %s125 = sphi 0, %s123
    %s126 = sphi 0, %s125
    %s140 = sphi 0, %s126
    %s144 = sphi 0, %s144
    %s146 = sphi 0, %s144
    %s147 = sphi 0, %s146
    %s161 = sphi 0, %s147
    %s165 = sphi 0, %s165
    %s167 = sphi 0, %s165
    %s168 = sphi 0, %s167
    %s182 = sphi 0, %s168
    %s186 = sphi 0, %s186
    %s188 = sphi 0, %s186
    %s189 = sphi 0, %s188
    %s203 = sphi 0, %s189
    %s207 = sphi 0, %s207
    %s209 = sphi 0, %s207
    %s210 = sphi 0, %s209
    %s224 = sphi 0, %s210
    %s228 = sphi 0, %s228
    %s230 = sphi 0, %s228
    %s231 = sphi 0, %s230
    %s245 = sphi 0, %s231
    %s251 = sphi 0, %s253
    %s254 = sphi 0, %s251
    %s255 = sphi 0, %s254
    %s271 = sphi 0, %s255
  $region4: #{_lambda_.11} parent=0 // loop_header_branch
    %19 = sbr.rel (%p17) target = $region8
  $region5: #{_lambda_.11} parent=0 // loop_body
    %s21 = ssub.s32 %s16, 1
    %s22 = ssub.s32 %s16, 2
    %s23 = sadd.s32 %s16, 1
    %s24 = ssub.s32 %s16, %s23
    %p25 = scmp.eq.s32.totalorder %s24, 0
    %s27 = sadd.s32 %s26, 1
    %s28 = scalar_select %p25, %s26, %s27
    %p31 = pneg %p25
    %p32 = scmp.eq.s32.totalorder %s16, 1
    %p33 = por %p31, %p32
    %p34 = scmp.ne.s32.totalorder %s26, %s29
    %p35 = scmp.eq.s32.totalorder %s16, 0
    %p36 = por %p34, %p35
    %p37 = scmp.ne.s32.totalorder %s26, %s29
    %p38 = scmp.eq.s32.totalorder %s21, 1
    %p39 = por %p37, %p38
    %p40 = scmp.ne.s32.totalorder %s29, %s30
    %p41 = scmp.eq.s32.totalorder %s21, 0
    %p42 = por %p40, %p41
    %p43 = scmp.ne.s32.totalorder %s29, %s30
    %p44 = scmp.eq.s32.totalorder %s22, 1
    %p45 = por %p43, %p44
    %p47 = scmp.ne.s32.totalorder %s30, %s46
    %p48 = scmp.eq.s32.totalorder %s22, 0
    %p49 = por %p47, %p48
    %s50 = ssub.s32 %s16, %s23
    %p51 = scmp.eq.s32.totalorder %s50, 0
    %s53 = sadd.s32 %s52, 1
    %s54 = scalar_select %p51, %s52, %s53
    %p57 = pneg %p51
    %p58 = scmp.eq.s32.totalorder %s16, 1
    %p59 = por %p57, %p58
    %p60 = scmp.ne.s32.totalorder %s52, %s55
    %p61 = scmp.eq.s32.totalorder %s16, 0
    %p62 = por %p60, %p61
    %p63 = scmp.ne.s32.totalorder %s52, %s55
    %p64 = scmp.eq.s32.totalorder %s21, 1
    %p65 = por %p63, %p64
    %p66 = scmp.ne.s32.totalorder %s55, %s56
    %p67 = scmp.eq.s32.totalorder %s21, 0
    %p68 = por %p66, %p67
    %p69 = scmp.ne.s32.totalorder %s55, %s56
    %p70 = scmp.eq.s32.totalorder %s22, 1
    %p71 = por %p69, %p70
    %p73 = scmp.ne.s32.totalorder %s56, %s72
    %p74 = scmp.eq.s32.totalorder %s22, 0
    %p75 = por %p73, %p74
    %s76 = ssub.s32 %s16, %s23
    %p77 = scmp.eq.s32.totalorder %s76, 0
    %s79 = sadd.s32 %s78, 1
    %s80 = scalar_select %p77, %s78, %s79
    %p83 = pneg %p77
    %p84 = scmp.eq.s32.totalorder %s16, 1
    %p85 = por %p83, %p84
    %p86 = scmp.ne.s32.totalorder %s78, %s81
    %p87 = scmp.eq.s32.totalorder %s16, 0
    %p88 = por %p86, %p87
    %p89 = scmp.ne.s32.totalorder %s78, %s81
    %p90 = scmp.eq.s32.totalorder %s21, 1
    %p91 = por %p89, %p90
    %p92 = scmp.ne.s32.totalorder %s81, %s82
    %p93 = scmp.eq.s32.totalorder %s21, 0
    %p94 = por %p92, %p93
    %p95 = scmp.ne.s32.totalorder %s81, %s82
    %p96 = scmp.eq.s32.totalorder %s22, 1
    %p97 = por %p95, %p96
    %p99 = scmp.ne.s32.totalorder %s82, %s98
    %p100 = scmp.eq.s32.totalorder %s22, 0
    %p101 = por %p99, %p100
    %s103 = sadd.s32 %s102, 1
    %p106 = scmp.eq.s32.totalorder %s16, 1
    %p107 = scmp.ne.s32.totalorder %s102, %s104
    %p108 = scmp.eq.s32.totalorder %s16, 0
    %p109 = por %p107, %p108
    %p110 = scmp.ne.s32.totalorder %s102, %s104
    %p111 = scmp.eq.s32.totalorder %s21, 1
    %p112 = por %p110, %p111
    %p113 = scmp.ne.s32.totalorder %s104, %s105
    %p114 = scmp.eq.s32.totalorder %s21, 0
    %p115 = por %p113, %p114
    %p116 = scmp.ne.s32.totalorder %s104, %s105
    %p117 = scmp.eq.s32.totalorder %s22, 1
    %p118 = por %p116, %p117
    %p120 = scmp.ne.s32.totalorder %s105, %s119
    %p121 = scmp.eq.s32.totalorder %s22, 0
    %p122 = por %p120, %p121
    %s124 = sadd.s32 %s123, 1
    %p127 = scmp.eq.s32.totalorder %s16, 1
    %p128 = scmp.ne.s32.totalorder %s123, %s125
    %p129 = scmp.eq.s32.totalorder %s16, 0
    %p130 = por %p128, %p129
    %p131 = scmp.ne.s32.totalorder %s123, %s125
    %p132 = scmp.eq.s32.totalorder %s21, 1
    %p133 = por %p131, %p132
    %p134 = scmp.ne.s32.totalorder %s125, %s126
    %p135 = scmp.eq.s32.totalorder %s21, 0
    %p136 = por %p134, %p135
    %p137 = scmp.ne.s32.totalorder %s125, %s126
    %p138 = scmp.eq.s32.totalorder %s22, 1
    %p139 = por %p137, %p138
    %p141 = scmp.ne.s32.totalorder %s126, %s140
    %p142 = scmp.eq.s32.totalorder %s22, 0
    %p143 = por %p141, %p142
    %s145 = sadd.s32 %s144, 1
    %p148 = scmp.eq.s32.totalorder %s16, 1
    %p149 = scmp.ne.s32.totalorder %s144, %s146
    %p150 = scmp.eq.s32.totalorder %s16, 0
    %p151 = por %p149, %p150
    %p152 = scmp.ne.s32.totalorder %s144, %s146
    %p153 = scmp.eq.s32.totalorder %s21, 1
    %p154 = por %p152, %p153
    %p155 = scmp.ne.s32.totalorder %s146, %s147
    %p156 = scmp.eq.s32.totalorder %s21, 0
    %p157 = por %p155, %p156
    %p158 = scmp.ne.s32.totalorder %s146, %s147
    %p159 = scmp.eq.s32.totalorder %s22, 1
    %p160 = por %p158, %p159
    %p162 = scmp.ne.s32.totalorder %s147, %s161
    %p163 = scmp.eq.s32.totalorder %s22, 0
    %p164 = por %p162, %p163
    %s166 = sadd.s32 %s165, 1
    %p169 = scmp.eq.s32.totalorder %s16, 1
    %p170 = scmp.ne.s32.totalorder %s165, %s167
    %p171 = scmp.eq.s32.totalorder %s16, 0
    %p172 = por %p170, %p171
    %p173 = scmp.ne.s32.totalorder %s165, %s167
    %p174 = scmp.eq.s32.totalorder %s21, 1
    %p175 = por %p173, %p174
    %p176 = scmp.ne.s32.totalorder %s167, %s168
    %p177 = scmp.eq.s32.totalorder %s21, 0
    %p178 = por %p176, %p177
    %p179 = scmp.ne.s32.totalorder %s167, %s168
    %p180 = scmp.eq.s32.totalorder %s22, 1
    %p181 = por %p179, %p180
    %p183 = scmp.ne.s32.totalorder %s168, %s182
    %p184 = scmp.eq.s32.totalorder %s22, 0
    %p185 = por %p183, %p184
    %s187 = sadd.s32 %s186, 1
    %p190 = scmp.eq.s32.totalorder %s16, 1
    %p191 = scmp.ne.s32.totalorder %s186, %s188
    %p192 = scmp.eq.s32.totalorder %s16, 0
    %p193 = por %p191, %p192
    %p194 = scmp.ne.s32.totalorder %s186, %s188
    %p195 = scmp.eq.s32.totalorder %s21, 1
    %p196 = por %p194, %p195
    %p197 = scmp.ne.s32.totalorder %s188, %s189
    %p198 = scmp.eq.s32.totalorder %s21, 0
    %p199 = por %p197, %p198
    %p200 = scmp.ne.s32.totalorder %s188, %s189
    %p201 = scmp.eq.s32.totalorder %s22, 1
    %p202 = por %p200, %p201
    %p204 = scmp.ne.s32.totalorder %s189, %s203
    %p205 = scmp.eq.s32.totalorder %s22, 0
    %p206 = por %p204, %p205
    %s208 = sadd.s32 %s207, 1
    %p211 = scmp.eq.s32.totalorder %s16, 1
    %p212 = scmp.ne.s32.totalorder %s207, %s209
    %p213 = scmp.eq.s32.totalorder %s16, 0
    %p214 = por %p212, %p213
    %p215 = scmp.ne.s32.totalorder %s207, %s209
    %p216 = scmp.eq.s32.totalorder %s21, 1
    %p217 = por %p215, %p216
    %p218 = scmp.ne.s32.totalorder %s209, %s210
    %p219 = scmp.eq.s32.totalorder %s21, 0
    %p220 = por %p218, %p219
    %p221 = scmp.ne.s32.totalorder %s209, %s210
    %p222 = scmp.eq.s32.totalorder %s22, 1
    %p223 = por %p221, %p222
    %p225 = scmp.ne.s32.totalorder %s210, %s224
    %p226 = scmp.eq.s32.totalorder %s22, 0
    %p227 = por %p225, %p226
    %s229 = sadd.s32 %s228, 1
    %p232 = scmp.eq.s32.totalorder %s16, 1
    %p233 = scmp.ne.s32.totalorder %s228, %s230
    %p234 = scmp.eq.s32.totalorder %s16, 0
    %p235 = por %p233, %p234
    %p236 = scmp.ne.s32.totalorder %s228, %s230
    %p237 = scmp.eq.s32.totalorder %s21, 1
    %p238 = por %p236, %p237
    %p239 = scmp.ne.s32.totalorder %s230, %s231
    %p240 = scmp.eq.s32.totalorder %s21, 0
    %p241 = por %p239, %p240
    %p242 = scmp.ne.s32.totalorder %s230, %s231
    %p243 = scmp.eq.s32.totalorder %s22, 1
    %p244 = por %p242, %p243
    %p246 = scmp.ne.s32.totalorder %s231, %s245
    %p247 = scmp.eq.s32.totalorder %s22, 0
    %p248 = por %p246, %p247
    %s249 = ssub.s32 %s16, %s23
    %p250 = scmp.eq.s32.totalorder %s249, 0
    %s252 = sadd.s32 %s251, 1
    %s253 = scalar_select %p250, %s251, %s252
    %p256 = pneg %p250
    %p257 = scmp.eq.s32.totalorder %s16, 1
    %p258 = por %p256, %p257
    %p259 = scmp.ne.s32.totalorder %s251, %s254
    %p260 = scmp.eq.s32.totalorder %s16, 0
    %p261 = por %p259, %p260
    %p262 = scmp.ne.s32.totalorder %s251, %s254
    %p263 = scmp.eq.s32.totalorder %s21, 1
    %p264 = por %p262, %p263
    %p265 = scmp.ne.s32.totalorder %s254, %s255
    %p266 = scmp.eq.s32.totalorder %s21, 0
    %p267 = por %p265, %p266
    %p268 = scmp.ne.s32.totalorder %s254, %s255
    %p269 = scmp.eq.s32.totalorder %s22, 1
    %p270 = por %p268, %p269
    %p272 = scmp.ne.s32.totalorder %s255, %s271
    %p273 = scmp.eq.s32.totalorder %s22, 0
    %p274 = por %p272, %p273
    %p275 = scmp.le.s32.totalorder 1, %s16
    %p276 = scmp.lt.s32.totalorder %s16, 3
    %p277 = pnand %p275, %p276
    %p278 = pneg %p277
    // Predicated region
    $region9: #{_lambda_.11} parent=5 // pred_check
      _
    $region10: #{_lambda_.11} parent=5 // pred_check_branch
      %280 = sbr.rel (%p277) target = $region12
    $region11: #{_lambda_.11} parent=5 // pred_region
      %s281 = ssub.s32 %s16, 1
      // Predicated region
      $region13: #{_lambda_.11} parent=11 // pred_check
        %p282 = pneg %p115
      $region14: #{_lambda_.11} parent=11 // pred_check_branch
        %284 = sbr.rel (%p282) target = $region16
      $region15: #{_lambda_.11} parent=11 // pred_region
        _
      $region16: #{_lambda_.11} parent=11 // pred_fallthru
        _
      // Predicated region
      $region17: #{_lambda_.11} parent=11 // pred_check
        %p285 = pneg %p136
      $region18: #{_lambda_.11} parent=11 // pred_check_branch
        %287 = sbr.rel (%p285) target = $region20
      $region19: #{_lambda_.11} parent=11 // pred_region
        _
      $region20: #{_lambda_.11} parent=11 // pred_fallthru
        _
      // Predicated region
      $region21: #{_lambda_.11} parent=11 // pred_check
        %p288 = pneg %p157
      $region22: #{_lambda_.11} parent=11 // pred_check_branch
        %290 = sbr.rel (%p288) target = $region24
      $region23: #{_lambda_.11} parent=11 // pred_region
        _
      $region24: #{_lambda_.11} parent=11 // pred_fallthru
        _
      // Predicated region
      $region25: #{_lambda_.11} parent=11 // pred_check
        %p291 = pneg %p178
      $region26: #{_lambda_.11} parent=11 // pred_check_branch
        %293 = sbr.rel (%p291) target = $region28
      $region27: #{_lambda_.11} parent=11 // pred_region
        _
      $region28: #{_lambda_.11} parent=11 // pred_fallthru
        _
      // Predicated region
      $region29: #{_lambda_.11} parent=11 // pred_check
        %p294 = pneg %p199
      $region30: #{_lambda_.11} parent=11 // pred_check_branch
        %296 = sbr.rel (%p294) target = $region32
      $region31: #{_lambda_.11} parent=11 // pred_region
        _
      $region32: #{_lambda_.11} parent=11 // pred_fallthru
        _
      // Predicated region
      $region33: #{_lambda_.11} parent=11 // pred_check
        %p297 = pneg %p220
      $region34: #{_lambda_.11} parent=11 // pred_check_branch
        %299 = sbr.rel (%p297) target = $region36
      $region35: #{_lambda_.11} parent=11 // pred_region
        _
      $region36: #{_lambda_.11} parent=11 // pred_fallthru
        _
      // Predicated region
      $region37: #{_lambda_.11} parent=11 // pred_check
        %p300 = pneg %p241
      $region38: #{_lambda_.11} parent=11 // pred_check_branch
        %302 = sbr.rel (%p300) target = $region40
      $region39: #{_lambda_.11} parent=11 // pred_region
        _
      $region40: #{_lambda_.11} parent=11 // pred_fallthru
        _
    $region12: #{_lambda_.11} parent=5 // pred_fallthru
      _
    %p303 = scmp.lt.s32.totalorder %s16, 2
    // Predicated region
    $region41: #{_lambda_.11} parent=5 // pred_check
      %p304 = pneg %p303
    $region42: #{_lambda_.11} parent=5 // pred_check_branch
      %306 = sbr.rel (%p304) target = $region44
    $region43: #{_lambda_.11} parent=5 // pred_region
      // Predicated region
      $region45: #{_lambda_.11} parent=43 // pred_check
        %p307 = pneg %p36
      $region46: #{_lambda_.11} parent=43 // pred_check_branch
        %309 = sbr.rel (%p307) target = $region48
      $region47: #{_lambda_.11} parent=43 // pred_region
        %s310 = smul.u32 4, %s16
        %p311 = scmp.lt.s32.totalorder %s310, 7
        %s312 = scalar_select %p311, %s310, 7
        %s313 = smul.addr %s312, 8
        %s314 = scalar_lea.vmem %s0, %s313
        %s315 = smul.u32 4, %s16
      $region48: #{_lambda_.11} parent=43 // pred_fallthru
        _
      // Predicated region
      $region49: #{_lambda_.11} parent=43 // pred_check
        %p316 = pneg %p62
      $region50: #{_lambda_.11} parent=43 // pred_check_branch
        %318 = sbr.rel (%p316) target = $region52
      $region51: #{_lambda_.11} parent=43 // pred_region
        %s319 = smul.u32 4, %s16
        %p320 = scmp.lt.s32.totalorder %s319, 7
        %s321 = scalar_select %p320, %s319, 7
        %s322 = smul.addr %s321, 8
        %s323 = scalar_lea.vmem %s1, %s322
        %s324 = smul.u32 4, %s16
      $region52: #{_lambda_.11} parent=43 // pred_fallthru
        _
      // Predicated region
      $region53: #{_lambda_.11} parent=43 // pred_check
        %p325 = pneg %p88
      $region54: #{_lambda_.11} parent=43 // pred_check_branch
        %327 = sbr.rel (%p325) target = $region56
      $region55: #{_lambda_.11} parent=43 // pred_region
        %s328 = smul.u32 4, %s16
        %p329 = scmp.lt.s32.totalorder %s328, 7
        %s330 = scalar_select %p329, %s328, 7
        %s331 = smul.addr %s330, 8
        %s332 = scalar_lea.vmem %s2, %s331
        %s333 = smul.u32 4, %s16
      $region56: #{_lambda_.11} parent=43 // pred_fallthru
        _
    $region44: #{_lambda_.11} parent=5 // pred_fallthru
      _
    %p334 = scmp.le.s32.totalorder 1, %s16
    %p335 = scmp.lt.s32.totalorder %s16, 3
    %p336 = pnand %p334, %p335
    %p337 = pneg %p336
    // Predicated region
    $region57: #{_lambda_.11} parent=5 // pred_check
      _
    $region58: #{_lambda_.11} parent=5 // pred_check_branch
      %339 = sbr.rel (%p336) target = $region60
    $region59: #{_lambda_.11} parent=5 // pred_region
      %s340 = ssub.s32 %s16, 1
      %s341 = smul.u32 4, %s21
      %p342 = scmp.lt.s32.totalorder %s341, 7
      %s343 = scalar_select %p342, %s341, 7
      %s344 = smul.addr %s343, 8
      %s345 = scalar_lea.vmem %s0, %s344
      %p346 = pneg %p42
      %p347 = pneg %p39
      %s348 = smul.u32 4, %s21
      %p349 = scmp.lt.s32.totalorder %s348, 7
      %s350 = scalar_select %p349, %s348, 7
      %s351 = smul.addr %s350, 8
      %s352 = scalar_lea.vmem %s1, %s351
      %p353 = pneg %p68
      %p354 = pneg %p65
      %s355 = smul.u32 4, %s21
      %p356 = scmp.lt.s32.totalorder %s355, 7
      %s357 = scalar_select %p356, %s355, 7
      %s358 = smul.addr %s357, 8
      %s359 = scalar_lea.vmem %s2, %s358
      %p360 = pneg %p94
      %p361 = pneg %p91
      %p362 = pneg %p115
      %p363 = pneg %p112
      %p364 = pneg %p136
      %p365 = pneg %p133
      %p366 = pneg %p157
      %p367 = pneg %p154
      %p368 = pneg %p178
      %p369 = pneg %p175
      %p370 = pneg %p199
      %p371 = pneg %p196
      %p372 = pneg %p220
      %p373 = pneg %p217
      %p374 = pneg %p241
      %p375 = pneg %p238
      %p376 = pneg %p267
      %p377 = pneg %p264
      %s378 = smul.u32 4, %s21
      %p379 = scmp.lt.s32.totalorder %s378, 7
      %s380 = scalar_select %p379, %s378, 7
      %s381 = smul.addr %s380, 8
      %s382 = scalar_lea.vmem %s10, %s381
      %s383 = smul.u32 4, %s21
      %p384 = scmp.lt.s32.totalorder %s383, 7
      %s385 = scalar_select %p384, %s383, 7
      %s386 = smul.addr %s385, 8
      %s387 = scalar_lea.vmem %s0, %s386
      %s388 = smul.u32 4, %s21
      %s389 = smul.u32 4, %s21
      %p390 = scmp.lt.s32.totalorder %s389, 7
      %s391 = scalar_select %p390, %s389, 7
      %s392 = smul.addr %s391, 8
      %s393 = scalar_lea.vmem %s1, %s392
      %s394 = smul.u32 4, %s21
      %s395 = smul.u32 4, %s21
      %p396 = scmp.lt.s32.totalorder %s395, 7
      %s397 = scalar_select %p396, %s395, 7
      %s398 = smul.addr %s397, 8
      %s399 = scalar_lea.vmem %s2, %s398
      %s400 = smul.u32 4, %s21
      %s401 = smul.u32 4, %s21
      %p402 = scmp.lt.s32.totalorder %s401, 7
      %s403 = scalar_select %p402, %s401, 7
      %s404 = smul.addr %s403, 8
      %s405 = scalar_lea.vmem %s10, %s404
      %s406 = smul.u32 4, %s21
      %v408 = vld [vmem:[%s387] sm:$0xff]
      %v409 = vld [vmem:[%s387 + $0x8] sm:$0xff]
      %v410 = vld [vmem:[%s387 + $0x10] sm:$0xff]
      %v411 = vld [vmem:[%s387 + $0x18] sm:$0xff]
      %v412 = vmul.f32 %v408, 0.2
      %v413 = vmul.f32 %v409, 0.2
      %v414 = vmul.f32 %v410, 0.2
      %v415 = vmul.f32 %v411, 0.2
      %v416 = vrcp.pop %v412
      %v417 = vmul.f32 %v412, %v416
      %v418 = vsub.f32 1.0, %v417
      %v419 = vmul.f32 %v416, %v418
      %v420 = vadd.f32 %v416, %v419
      %vm421 = vweird.f32 %v412
      %vm422 = vweird.f32 %v416
      %vm423 = vmor %vm421, %vm422
      %v424 = vsel %vm423, %v416, %v420
      %v425 = vand.u32 2147483647, %v412
      %vm426 = vcmp.eq.f32.partialorder %v425, 8.507059e+37
      %v427 = vand.u32 %v412, 2147483648
      %v428 = vor.u32 1.1754944e-38, %v427
      %v429 = vsel %vm426, %v428, %v424
      %v430 = vmul.f32 1.0, %v429
      %v431 = vrcp.pop %v413
      %v432 = vmul.f32 %v413, %v431
      %v433 = vsub.f32 1.0, %v432
      %v434 = vmul.f32 %v431, %v433
      %v435 = vadd.f32 %v431, %v434
      %vm436 = vweird.f32 %v413
      %vm437 = vweird.f32 %v431
      %vm438 = vmor %vm436, %vm437
      %v439 = vsel %vm438, %v431, %v435
      %v440 = vand.u32 2147483647, %v413
      %vm441 = vcmp.eq.f32.partialorder %v440, 8.507059e+37
      %v442 = vand.u32 %v413, 2147483648
      %v443 = vor.u32 1.1754944e-38, %v442
      %v444 = vsel %vm441, %v443, %v439
      %v445 = vmul.f32 1.0, %v444
      %v446 = vrcp.pop %v414
      %v447 = vmul.f32 %v414, %v446
      %v448 = vsub.f32 1.0, %v447
      %v449 = vmul.f32 %v446, %v448
      %v450 = vadd.f32 %v446, %v449
      %vm451 = vweird.f32 %v414
      %vm452 = vweird.f32 %v446
      %vm453 = vmor %vm451, %vm452
      %v454 = vsel %vm453, %v446, %v450
      %v455 = vand.u32 2147483647, %v414
      %vm456 = vcmp.eq.f32.partialorder %v455, 8.507059e+37
      %v457 = vand.u32 %v414, 2147483648
      %v458 = vor.u32 1.1754944e-38, %v457
      %v459 = vsel %vm456, %v458, %v454
      %v460 = vmul.f32 1.0, %v459
      %v461 = vrcp.pop %v415
      %v462 = vmul.f32 %v415, %v461
      %v463 = vsub.f32 1.0, %v462
      %v464 = vmul.f32 %v461, %v463
      %v465 = vadd.f32 %v461, %v464
      %vm466 = vweird.f32 %v415
      %vm467 = vweird.f32 %v461
      %vm468 = vmor %vm466, %vm467
      %v469 = vsel %vm468, %v461, %v465
      %v470 = vand.u32 2147483647, %v415
      %vm471 = vcmp.eq.f32.partialorder %v470, 8.507059e+37
      %v472 = vand.u32 %v415, 2147483648
      %v473 = vor.u32 1.1754944e-38, %v472
      %v474 = vsel %vm471, %v473, %v469
      %v475 = vmul.f32 1.0, %v474
      %v476 = vmul.f32 %v412, %v412
      %v477 = vmul.f32 %v413, %v413
      %v478 = vmul.f32 %v414, %v414
      %v479 = vmul.f32 %v415, %v415
      %v480 = vmul.f32 %v476, %v476
      %v481 = vmul.f32 %v477, %v477
      %v482 = vmul.f32 %v478, %v478
      %v483 = vmul.f32 %v479, %v479
      %v484 = vmul.f32 %v412, %v480
      %v485 = vmul.f32 %v413, %v481
      %v486 = vmul.f32 %v414, %v482
      %v487 = vmul.f32 %v415, %v483
      %v488 = vmul.f32 %v484, -28.0
      %v489 = vmul.f32 %v485, -28.0
      %v490 = vmul.f32 %v486, -28.0
      %v491 = vmul.f32 %v487, -28.0
      %v492 = vadd.f32 %v430, %v488
      %v493 = vadd.f32 %v445, %v489
      %v494 = vadd.f32 %v460, %v490
      %v495 = vadd.f32 %v475, %v491
      %v496 = vmul.f32 %v476, %v480
      %v497 = vmul.f32 %v477, %v481
      %v498 = vmul.f32 %v478, %v482
      %v499 = vmul.f32 %v479, %v483
      %v500 = vmul.f32 %v496, 48.0
      %v501 = vmul.f32 %v497, 48.0
      %v502 = vmul.f32 %v498, 48.0
      %v503 = vmul.f32 %v499, 48.0
      %v504 = vadd.f32 %v492, %v500
      %v505 = vadd.f32 %v493, %v501
      %v506 = vadd.f32 %v494, %v502
      %v507 = vadd.f32 %v495, %v503
      %v508 = vmul.f32 %v412, %v476
      %v509 = vmul.f32 %v413, %v477
      %v510 = vmul.f32 %v414, %v478
      %v511 = vmul.f32 %v415, %v479
      %v512 = vmul.f32 %v508, %v480
      %v513 = vmul.f32 %v509, %v481
      %v514 = vmul.f32 %v510, %v482
      %v515 = vmul.f32 %v511, %v483
      %v516 = vmul.f32 %v512, -21.0
      %v517 = vmul.f32 %v513, -21.0
      %v518 = vmul.f32 %v514, -21.0
      %v519 = vmul.f32 %v515, -21.0
      %v520 = vadd.f32 %v504, %v516
      %v521 = vadd.f32 %v505, %v517
      %v522 = vadd.f32 %v506, %v518
      %v523 = vadd.f32 %v507, %v519
      %vm524 = vcmp.lt.f32.partialorder %v412, 1.0
      %vm525 = vcmp.lt.f32.partialorder %v413, 1.0
      %vm526 = vcmp.lt.f32.partialorder %v414, 1.0
      %vm527 = vcmp.lt.f32.partialorder %v415, 1.0
      %v528 = vsel %vm524, %v520, 0.0
      %v529 = vsel %vm525, %v521, 0.0
      %v530 = vsel %vm526, %v522, 0.0
      %v531 = vsel %vm527, %v523, 0.0
      %v532 = vld [vmem:[%s3] sm:$0x1]
      %v534 = vperm.slane %v532, 0
      %537 = vset.pattern.permute.xlu0 0
      %538 = vperm.xlu0 %537, %v412
      %v539 = vpop.permute.xlu0 %538
      %542 = vset.pattern.permute.xlu0 0
      %543 = vperm.xlu0 %542, %v413
      %v544 = vpop.permute.xlu0 %543
      %547 = vset.pattern.permute.xlu0 0
      %548 = vperm.xlu0 %547, %v414
      %v549 = vpop.permute.xlu0 %548
      %552 = vset.pattern.permute.xlu0 0
      %553 = vperm.xlu0 %552, %v415
      %v554 = vpop.permute.xlu0 %553
      %v556 = vmul.f32 %v534, %v539
      %v557 = vmul.f32 %v534, %v544
      %v558 = vmul.f32 %v534, %v549
      %v559 = vmul.f32 %v534, %v554
      %v560 = vand.u32 2147483647, %v556
      %vm561 = vcmp.le.f32.partialorder %v560, 0.7853982
      %vm562 = vcmp.lt.s32.totalorder %v556, 0
      %v563 = vand.u32 %v556, 2139095040
      %v564 = vshrl.u32 %v563, 23
      %v565 = vsub.s32 %v564, 127
      %v566 = vand.u32 2147483647, %v556
      %v567 = vand.u32 %v566, 8388607
      %v568 = vor.u32 %v567, 8388608
      %v569 = vsub.s32 0, %v568
      %v570 = vadd.s32 %v565, 1
      %vm571 = vcmp.gt.s32.totalorder %v570, 0
      %v572 = vsel %vm571, %v570, 0
      %v573 = vshrl.u32 %v572, 5
      %v574 = vand.u32 %v572, 31
      %v575 = vsub.s32 32, %v574
      %v576 = vshrl.u32 683565275, %v575
      %v577 = vshll.u32 683565275, %v574
      %v578 = vshrl.u32 2475754826, %v575
      %v579 = vor.u32 %v577, %v578
      %v580 = vshll.u32 2475754826, %v574
      %v581 = vshrl.u32 2131351028, %v575
      %v582 = vor.u32 %v580, %v581
      %v583 = vshll.u32 2131351028, %v574
      %v584 = vshrl.u32 2102212464, %v575
      %v585 = vor.u32 %v583, %v584
      %v586 = vshll.u32 2102212464, %v574
      %v587 = vshrl.u32 920167782, %v575
      %v588 = vor.u32 %v586, %v587
      %v589 = vshll.u32 920167782, %v574
      %v590 = vshrl.u32 1326507024, %v575
      %v591 = vor.u32 %v589, %v590
      %vm592 = vcmp.lt.s32.totalorder %v573, 1
      %vm593 = vcmp.lt.s32.totalorder %v573, 2
      %vm594 = vcmp.lt.s32.totalorder %v573, 3
      %vm595 = vcmp.lt.s32.totalorder %v573, 4
      %v596 = vsel %vm592, %v576, %v579
      %v597 = vsel %vm595, %v585, 2102212464
      %v598 = vsel %vm594, %v582, %v597
      %v599 = vsel %vm593, %v596, %v598
      %v600 = vsel %vm592, %v579, %v582
      %v601 = vsel %vm595, %v588, 920167782
      %v602 = vsel %vm594, %v585, %v601
      %v603 = vsel %vm593, %v600, %v602
      %v604 = vsel %vm592, %v582, %v585
      %v605 = vsel %vm595, %v591, 1326507024
      %v606 = vsel %vm594, %v588, %v605
      %v607 = vsel %vm593, %v604, %v606
      %v608 = vshll.u32 %v568, 8
      %v609 = vand.u32 %v608, 65535
      %v610 = vshrl.u32 %v608, 16
      %v611 = vand.u32 %v607, 65535
      %v612 = vshrl.u32 %v607, 16
      %v613 = vmul.u32 %v609, %v611
      %v614 = vmul.u32 %v609, %v612
      %v615 = vmul.u32 %v610, %v611
      %v616 = vmul.u32 %v610, %v612
      %v617 = vshll.u32 %v614, 16
      %v618 = vshrl.u32 %v614, 16
      %v619 = vshll.u32 %v615, 16
      %v620 = vshrl.u32 %v615, 16
      %vm621 = vc.u32 %v613, %v617
      %v622 = vsel %vm621, 1, 0
      %v623 = vadd.s32 %v613, %v617
      %v624 = vadd.s32 %v616, %v622
      %vm625 = vc.u32 %v623, %v619
      %v626 = vsel %vm625, 1, 0
      %v627 = vadd.s32 %v623, %v619
      %v628 = vadd.s32 %v624, %v626
      %v629 = vadd.s32 %v628, %v618
      %v630 = vadd.s32 %v629, %v620
      %v631 = vand.u32 %v608, 65535
      %v632 = vshrl.u32 %v608, 16
      %v633 = vand.u32 %v603, 65535
      %v634 = vshrl.u32 %v603, 16
      %v635 = vmul.u32 %v631, %v633
      %v636 = vmul.u32 %v631, %v634
      %v637 = vmul.u32 %v632, %v633
      %v638 = vmul.u32 %v632, %v634
      %v639 = vshll.u32 %v636, 16
      %v640 = vshrl.u32 %v636, 16
      %v641 = vshll.u32 %v637, 16
      %v642 = vshrl.u32 %v637, 16
      %vm643 = vc.u32 %v635, %v639
      %v644 = vsel %vm643, 1, 0
      %v645 = vadd.s32 %v635, %v639
      %v646 = vadd.s32 %v638, %v644
      %vm647 = vc.u32 %v645, %v641
      %v648 = vsel %vm647, 1, 0
      %v649 = vadd.s32 %v645, %v641
      %v650 = vadd.s32 %v646, %v648
      %v651 = vadd.s32 %v650, %v640
      %v652 = vadd.s32 %v651, %v642
      %v653 = vmul.u32 %v608, %v599
      %v654 = vadd.s32 %v630, %v649
      %vm655 = vc.u32 %v630, %v649
      %v656 = vadd.s32 %v652, 1
      %v657 = vsel %vm655, %v656, %v652
      %v658 = vadd.s32 %v653, %v657
      %v659 = vadd.s32 %v658, 536870912
      %v660 = vshrl.u32 %v659, 30
      %v661 = vshll.u32 %v660, 30
      %v662 = vsub.s32 %v658, %v661
      %vm663 = vcmp.lt.s32.totalorder %v662, 0
      %v664 = vsub.s32 0, %v662
      %v665 = vsel %vm663, %v664, %v662
      %v666 = vclz %v665
      %v667 = vsub.s32 %v666, 2
      %vm668 = vcmp.gt.s32.totalorder 0, %v667
      %v669 = vsel %vm668, 0, %v667
      %v670 = vsub.s32 32, %v669
      %v671 = vshll.u32 %v662, %v669
      %v672 = vshrl.u32 %v654, %v670
      %v673 = vor.u32 %v671, %v672
      %v674 = vsub.s32 4294967266, %v669
      %v675 = vadd.s32 %v674, 127
      %v676 = vshll.u32 %v675, 23
      %v677 = vor.u32 4788187, %v676
      %v678 = vand.u32 2147483647, %v677
      %v680 = vcvt.s32.f32 %v673
      %v681 = vmul.f32 %v680, %v678
      %v682 = vxor.u32 %v681, 2147483648
      %v683 = vsel %vm562, %v682, %v681
      %v684 = vsub.s32 4, %v660
      %v685 = vsel %vm562, %v684, %v660
      %v686 = vsel %vm561, %v556, %v683
      %v687 = vsel %vm561, 0, %v685
      %v688 = vmul.f32 %v686, %v686
      %v689 = vmul.f32 %v688, -0.001358992
      %v690 = vadd.f32 %v689, 0.041655596
      %v691 = vmul.f32 %v688, %v690
      %v692 = vadd.f32 %v691, -0.4999988
      %v693 = vmul.f32 %v688, %v692
      %v694 = vadd.f32 1.0, %v693
      %v695 = vmul.f32 %v686, %v686
      %v696 = vmul.f32 %v695, -0.00019511016
      %v697 = vadd.f32 %v696, 0.008332121
      %v698 = vmul.f32 %v695, %v697
      %v699 = vadd.f32 %v698, -0.16666654
      %v700 = vmul.f32 %v695, %v699
      %v701 = vadd.f32 %v700, 1.0
      %v702 = vmul.f32 %v701, %v686
      %vm703 = vweird.f32 %v556
      %v704 = vadd.s32 %v687, 3
      %v705 = vand.u32 %v704, 3
      %vm706 = vcmp.lt.s32.totalorder %v705, 2
      %vm707 = vcmp.eq.s32.totalorder %v705, 0
      %v708 = vxor.u32 %v702, 2147483648
      %v709 = vsel %vm707, %v694, %v708
      %vm710 = vcmp.eq.s32.totalorder %v705, 2
      %v711 = vxor.u32 %v694, 2147483648
      %v712 = vsel %vm710, %v711, %v702
      %v713 = vsel %vm706, %v709, %v712
      %v714 = vsel %vm703, nan, %v713
      %v715 = vand.u32 2147483647, %v557
      %vm716 = vcmp.le.f32.partialorder %v715, 0.7853982
      %vm717 = vcmp.lt.s32.totalorder %v557, 0
      %v718 = vand.u32 %v557, 2139095040
      %v719 = vshrl.u32 %v718, 23
      %v720 = vsub.s32 %v719, 127
      %v721 = vand.u32 2147483647, %v557
      %v722 = vand.u32 %v721, 8388607
      %v723 = vor.u32 %v722, 8388608
      %v724 = vsub.s32 0, %v723
      %v725 = vadd.s32 %v720, 1
      %vm726 = vcmp.gt.s32.totalorder %v725, 0
      %v727 = vsel %vm726, %v725, 0
      %v728 = vshrl.u32 %v727, 5
      %v729 = vand.u32 %v727, 31
      %v730 = vsub.s32 32, %v729
      %v731 = vshrl.u32 683565275, %v730
      %v732 = vshll.u32 683565275, %v729
      %v733 = vshrl.u32 2475754826, %v730
      %v734 = vor.u32 %v732, %v733
      %v735 = vshll.u32 2475754826, %v729
      %v736 = vshrl.u32 2131351028, %v730
      %v737 = vor.u32 %v735, %v736
      %v738 = vshll.u32 2131351028, %v729
      %v739 = vshrl.u32 2102212464, %v730
      %v740 = vor.u32 %v738, %v739
      %v741 = vshll.u32 2102212464, %v729
      %v742 = vshrl.u32 920167782, %v730
      %v743 = vor.u32 %v741, %v742
      %v744 = vshll.u32 920167782, %v729
      %v745 = vshrl.u32 1326507024, %v730
      %v746 = vor.u32 %v744, %v745
      %vm747 = vcmp.lt.s32.totalorder %v728, 1
      %vm748 = vcmp.lt.s32.totalorder %v728, 2
      %vm749 = vcmp.lt.s32.totalorder %v728, 3
      %vm750 = vcmp.lt.s32.totalorder %v728, 4
      %v751 = vsel %vm747, %v731, %v734
      %v752 = vsel %vm750, %v740, 2102212464
      %v753 = vsel %vm749, %v737, %v752
      %v754 = vsel %vm748, %v751, %v753
      %v755 = vsel %vm747, %v734, %v737
      %v756 = vsel %vm750, %v743, 920167782
      %v757 = vsel %vm749, %v740, %v756
      %v758 = vsel %vm748, %v755, %v757
      %v759 = vsel %vm747, %v737, %v740
      %v760 = vsel %vm750, %v746, 1326507024
      %v761 = vsel %vm749, %v743, %v760
      %v762 = vsel %vm748, %v759, %v761
      %v763 = vshll.u32 %v723, 8
      %v764 = vand.u32 %v763, 65535
      %v765 = vshrl.u32 %v763, 16
      %v766 = vand.u32 %v762, 65535
      %v767 = vshrl.u32 %v762, 16
      %v768 = vmul.u32 %v764, %v766
      %v769 = vmul.u32 %v764, %v767
      %v770 = vmul.u32 %v765, %v766
      %v771 = vmul.u32 %v765, %v767
      %v772 = vshll.u32 %v769, 16
      %v773 = vshrl.u32 %v769, 16
      %v774 = vshll.u32 %v770, 16
      %v775 = vshrl.u32 %v770, 16
      %vm776 = vc.u32 %v768, %v772
      %v777 = vsel %vm776, 1, 0
      %v778 = vadd.s32 %v768, %v772
      %v779 = vadd.s32 %v771, %v777
      %vm780 = vc.u32 %v778, %v774
      %v781 = vsel %vm780, 1, 0
      %v782 = vadd.s32 %v778, %v774
      %v783 = vadd.s32 %v779, %v781
      %v784 = vadd.s32 %v783, %v773
      %v785 = vadd.s32 %v784, %v775
      %v786 = vand.u32 %v763, 65535
      %v787 = vshrl.u32 %v763, 16
      %v788 = vand.u32 %v758, 65535
      %v789 = vshrl.u32 %v758, 16
      %v790 = vmul.u32 %v786, %v788
      %v791 = vmul.u32 %v786, %v789
      %v792 = vmul.u32 %v787, %v788
      %v793 = vmul.u32 %v787, %v789
      %v794 = vshll.u32 %v791, 16
      %v795 = vshrl.u32 %v791, 16
      %v796 = vshll.u32 %v792, 16
      %v797 = vshrl.u32 %v792, 16
      %vm798 = vc.u32 %v790, %v794
      %v799 = vsel %vm798, 1, 0
      %v800 = vadd.s32 %v790, %v794
      %v801 = vadd.s32 %v793, %v799
      %vm802 = vc.u32 %v800, %v796
      %v803 = vsel %vm802, 1, 0
      %v804 = vadd.s32 %v800, %v796
      %v805 = vadd.s32 %v801, %v803
      %v806 = vadd.s32 %v805, %v795
      %v807 = vadd.s32 %v806, %v797
      %v808 = vmul.u32 %v763, %v754
      %v809 = vadd.s32 %v785, %v804
      %vm810 = vc.u32 %v785, %v804
      %v811 = vadd.s32 %v807, 1
      %v812 = vsel %vm810, %v811, %v807
      %v813 = vadd.s32 %v808, %v812
      %v814 = vadd.s32 %v813, 536870912
      %v815 = vshrl.u32 %v814, 30
      %v816 = vshll.u32 %v815, 30
      %v817 = vsub.s32 %v813, %v816
      %vm818 = vcmp.lt.s32.totalorder %v817, 0
      %v819 = vsub.s32 0, %v817
      %v820 = vsel %vm818, %v819, %v817
      %v821 = vclz %v820
      %v822 = vsub.s32 %v821, 2
      %vm823 = vcmp.gt.s32.totalorder 0, %v822
      %v824 = vsel %vm823, 0, %v822
      %v825 = vsub.s32 32, %v824
      %v826 = vshll.u32 %v817, %v824
      %v827 = vshrl.u32 %v809, %v825
      %v828 = vor.u32 %v826, %v827
      %v829 = vsub.s32 4294967266, %v824
      %v830 = vadd.s32 %v829, 127
      %v831 = vshll.u32 %v830, 23
      %v832 = vor.u32 4788187, %v831
      %v833 = vand.u32 2147483647, %v832
      %v835 = vcvt.s32.f32 %v828
      %v836 = vmul.f32 %v835, %v833
      %v837 = vxor.u32 %v836, 2147483648
      %v838 = vsel %vm717, %v837, %v836
      %v839 = vsub.s32 4, %v815
      %v840 = vsel %vm717, %v839, %v815
      %v841 = vsel %vm716, %v557, %v838
      %v842 = vsel %vm716, 0, %v840
      %v843 = vmul.f32 %v841, %v841
      %v844 = vmul.f32 %v843, -0.001358992
      %v845 = vadd.f32 %v844, 0.041655596
      %v846 = vmul.f32 %v843, %v845
      %v847 = vadd.f32 %v846, -0.4999988
      %v848 = vmul.f32 %v843, %v847
      %v849 = vadd.f32 1.0, %v848
      %v850 = vmul.f32 %v841, %v841
      %v851 = vmul.f32 %v850, -0.00019511016
      %v852 = vadd.f32 %v851, 0.008332121
      %v853 = vmul.f32 %v850, %v852
      %v854 = vadd.f32 %v853, -0.16666654
      %v855 = vmul.f32 %v850, %v854
      %v856 = vadd.f32 %v855, 1.0
      %v857 = vmul.f32 %v856, %v841
      %vm858 = vweird.f32 %v557
      %v859 = vadd.s32 %v842, 3
      %v860 = vand.u32 %v859, 3
      %vm861 = vcmp.lt.s32.totalorder %v860, 2
      %vm862 = vcmp.eq.s32.totalorder %v860, 0
      %v863 = vxor.u32 %v857, 2147483648
      %v864 = vsel %vm862, %v849, %v863
      %vm865 = vcmp.eq.s32.totalorder %v860, 2
      %v866 = vxor.u32 %v849, 2147483648
      %v867 = vsel %vm865, %v866, %v857
      %v868 = vsel %vm861, %v864, %v867
      %v869 = vsel %vm858, nan, %v868
      %v870 = vand.u32 2147483647, %v558
      %vm871 = vcmp.le.f32.partialorder %v870, 0.7853982
      %vm872 = vcmp.lt.s32.totalorder %v558, 0
      %v873 = vand.u32 %v558, 2139095040
      %v874 = vshrl.u32 %v873, 23
      %v875 = vsub.s32 %v874, 127
      %v876 = vand.u32 2147483647, %v558
      %v877 = vand.u32 %v876, 8388607
      %v878 = vor.u32 %v877, 8388608
      %v879 = vsub.s32 0, %v878
      %v880 = vadd.s32 %v875, 1
      %vm881 = vcmp.gt.s32.totalorder %v880, 0
      %v882 = vsel %vm881, %v880, 0
      %v883 = vshrl.u32 %v882, 5
      %v884 = vand.u32 %v882, 31
      %v885 = vsub.s32 32, %v884
      %v886 = vshrl.u32 683565275, %v885
      %v887 = vshll.u32 683565275, %v884
      %v888 = vshrl.u32 2475754826, %v885
      %v889 = vor.u32 %v887, %v888
      %v890 = vshll.u32 2475754826, %v884
      %v891 = vshrl.u32 2131351028, %v885
      %v892 = vor.u32 %v890, %v891
      %v893 = vshll.u32 2131351028, %v884
      %v894 = vshrl.u32 2102212464, %v885
      %v895 = vor.u32 %v893, %v894
      %v896 = vshll.u32 2102212464, %v884
      %v897 = vshrl.u32 920167782, %v885
      %v898 = vor.u32 %v896, %v897
      %v899 = vshll.u32 920167782, %v884
      %v900 = vshrl.u32 1326507024, %v885
      %v901 = vor.u32 %v899, %v900
      %vm902 = vcmp.lt.s32.totalorder %v883, 1
      %vm903 = vcmp.lt.s32.totalorder %v883, 2
      %vm904 = vcmp.lt.s32.totalorder %v883, 3
      %vm905 = vcmp.lt.s32.totalorder %v883, 4
      %v906 = vsel %vm902, %v886, %v889
      %v907 = vsel %vm905, %v895, 2102212464
      %v908 = vsel %vm904, %v892, %v907
      %v909 = vsel %vm903, %v906, %v908
      %v910 = vsel %vm902, %v889, %v892
      %v911 = vsel %vm905, %v898, 920167782
      %v912 = vsel %vm904, %v895, %v911
      %v913 = vsel %vm903, %v910, %v912
      %v914 = vsel %vm902, %v892, %v895
      %v915 = vsel %vm905, %v901, 1326507024
      %v916 = vsel %vm904, %v898, %v915
      %v917 = vsel %vm903, %v914, %v916
      %v918 = vshll.u32 %v878, 8
      %v919 = vand.u32 %v918, 65535
      %v920 = vshrl.u32 %v918, 16
      %v921 = vand.u32 %v917, 65535
      %v922 = vshrl.u32 %v917, 16
      %v923 = vmul.u32 %v919, %v921
      %v924 = vmul.u32 %v919, %v922
      %v925 = vmul.u32 %v920, %v921
      %v926 = vmul.u32 %v920, %v922
      %v927 = vshll.u32 %v924, 16
      %v928 = vshrl.u32 %v924, 16
      %v929 = vshll.u32 %v925, 16
      %v930 = vshrl.u32 %v925, 16
      %vm931 = vc.u32 %v923, %v927
      %v932 = vsel %vm931, 1, 0
      %v933 = vadd.s32 %v923, %v927
      %v934 = vadd.s32 %v926, %v932
      %vm935 = vc.u32 %v933, %v929
      %v936 = vsel %vm935, 1, 0
      %v937 = vadd.s32 %v933, %v929
      %v938 = vadd.s32 %v934, %v936
      %v939 = vadd.s32 %v938, %v928
      %v940 = vadd.s32 %v939, %v930
      %v941 = vand.u32 %v918, 65535
      %v942 = vshrl.u32 %v918, 16
      %v943 = vand.u32 %v913, 65535
      %v944 = vshrl.u32 %v913, 16
      %v945 = vmul.u32 %v941, %v943
      %v946 = vmul.u32 %v941, %v944
      %v947 = vmul.u32 %v942, %v943
      %v948 = vmul.u32 %v942, %v944
      %v949 = vshll.u32 %v946, 16
      %v950 = vshrl.u32 %v946, 16
      %v951 = vshll.u32 %v947, 16
      %v952 = vshrl.u32 %v947, 16
      %vm953 = vc.u32 %v945, %v949
      %v954 = vsel %vm953, 1, 0
      %v955 = vadd.s32 %v945, %v949
      %v956 = vadd.s32 %v948, %v954
      %vm957 = vc.u32 %v955, %v951
      %v958 = vsel %vm957, 1, 0
      %v959 = vadd.s32 %v955, %v951
      %v960 = vadd.s32 %v956, %v958
      %v961 = vadd.s32 %v960, %v950
      %v962 = vadd.s32 %v961, %v952
      %v963 = vmul.u32 %v918, %v909
      %v964 = vadd.s32 %v940, %v959
      %vm965 = vc.u32 %v940, %v959
      %v966 = vadd.s32 %v962, 1
      %v967 = vsel %vm965, %v966, %v962
      %v968 = vadd.s32 %v963, %v967
      %v969 = vadd.s32 %v968, 536870912
      %v970 = vshrl.u32 %v969, 30
      %v971 = vshll.u32 %v970, 30
      %v972 = vsub.s32 %v968, %v971
      %vm973 = vcmp.lt.s32.totalorder %v972, 0
      %v974 = vsub.s32 0, %v972
      %v975 = vsel %vm973, %v974, %v972
      %v976 = vclz %v975
      %v977 = vsub.s32 %v976, 2
      %vm978 = vcmp.gt.s32.totalorder 0, %v977
      %v979 = vsel %vm978, 0, %v977
      %v980 = vsub.s32 32, %v979
      %v981 = vshll.u32 %v972, %v979
      %v982 = vshrl.u32 %v964, %v980
      %v983 = vor.u32 %v981, %v982
      %v984 = vsub.s32 4294967266, %v979
      %v985 = vadd.s32 %v984, 127
      %v986 = vshll.u32 %v985, 23
      %v987 = vor.u32 4788187, %v986
      %v988 = vand.u32 2147483647, %v987
      %v990 = vcvt.s32.f32 %v983
      %v991 = vmul.f32 %v990, %v988
      %v992 = vxor.u32 %v991, 2147483648
      %v993 = vsel %vm872, %v992, %v991
      %v994 = vsub.s32 4, %v970
      %v995 = vsel %vm872, %v994, %v970
      %v996 = vsel %vm871, %v558, %v993
      %v997 = vsel %vm871, 0, %v995
      %v998 = vmul.f32 %v996, %v996
      %v999 = vmul.f32 %v998, -0.001358992
      %v1000 = vadd.f32 %v999, 0.041655596
      %v1001 = vmul.f32 %v998, %v1000
      %v1002 = vadd.f32 %v1001, -0.4999988
      %v1003 = vmul.f32 %v998, %v1002
      %v1004 = vadd.f32 1.0, %v1003
      %v1005 = vmul.f32 %v996, %v996
      %v1006 = vmul.f32 %v1005, -0.00019511016
      %v1007 = vadd.f32 %v1006, 0.008332121
      %v1008 = vmul.f32 %v1005, %v1007
      %v1009 = vadd.f32 %v1008, -0.16666654
      %v1010 = vmul.f32 %v1005, %v1009
      %v1011 = vadd.f32 %v1010, 1.0
      %v1012 = vmul.f32 %v1011, %v996
      %vm1013 = vweird.f32 %v558
      %v1014 = vadd.s32 %v997, 3
      %v1015 = vand.u32 %v1014, 3
      %vm1016 = vcmp.lt.s32.totalorder %v1015, 2
      %vm1017 = vcmp.eq.s32.totalorder %v1015, 0
      %v1018 = vxor.u32 %v1012, 2147483648
      %v1019 = vsel %vm1017, %v1004, %v1018
      %vm1020 = vcmp.eq.s32.totalorder %v1015, 2
      %v1021 = vxor.u32 %v1004, 2147483648
      %v1022 = vsel %vm1020, %v1021, %v1012
      %v1023 = vsel %vm1016, %v1019, %v1022
      %v1024 = vsel %vm1013, nan, %v1023
      %v1025 = vand.u32 2147483647, %v559
      %vm1026 = vcmp.le.f32.partialorder %v1025, 0.7853982
      %vm1027 = vcmp.lt.s32.totalorder %v559, 0
      %v1028 = vand.u32 %v559, 2139095040
      %v1029 = vshrl.u32 %v1028, 23
      %v1030 = vsub.s32 %v1029, 127
      %v1031 = vand.u32 2147483647, %v559
      %v1032 = vand.u32 %v1031, 8388607
      %v1033 = vor.u32 %v1032, 8388608
      %v1034 = vsub.s32 0, %v1033
      %v1035 = vadd.s32 %v1030, 1
      %vm1036 = vcmp.gt.s32.totalorder %v1035, 0
      %v1037 = vsel %vm1036, %v1035, 0
      %v1038 = vshrl.u32 %v1037, 5
      %v1039 = vand.u32 %v1037, 31
      %v1040 = vsub.s32 32, %v1039
      %v1041 = vshrl.u32 683565275, %v1040
      %v1042 = vshll.u32 683565275, %v1039
      %v1043 = vshrl.u32 2475754826, %v1040
      %v1044 = vor.u32 %v1042, %v1043
      %v1045 = vshll.u32 2475754826, %v1039
      %v1046 = vshrl.u32 2131351028, %v1040
      %v1047 = vor.u32 %v1045, %v1046
      %v1048 = vshll.u32 2131351028, %v1039
      %v1049 = vshrl.u32 2102212464, %v1040
      %v1050 = vor.u32 %v1048, %v1049
      %v1051 = vshll.u32 2102212464, %v1039
      %v1052 = vshrl.u32 920167782, %v1040
      %v1053 = vor.u32 %v1051, %v1052
      %v1054 = vshll.u32 920167782, %v1039
      %v1055 = vshrl.u32 1326507024, %v1040
      %v1056 = vor.u32 %v1054, %v1055
      %vm1057 = vcmp.lt.s32.totalorder %v1038, 1
      %vm1058 = vcmp.lt.s32.totalorder %v1038, 2
      %vm1059 = vcmp.lt.s32.totalorder %v1038, 3
      %vm1060 = vcmp.lt.s32.totalorder %v1038, 4
      %v1061 = vsel %vm1057, %v1041, %v1044
      %v1062 = vsel %vm1060, %v1050, 2102212464
      %v1063 = vsel %vm1059, %v1047, %v1062
      %v1064 = vsel %vm1058, %v1061, %v1063
      %v1065 = vsel %vm1057, %v1044, %v1047
      %v1066 = vsel %vm1060, %v1053, 920167782
      %v1067 = vsel %vm1059, %v1050, %v1066
      %v1068 = vsel %vm1058, %v1065, %v1067
      %v1069 = vsel %vm1057, %v1047, %v1050
      %v1070 = vsel %vm1060, %v1056, 1326507024
      %v1071 = vsel %vm1059, %v1053, %v1070
      %v1072 = vsel %vm1058, %v1069, %v1071
      %v1073 = vshll.u32 %v1033, 8
      %v1074 = vand.u32 %v1073, 65535
      %v1075 = vshrl.u32 %v1073, 16
      %v1076 = vand.u32 %v1072, 65535
      %v1077 = vshrl.u32 %v1072, 16
      %v1078 = vmul.u32 %v1074, %v1076
      %v1079 = vmul.u32 %v1074, %v1077
      %v1080 = vmul.u32 %v1075, %v1076
      %v1081 = vmul.u32 %v1075, %v1077
      %v1082 = vshll.u32 %v1079, 16
      %v1083 = vshrl.u32 %v1079, 16
      %v1084 = vshll.u32 %v1080, 16
      %v1085 = vshrl.u32 %v1080, 16
      %vm1086 = vc.u32 %v1078, %v1082
      %v1087 = vsel %vm1086, 1, 0
      %v1088 = vadd.s32 %v1078, %v1082
      %v1089 = vadd.s32 %v1081, %v1087
      %vm1090 = vc.u32 %v1088, %v1084
      %v1091 = vsel %vm1090, 1, 0
      %v1092 = vadd.s32 %v1088, %v1084
      %v1093 = vadd.s32 %v1089, %v1091
      %v1094 = vadd.s32 %v1093, %v1083
      %v1095 = vadd.s32 %v1094, %v1085
      %v1096 = vand.u32 %v1073, 65535
      %v1097 = vshrl.u32 %v1073, 16
      %v1098 = vand.u32 %v1068, 65535
      %v1099 = vshrl.u32 %v1068, 16
      %v1100 = vmul.u32 %v1096, %v1098
      %v1101 = vmul.u32 %v1096, %v1099
      %v1102 = vmul.u32 %v1097, %v1098
      %v1103 = vmul.u32 %v1097, %v1099
      %v1104 = vshll.u32 %v1101, 16
      %v1105 = vshrl.u32 %v1101, 16
      %v1106 = vshll.u32 %v1102, 16
      %v1107 = vshrl.u32 %v1102, 16
      %vm1108 = vc.u32 %v1100, %v1104
      %v1109 = vsel %vm1108, 1, 0
      %v1110 = vadd.s32 %v1100, %v1104
      %v1111 = vadd.s32 %v1103, %v1109
      %vm1112 = vc.u32 %v1110, %v1106
      %v1113 = vsel %vm1112, 1, 0
      %v1114 = vadd.s32 %v1110, %v1106
      %v1115 = vadd.s32 %v1111, %v1113
      %v1116 = vadd.s32 %v1115, %v1105
      %v1117 = vadd.s32 %v1116, %v1107
      %v1118 = vmul.u32 %v1073, %v1064
      %v1119 = vadd.s32 %v1095, %v1114
      %vm1120 = vc.u32 %v1095, %v1114
      %v1121 = vadd.s32 %v1117, 1
      %v1122 = vsel %vm1120, %v1121, %v1117
      %v1123 = vadd.s32 %v1118, %v1122
      %v1124 = vadd.s32 %v1123, 536870912
      %v1125 = vshrl.u32 %v1124, 30
      %v1126 = vshll.u32 %v1125, 30
      %v1127 = vsub.s32 %v1123, %v1126
      %vm1128 = vcmp.lt.s32.totalorder %v1127, 0
      %v1129 = vsub.s32 0, %v1127
      %v1130 = vsel %vm1128, %v1129, %v1127
      %v1131 = vclz %v1130
      %v1132 = vsub.s32 %v1131, 2
      %vm1133 = vcmp.gt.s32.totalorder 0, %v1132
      %v1134 = vsel %vm1133, 0, %v1132
      %v1135 = vsub.s32 32, %v1134
      %v1136 = vshll.u32 %v1127, %v1134
      %v1137 = vshrl.u32 %v1119, %v1135
      %v1138 = vor.u32 %v1136, %v1137
      %v1139 = vsub.s32 4294967266, %v1134
      %v1140 = vadd.s32 %v1139, 127
      %v1141 = vshll.u32 %v1140, 23
      %v1142 = vor.u32 4788187, %v1141
      %v1143 = vand.u32 2147483647, %v1142
      %v1145 = vcvt.s32.f32 %v1138
      %v1146 = vmul.f32 %v1145, %v1143
      %v1147 = vxor.u32 %v1146, 2147483648
      %v1148 = vsel %vm1027, %v1147, %v1146
      %v1149 = vsub.s32 4, %v1125
      %v1150 = vsel %vm1027, %v1149, %v1125
      %v1151 = vsel %vm1026, %v559, %v1148
      %v1152 = vsel %vm1026, 0, %v1150
      %v1153 = vmul.f32 %v1151, %v1151
      %v1154 = vmul.f32 %v1153, -0.001358992
      %v1155 = vadd.f32 %v1154, 0.041655596
      %v1156 = vmul.f32 %v1153, %v1155
      %v1157 = vadd.f32 %v1156, -0.4999988
      %v1158 = vmul.f32 %v1153, %v1157
      %v1159 = vadd.f32 1.0, %v1158
      %v1160 = vmul.f32 %v1151, %v1151
      %v1161 = vmul.f32 %v1160, -0.00019511016
      %v1162 = vadd.f32 %v1161, 0.008332121
      %v1163 = vmul.f32 %v1160, %v1162
      %v1164 = vadd.f32 %v1163, -0.16666654
      %v1165 = vmul.f32 %v1160, %v1164
      %v1166 = vadd.f32 %v1165, 1.0
      %v1167 = vmul.f32 %v1166, %v1151
      %vm1168 = vweird.f32 %v559
      %v1169 = vadd.s32 %v1152, 3
      %v1170 = vand.u32 %v1169, 3
      %vm1171 = vcmp.lt.s32.totalorder %v1170, 2
      %vm1172 = vcmp.eq.s32.totalorder %v1170, 0
      %v1173 = vxor.u32 %v1167, 2147483648
      %v1174 = vsel %vm1172, %v1159, %v1173
      %vm1175 = vcmp.eq.s32.totalorder %v1170, 2
      %v1176 = vxor.u32 %v1159, 2147483648
      %v1177 = vsel %vm1175, %v1176, %v1167
      %v1178 = vsel %vm1171, %v1174, %v1177
      %v1179 = vsel %vm1168, nan, %v1178
      %1181 = vset.pattern.permute.xlu0 0
      %1182 = vperm.xlu0 %1181, %v528
      %v1183 = vpop.permute.xlu0 %1182
      %1186 = vset.pattern.permute.xlu0 0
      %1187 = vperm.xlu0 %1186, %v529
      %v1188 = vpop.permute.xlu0 %1187
      %1191 = vset.pattern.permute.xlu0 0
      %1192 = vperm.xlu0 %1191, %v530
      %v1193 = vpop.permute.xlu0 %1192
      %1196 = vset.pattern.permute.xlu0 0
      %1197 = vperm.xlu0 %1196, %v531
      %v1198 = vpop.permute.xlu0 %1197
      %v1200 = vmul.f32 %v1183, %v714
      %v1201 = vmul.f32 %v1188, %v869
      %v1202 = vmul.f32 %v1193, %v1024
      %v1203 = vmul.f32 %v1198, %v1179
      %v1204 = vpack.c.bf16 %v1201, %v1200
      %v1205 = vpack.c.bf16 %v1203, %v1202
      %v1206 = vld [vmem:[%s4] sm:$0x7]
      %v1207 = vld [vmem:[%s5] sm:$0x1]
      %v1209 = vperm.slane %v1207, 0
      %vm1211 = vcmask 48128
      %v1213 = vsel %vm1211, %v1204, 0
      %v1216 = vsel %vm1211, %v1205, 0
      %vm1218 = vcmask 1042432
      %v1220 = vsel %vm1218, %v1206, 0
      %1222 = vmatpush.bf16.msra.mxu0 0
      %1223 = vmatpush.bf16.msra.mxu0 0
      %1224 = vmatpush.bf16.msra.mxu0 0
      %1225 = vmatpush.bf16.msra.mxu0 0
      %1226 = vmatpush.bf16.msra.mxu0 0
      %1227 = vmatpush.bf16.msra.mxu0 0
      %1228 = vmatpush.bf16.msra.mxu0 0
      %1229 = vmatpush.bf16.msra.mxu0 %v1220
      %1230 = vmatmul.bf16.gmra.mxu0 %v1213
      %v1231 = vpop.f32.mrf.mxu0
      %v1232 = vadd.f32 %v1209, %v1231
      %v1233 = vpop.f32.mrf.mxu0
      %v1234 = vadd.f32 %v1209, %v1233
      %1235 = vmatmul.bf16.gmra.mxu0 %v1216
      %v1236 = vpop.f32.mrf.mxu0
      %v1237 = vadd.f32 %v1209, %v1236
      %v1238 = vpop.f32.mrf.mxu0
      %v1239 = vadd.f32 %v1209, %v1238
      %1240 = vdwg.mxu0
      %v1241 = vxor.u32 %v1232, 2147483648
      %v1242 = vxor.u32 %v1234, 2147483648
      %v1243 = vxor.u32 %v1237, 2147483648
      %v1244 = vxor.u32 %v1239, 2147483648
      %v1245 = vmul.f32 %v1241, 1.442695
      %v1246 = vpow.pop %v1245
      %v1247 = vmul.f32 %v1242, 1.442695
      %v1248 = vpow.pop %v1247
      %v1249 = vmul.f32 %v1243, 1.442695
      %v1250 = vpow.pop %v1249
      %v1251 = vmul.f32 %v1244, 1.442695
      %v1252 = vpow.pop %v1251
      %v1253 = vadd.f32 %v1246, 1.0
      %v1254 = vadd.f32 %v1248, 1.0
      %v1255 = vadd.f32 %v1250, 1.0
      %v1256 = vadd.f32 %v1252, 1.0
      %v1257 = vrcp.pop %v1253
      %v1258 = vmul.f32 %v1253, %v1257
      %v1259 = vsub.f32 1.0, %v1258
      %v1260 = vmul.f32 %v1257, %v1259
      %v1261 = vadd.f32 %v1257, %v1260
      %vm1262 = vweird.f32 %v1253
      %vm1263 = vweird.f32 %v1257
      %vm1264 = vmor %vm1262, %vm1263
      %v1265 = vsel %vm1264, %v1257, %v1261
      %v1266 = vand.u32 2147483647, %v1253
      %vm1267 = vcmp.eq.f32.partialorder %v1266, 8.507059e+37
      %v1268 = vand.u32 %v1253, 2147483648
      %v1269 = vor.u32 1.1754944e-38, %v1268
      %v1270 = vsel %vm1267, %v1269, %v1265
      %v1271 = vmul.f32 1.0, %v1270
      %v1272 = vrcp.pop %v1254
      %v1273 = vmul.f32 %v1254, %v1272
      %v1274 = vsub.f32 1.0, %v1273
      %v1275 = vmul.f32 %v1272, %v1274
      %v1276 = vadd.f32 %v1272, %v1275
      %vm1277 = vweird.f32 %v1254
      %vm1278 = vweird.f32 %v1272
      %vm1279 = vmor %vm1277, %vm1278
      %v1280 = vsel %vm1279, %v1272, %v1276
      %v1281 = vand.u32 2147483647, %v1254
      %vm1282 = vcmp.eq.f32.partialorder %v1281, 8.507059e+37
      %v1283 = vand.u32 %v1254, 2147483648
      %v1284 = vor.u32 1.1754944e-38, %v1283
      %v1285 = vsel %vm1282, %v1284, %v1280
      %v1286 = vmul.f32 1.0, %v1285
      %v1287 = vrcp.pop %v1255
      %v1288 = vmul.f32 %v1255, %v1287
      %v1289 = vsub.f32 1.0, %v1288
      %v1290 = vmul.f32 %v1287, %v1289
      %v1291 = vadd.f32 %v1287, %v1290
      %vm1292 = vweird.f32 %v1255
      %vm1293 = vweird.f32 %v1287
      %vm1294 = vmor %vm1292, %vm1293
      %v1295 = vsel %vm1294, %v1287, %v1291
      %v1296 = vand.u32 2147483647, %v1255
      %vm1297 = vcmp.eq.f32.partialorder %v1296, 8.507059e+37
      %v1298 = vand.u32 %v1255, 2147483648
      %v1299 = vor.u32 1.1754944e-38, %v1298
      %v1300 = vsel %vm1297, %v1299, %v1295
      %v1301 = vmul.f32 1.0, %v1300
      %v1302 = vrcp.pop %v1256
      %v1303 = vmul.f32 %v1256, %v1302
      %v1304 = vsub.f32 1.0, %v1303
      %v1305 = vmul.f32 %v1302, %v1304
      %v1306 = vadd.f32 %v1302, %v1305
      %vm1307 = vweird.f32 %v1256
      %vm1308 = vweird.f32 %v1302
      %vm1309 = vmor %vm1307, %vm1308
      %v1310 = vsel %vm1309, %v1302, %v1306
      %v1311 = vand.u32 2147483647, %v1256
      %vm1312 = vcmp.eq.f32.partialorder %v1311, 8.507059e+37
      %v1313 = vand.u32 %v1256, 2147483648
      %v1314 = vor.u32 1.1754944e-38, %v1313
      %v1315 = vsel %vm1312, %v1314, %v1310
      %v1316 = vmul.f32 1.0, %v1315
      %v1317 = vmul.f32 %v1232, %v1271
      %v1318 = vmul.f32 %v1234, %v1286
      %v1319 = vmul.f32 %v1237, %v1301
      %v1320 = vmul.f32 %v1239, %v1316
      %v1321 = vld [vmem:[%s393] sm:$0xff]
      %v1322 = vld [vmem:[%s393 + $0x8] sm:$0xff]
      %v1323 = vld [vmem:[%s393 + $0x10] sm:$0xff]
      %v1324 = vld [vmem:[%s393 + $0x18] sm:$0xff]
      %v1325 = vpack.c.bf16 %v1322, %v1321
      %v1326 = vpack.c.bf16 %v1324, %v1323
      %v1327 = vld [vmem:[%s6] sm:$0xf]
      %v1328 = vld [vmem:[%s6 + $0x4] sm:$0xf]
      %v1329 = vld [vmem:[%s6 + $0x8] sm:$0xf]
      %v1330 = vld [vmem:[%s6 + $0xc] sm:$0xf]
      %v1331 = vld [vmem:[%s399] sm:$0xff]
      %v1332 = vld [vmem:[%s399 + $0x8] sm:$0xff]
      %v1333 = vld [vmem:[%s399 + $0x10] sm:$0xff]
      %v1334 = vld [vmem:[%s399 + $0x18] sm:$0xff]
      %v1335 = vpack.c.bf16 %v1332, %v1331
      %v1336 = vpack.c.bf16 %v1334, %v1333
      %v1337 = vld [vmem:[%s7] sm:$0xf]
      %v1338 = vld [vmem:[%s7 + $0x4] sm:$0xf]
      %v1339 = vld [vmem:[%s7 + $0x8] sm:$0xf]
      %v1340 = vld [vmem:[%s7 + $0xc] sm:$0xf]
      %v1345 = vunpack.c.l.b16 %v1337
      %v1346 = vunpack.c.l.b16 %v1338
      %v1347 = vunpack.c.l.b16 %v1339
      %v1348 = vunpack.c.l.b16 %v1340
      %v1349 = vpack.c.b16 %v1346, %v1345
      %v1350 = vpack.c.b16 %v1348, %v1347
      %vm1353 = vcmask 261120
      %v1355 = vsel %vm1353, %v1335, 0
      %v1358 = vsel %vm1353, %v1336, 0
      %1360 = vmatpush.bf16.msra.mxu0 0
      %1361 = vmatpush.bf16.msra.mxu0 0
      %1362 = vmatpush.bf16.msra.mxu0 0
      %1363 = vmatpush.bf16.msra.mxu0 0
      %1364 = vmatpush.bf16.msra.mxu0 0
      %1365 = vmatpush.bf16.msra.mxu0 0
      %1366 = vmatpush.bf16.msra.mxu0 %v1350
      %1367 = vmatpush.bf16.msra.mxu0 %v1349
      %1368 = vmatmul.bf16.gmra.mxu0 %v1355
      %v1369 = vpop.f32.mrf.mxu0
      %v1370 = vadd.f32 0.0, %v1369
      %v1371 = vpop.f32.mrf.mxu0
      %v1372 = vadd.f32 0.0, %v1371
      %1373 = vmatmul.bf16.gmra.mxu0 %v1358
      %v1374 = vpop.f32.mrf.mxu0
      %v1375 = vadd.f32 0.0, %v1374
      %v1376 = vpop.f32.mrf.mxu0
      %v1377 = vadd.f32 0.0, %v1376
      %1378 = vdwg.mxu0
      %v1383 = vunpack.c.l.b16 %v1327
      %v1384 = vunpack.c.l.b16 %v1328
      %v1385 = vunpack.c.l.b16 %v1329
      %v1386 = vunpack.c.l.b16 %v1330
      %v1387 = vpack.c.b16 %v1384, %v1383
      %v1388 = vpack.c.b16 %v1386, %v1385
      %v1392 = vsel %vm1353, %v1325, 0
      %v1395 = vsel %vm1353, %v1326, 0
      %1397 = vmatpush.bf16.msra.mxu0 0
      %1398 = vmatpush.bf16.msra.mxu0 0
      %1399 = vmatpush.bf16.msra.mxu0 0
      %1400 = vmatpush.bf16.msra.mxu0 0
      %1401 = vmatpush.bf16.msra.mxu0 0
      %1402 = vmatpush.bf16.msra.mxu0 0
      %1403 = vmatpush.bf16.msra.mxu0 %v1388
      %1404 = vmatpush.bf16.msra.mxu0 %v1387
      %1405 = vmatmul.bf16.gmra.mxu0 %v1392
      %v1406 = vpop.f32.mrf.mxu0
      %v1407 = vadd.f32 %v1370, %v1406
      %v1408 = vpop.f32.mrf.mxu0
      %v1409 = vadd.f32 %v1372, %v1408
      %1410 = vmatmul.bf16.gmra.mxu0 %v1395
      %v1411 = vpop.f32.mrf.mxu0
      %v1412 = vadd.f32 %v1375, %v1411
      %v1413 = vpop.f32.mrf.mxu0
      %v1414 = vadd.f32 %v1377, %v1413
      %1415 = vdwg.mxu0
      %v1416 = vpack.c.bf16 %v1318, %v1317
      %v1417 = vpack.c.bf16 %v1320, %v1319
      %v1418 = vld [vmem:[%s8] sm:$0xf]
      %v1419 = vld [vmem:[%s8 + $0x4] sm:$0xf]
      %v1420 = vld [vmem:[%s8 + $0x8] sm:$0xf]
      %v1421 = vld [vmem:[%s8 + $0xc] sm:$0xf]
      %v1426 = vunpack.c.l.b16 %v1418
      %v1427 = vunpack.c.l.b16 %v1419
      %v1428 = vunpack.c.l.b16 %v1420
      %v1429 = vunpack.c.l.b16 %v1421
      %v1430 = vpack.c.b16 %v1427, %v1426
      %v1431 = vpack.c.b16 %v1429, %v1428
      %v1435 = vsel %vm1353, %v1416, 0
      %v1438 = vsel %vm1353, %v1417, 0
      %1440 = vmatpush.bf16.msra.mxu0 0
      %1441 = vmatpush.bf16.msra.mxu0 0
      %1442 = vmatpush.bf16.msra.mxu0 0
      %1443 = vmatpush.bf16.msra.mxu0 0
      %1444 = vmatpush.bf16.msra.mxu0 0
      %1445 = vmatpush.bf16.msra.mxu0 0
      %1446 = vmatpush.bf16.msra.mxu0 %v1431
      %1447 = vmatpush.bf16.msra.mxu0 %v1430
      %1448 = vmatmul.bf16.gmra.mxu0 %v1435
      %v1449 = vpop.f32.mrf.mxu0
      %v1450 = vadd.f32 0.0, %v1449
      %v1451 = vpop.f32.mrf.mxu0
      %v1452 = vadd.f32 0.0, %v1451
      %1453 = vmatmul.bf16.gmra.mxu0 %v1438
      %v1454 = vpop.f32.mrf.mxu0
      %v1455 = vadd.f32 0.0, %v1454
      %v1456 = vpop.f32.mrf.mxu0
      %v1457 = vadd.f32 0.0, %v1456
      %1458 = vdwg.mxu0
      %v1459 = vadd.f32 %v1407, %v1450
      %v1460 = vadd.f32 %v1409, %v1452
      %v1461 = vadd.f32 %v1412, %v1455
      %v1462 = vadd.f32 %v1414, %v1457
      %v1463 = vld [vmem:[%s9] sm:$0x1]
      %v1465 = vperm.slane %v1463, 0
      %v1467 = vadd.f32 %v1459, %v1465
      %v1468 = vadd.f32 %v1460, %v1465
      %v1469 = vadd.f32 %v1461, %v1465
      %v1470 = vadd.f32 %v1462, %v1465
      %v1471 = vxor.u32 %v1467, 2147483648
      %v1472 = vxor.u32 %v1468, 2147483648
      %v1473 = vxor.u32 %v1469, 2147483648
      %v1474 = vxor.u32 %v1470, 2147483648
      %v1475 = vmul.f32 %v1471, 1.442695
      %v1476 = vpow.pop %v1475
      %v1477 = vmul.f32 %v1472, 1.442695
      %v1478 = vpow.pop %v1477
      %v1479 = vmul.f32 %v1473, 1.442695
      %v1480 = vpow.pop %v1479
      %v1481 = vmul.f32 %v1474, 1.442695
      %v1482 = vpow.pop %v1481
      %v1483 = vadd.f32 %v1476, 1.0
      %v1484 = vadd.f32 %v1478, 1.0
      %v1485 = vadd.f32 %v1480, 1.0
      %v1486 = vadd.f32 %v1482, 1.0
      %v1487 = vrcp.pop %v1483
      %v1488 = vmul.f32 %v1483, %v1487
      %v1489 = vsub.f32 1.0, %v1488
      %v1490 = vmul.f32 %v1487, %v1489
      %v1491 = vadd.f32 %v1487, %v1490
      %vm1492 = vweird.f32 %v1483
      %vm1493 = vweird.f32 %v1487
      %vm1494 = vmor %vm1492, %vm1493
      %v1495 = vsel %vm1494, %v1487, %v1491
      %v1496 = vand.u32 2147483647, %v1483
      %vm1497 = vcmp.eq.f32.partialorder %v1496, 8.507059e+37
      %v1498 = vand.u32 %v1483, 2147483648
      %v1499 = vor.u32 1.1754944e-38, %v1498
      %v1500 = vsel %vm1497, %v1499, %v1495
      %v1501 = vmul.f32 1.0, %v1500
      %v1502 = vrcp.pop %v1484
      %v1503 = vmul.f32 %v1484, %v1502
      %v1504 = vsub.f32 1.0, %v1503
      %v1505 = vmul.f32 %v1502, %v1504
      %v1506 = vadd.f32 %v1502, %v1505
      %vm1507 = vweird.f32 %v1484
      %vm1508 = vweird.f32 %v1502
      %vm1509 = vmor %vm1507, %vm1508
      %v1510 = vsel %vm1509, %v1502, %v1506
      %v1511 = vand.u32 2147483647, %v1484
      %vm1512 = vcmp.eq.f32.partialorder %v1511, 8.507059e+37
      %v1513 = vand.u32 %v1484, 2147483648
      %v1514 = vor.u32 1.1754944e-38, %v1513
      %v1515 = vsel %vm1512, %v1514, %v1510
      %v1516 = vmul.f32 1.0, %v1515
      %v1517 = vrcp.pop %v1485
      %v1518 = vmul.f32 %v1485, %v1517
      %v1519 = vsub.f32 1.0, %v1518
      %v1520 = vmul.f32 %v1517, %v1519
      %v1521 = vadd.f32 %v1517, %v1520
      %vm1522 = vweird.f32 %v1485
      %vm1523 = vweird.f32 %v1517
      %vm1524 = vmor %vm1522, %vm1523
      %v1525 = vsel %vm1524, %v1517, %v1521
      %v1526 = vand.u32 2147483647, %v1485
      %vm1527 = vcmp.eq.f32.partialorder %v1526, 8.507059e+37
      %v1528 = vand.u32 %v1485, 2147483648
      %v1529 = vor.u32 1.1754944e-38, %v1528
      %v1530 = vsel %vm1527, %v1529, %v1525
      %v1531 = vmul.f32 1.0, %v1530
      %v1532 = vrcp.pop %v1486
      %v1533 = vmul.f32 %v1486, %v1532
      %v1534 = vsub.f32 1.0, %v1533
      %v1535 = vmul.f32 %v1532, %v1534
      %v1536 = vadd.f32 %v1532, %v1535
      %vm1537 = vweird.f32 %v1486
      %vm1538 = vweird.f32 %v1532
      %vm1539 = vmor %vm1537, %vm1538
      %v1540 = vsel %vm1539, %v1532, %v1536
      %v1541 = vand.u32 2147483647, %v1486
      %vm1542 = vcmp.eq.f32.partialorder %v1541, 8.507059e+37
      %v1543 = vand.u32 %v1486, 2147483648
      %v1544 = vor.u32 1.1754944e-38, %v1543
      %v1545 = vsel %vm1542, %v1544, %v1540
      %v1546 = vmul.f32 1.0, %v1545
      %v1547 = vmul.f32 %v1467, %v1501
      %v1548 = vmul.f32 %v1468, %v1516
      %v1549 = vmul.f32 %v1469, %v1531
      %v1550 = vmul.f32 %v1470, %v1546
      %1551 = vst.msk [vmem:[%s405] sm:$0xff] %vm1353, %v1547
      %1552 = vst.msk [vmem:[%s405 + $0x8] sm:$0xff] %vm1353, %v1548
      %1553 = vst.msk [vmem:[%s405 + $0x10] sm:$0xff] %vm1353, %v1549
      %1554 = vst.msk [vmem:[%s405 + $0x18] sm:$0xff] %vm1353, %v1550
      %s1555 = smul.u32 4, %s21
      %p1556 = scmp.lt.s32.totalorder %s1555, 7
      %s1557 = scalar_select %p1556, %s1555, 7
      %s1558 = smul.addr %s1557, 8
      %s1559 = scalar_lea.vmem %s10, %s1558
      // Predicated region
      $region61: #{_lambda_.11} parent=59 // pred_check
        %p1560 = pneg %p264
      $region62: #{_lambda_.11} parent=59 // pred_check_branch
        %1562 = sbr.rel (%p1560) target = $region64
      $region63: #{_lambda_.11} parent=59 // pred_region
        %s1563 = smul.u32 4, %s21
      $region64: #{_lambda_.11} parent=59 // pred_fallthru
        _
    $region60: #{_lambda_.11} parent=5 // pred_fallthru
      _
    %p1564 = scmp.le.s32.totalorder 2, %s16
    // Predicated region
    $region65: #{_lambda_.11} parent=5 // pred_check
      %p1565 = pneg %p1564
    $region66: #{_lambda_.11} parent=5 // pred_check_branch
      %1567 = sbr.rel (%p1565) target = $region68
    $region67: #{_lambda_.11} parent=5 // pred_region
      %s1568 = ssub.s32 %s16, 2
      // Predicated region
      $region69: #{_lambda_.11} parent=67 // pred_check
        %p1569 = pneg %p270
      $region70: #{_lambda_.11} parent=67 // pred_check_branch
        %1571 = sbr.rel (%p1569) target = $region72
      $region71: #{_lambda_.11} parent=67 // pred_region
        %s1572 = smul.u32 4, %s22
        %p1573 = scmp.lt.s32.totalorder %s1572, 7
        %s1574 = scalar_select %p1573, %s1572, 7
        %s1575 = smul.addr %s1574, 8
        %s1576 = scalar_lea.vmem %s10, %s1575
      $region72: #{_lambda_.11} parent=67 // pred_fallthru
        _
    $region68: #{_lambda_.11} parent=5 // pred_fallthru
      _
  $region6: #{_lambda_.11} parent=0 // loop_footer
    %s20 = sadd.s32 1, %s16
  $region7: #{_lambda_.11} parent=0 // loop_footer_branch
    %15 = sbr.rel target = $region3
  $region8: #{_lambda_.11} parent=0 // loop_exit
    _

// kernel: _lambda_.14
$region0: #{_lambda_.14}
  #allocation0 [shape = 'u32[]', space=smem, size = 0x4, offset = 0x4, fixed_abs, tag = 'smem constant byte address 0x4 - core index']
  #allocation1 [shape = 'u32[72,128]{1,0:T(1,128)}', space=vmem, size = 0x9000, scoped, tag = 'internal scratch']
  #allocation2 [shape = 's32[1]{0}', space=sflag, size = 0x4, scoped, tag = 'scoped memory for _lambda_.14']
  #allocation3 [shape = 's32[1]{0:T(128)S(6)}', space=smem, size = 0x200, scoped, tag = 'prefetched SMEM operand 0']
  #allocation4 [shape = 's32[1]{0:T(128)S(6)}', space=smem, size = 0x200, scoped, tag = 'prefetched SMEM operand 1']
  %s0 = inlined_call_operand.<no memory space> [shape: s32[1], index: 0, kind: input, shape index: {}]
  %s1 = inlined_call_operand.<no memory space> [shape: s32[1], index: 1, kind: input, shape index: {}]
  %s2 = inlined_call_operand.vmem [shape: s32[1,240], index: 2, kind: input, shape index: {}]
  %s3 = inlined_call_operand.vmem [shape: f32[240,18], index: 3, kind: input, shape index: {}]
  %s4 = inlined_call_operand.vmem [shape: f32[240,32], index: 4, kind: input, shape index: {}]
  %s5 = inlined_call_operand.vmem [shape: bf16[18,8], index: 5, kind: input, shape index: {}]
  %s6 = inlined_call_operand.vmem [shape: bf16[32,256], index: 6, kind: input, shape index: {}]
  %s7 = inlined_call_operand.vmem [shape: bf16[8,256], index: 7, kind: input, shape index: {}]
  %s8 = inlined_call_operand.vmem [shape: bf16[256,32], index: 8, kind: input, shape index: {}]
  %s9 = inlined_call_operand.vmem [shape: f32[64,32], index: 9, kind: output, shape index: {}]
  %s10 = sld [smem:[#allocation0]]
  $region69: #{_lambda_.14} parent=0
    _
  %s12 = ssub.s32 1, %s10
  %s13 = scalar_select 0, %s12, %s10
  %14 = sst [smem:[#allocation3]] %s0
  %15 = sst [smem:[#allocation4]] %s1
  loop: start=0, step=1, limit=4
  $region2: #{_lambda_.14} parent=0 // loop_pre_header
    _
  $region3: #{_lambda_.14} parent=0 // loop_header
    %s17 = sphi 0, %s21
    %p18 = scmp.ge.s32.totalorder %s17, 4
    %s24 = sphi 0, %s36
    %s25 = sphi 0, %s32
    %s26 = sphi 0, %s24
    %s27 = sphi 0, %s25
    %s28 = sphi 0, %s26
    %s29 = sphi 0, %s27
    %s39 = sphi 0, %s41
    %s42 = sphi 0, %s39
    %s43 = sphi 0, %s42
    %s59 = sphi 0, %s43
    %s65 = sphi 0, %s67
    %s68 = sphi 0, %s65
    %s69 = sphi 0, %s68
    %s85 = sphi 0, %s69
    %s91 = sphi 0, %s93
    %s94 = sphi 0, %s91
    %s95 = sphi 0, %s94
    %s111 = sphi 0, %s95
    %s115 = sphi 0, %s115
    %s117 = sphi 0, %s115
    %s118 = sphi 0, %s117
    %s132 = sphi 0, %s118
    %s136 = sphi 0, %s136
    %s138 = sphi 0, %s136
    %s139 = sphi 0, %s138
    %s153 = sphi 0, %s139
    %s157 = sphi 0, %s157
    %s159 = sphi 0, %s157
    %s160 = sphi 0, %s159
    %s174 = sphi 0, %s160
    %s178 = sphi 0, %s178
    %s180 = sphi 0, %s178
    %s181 = sphi 0, %s180
    %s195 = sphi 0, %s181
    %s201 = sphi 0, %s203
    %s204 = sphi 0, %s201
    %s205 = sphi 0, %s204
    %s221 = sphi 0, %s205
  $region4: #{_lambda_.14} parent=0 // loop_header_branch
    %20 = sbr.rel (%p18) target = $region8
  $region5: #{_lambda_.14} parent=0 // loop_body
    %s22 = ssub.s32 %s17, 1
    %s23 = ssub.s32 %s17, 2
    %s30 = sadd.s32 1, %s25
    %p31 = scmp.ge.s32.totalorder %s30, 1
    %s32 = scalar_select %p31, 0, %s30
    %s33 = sadd.s32 1, %s24
    %s34 = scalar_select %p31, %s33, %s24
    %p35 = scmp.ge.s32.totalorder %s34, 2
    %s36 = scalar_select %p35, 0, %s34
    %s37 = ssub.s32 %s25, %s32
    %p38 = scmp.eq.s32.totalorder %s37, 0
    %s40 = sadd.s32 %s39, 1
    %s41 = scalar_select %p38, %s39, %s40
    %p44 = pneg %p38
    %p45 = scmp.eq.s32.totalorder %s17, 1
    %p46 = por %p44, %p45
    %p47 = scmp.ne.s32.totalorder %s39, %s42
    %p48 = scmp.eq.s32.totalorder %s17, 0
    %p49 = por %p47, %p48
    %p50 = scmp.ne.s32.totalorder %s39, %s42
    %p51 = scmp.eq.s32.totalorder %s22, 1
    %p52 = por %p50, %p51
    %p53 = scmp.ne.s32.totalorder %s42, %s43
    %p54 = scmp.eq.s32.totalorder %s22, 0
    %p55 = por %p53, %p54
    %p56 = scmp.ne.s32.totalorder %s42, %s43
    %p57 = scmp.eq.s32.totalorder %s23, 1
    %p58 = por %p56, %p57
    %p60 = scmp.ne.s32.totalorder %s43, %s59
    %p61 = scmp.eq.s32.totalorder %s23, 0
    %p62 = por %p60, %p61
    %s63 = ssub.s32 %s25, %s32
    %p64 = scmp.eq.s32.totalorder %s63, 0
    %s66 = sadd.s32 %s65, 1
    %s67 = scalar_select %p64, %s65, %s66
    %p70 = pneg %p64
    %p71 = scmp.eq.s32.totalorder %s17, 1
    %p72 = por %p70, %p71
    %p73 = scmp.ne.s32.totalorder %s65, %s68
    %p74 = scmp.eq.s32.totalorder %s17, 0
    %p75 = por %p73, %p74
    %p76 = scmp.ne.s32.totalorder %s65, %s68
    %p77 = scmp.eq.s32.totalorder %s22, 1
    %p78 = por %p76, %p77
    %p79 = scmp.ne.s32.totalorder %s68, %s69
    %p80 = scmp.eq.s32.totalorder %s22, 0
    %p81 = por %p79, %p80
    %p82 = scmp.ne.s32.totalorder %s68, %s69
    %p83 = scmp.eq.s32.totalorder %s23, 1
    %p84 = por %p82, %p83
    %p86 = scmp.ne.s32.totalorder %s69, %s85
    %p87 = scmp.eq.s32.totalorder %s23, 0
    %p88 = por %p86, %p87
    %s89 = ssub.s32 %s25, %s32
    %p90 = scmp.eq.s32.totalorder %s89, 0
    %s92 = sadd.s32 %s91, 1
    %s93 = scalar_select %p90, %s91, %s92
    %p96 = pneg %p90
    %p97 = scmp.eq.s32.totalorder %s17, 1
    %p98 = por %p96, %p97
    %p99 = scmp.ne.s32.totalorder %s91, %s94
    %p100 = scmp.eq.s32.totalorder %s17, 0
    %p101 = por %p99, %p100
    %p102 = scmp.ne.s32.totalorder %s91, %s94
    %p103 = scmp.eq.s32.totalorder %s22, 1
    %p104 = por %p102, %p103
    %p105 = scmp.ne.s32.totalorder %s94, %s95
    %p106 = scmp.eq.s32.totalorder %s22, 0
    %p107 = por %p105, %p106
    %p108 = scmp.ne.s32.totalorder %s94, %s95
    %p109 = scmp.eq.s32.totalorder %s23, 1
    %p110 = por %p108, %p109
    %p112 = scmp.ne.s32.totalorder %s95, %s111
    %p113 = scmp.eq.s32.totalorder %s23, 0
    %p114 = por %p112, %p113
    %s116 = sadd.s32 %s115, 1
    %p119 = scmp.eq.s32.totalorder %s17, 1
    %p120 = scmp.ne.s32.totalorder %s115, %s117
    %p121 = scmp.eq.s32.totalorder %s17, 0
    %p122 = por %p120, %p121
    %p123 = scmp.ne.s32.totalorder %s115, %s117
    %p124 = scmp.eq.s32.totalorder %s22, 1
    %p125 = por %p123, %p124
    %p126 = scmp.ne.s32.totalorder %s117, %s118
    %p127 = scmp.eq.s32.totalorder %s22, 0
    %p128 = por %p126, %p127
    %p129 = scmp.ne.s32.totalorder %s117, %s118
    %p130 = scmp.eq.s32.totalorder %s23, 1
    %p131 = por %p129, %p130
    %p133 = scmp.ne.s32.totalorder %s118, %s132
    %p134 = scmp.eq.s32.totalorder %s23, 0
    %p135 = por %p133, %p134
    %s137 = sadd.s32 %s136, 1
    %p140 = scmp.eq.s32.totalorder %s17, 1
    %p141 = scmp.ne.s32.totalorder %s136, %s138
    %p142 = scmp.eq.s32.totalorder %s17, 0
    %p143 = por %p141, %p142
    %p144 = scmp.ne.s32.totalorder %s136, %s138
    %p145 = scmp.eq.s32.totalorder %s22, 1
    %p146 = por %p144, %p145
    %p147 = scmp.ne.s32.totalorder %s138, %s139
    %p148 = scmp.eq.s32.totalorder %s22, 0
    %p149 = por %p147, %p148
    %p150 = scmp.ne.s32.totalorder %s138, %s139
    %p151 = scmp.eq.s32.totalorder %s23, 1
    %p152 = por %p150, %p151
    %p154 = scmp.ne.s32.totalorder %s139, %s153
    %p155 = scmp.eq.s32.totalorder %s23, 0
    %p156 = por %p154, %p155
    %s158 = sadd.s32 %s157, 1
    %p161 = scmp.eq.s32.totalorder %s17, 1
    %p162 = scmp.ne.s32.totalorder %s157, %s159
    %p163 = scmp.eq.s32.totalorder %s17, 0
    %p164 = por %p162, %p163
    %p165 = scmp.ne.s32.totalorder %s157, %s159
    %p166 = scmp.eq.s32.totalorder %s22, 1
    %p167 = por %p165, %p166
    %p168 = scmp.ne.s32.totalorder %s159, %s160
    %p169 = scmp.eq.s32.totalorder %s22, 0
    %p170 = por %p168, %p169
    %p171 = scmp.ne.s32.totalorder %s159, %s160
    %p172 = scmp.eq.s32.totalorder %s23, 1
    %p173 = por %p171, %p172
    %p175 = scmp.ne.s32.totalorder %s160, %s174
    %p176 = scmp.eq.s32.totalorder %s23, 0
    %p177 = por %p175, %p176
    %s179 = sadd.s32 %s178, 1
    %p182 = scmp.eq.s32.totalorder %s17, 1
    %p183 = scmp.ne.s32.totalorder %s178, %s180
    %p184 = scmp.eq.s32.totalorder %s17, 0
    %p185 = por %p183, %p184
    %p186 = scmp.ne.s32.totalorder %s178, %s180
    %p187 = scmp.eq.s32.totalorder %s22, 1
    %p188 = por %p186, %p187
    %p189 = scmp.ne.s32.totalorder %s180, %s181
    %p190 = scmp.eq.s32.totalorder %s22, 0
    %p191 = por %p189, %p190
    %p192 = scmp.ne.s32.totalorder %s180, %s181
    %p193 = scmp.eq.s32.totalorder %s23, 1
    %p194 = por %p192, %p193
    %p196 = scmp.ne.s32.totalorder %s181, %s195
    %p197 = scmp.eq.s32.totalorder %s23, 0
    %p198 = por %p196, %p197
    %s199 = ssub.s32 %s24, %s36
    %p200 = scmp.eq.s32.totalorder %s199, 0
    %s202 = sadd.s32 %s201, 1
    %s203 = scalar_select %p200, %s201, %s202
    %p206 = pneg %p200
    %p207 = scmp.eq.s32.totalorder %s17, 1
    %p208 = por %p206, %p207
    %p209 = scmp.ne.s32.totalorder %s201, %s204
    %p210 = scmp.eq.s32.totalorder %s17, 0
    %p211 = por %p209, %p210
    %p212 = scmp.ne.s32.totalorder %s201, %s204
    %p213 = scmp.eq.s32.totalorder %s22, 1
    %p214 = por %p212, %p213
    %p215 = scmp.ne.s32.totalorder %s204, %s205
    %p216 = scmp.eq.s32.totalorder %s22, 0
    %p217 = por %p215, %p216
    %p218 = scmp.ne.s32.totalorder %s204, %s205
    %p219 = scmp.eq.s32.totalorder %s23, 1
    %p220 = por %p218, %p219
    %p222 = scmp.ne.s32.totalorder %s205, %s221
    %p223 = scmp.eq.s32.totalorder %s23, 0
    %p224 = por %p222, %p223
    %p225 = scmp.le.s32.totalorder 1, %s17
    %p226 = scmp.lt.s32.totalorder %s17, 3
    %p227 = pnand %p225, %p226
    %p228 = pneg %p227
    // Predicated region
    $region9: #{_lambda_.14} parent=5 // pred_check
      _
    $region10: #{_lambda_.14} parent=5 // pred_check_branch
      %230 = sbr.rel (%p227) target = $region12
    $region11: #{_lambda_.14} parent=5 // pred_region
      %s231 = ssub.s32 %s17, 1
      // Predicated region
      $region13: #{_lambda_.14} parent=11 // pred_check
        %p232 = pneg %p55
      $region14: #{_lambda_.14} parent=11 // pred_check_branch
        %234 = sbr.rel (%p232) target = $region16
      $region15: #{_lambda_.14} parent=11 // pred_region
        %s235 = smul.u32 2, %s27
        %p236 = scmp.lt.s32.totalorder %s235, 1
        %s237 = scalar_select %p236, %s235, 1
        %s238 = scalar_lea.vmem %s2, %s237
        %s239 = smul.u32 2, %s27
      $region16: #{_lambda_.14} parent=11 // pred_fallthru
        _
      // Predicated region
      $region17: #{_lambda_.14} parent=11 // pred_check
        %p240 = pneg %p81
      $region18: #{_lambda_.14} parent=11 // pred_check_branch
        %242 = sbr.rel (%p240) target = $region20
      $region19: #{_lambda_.14} parent=11 // pred_region
        %s243 = smul.u32 30, %s27
        %p244 = scmp.lt.s32.totalorder %s243, 29
        %s245 = scalar_select %p244, %s243, 29
        %s246 = smul.addr %s245, 8
        %s247 = scalar_lea.vmem %s3, %s246
        %s248 = smul.u32 30, %s27
      $region20: #{_lambda_.14} parent=11 // pred_fallthru
        _
      // Predicated region
      $region21: #{_lambda_.14} parent=11 // pred_check
        %p249 = pneg %p107
      $region22: #{_lambda_.14} parent=11 // pred_check_branch
        %251 = sbr.rel (%p249) target = $region24
      $region23: #{_lambda_.14} parent=11 // pred_region
        %s252 = smul.u32 30, %s27
        %p253 = scmp.lt.s32.totalorder %s252, 29
        %s254 = scalar_select %p253, %s252, 29
        %s255 = smul.addr %s254, 8
        %s256 = scalar_lea.vmem %s4, %s255
        %s257 = smul.u32 30, %s27
      $region24: #{_lambda_.14} parent=11 // pred_fallthru
        _
      // Predicated region
      $region25: #{_lambda_.14} parent=11 // pred_check
        %p258 = pneg %p128
      $region26: #{_lambda_.14} parent=11 // pred_check_branch
        %260 = sbr.rel (%p258) target = $region28
      $region27: #{_lambda_.14} parent=11 // pred_region
        _
      $region28: #{_lambda_.14} parent=11 // pred_fallthru
        _
      // Predicated region
      $region29: #{_lambda_.14} parent=11 // pred_check
        %p261 = pneg %p149
      $region30: #{_lambda_.14} parent=11 // pred_check_branch
        %263 = sbr.rel (%p261) target = $region32
      $region31: #{_lambda_.14} parent=11 // pred_region
        _
      $region32: #{_lambda_.14} parent=11 // pred_fallthru
        _
      // Predicated region
      $region33: #{_lambda_.14} parent=11 // pred_check
        %p264 = pneg %p170
      $region34: #{_lambda_.14} parent=11 // pred_check_branch
        %266 = sbr.rel (%p264) target = $region36
      $region35: #{_lambda_.14} parent=11 // pred_region
        _
      $region36: #{_lambda_.14} parent=11 // pred_fallthru
        _
      // Predicated region
      $region37: #{_lambda_.14} parent=11 // pred_check
        %p267 = pneg %p191
      $region38: #{_lambda_.14} parent=11 // pred_check_branch
        %269 = sbr.rel (%p267) target = $region40
      $region39: #{_lambda_.14} parent=11 // pred_region
        _
      $region40: #{_lambda_.14} parent=11 // pred_fallthru
        _
    $region12: #{_lambda_.14} parent=5 // pred_fallthru
      _
    %p270 = scmp.lt.s32.totalorder %s17, 2
    // Predicated region
    $region41: #{_lambda_.14} parent=5 // pred_check
      %p271 = pneg %p270
    $region42: #{_lambda_.14} parent=5 // pred_check_branch
      %273 = sbr.rel (%p271) target = $region44
    $region43: #{_lambda_.14} parent=5 // pred_region
      _
    $region44: #{_lambda_.14} parent=5 // pred_fallthru
      _
    %p274 = scmp.le.s32.totalorder 1, %s17
    %p275 = scmp.lt.s32.totalorder %s17, 3
    %p276 = pnand %p274, %p275
    %p277 = pneg %p276
    // Predicated region
    $region45: #{_lambda_.14} parent=5 // pred_check
      _
    $region46: #{_lambda_.14} parent=5 // pred_check_branch
      %279 = sbr.rel (%p276) target = $region48
    $region47: #{_lambda_.14} parent=5 // pred_region
      %s280 = ssub.s32 %s17, 1
      %s281 = smul.u32 2, %s27
      %p282 = scmp.lt.s32.totalorder %s281, 1
      %s283 = scalar_select %p282, %s281, 1
      %s284 = scalar_lea.vmem %s2, %s283
      %p285 = pneg %p55
      %p286 = pneg %p52
      %s287 = smul.u32 30, %s27
      %p288 = scmp.lt.s32.totalorder %s287, 29
      %s289 = scalar_select %p288, %s287, 29
      %s290 = smul.addr %s289, 8
      %s291 = scalar_lea.vmem %s3, %s290
      %p292 = pneg %p81
      %p293 = pneg %p78
      %s294 = smul.u32 30, %s27
      %p295 = scmp.lt.s32.totalorder %s294, 29
      %s296 = scalar_select %p295, %s294, 29
      %s297 = smul.addr %s296, 8
      %s298 = scalar_lea.vmem %s4, %s297
      %p299 = pneg %p107
      %p300 = pneg %p104
      %p301 = pneg %p128
      %p302 = pneg %p125
      %p303 = pneg %p149
      %p304 = pneg %p146
      %p305 = pneg %p170
      %p306 = pneg %p167
      %p307 = pneg %p191
      %p308 = pneg %p188
      %p309 = pneg %p217
      %p310 = pneg %p214
      %s311 = smul.u32 4, %s26
      %p312 = scmp.lt.s32.totalorder %s311, 7
      %s313 = scalar_select %p312, %s311, 7
      %s314 = smul.addr %s313, 8
      %s315 = scalar_lea.vmem %s9, %s314
      %s316 = smul.u32 2, %s27
      %p317 = scmp.lt.s32.totalorder %s316, 1
      %s318 = scalar_select %p317, %s316, 1
      %s319 = scalar_lea.vmem %s2, %s318
      %s320 = smul.u32 2, %s27
      %s321 = smul.u32 30, %s27
      %p322 = scmp.lt.s32.totalorder %s321, 29
      %s323 = scalar_select %p322, %s321, 29
      %s324 = smul.addr %s323, 8
      %s325 = scalar_lea.vmem %s3, %s324
      %s326 = smul.u32 30, %s27
      %s327 = smul.u32 30, %s27
      %p328 = scmp.lt.s32.totalorder %s327, 29
      %s329 = scalar_select %p328, %s327, 29
      %s330 = smul.addr %s329, 8
      %s331 = scalar_lea.vmem %s4, %s330
      %s332 = smul.u32 30, %s27
      %s333 = smul.u32 4, %s26
      %p334 = scmp.lt.s32.totalorder %s333, 7
      %s335 = scalar_select %p334, %s333, 7
      %s336 = smul.addr %s335, 8
      %s337 = scalar_lea.vmem %s9, %s336
      %s338 = smul.u32 4, %s26
      %p340 = scmp.eq.s32.totalorder %s27, 0
      // Predicated region
      $region49: #{_lambda_.14} parent=47 // pred_check
        %p341 = pneg %p340
      $region50: #{_lambda_.14} parent=47 // pred_check_branch
        %343 = sbr.rel (%p341) target = $region52
      $region51: #{_lambda_.14} parent=47 // pred_region
        %vm344 = vcmask 261120
        %345 = vst.msk [vmem:[%s337] sm:$0xff] %vm344, 0.0
        %346 = vst.msk [vmem:[%s337 + $0x8] sm:$0xff] %vm344, 0.0
        %347 = vst.msk [vmem:[%s337 + $0x10] sm:$0xff] %vm344, 0.0
        %348 = vst.msk [vmem:[%s337 + $0x18] sm:$0xff] %vm344, 0.0
      $region52: #{_lambda_.14} parent=47 // pred_fallthru
        _
      %s349 = smul.u32 %s26, 32
      %s350 = sld [smem:[#allocation4 + %s27]]
      %p351 = scmp.ge.s32.totalorder %s350, %s349
      %s352 = sld [smem:[#allocation3 + %s27]]
      %s353 = sadd.s32 %s349, 32
      %p354 = scmp.lt.s32.totalorder %s352, %s353
      %p355 = pnand %p351, %p354
      %p356 = pneg %p355
      // Predicated region
      $region53: #{_lambda_.14} parent=47 // pred_check
        _
      $region54: #{_lambda_.14} parent=47 // pred_check_branch
        %358 = sbr.rel (%p355) target = $region56
      $region55: #{_lambda_.14} parent=47 // pred_region
        %v359 = vld [vmem:[%s325] sm:$0xff]
        %v360 = vld [vmem:[%s325 + $0x8] sm:$0xff]
        %v361 = vld [vmem:[%s325 + $0x10] sm:$0xff]
        %v362 = vld [vmem:[%s325 + $0x18] sm:$0xff]
        %v363 = vld [vmem:[%s325 + $0x20] sm:$0xff]
        %v364 = vld [vmem:[%s325 + $0x28] sm:$0xff]
        %v365 = vld [vmem:[%s325 + $0x30] sm:$0xff]
        %v366 = vld [vmem:[%s325 + $0x38] sm:$0xff]
        %v367 = vld [vmem:[%s325 + $0x40] sm:$0xff]
        %v368 = vld [vmem:[%s325 + $0x48] sm:$0xff]
        %v369 = vld [vmem:[%s325 + $0x50] sm:$0xff]
        %v370 = vld [vmem:[%s325 + $0x58] sm:$0xff]
        %v371 = vld [vmem:[%s325 + $0x60] sm:$0xff]
        %v372 = vld [vmem:[%s325 + $0x68] sm:$0xff]
        %v373 = vld [vmem:[%s325 + $0x70] sm:$0xff]
        %v374 = vld [vmem:[%s325 + $0x78] sm:$0xff]
        %v375 = vld [vmem:[%s325 + $0x80] sm:$0xff]
        %v376 = vld [vmem:[%s325 + $0x88] sm:$0xff]
        %v377 = vld [vmem:[%s325 + $0x90] sm:$0xff]
        %v378 = vld [vmem:[%s325 + $0x98] sm:$0xff]
        %v379 = vld [vmem:[%s325 + $0xa0] sm:$0xff]
        %v380 = vld [vmem:[%s325 + $0xa8] sm:$0xff]
        %v381 = vld [vmem:[%s325 + $0xb0] sm:$0xff]
        %v382 = vld [vmem:[%s325 + $0xb8] sm:$0xff]
        %v383 = vld [vmem:[%s325 + $0xc0] sm:$0xff]
        %v384 = vld [vmem:[%s325 + $0xc8] sm:$0xff]
        %v385 = vld [vmem:[%s325 + $0xd0] sm:$0xff]
        %v386 = vld [vmem:[%s325 + $0xd8] sm:$0xff]
        %v387 = vld [vmem:[%s325 + $0xe0] sm:$0xff]
        %v388 = vld [vmem:[%s325 + $0xe8] sm:$0xff]
        %v389 = vpack.c.bf16 %v360, %v359
        %v390 = vpack.c.bf16 %v362, %v361
        %v391 = vpack.c.bf16 %v364, %v363
        %v392 = vpack.c.bf16 %v366, %v365
        %v393 = vpack.c.bf16 %v368, %v367
        %v394 = vpack.c.bf16 %v370, %v369
        %v395 = vpack.c.bf16 %v372, %v371
        %v396 = vpack.c.bf16 %v374, %v373
        %v397 = vpack.c.bf16 %v376, %v375
        %v398 = vpack.c.bf16 %v378, %v377
        %v399 = vpack.c.bf16 %v380, %v379
        %v400 = vpack.c.bf16 %v382, %v381
        %v401 = vpack.c.bf16 %v384, %v383
        %v402 = vpack.c.bf16 %v386, %v385
        %v403 = vpack.c.bf16 %v388, %v387
        %v404 = vld [vmem:[%s5] sm:$0xf]
        %v405 = vld [vmem:[%s5 + $0x4] sm:$0xf]
        %v406 = vld [vmem:[%s5 + $0x8] sm:$0x1]
        %v410 = vunpack.c.l.b16 %v404
        %v411 = vunpack.c.l.b16 %v405
        %v412 = vunpack.c.l.b16 %v406
        %v413 = vpack.c.b16 %v411, %v410
        %v414 = vpack.c.b16 %v412, %v412
        %vm416 = vcmask 146432
        %v418 = vsel %vm416, %v389, 0
        %v421 = vsel %vm416, %v390, 0
        %v424 = vsel %vm416, %v391, 0
        %v427 = vsel %vm416, %v392, 0
        %v430 = vsel %vm416, %v393, 0
        %v433 = vsel %vm416, %v394, 0
        %v436 = vsel %vm416, %v395, 0
        %v439 = vsel %vm416, %v396, 0
        %v442 = vsel %vm416, %v397, 0
        %v445 = vsel %vm416, %v398, 0
        %v448 = vsel %vm416, %v399, 0
        %v451 = vsel %vm416, %v400, 0
        %v454 = vsel %vm416, %v401, 0
        %v457 = vsel %vm416, %v402, 0
        %v460 = vsel %vm416, %v403, 0
        %vm462 = vcmask 1040384
        %v464 = vsel %vm462, %v414, 0
        %466 = vmatpush.bf16.msra.mxu0 0
        %467 = vmatpush.bf16.msra.mxu0 0
        %468 = vmatpush.bf16.msra.mxu0 0
        %469 = vmatpush.bf16.msra.mxu0 0
        %470 = vmatpush.bf16.msra.mxu0 0
        %471 = vmatpush.bf16.msra.mxu0 0
        %472 = vmatpush.bf16.msra.mxu0 %v464
        %473 = vmatpush.bf16.msra.mxu0 %v413
        %474 = vmatmul.bf16.gmra.mxu0 %v418
        %v475 = vpop.f32.mrf.mxu0
        %v476 = vadd.f32 0.0, %v475
        %v477 = vpop.f32.mrf.mxu0
        %v478 = vadd.f32 0.0, %v477
        %479 = vmatmul.bf16.gmra.mxu0 %v421
        %v480 = vpop.f32.mrf.mxu0
        %v481 = vadd.f32 0.0, %v480
        %v482 = vpop.f32.mrf.mxu0
        %v483 = vadd.f32 0.0, %v482
        %484 = vmatmul.bf16.gmra.mxu0 %v424
        %v485 = vpop.f32.mrf.mxu0
        %v486 = vadd.f32 0.0, %v485
        %v487 = vpop.f32.mrf.mxu0
        %v488 = vadd.f32 0.0, %v487
        %489 = vmatmul.bf16.gmra.mxu0 %v427
        %v490 = vpop.f32.mrf.mxu0
        %v491 = vadd.f32 0.0, %v490
        %v492 = vpop.f32.mrf.mxu0
        %v493 = vadd.f32 0.0, %v492
        %494 = vmatmul.bf16.gmra.mxu0 %v430
        %v495 = vpop.f32.mrf.mxu0
        %v496 = vadd.f32 0.0, %v495
        %v497 = vpop.f32.mrf.mxu0
        %v498 = vadd.f32 0.0, %v497
        %499 = vmatmul.bf16.gmra.mxu0 %v433
        %v500 = vpop.f32.mrf.mxu0
        %v501 = vadd.f32 0.0, %v500
        %v502 = vpop.f32.mrf.mxu0
        %v503 = vadd.f32 0.0, %v502
        %504 = vmatmul.bf16.gmra.mxu0 %v436
        %v505 = vpop.f32.mrf.mxu0
        %v506 = vadd.f32 0.0, %v505
        %v507 = vpop.f32.mrf.mxu0
        %v508 = vadd.f32 0.0, %v507
        %509 = vmatmul.bf16.gmra.mxu0 %v439
        %v510 = vpop.f32.mrf.mxu0
        %v511 = vadd.f32 0.0, %v510
        %v512 = vpop.f32.mrf.mxu0
        %v513 = vadd.f32 0.0, %v512
        %514 = vmatmul.bf16.gmra.mxu0 %v442
        %v515 = vpop.f32.mrf.mxu0
        %v516 = vadd.f32 0.0, %v515
        %v517 = vpop.f32.mrf.mxu0
        %v518 = vadd.f32 0.0, %v517
        %519 = vmatmul.bf16.gmra.mxu0 %v445
        %v520 = vpop.f32.mrf.mxu0
        %v521 = vadd.f32 0.0, %v520
        %v522 = vpop.f32.mrf.mxu0
        %v523 = vadd.f32 0.0, %v522
        %524 = vmatmul.bf16.gmra.mxu0 %v448
        %v525 = vpop.f32.mrf.mxu0
        %v526 = vadd.f32 0.0, %v525
        %v527 = vpop.f32.mrf.mxu0
        %v528 = vadd.f32 0.0, %v527
        %529 = vmatmul.bf16.gmra.mxu0 %v451
        %v530 = vpop.f32.mrf.mxu0
        %v531 = vadd.f32 0.0, %v530
        %v532 = vpop.f32.mrf.mxu0
        %v533 = vadd.f32 0.0, %v532
        %534 = vmatmul.bf16.gmra.mxu0 %v454
        %v535 = vpop.f32.mrf.mxu0
        %v536 = vadd.f32 0.0, %v535
        %v537 = vpop.f32.mrf.mxu0
        %v538 = vadd.f32 0.0, %v537
        %539 = vmatmul.bf16.gmra.mxu0 %v457
        %v540 = vpop.f32.mrf.mxu0
        %v541 = vadd.f32 0.0, %v540
        %v542 = vpop.f32.mrf.mxu0
        %v543 = vadd.f32 0.0, %v542
        %544 = vmatmul.bf16.gmra.mxu0 %v460
        %v545 = vpop.f32.mrf.mxu0
        %v546 = vadd.f32 0.0, %v545
        %v547 = vpop.f32.mrf.mxu0
        %v548 = vadd.f32 0.0, %v547
        %549 = vdwg.mxu0
        %v550 = vld [vmem:[%s331] sm:$0xff]
        %v551 = vld [vmem:[%s331 + $0x8] sm:$0xff]
        %v552 = vld [vmem:[%s331 + $0x10] sm:$0xff]
        %v553 = vld [vmem:[%s331 + $0x18] sm:$0xff]
        %v554 = vld [vmem:[%s331 + $0x20] sm:$0xff]
        %v555 = vld [vmem:[%s331 + $0x28] sm:$0xff]
        %v556 = vld [vmem:[%s331 + $0x30] sm:$0xff]
        %v557 = vld [vmem:[%s331 + $0x38] sm:$0xff]
        %v558 = vld [vmem:[%s331 + $0x40] sm:$0xff]
        %v559 = vld [vmem:[%s331 + $0x48] sm:$0xff]
        %v560 = vld [vmem:[%s331 + $0x50] sm:$0xff]
        %v561 = vld [vmem:[%s331 + $0x58] sm:$0xff]
        %v562 = vld [vmem:[%s331 + $0x60] sm:$0xff]
        %v563 = vld [vmem:[%s331 + $0x68] sm:$0xff]
        %v564 = vld [vmem:[%s331 + $0x70] sm:$0xff]
        %v565 = vld [vmem:[%s331 + $0x78] sm:$0xff]
        %v566 = vld [vmem:[%s331 + $0x80] sm:$0xff]
        %v567 = vld [vmem:[%s331 + $0x88] sm:$0xff]
        %v568 = vld [vmem:[%s331 + $0x90] sm:$0xff]
        %v569 = vld [vmem:[%s331 + $0x98] sm:$0xff]
        %v570 = vld [vmem:[%s331 + $0xa0] sm:$0xff]
        %v571 = vld [vmem:[%s331 + $0xa8] sm:$0xff]
        %v572 = vld [vmem:[%s331 + $0xb0] sm:$0xff]
        %v573 = vld [vmem:[%s331 + $0xb8] sm:$0xff]
        %v574 = vld [vmem:[%s331 + $0xc0] sm:$0xff]
        %v575 = vld [vmem:[%s331 + $0xc8] sm:$0xff]
        %v576 = vld [vmem:[%s331 + $0xd0] sm:$0xff]
        %v577 = vld [vmem:[%s331 + $0xd8] sm:$0xff]
        %v578 = vld [vmem:[%s331 + $0xe0] sm:$0xff]
        %v579 = vld [vmem:[%s331 + $0xe8] sm:$0xff]
        %v580 = vpack.c.bf16 %v551, %v550
        %v581 = vpack.c.bf16 %v553, %v552
        %v582 = vpack.c.bf16 %v555, %v554
        %v583 = vpack.c.bf16 %v557, %v556
        %v584 = vpack.c.bf16 %v559, %v558
        %v585 = vpack.c.bf16 %v561, %v560
        %v586 = vpack.c.bf16 %v563, %v562
        %v587 = vpack.c.bf16 %v565, %v564
        %v588 = vpack.c.bf16 %v567, %v566
        %v589 = vpack.c.bf16 %v569, %v568
        %v590 = vpack.c.bf16 %v571, %v570
        %v591 = vpack.c.bf16 %v573, %v572
        %v592 = vpack.c.bf16 %v575, %v574
        %v593 = vpack.c.bf16 %v577, %v576
        %v594 = vpack.c.bf16 %v579, %v578
        %v595 = vld [vmem:[%s6] sm:$0xff]
        %v596 = vld [vmem:[%s6 + $0x8] sm:$0xff]
        %v597 = vld [vmem:[%s6 + $0x10] sm:$0xff]
        %v598 = vld [vmem:[%s6 + $0x18] sm:$0xff]
        %v603 = vunpack.c.l.b16 %v595
        %v604 = vunpack.c.h.b16 %v595
        %v605 = vunpack.c.l.b16 %v596
        %v606 = vunpack.c.h.b16 %v596
        %v607 = vunpack.c.l.b16 %v597
        %v608 = vunpack.c.h.b16 %v597
        %v609 = vunpack.c.l.b16 %v598
        %v610 = vunpack.c.h.b16 %v598
        %v611 = vpack.c.b16 %v605, %v603
        %v612 = vpack.c.b16 %v606, %v604
        %v613 = vpack.c.b16 %v609, %v607
        %v614 = vpack.c.b16 %v610, %v608
        %vm619 = vcmask 261120
        %v621 = vsel %vm619, %v580, 0
        %v624 = vsel %vm619, %v581, 0
        %v627 = vsel %vm619, %v582, 0
        %v630 = vsel %vm619, %v583, 0
        %v633 = vsel %vm619, %v584, 0
        %v636 = vsel %vm619, %v585, 0
        %v639 = vsel %vm619, %v586, 0
        %v642 = vsel %vm619, %v587, 0
        %v645 = vsel %vm619, %v588, 0
        %v648 = vsel %vm619, %v589, 0
        %v651 = vsel %vm619, %v590, 0
        %v654 = vsel %vm619, %v591, 0
        %v657 = vsel %vm619, %v592, 0
        %v660 = vsel %vm619, %v593, 0
        %v663 = vsel %vm619, %v594, 0
        %665 = vmatpush.bf16.msra.mxu0 0
        %666 = vmatpush.bf16.msra.mxu0 0
        %667 = vmatpush.bf16.msra.mxu0 0
        %668 = vmatpush.bf16.msra.mxu0 0
        %669 = vmatpush.bf16.msra.mxu0 0
        %670 = vmatpush.bf16.msra.mxu0 0
        %671 = vmatpush.bf16.msra.mxu0 %v613
        %672 = vmatpush.bf16.msra.mxu0 %v611
        %673 = vmatmul.bf16.gmra.mxu0 %v621
        %v674 = vpop.f32.mrf.mxu0
        %v675 = vadd.f32 0.0, %v674
        %v676 = vpop.f32.mrf.mxu0
        %v677 = vadd.f32 0.0, %v676
        %678 = vmatmul.bf16.gmra.mxu0 %v624
        %v679 = vpop.f32.mrf.mxu0
        %v680 = vadd.f32 0.0, %v679
        %v681 = vpop.f32.mrf.mxu0
        %v682 = vadd.f32 0.0, %v681
        %683 = vmatmul.bf16.gmra.mxu0 %v627
        %v684 = vpop.f32.mrf.mxu0
        %v685 = vadd.f32 0.0, %v684
        %v686 = vpop.f32.mrf.mxu0
        %v687 = vadd.f32 0.0, %v686
        %688 = vmatmul.bf16.gmra.mxu0 %v630
        %v689 = vpop.f32.mrf.mxu0
        %v690 = vadd.f32 0.0, %v689
        %v691 = vpop.f32.mrf.mxu0
        %v692 = vadd.f32 0.0, %v691
        %693 = vmatmul.bf16.gmra.mxu0 %v633
        %v694 = vpop.f32.mrf.mxu0
        %v695 = vadd.f32 0.0, %v694
        %v696 = vpop.f32.mrf.mxu0
        %v697 = vadd.f32 0.0, %v696
        %698 = vmatmul.bf16.gmra.mxu0 %v636
        %v699 = vpop.f32.mrf.mxu0
        %v700 = vadd.f32 0.0, %v699
        %v701 = vpop.f32.mrf.mxu0
        %v702 = vadd.f32 0.0, %v701
        %703 = vmatmul.bf16.gmra.mxu0 %v639
        %v704 = vpop.f32.mrf.mxu0
        %v705 = vadd.f32 0.0, %v704
        %v706 = vpop.f32.mrf.mxu0
        %v707 = vadd.f32 0.0, %v706
        %708 = vmatmul.bf16.gmra.mxu0 %v642
        %v709 = vpop.f32.mrf.mxu0
        %v710 = vadd.f32 0.0, %v709
        %v711 = vpop.f32.mrf.mxu0
        %v712 = vadd.f32 0.0, %v711
        %713 = vmatmul.bf16.gmra.mxu0 %v645
        %v714 = vpop.f32.mrf.mxu0
        %v715 = vadd.f32 0.0, %v714
        %v716 = vpop.f32.mrf.mxu0
        %v717 = vadd.f32 0.0, %v716
        %718 = vmatmul.bf16.gmra.mxu0 %v648
        %v719 = vpop.f32.mrf.mxu0
        %v720 = vadd.f32 0.0, %v719
        %v721 = vpop.f32.mrf.mxu0
        %v722 = vadd.f32 0.0, %v721
        %723 = vmatmul.bf16.gmra.mxu0 %v651
        %v724 = vpop.f32.mrf.mxu0
        %v725 = vadd.f32 0.0, %v724
        %v726 = vpop.f32.mrf.mxu0
        %v727 = vadd.f32 0.0, %v726
        %728 = vmatmul.bf16.gmra.mxu0 %v654
        %v729 = vpop.f32.mrf.mxu0
        %v730 = vadd.f32 0.0, %v729
        %v731 = vpop.f32.mrf.mxu0
        %v732 = vadd.f32 0.0, %v731
        %733 = vmatmul.bf16.gmra.mxu0 %v657
        %v734 = vpop.f32.mrf.mxu0
        %v735 = vadd.f32 0.0, %v734
        %v736 = vpop.f32.mrf.mxu0
        %v737 = vadd.f32 0.0, %v736
        %738 = vmatmul.bf16.gmra.mxu0 %v660
        %v739 = vpop.f32.mrf.mxu0
        %v740 = vadd.f32 0.0, %v739
        %v741 = vpop.f32.mrf.mxu0
        %v742 = vadd.f32 0.0, %v741
        %743 = vmatmul.bf16.gmra.mxu0 %v663
        %v744 = vpop.f32.mrf.mxu0
        %v745 = vadd.f32 0.0, %v744
        %v746 = vpop.f32.mrf.mxu0
        %v747 = vadd.f32 0.0, %v746
        %748 = vdwg.mxu0
        %749 = vmatpush.bf16.msra.mxu0 0
        %750 = vmatpush.bf16.msra.mxu0 0
        %751 = vmatpush.bf16.msra.mxu0 0
        %752 = vmatpush.bf16.msra.mxu0 0
        %753 = vmatpush.bf16.msra.mxu0 0
        %754 = vmatpush.bf16.msra.mxu0 0
        %755 = vmatpush.bf16.msra.mxu0 %v614
        %756 = vmatpush.bf16.msra.mxu0 %v612
        %757 = vmatmul.bf16.gmra.mxu0 %v621
        %v758 = vpop.f32.mrf.mxu0
        %v759 = vadd.f32 0.0, %v758
        %v760 = vpop.f32.mrf.mxu0
        %v761 = vadd.f32 0.0, %v760
        %762 = vmatmul.bf16.gmra.mxu0 %v624
        %v763 = vpop.f32.mrf.mxu0
        %v764 = vadd.f32 0.0, %v763
        %v765 = vpop.f32.mrf.mxu0
        %v766 = vadd.f32 0.0, %v765
        %767 = vmatmul.bf16.gmra.mxu0 %v627
        %v768 = vpop.f32.mrf.mxu0
        %v769 = vadd.f32 0.0, %v768
        %v770 = vpop.f32.mrf.mxu0
        %v771 = vadd.f32 0.0, %v770
        %772 = vmatmul.bf16.gmra.mxu0 %v630
        %v773 = vpop.f32.mrf.mxu0
        %v774 = vadd.f32 0.0, %v773
        %v775 = vpop.f32.mrf.mxu0
        %v776 = vadd.f32 0.0, %v775
        %777 = vmatmul.bf16.gmra.mxu0 %v633
        %v778 = vpop.f32.mrf.mxu0
        %v779 = vadd.f32 0.0, %v778
        %v780 = vpop.f32.mrf.mxu0
        %v781 = vadd.f32 0.0, %v780
        %782 = vmatmul.bf16.gmra.mxu0 %v636
        %v783 = vpop.f32.mrf.mxu0
        %v784 = vadd.f32 0.0, %v783
        %v785 = vpop.f32.mrf.mxu0
        %v786 = vadd.f32 0.0, %v785
        %787 = vmatmul.bf16.gmra.mxu0 %v639
        %v788 = vpop.f32.mrf.mxu0
        %v789 = vadd.f32 0.0, %v788
        %v790 = vpop.f32.mrf.mxu0
        %v791 = vadd.f32 0.0, %v790
        %792 = vmatmul.bf16.gmra.mxu0 %v642
        %v793 = vpop.f32.mrf.mxu0
        %v794 = vadd.f32 0.0, %v793
        %v795 = vpop.f32.mrf.mxu0
        %v796 = vadd.f32 0.0, %v795
        %797 = vmatmul.bf16.gmra.mxu0 %v645
        %v798 = vpop.f32.mrf.mxu0
        %v799 = vadd.f32 0.0, %v798
        %v800 = vpop.f32.mrf.mxu0
        %v801 = vadd.f32 0.0, %v800
        %802 = vmatmul.bf16.gmra.mxu0 %v648
        %v803 = vpop.f32.mrf.mxu0
        %v804 = vadd.f32 0.0, %v803
        %v805 = vpop.f32.mrf.mxu0
        %v806 = vadd.f32 0.0, %v805
        %807 = vmatmul.bf16.gmra.mxu0 %v651
        %v808 = vpop.f32.mrf.mxu0
        %v809 = vadd.f32 0.0, %v808
        %v810 = vpop.f32.mrf.mxu0
        %v811 = vadd.f32 0.0, %v810
        %812 = vmatmul.bf16.gmra.mxu0 %v654
        %v813 = vpop.f32.mrf.mxu0
        %v814 = vadd.f32 0.0, %v813
        %v815 = vpop.f32.mrf.mxu0
        %v816 = vadd.f32 0.0, %v815
        %817 = vmatmul.bf16.gmra.mxu0 %v657
        %v818 = vpop.f32.mrf.mxu0
        %v819 = vadd.f32 0.0, %v818
        %v820 = vpop.f32.mrf.mxu0
        %v821 = vadd.f32 0.0, %v820
        %822 = vmatmul.bf16.gmra.mxu0 %v660
        %v823 = vpop.f32.mrf.mxu0
        %v824 = vadd.f32 0.0, %v823
        %v825 = vpop.f32.mrf.mxu0
        %v826 = vadd.f32 0.0, %v825
        %827 = vmatmul.bf16.gmra.mxu0 %v663
        %v828 = vpop.f32.mrf.mxu0
        %v829 = vadd.f32 0.0, %v828
        %v830 = vpop.f32.mrf.mxu0
        %v831 = vadd.f32 0.0, %v830
        %832 = vdwg.mxu0
        %v833 = vpack.c.bf16 %v478, %v476
        %v834 = vpack.c.bf16 %v483, %v481
        %v835 = vpack.c.bf16 %v488, %v486
        %v836 = vpack.c.bf16 %v493, %v491
        %v837 = vpack.c.bf16 %v498, %v496
        %v838 = vpack.c.bf16 %v503, %v501
        %v839 = vpack.c.bf16 %v508, %v506
        %v840 = vpack.c.bf16 %v513, %v511
        %v841 = vpack.c.bf16 %v518, %v516
        %v842 = vpack.c.bf16 %v523, %v521
        %v843 = vpack.c.bf16 %v528, %v526
        %v844 = vpack.c.bf16 %v533, %v531
        %v845 = vpack.c.bf16 %v538, %v536
        %v846 = vpack.c.bf16 %v543, %v541
        %v847 = vpack.c.bf16 %v548, %v546
        %v848 = vld [vmem:[%s7] sm:$0xff]
        %v850 = vunpack.c.l.b16 %v848
        %v851 = vunpack.c.h.b16 %v848
        %v852 = vpack.c.b16 %v850, %v850
        %v853 = vpack.c.b16 %v851, %v851
        %vm854 = vcmask 64512
        %v856 = vsel %vm854, %v833, 0
        %v859 = vsel %vm854, %v834, 0
        %v862 = vsel %vm854, %v835, 0
        %v865 = vsel %vm854, %v836, 0
        %v868 = vsel %vm854, %v837, 0
        %v871 = vsel %vm854, %v838, 0
        %v874 = vsel %vm854, %v839, 0
        %v877 = vsel %vm854, %v840, 0
        %v880 = vsel %vm854, %v841, 0
        %v883 = vsel %vm854, %v842, 0
        %v886 = vsel %vm854, %v843, 0
        %v889 = vsel %vm854, %v844, 0
        %v892 = vsel %vm854, %v845, 0
        %v895 = vsel %vm854, %v846, 0
        %v898 = vsel %vm854, %v847, 0
        %vm900 = vcmask 1043456
        %v902 = vsel %vm900, %v852, 0
        %v905 = vsel %vm900, %v853, 0
        %907 = vmatpush.bf16.msra.mxu0 0
        %908 = vmatpush.bf16.msra.mxu0 0
        %909 = vmatpush.bf16.msra.mxu0 0
        %910 = vmatpush.bf16.msra.mxu0 0
        %911 = vmatpush.bf16.msra.mxu0 0
        %912 = vmatpush.bf16.msra.mxu0 0
        %913 = vmatpush.bf16.msra.mxu0 0
        %914 = vmatpush.bf16.msra.mxu0 %v902
        %915 = vmatmul.bf16.gmra.mxu0 %v856
        %v916 = vpop.f32.mrf.mxu0
        %v917 = vadd.f32 0.0, %v916
        %v918 = vpop.f32.mrf.mxu0
        %v919 = vadd.f32 0.0, %v918
        %920 = vmatmul.bf16.gmra.mxu0 %v859
        %v921 = vpop.f32.mrf.mxu0
        %v922 = vadd.f32 0.0, %v921
        %v923 = vpop.f32.mrf.mxu0
        %v924 = vadd.f32 0.0, %v923
        %925 = vmatmul.bf16.gmra.mxu0 %v862
        %v926 = vpop.f32.mrf.mxu0
        %v927 = vadd.f32 0.0, %v926
        %v928 = vpop.f32.mrf.mxu0
        %v929 = vadd.f32 0.0, %v928
        %930 = vmatmul.bf16.gmra.mxu0 %v865
        %v931 = vpop.f32.mrf.mxu0
        %v932 = vadd.f32 0.0, %v931
        %v933 = vpop.f32.mrf.mxu0
        %v934 = vadd.f32 0.0, %v933
        %935 = vmatmul.bf16.gmra.mxu0 %v868
        %v936 = vpop.f32.mrf.mxu0
        %v937 = vadd.f32 0.0, %v936
        %v938 = vpop.f32.mrf.mxu0
        %v939 = vadd.f32 0.0, %v938
        %940 = vmatmul.bf16.gmra.mxu0 %v871
        %v941 = vpop.f32.mrf.mxu0
        %v942 = vadd.f32 0.0, %v941
        %v943 = vpop.f32.mrf.mxu0
        %v944 = vadd.f32 0.0, %v943
        %945 = vmatmul.bf16.gmra.mxu0 %v874
        %v946 = vpop.f32.mrf.mxu0
        %v947 = vadd.f32 0.0, %v946
        %v948 = vpop.f32.mrf.mxu0
        %v949 = vadd.f32 0.0, %v948
        %950 = vmatmul.bf16.gmra.mxu0 %v877
        %v951 = vpop.f32.mrf.mxu0
        %v952 = vadd.f32 0.0, %v951
        %v953 = vpop.f32.mrf.mxu0
        %v954 = vadd.f32 0.0, %v953
        %955 = vmatmul.bf16.gmra.mxu0 %v880
        %v956 = vpop.f32.mrf.mxu0
        %v957 = vadd.f32 0.0, %v956
        %v958 = vpop.f32.mrf.mxu0
        %v959 = vadd.f32 0.0, %v958
        %960 = vmatmul.bf16.gmra.mxu0 %v883
        %v961 = vpop.f32.mrf.mxu0
        %v962 = vadd.f32 0.0, %v961
        %v963 = vpop.f32.mrf.mxu0
        %v964 = vadd.f32 0.0, %v963
        %965 = vmatmul.bf16.gmra.mxu0 %v886
        %v966 = vpop.f32.mrf.mxu0
        %v967 = vadd.f32 0.0, %v966
        %v968 = vpop.f32.mrf.mxu0
        %v969 = vadd.f32 0.0, %v968
        %970 = vmatmul.bf16.gmra.mxu0 %v889
        %v971 = vpop.f32.mrf.mxu0
        %v972 = vadd.f32 0.0, %v971
        %v973 = vpop.f32.mrf.mxu0
        %v974 = vadd.f32 0.0, %v973
        %975 = vmatmul.bf16.gmra.mxu0 %v892
        %v976 = vpop.f32.mrf.mxu0
        %v977 = vadd.f32 0.0, %v976
        %v978 = vpop.f32.mrf.mxu0
        %v979 = vadd.f32 0.0, %v978
        %980 = vmatmul.bf16.gmra.mxu0 %v895
        %v981 = vpop.f32.mrf.mxu0
        %v982 = vadd.f32 0.0, %v981
        %v983 = vpop.f32.mrf.mxu0
        %v984 = vadd.f32 0.0, %v983
        %985 = vmatmul.bf16.gmra.mxu0 %v898
        %v986 = vpop.f32.mrf.mxu0
        %v987 = vadd.f32 0.0, %v986
        %v988 = vpop.f32.mrf.mxu0
        %v989 = vadd.f32 0.0, %v988
        %990 = vdwg.mxu0
        %991 = vmatpush.bf16.msra.mxu0 0
        %992 = vmatpush.bf16.msra.mxu0 0
        %993 = vmatpush.bf16.msra.mxu0 0
        %994 = vmatpush.bf16.msra.mxu0 0
        %995 = vmatpush.bf16.msra.mxu0 0
        %996 = vmatpush.bf16.msra.mxu0 0
        %997 = vmatpush.bf16.msra.mxu0 0
        %998 = vmatpush.bf16.msra.mxu0 %v905
        %999 = vmatmul.bf16.gmra.mxu0 %v856
        %v1000 = vpop.f32.mrf.mxu0
        %v1001 = vadd.f32 0.0, %v1000
        %v1002 = vpop.f32.mrf.mxu0
        %v1003 = vadd.f32 0.0, %v1002
        %1004 = vmatmul.bf16.gmra.mxu0 %v859
        %v1005 = vpop.f32.mrf.mxu0
        %v1006 = vadd.f32 0.0, %v1005
        %v1007 = vpop.f32.mrf.mxu0
        %v1008 = vadd.f32 0.0, %v1007
        %1009 = vmatmul.bf16.gmra.mxu0 %v862
        %v1010 = vpop.f32.mrf.mxu0
        %v1011 = vadd.f32 0.0, %v1010
        %v1012 = vpop.f32.mrf.mxu0
        %v1013 = vadd.f32 0.0, %v1012
        %1014 = vmatmul.bf16.gmra.mxu0 %v865
        %v1015 = vpop.f32.mrf.mxu0
        %v1016 = vadd.f32 0.0, %v1015
        %v1017 = vpop.f32.mrf.mxu0
        %v1018 = vadd.f32 0.0, %v1017
        %1019 = vmatmul.bf16.gmra.mxu0 %v868
        %v1020 = vpop.f32.mrf.mxu0
        %v1021 = vadd.f32 0.0, %v1020
        %v1022 = vpop.f32.mrf.mxu0
        %v1023 = vadd.f32 0.0, %v1022
        %1024 = vmatmul.bf16.gmra.mxu0 %v871
        %v1025 = vpop.f32.mrf.mxu0
        %v1026 = vadd.f32 0.0, %v1025
        %v1027 = vpop.f32.mrf.mxu0
        %v1028 = vadd.f32 0.0, %v1027
        %1029 = vmatmul.bf16.gmra.mxu0 %v874
        %v1030 = vpop.f32.mrf.mxu0
        %v1031 = vadd.f32 0.0, %v1030
        %v1032 = vpop.f32.mrf.mxu0
        %v1033 = vadd.f32 0.0, %v1032
        %1034 = vmatmul.bf16.gmra.mxu0 %v877
        %v1035 = vpop.f32.mrf.mxu0
        %v1036 = vadd.f32 0.0, %v1035
        %v1037 = vpop.f32.mrf.mxu0
        %v1038 = vadd.f32 0.0, %v1037
        %1039 = vmatmul.bf16.gmra.mxu0 %v880
        %v1040 = vpop.f32.mrf.mxu0
        %v1041 = vadd.f32 0.0, %v1040
        %v1042 = vpop.f32.mrf.mxu0
        %v1043 = vadd.f32 0.0, %v1042
        %1044 = vmatmul.bf16.gmra.mxu0 %v883
        %v1045 = vpop.f32.mrf.mxu0
        %v1046 = vadd.f32 0.0, %v1045
        %v1047 = vpop.f32.mrf.mxu0
        %v1048 = vadd.f32 0.0, %v1047
        %1049 = vmatmul.bf16.gmra.mxu0 %v886
        %v1050 = vpop.f32.mrf.mxu0
        %v1051 = vadd.f32 0.0, %v1050
        %v1052 = vpop.f32.mrf.mxu0
        %v1053 = vadd.f32 0.0, %v1052
        %1054 = vmatmul.bf16.gmra.mxu0 %v889
        %v1055 = vpop.f32.mrf.mxu0
        %v1056 = vadd.f32 0.0, %v1055
        %v1057 = vpop.f32.mrf.mxu0
        %v1058 = vadd.f32 0.0, %v1057
        %1059 = vmatmul.bf16.gmra.mxu0 %v892
        %v1060 = vpop.f32.mrf.mxu0
        %v1061 = vadd.f32 0.0, %v1060
        %v1062 = vpop.f32.mrf.mxu0
        %v1063 = vadd.f32 0.0, %v1062
        %1064 = vmatmul.bf16.gmra.mxu0 %v895
        %v1065 = vpop.f32.mrf.mxu0
        %v1066 = vadd.f32 0.0, %v1065
        %v1067 = vpop.f32.mrf.mxu0
        %v1068 = vadd.f32 0.0, %v1067
        %1069 = vmatmul.bf16.gmra.mxu0 %v898
        %v1070 = vpop.f32.mrf.mxu0
        %v1071 = vadd.f32 0.0, %v1070
        %v1072 = vpop.f32.mrf.mxu0
        %v1073 = vadd.f32 0.0, %v1072
        %1074 = vdwg.mxu0
        %v1075 = vmul.f32 %v675, %v917
        %v1076 = vmul.f32 %v759, %v1001
        %v1077 = vmul.f32 %v677, %v919
        %v1078 = vmul.f32 %v761, %v1003
        %v1079 = vmul.f32 %v680, %v922
        %v1080 = vmul.f32 %v764, %v1006
        %v1081 = vmul.f32 %v682, %v924
        %v1082 = vmul.f32 %v766, %v1008
        %v1083 = vmul.f32 %v685, %v927
        %v1084 = vmul.f32 %v769, %v1011
        %v1085 = vmul.f32 %v687, %v929
        %v1086 = vmul.f32 %v771, %v1013
        %v1087 = vmul.f32 %v690, %v932
        %v1088 = vmul.f32 %v774, %v1016
        %v1089 = vmul.f32 %v692, %v934
        %v1090 = vmul.f32 %v776, %v1018
        %v1091 = vmul.f32 %v695, %v937
        %v1092 = vmul.f32 %v779, %v1021
        %v1093 = vmul.f32 %v697, %v939
        %v1094 = vmul.f32 %v781, %v1023
        %v1095 = vmul.f32 %v700, %v942
        %v1096 = vmul.f32 %v784, %v1026
        %v1097 = vmul.f32 %v702, %v944
        %v1098 = vmul.f32 %v786, %v1028
        %v1099 = vmul.f32 %v705, %v947
        %v1100 = vmul.f32 %v789, %v1031
        %v1101 = vmul.f32 %v707, %v949
        %v1102 = vmul.f32 %v791, %v1033
        %v1103 = vmul.f32 %v710, %v952
        %v1104 = vmul.f32 %v794, %v1036
        %v1105 = vmul.f32 %v712, %v954
        %v1106 = vmul.f32 %v796, %v1038
        %v1107 = vmul.f32 %v715, %v957
        %v1108 = vmul.f32 %v799, %v1041
        %v1109 = vmul.f32 %v717, %v959
        %v1110 = vmul.f32 %v801, %v1043
        %v1111 = vmul.f32 %v720, %v962
        %v1112 = vmul.f32 %v804, %v1046
        %v1113 = vmul.f32 %v722, %v964
        %v1114 = vmul.f32 %v806, %v1048
        %v1115 = vmul.f32 %v725, %v967
        %v1116 = vmul.f32 %v809, %v1051
        %v1117 = vmul.f32 %v727, %v969
        %v1118 = vmul.f32 %v811, %v1053
        %v1119 = vmul.f32 %v730, %v972
        %v1120 = vmul.f32 %v814, %v1056
        %v1121 = vmul.f32 %v732, %v974
        %v1122 = vmul.f32 %v816, %v1058
        %v1123 = vmul.f32 %v735, %v977
        %v1124 = vmul.f32 %v819, %v1061
        %v1125 = vmul.f32 %v737, %v979
        %v1126 = vmul.f32 %v821, %v1063
        %v1127 = vmul.f32 %v740, %v982
        %v1128 = vmul.f32 %v824, %v1066
        %v1129 = vmul.f32 %v742, %v984
        %v1130 = vmul.f32 %v826, %v1068
        %v1131 = vmul.f32 %v745, %v987
        %v1132 = vmul.f32 %v829, %v1071
        %v1133 = vmul.f32 %v747, %v989
        %v1134 = vmul.f32 %v831, %v1073
        %v1135 = vpack.c.bf16 %v1077, %v1075
        %v1136 = vpack.c.bf16 %v1078, %v1076
        %v1137 = vpack.c.bf16 %v1081, %v1079
        %v1138 = vpack.c.bf16 %v1082, %v1080
        %v1139 = vpack.c.bf16 %v1085, %v1083
        %v1140 = vpack.c.bf16 %v1086, %v1084
        %v1141 = vpack.c.bf16 %v1089, %v1087
        %v1142 = vpack.c.bf16 %v1090, %v1088
        %v1143 = vpack.c.bf16 %v1093, %v1091
        %v1144 = vpack.c.bf16 %v1094, %v1092
        %v1145 = vpack.c.bf16 %v1097, %v1095
        %v1146 = vpack.c.bf16 %v1098, %v1096
        %v1147 = vpack.c.bf16 %v1101, %v1099
        %v1148 = vpack.c.bf16 %v1102, %v1100
        %v1149 = vpack.c.bf16 %v1105, %v1103
        %v1150 = vpack.c.bf16 %v1106, %v1104
        %v1151 = vpack.c.bf16 %v1109, %v1107
        %v1152 = vpack.c.bf16 %v1110, %v1108
        %v1153 = vpack.c.bf16 %v1113, %v1111
        %v1154 = vpack.c.bf16 %v1114, %v1112
        %v1155 = vpack.c.bf16 %v1117, %v1115
        %v1156 = vpack.c.bf16 %v1118, %v1116
        %v1157 = vpack.c.bf16 %v1121, %v1119
        %v1158 = vpack.c.bf16 %v1122, %v1120
        %v1159 = vpack.c.bf16 %v1125, %v1123
        %v1160 = vpack.c.bf16 %v1126, %v1124
        %v1161 = vpack.c.bf16 %v1129, %v1127
        %v1162 = vpack.c.bf16 %v1130, %v1128
        %v1163 = vpack.c.bf16 %v1133, %v1131
        %v1164 = vpack.c.bf16 %v1134, %v1132
        %v1165 = vld [vmem:[%s8] sm:$0xf]
        %v1166 = vld [vmem:[%s8 + $0x4] sm:$0xf]
        %v1167 = vld [vmem:[%s8 + $0x8] sm:$0xf]
        %v1168 = vld [vmem:[%s8 + $0xc] sm:$0xf]
        %v1169 = vld [vmem:[%s8 + $0x10] sm:$0xf]
        %v1170 = vld [vmem:[%s8 + $0x14] sm:$0xf]
        %v1171 = vld [vmem:[%s8 + $0x18] sm:$0xf]
        %v1172 = vld [vmem:[%s8 + $0x1c] sm:$0xf]
        %v1173 = vld [vmem:[%s8 + $0x20] sm:$0xf]
        %v1174 = vld [vmem:[%s8 + $0x24] sm:$0xf]
        %v1175 = vld [vmem:[%s8 + $0x28] sm:$0xf]
        %v1176 = vld [vmem:[%s8 + $0x2c] sm:$0xf]
        %v1177 = vld [vmem:[%s8 + $0x30] sm:$0xf]
        %v1178 = vld [vmem:[%s8 + $0x34] sm:$0xf]
        %v1179 = vld [vmem:[%s8 + $0x38] sm:$0xf]
        %v1180 = vld [vmem:[%s8 + $0x3c] sm:$0xf]
        %v1181 = vld [vmem:[%s8 + $0x40] sm:$0xf]
        %v1182 = vld [vmem:[%s8 + $0x44] sm:$0xf]
        %v1183 = vld [vmem:[%s8 + $0x48] sm:$0xf]
        %v1184 = vld [vmem:[%s8 + $0x4c] sm:$0xf]
        %v1185 = vld [vmem:[%s8 + $0x50] sm:$0xf]
        %v1186 = vld [vmem:[%s8 + $0x54] sm:$0xf]
        %v1187 = vld [vmem:[%s8 + $0x58] sm:$0xf]
        %v1188 = vld [vmem:[%s8 + $0x5c] sm:$0xf]
        %v1189 = vld [vmem:[%s8 + $0x60] sm:$0xf]
        %v1190 = vld [vmem:[%s8 + $0x64] sm:$0xf]
        %v1191 = vld [vmem:[%s8 + $0x68] sm:$0xf]
        %v1192 = vld [vmem:[%s8 + $0x6c] sm:$0xf]
        %v1193 = vld [vmem:[%s8 + $0x70] sm:$0xf]
        %v1194 = vld [vmem:[%s8 + $0x74] sm:$0xf]
        %v1195 = vld [vmem:[%s8 + $0x78] sm:$0xf]
        %v1196 = vld [vmem:[%s8 + $0x7c] sm:$0xf]
        %v1229 = vunpack.c.l.b16 %v1165
        %v1230 = vunpack.c.l.b16 %v1166
        %v1231 = vunpack.c.l.b16 %v1167
        %v1232 = vunpack.c.l.b16 %v1168
        %v1233 = vunpack.c.l.b16 %v1169
        %v1234 = vunpack.c.l.b16 %v1170
        %v1235 = vunpack.c.l.b16 %v1171
        %v1236 = vunpack.c.l.b16 %v1172
        %v1237 = vunpack.c.l.b16 %v1173
        %v1238 = vunpack.c.l.b16 %v1174
        %v1239 = vunpack.c.l.b16 %v1175
        %v1240 = vunpack.c.l.b16 %v1176
        %v1241 = vunpack.c.l.b16 %v1177
        %v1242 = vunpack.c.l.b16 %v1178
        %v1243 = vunpack.c.l.b16 %v1179
        %v1244 = vunpack.c.l.b16 %v1180
        %v1245 = vunpack.c.l.b16 %v1181
        %v1246 = vunpack.c.l.b16 %v1182
        %v1247 = vunpack.c.l.b16 %v1183
        %v1248 = vunpack.c.l.b16 %v1184
        %v1249 = vunpack.c.l.b16 %v1185
        %v1250 = vunpack.c.l.b16 %v1186
        %v1251 = vunpack.c.l.b16 %v1187
        %v1252 = vunpack.c.l.b16 %v1188
        %v1253 = vunpack.c.l.b16 %v1189
        %v1254 = vunpack.c.l.b16 %v1190
        %v1255 = vunpack.c.l.b16 %v1191
        %v1256 = vunpack.c.l.b16 %v1192
        %v1257 = vunpack.c.l.b16 %v1193
        %v1258 = vunpack.c.l.b16 %v1194
        %v1259 = vunpack.c.l.b16 %v1195
        %v1260 = vunpack.c.l.b16 %v1196
        %v1261 = vpack.c.b16 %v1230, %v1229
        %v1262 = vpack.c.b16 %v1232, %v1231
        %v1263 = vpack.c.b16 %v1234, %v1233
        %v1264 = vpack.c.b16 %v1236, %v1235
        %v1265 = vpack.c.b16 %v1238, %v1237
        %v1266 = vpack.c.b16 %v1240, %v1239
        %v1267 = vpack.c.b16 %v1242, %v1241
        %v1268 = vpack.c.b16 %v1244, %v1243
        %v1269 = vpack.c.b16 %v1246, %v1245
        %v1270 = vpack.c.b16 %v1248, %v1247
        %v1271 = vpack.c.b16 %v1250, %v1249
        %v1272 = vpack.c.b16 %v1252, %v1251
        %v1273 = vpack.c.b16 %v1254, %v1253
        %v1274 = vpack.c.b16 %v1256, %v1255
        %v1275 = vpack.c.b16 %v1258, %v1257
        %v1276 = vpack.c.b16 %v1260, %v1259
        %1293 = vmatpush.bf16.msra.mxu0 %v1268
        %1294 = vmatpush.bf16.msra.mxu0 %v1267
        %1295 = vmatpush.bf16.msra.mxu0 %v1266
        %1296 = vmatpush.bf16.msra.mxu0 %v1265
        %1297 = vmatpush.bf16.msra.mxu0 %v1264
        %1298 = vmatpush.bf16.msra.mxu0 %v1263
        %1299 = vmatpush.bf16.msra.mxu0 %v1262
        %1300 = vmatpush.bf16.msra.mxu0 %v1261
        %1301 = vmatmul.bf16.gmra.mxu0 %v1135
        %v1302 = vpop.f32.mrf.mxu0
        %v1303 = vadd.f32 0.0, %v1302
        %v1304 = vpop.f32.mrf.mxu0
        %v1305 = vadd.f32 0.0, %v1304
        %1306 = vmatmul.bf16.gmra.mxu0 %v1137
        %v1307 = vpop.f32.mrf.mxu0
        %v1308 = vadd.f32 0.0, %v1307
        %v1309 = vpop.f32.mrf.mxu0
        %v1310 = vadd.f32 0.0, %v1309
        %1311 = vmatmul.bf16.gmra.mxu0 %v1139
        %v1312 = vpop.f32.mrf.mxu0
        %v1313 = vadd.f32 0.0, %v1312
        %v1314 = vpop.f32.mrf.mxu0
        %v1315 = vadd.f32 0.0, %v1314
        %1316 = vmatmul.bf16.gmra.mxu0 %v1141
        %v1317 = vpop.f32.mrf.mxu0
        %v1318 = vadd.f32 0.0, %v1317
        %v1319 = vpop.f32.mrf.mxu0
        %v1320 = vadd.f32 0.0, %v1319
        %1321 = vmatmul.bf16.gmra.mxu0 %v1143
        %v1322 = vpop.f32.mrf.mxu0
        %v1323 = vadd.f32 0.0, %v1322
        %v1324 = vpop.f32.mrf.mxu0
        %v1325 = vadd.f32 0.0, %v1324
        %1326 = vmatmul.bf16.gmra.mxu0 %v1145
        %v1327 = vpop.f32.mrf.mxu0
        %v1328 = vadd.f32 0.0, %v1327
        %v1329 = vpop.f32.mrf.mxu0
        %v1330 = vadd.f32 0.0, %v1329
        %1331 = vmatmul.bf16.gmra.mxu0 %v1147
        %v1332 = vpop.f32.mrf.mxu0
        %v1333 = vadd.f32 0.0, %v1332
        %v1334 = vpop.f32.mrf.mxu0
        %v1335 = vadd.f32 0.0, %v1334
        %1336 = vmatmul.bf16.gmra.mxu0 %v1149
        %v1337 = vpop.f32.mrf.mxu0
        %v1338 = vadd.f32 0.0, %v1337
        %v1339 = vpop.f32.mrf.mxu0
        %v1340 = vadd.f32 0.0, %v1339
        %1341 = vmatmul.bf16.gmra.mxu0 %v1151
        %v1342 = vpop.f32.mrf.mxu0
        %v1343 = vadd.f32 0.0, %v1342
        %v1344 = vpop.f32.mrf.mxu0
        %v1345 = vadd.f32 0.0, %v1344
        %1346 = vmatmul.bf16.gmra.mxu0 %v1153
        %v1347 = vpop.f32.mrf.mxu0
        %v1348 = vadd.f32 0.0, %v1347
        %v1349 = vpop.f32.mrf.mxu0
        %v1350 = vadd.f32 0.0, %v1349
        %1351 = vmatmul.bf16.gmra.mxu0 %v1155
        %v1352 = vpop.f32.mrf.mxu0
        %v1353 = vadd.f32 0.0, %v1352
        %v1354 = vpop.f32.mrf.mxu0
        %v1355 = vadd.f32 0.0, %v1354
        %1356 = vmatmul.bf16.gmra.mxu0 %v1157
        %v1357 = vpop.f32.mrf.mxu0
        %v1358 = vadd.f32 0.0, %v1357
        %v1359 = vpop.f32.mrf.mxu0
        %v1360 = vadd.f32 0.0, %v1359
        %1361 = vmatmul.bf16.gmra.mxu0 %v1159
        %v1362 = vpop.f32.mrf.mxu0
        %v1363 = vadd.f32 0.0, %v1362
        %v1364 = vpop.f32.mrf.mxu0
        %v1365 = vadd.f32 0.0, %v1364
        %1366 = vmatmul.bf16.gmra.mxu0 %v1161
        %v1367 = vpop.f32.mrf.mxu0
        %v1368 = vadd.f32 0.0, %v1367
        %v1369 = vpop.f32.mrf.mxu0
        %v1370 = vadd.f32 0.0, %v1369
        %1371 = vmatmul.bf16.gmra.mxu0 %v1163
        %v1372 = vpop.f32.mrf.mxu0
        %v1373 = vadd.f32 0.0, %v1372
        %v1374 = vpop.f32.mrf.mxu0
        %v1375 = vadd.f32 0.0, %v1374
        %1376 = vdwg.mxu0
        %1377 = vmatpush.bf16.msra.mxu0 %v1276
        %1378 = vmatpush.bf16.msra.mxu0 %v1275
        %1379 = vmatpush.bf16.msra.mxu0 %v1274
        %1380 = vmatpush.bf16.msra.mxu0 %v1273
        %1381 = vmatpush.bf16.msra.mxu0 %v1272
        %1382 = vmatpush.bf16.msra.mxu0 %v1271
        %1383 = vmatpush.bf16.msra.mxu0 %v1270
        %1384 = vmatpush.bf16.msra.mxu0 %v1269
        %1385 = vmatmul.bf16.gmra.mxu0 %v1136
        %v1386 = vpop.f32.mrf.mxu0
        %v1387 = vadd.f32 %v1303, %v1386
        %v1388 = vpop.f32.mrf.mxu0
        %v1389 = vadd.f32 %v1305, %v1388
        %1390 = vmatmul.bf16.gmra.mxu0 %v1138
        %v1391 = vpop.f32.mrf.mxu0
        %v1392 = vadd.f32 %v1308, %v1391
        %v1393 = vpop.f32.mrf.mxu0
        %v1394 = vadd.f32 %v1310, %v1393
        %1395 = vmatmul.bf16.gmra.mxu0 %v1140
        %v1396 = vpop.f32.mrf.mxu0
        %v1397 = vadd.f32 %v1313, %v1396
        %v1398 = vpop.f32.mrf.mxu0
        %v1399 = vadd.f32 %v1315, %v1398
        %1400 = vmatmul.bf16.gmra.mxu0 %v1142
        %v1401 = vpop.f32.mrf.mxu0
        %v1402 = vadd.f32 %v1318, %v1401
        %v1403 = vpop.f32.mrf.mxu0
        %v1404 = vadd.f32 %v1320, %v1403
        %1405 = vmatmul.bf16.gmra.mxu0 %v1144
        %v1406 = vpop.f32.mrf.mxu0
        %v1407 = vadd.f32 %v1323, %v1406
        %v1408 = vpop.f32.mrf.mxu0
        %v1409 = vadd.f32 %v1325, %v1408
        %1410 = vmatmul.bf16.gmra.mxu0 %v1146
        %v1411 = vpop.f32.mrf.mxu0
        %v1412 = vadd.f32 %v1328, %v1411
        %v1413 = vpop.f32.mrf.mxu0
        %v1414 = vadd.f32 %v1330, %v1413
        %1415 = vmatmul.bf16.gmra.mxu0 %v1148
        %v1416 = vpop.f32.mrf.mxu0
        %v1417 = vadd.f32 %v1333, %v1416
        %v1418 = vpop.f32.mrf.mxu0
        %v1419 = vadd.f32 %v1335, %v1418
        %1420 = vmatmul.bf16.gmra.mxu0 %v1150
        %v1421 = vpop.f32.mrf.mxu0
        %v1422 = vadd.f32 %v1338, %v1421
        %v1423 = vpop.f32.mrf.mxu0
        %v1424 = vadd.f32 %v1340, %v1423
        %1425 = vmatmul.bf16.gmra.mxu0 %v1152
        %v1426 = vpop.f32.mrf.mxu0
        %v1427 = vadd.f32 %v1343, %v1426
        %v1428 = vpop.f32.mrf.mxu0
        %v1429 = vadd.f32 %v1345, %v1428
        %1430 = vmatmul.bf16.gmra.mxu0 %v1154
        %v1431 = vpop.f32.mrf.mxu0
        %v1432 = vadd.f32 %v1348, %v1431
        %v1433 = vpop.f32.mrf.mxu0
        %v1434 = vadd.f32 %v1350, %v1433
        %1435 = vmatmul.bf16.gmra.mxu0 %v1156
        %v1436 = vpop.f32.mrf.mxu0
        %v1437 = vadd.f32 %v1353, %v1436
        %v1438 = vpop.f32.mrf.mxu0
        %v1439 = vadd.f32 %v1355, %v1438
        %1440 = vmatmul.bf16.gmra.mxu0 %v1158
        %v1441 = vpop.f32.mrf.mxu0
        %v1442 = vadd.f32 %v1358, %v1441
        %v1443 = vpop.f32.mrf.mxu0
        %v1444 = vadd.f32 %v1360, %v1443
        %1445 = vmatmul.bf16.gmra.mxu0 %v1160
        %v1446 = vpop.f32.mrf.mxu0
        %v1447 = vadd.f32 %v1363, %v1446
        %v1448 = vpop.f32.mrf.mxu0
        %v1449 = vadd.f32 %v1365, %v1448
        %1450 = vmatmul.bf16.gmra.mxu0 %v1162
        %v1451 = vpop.f32.mrf.mxu0
        %v1452 = vadd.f32 %v1368, %v1451
        %v1453 = vpop.f32.mrf.mxu0
        %v1454 = vadd.f32 %v1370, %v1453
        %1455 = vmatmul.bf16.gmra.mxu0 %v1164
        %v1456 = vpop.f32.mrf.mxu0
        %v1457 = vadd.f32 %v1373, %v1456
        %v1458 = vpop.f32.mrf.mxu0
        %v1459 = vadd.f32 %v1375, %v1458
        %1460 = vdwg.mxu0
        %v1461 = vlaneseq
        %v1462 = vshrl.u32 %v1461, 7
        %v1463 = vadd.s32 %v1462, 8
        %v1464 = vadd.s32 %v1462, 16
        %v1465 = vadd.s32 %v1462, 24
        %v1466 = vstv %s349
        %v1467 = vadd.s32 %v1466, %v1462
        %v1468 = vadd.s32 %v1466, %v1463
        %v1469 = vadd.s32 %v1466, %v1464
        %v1470 = vadd.s32 %v1466, %v1465
        %v1471 = vld [vmem:[%s319] sm:$0x3]
        %v1472 = vperm.slane %v1471, 0
        %v1473 = vperm.slane %v1471, 1
        %vm1474 = vcmp.eq.s32.totalorder %v1472, %v1467
        %vm1475 = vcmp.eq.s32.totalorder %v1473, %v1467
        %vm1476 = vcmp.eq.s32.totalorder %v1472, %v1468
        %vm1477 = vcmp.eq.s32.totalorder %v1473, %v1468
        %vm1478 = vcmp.eq.s32.totalorder %v1472, %v1469
        %vm1479 = vcmp.eq.s32.totalorder %v1473, %v1469
        %vm1480 = vcmp.eq.s32.totalorder %v1472, %v1470
        %vm1481 = vcmp.eq.s32.totalorder %v1473, %v1470
        %v1482 = vsel %vm1474, 1, 0
        %v1483 = vsel %vm1475, 1, 0
        %v1484 = vsel %vm1476, 1, 0
        %v1485 = vsel %vm1477, 1, 0
        %v1486 = vsel %vm1478, 1, 0
        %v1487 = vsel %vm1479, 1, 0
        %v1488 = vsel %vm1480, 1, 0
        %v1489 = vsel %vm1481, 1, 0
        %v1490 = vcvt.s32.f32 %v1482
        %v1491 = vcvt.s32.f32 %v1483
        %v1492 = vcvt.s32.f32 %v1484
        %v1493 = vcvt.s32.f32 %v1485
        %v1494 = vcvt.s32.f32 %v1486
        %v1495 = vcvt.s32.f32 %v1487
        %v1496 = vcvt.s32.f32 %v1488
        %v1497 = vcvt.s32.f32 %v1489
        %v1498 = vpack.c.bf16 %v1492, %v1490
        %v1499 = vpack.c.bf16 %v1493, %v1491
        %v1500 = vpack.c.bf16 %v1496, %v1494
        %v1501 = vpack.c.bf16 %v1497, %v1495
        %v1502 = vld [vmem:[%s337] sm:$0xff]
        %v1503 = vld [vmem:[%s337 + $0x8] sm:$0xff]
        %v1504 = vld [vmem:[%s337 + $0x10] sm:$0xff]
        %v1505 = vld [vmem:[%s337 + $0x18] sm:$0xff]
        %v1506 = vpack.c.bf16 %v1389, %v1387
        %v1507 = vpack.c.bf16 %v1394, %v1392
        %v1508 = vpack.c.bf16 %v1399, %v1397
        %v1509 = vpack.c.bf16 %v1404, %v1402
        %v1510 = vpack.c.bf16 %v1409, %v1407
        %v1511 = vpack.c.bf16 %v1414, %v1412
        %v1512 = vpack.c.bf16 %v1419, %v1417
        %v1513 = vpack.c.bf16 %v1424, %v1422
        %v1514 = vpack.c.bf16 %v1429, %v1427
        %v1515 = vpack.c.bf16 %v1434, %v1432
        %v1516 = vpack.c.bf16 %v1439, %v1437
        %v1517 = vpack.c.bf16 %v1444, %v1442
        %v1518 = vpack.c.bf16 %v1449, %v1447
        %v1519 = vpack.c.bf16 %v1454, %v1452
        %v1520 = vpack.c.bf16 %v1459, %v1457
        %vm1521 = vcmask 916480
        %v1523 = vsel %vm1521, %v1499, 0
        %v1526 = vsel %vm1521, %v1501, 0
        %1528 = vmatpush.bf16.msra.mxu0 %v1513
        %1529 = vmatpush.bf16.msra.mxu0 %v1512
        %1530 = vmatpush.bf16.msra.mxu0 %v1511
        %1531 = vmatpush.bf16.msra.mxu0 %v1510
        %1532 = vmatpush.bf16.msra.mxu0 %v1509
        %1533 = vmatpush.bf16.msra.mxu0 %v1508
        %1534 = vmatpush.bf16.msra.mxu0 %v1507
        %1535 = vmatpush.bf16.msra.mxu0 %v1506
        %1536 = vmatmul.bf16.gmra.mxu0 %v1498
        %v1537 = vpop.f32.mrf.mxu0
        %v1538 = vadd.f32 0.0, %v1537
        %v1539 = vpop.f32.mrf.mxu0
        %v1540 = vadd.f32 0.0, %v1539
        %1541 = vmatmul.bf16.gmra.mxu0 %v1500
        %v1542 = vpop.f32.mrf.mxu0
        %v1543 = vadd.f32 0.0, %v1542
        %v1544 = vpop.f32.mrf.mxu0
        %v1545 = vadd.f32 0.0, %v1544
        %1546 = vdwg.mxu0
        %1547 = vmatpush.bf16.msra.mxu0 0
        %1548 = vmatpush.bf16.msra.mxu0 %v1520
        %1549 = vmatpush.bf16.msra.mxu0 %v1519
        %1550 = vmatpush.bf16.msra.mxu0 %v1518
        %1551 = vmatpush.bf16.msra.mxu0 %v1517
        %1552 = vmatpush.bf16.msra.mxu0 %v1516
        %1553 = vmatpush.bf16.msra.mxu0 %v1515
        %1554 = vmatpush.bf16.msra.mxu0 %v1514
        %1555 = vmatmul.bf16.gmra.mxu0 %v1523
        %v1556 = vpop.f32.mrf.mxu0
        %v1557 = vadd.f32 %v1538, %v1556
        %v1558 = vpop.f32.mrf.mxu0
        %v1559 = vadd.f32 %v1540, %v1558
        %1560 = vmatmul.bf16.gmra.mxu0 %v1526
        %v1561 = vpop.f32.mrf.mxu0
        %v1562 = vadd.f32 %v1543, %v1561
        %v1563 = vpop.f32.mrf.mxu0
        %v1564 = vadd.f32 %v1545, %v1563
        %1565 = vdwg.mxu0
        %v1566 = vadd.f32 %v1502, %v1557
        %v1567 = vadd.f32 %v1503, %v1559
        %v1568 = vadd.f32 %v1504, %v1562
        %v1569 = vadd.f32 %v1505, %v1564
        %1570 = vst.msk [vmem:[%s337] sm:$0xff] %vm619, %v1566
        %1571 = vst.msk [vmem:[%s337 + $0x8] sm:$0xff] %vm619, %v1567
        %1572 = vst.msk [vmem:[%s337 + $0x10] sm:$0xff] %vm619, %v1568
        %1573 = vst.msk [vmem:[%s337 + $0x18] sm:$0xff] %vm619, %v1569
      $region56: #{_lambda_.14} parent=47 // pred_fallthru
        _
      %s1574 = smul.u32 4, %s26
      %p1575 = scmp.lt.s32.totalorder %s1574, 7
      %s1576 = scalar_select %p1575, %s1574, 7
      %s1577 = smul.addr %s1576, 8
      %s1578 = scalar_lea.vmem %s9, %s1577
      // Predicated region
      $region57: #{_lambda_.14} parent=47 // pred_check
        %p1579 = pneg %p214
      $region58: #{_lambda_.14} parent=47 // pred_check_branch
        %1581 = sbr.rel (%p1579) target = $region60
      $region59: #{_lambda_.14} parent=47 // pred_region
        %s1582 = smul.u32 4, %s26
      $region60: #{_lambda_.14} parent=47 // pred_fallthru
        _
    $region48: #{_lambda_.14} parent=5 // pred_fallthru
      _
    %p1583 = scmp.le.s32.totalorder 2, %s17
    // Predicated region
    $region61: #{_lambda_.14} parent=5 // pred_check
      %p1584 = pneg %p1583
    $region62: #{_lambda_.14} parent=5 // pred_check_branch
      %1586 = sbr.rel (%p1584) target = $region64
    $region63: #{_lambda_.14} parent=5 // pred_region
      %s1587 = ssub.s32 %s17, 2
      // Predicated region
      $region65: #{_lambda_.14} parent=63 // pred_check
        %p1588 = pneg %p220
      $region66: #{_lambda_.14} parent=63 // pred_check_branch
        %1590 = sbr.rel (%p1588) target = $region68
      $region67: #{_lambda_.14} parent=63 // pred_region
        %s1591 = smul.u32 4, %s28
        %p1592 = scmp.lt.s32.totalorder %s1591, 7
        %s1593 = scalar_select %p1592, %s1591, 7
        %s1594 = smul.addr %s1593, 8
        %s1595 = scalar_lea.vmem %s9, %s1594
      $region68: #{_lambda_.14} parent=63 // pred_fallthru
        _
    $region64: #{_lambda_.14} parent=5 // pred_fallthru
      _
  $region6: #{_lambda_.14} parent=0 // loop_footer
    %s21 = sadd.s32 1, %s17
  $region7: #{_lambda_.14} parent=0 // loop_footer_branch
    %16 = sbr.rel target = $region3
  $region8: #{_lambda_.14} parent=0 // loop_exit
    _

// kernel: _lambda_.15
$region0: #{_lambda_.15}
  #allocation0 [shape = 'u32[]', space=smem, size = 0x4, offset = 0x4, fixed_abs, tag = 'smem constant byte address 0x4 - core index']
  #allocation1 [shape = 'u32[72,128]{1,0:T(1,128)}', space=vmem, size = 0x9000, scoped, tag = 'internal scratch']
  %s0 = inlined_call_operand.vmem [shape: f32[64,32], index: 0, kind: input, shape index: {}]
  %s1 = inlined_call_operand.vmem [shape: f32[64,32], index: 1, kind: input, shape index: {}]
  %s2 = inlined_call_operand.vmem [shape: f32[64,32], index: 2, kind: input, shape index: {}]
  %s3 = inlined_call_operand.vmem [shape: bf16[32,32], index: 3, kind: input, shape index: {}]
  %s4 = inlined_call_operand.vmem [shape: f32[1,32], index: 4, kind: input, shape index: {}, may-alias: {4,6,8,10,12,14,16}]
  %s5 = inlined_call_operand.vmem [shape: bf16[32,32], index: 5, kind: input, shape index: {}]
  %s6 = inlined_call_operand.vmem [shape: f32[1,32], index: 6, kind: input, shape index: {}, may-alias: {4,6,8,10,12,14,16}]
  %s7 = inlined_call_operand.vmem [shape: bf16[32,32], index: 7, kind: input, shape index: {}]
  %s8 = inlined_call_operand.vmem [shape: f32[1,32], index: 8, kind: input, shape index: {}, may-alias: {4,6,8,10,12,14,16}]
  %s9 = inlined_call_operand.vmem [shape: bf16[32,32], index: 9, kind: input, shape index: {}]
  %s10 = inlined_call_operand.vmem [shape: f32[1,32], index: 10, kind: input, shape index: {}, may-alias: {4,6,8,10,12,14,16}]
  %s11 = inlined_call_operand.vmem [shape: bf16[32,32], index: 11, kind: input, shape index: {}]
  %s12 = inlined_call_operand.vmem [shape: f32[1,32], index: 12, kind: input, shape index: {}, may-alias: {4,6,8,10,12,14,16}]
  %s13 = inlined_call_operand.vmem [shape: bf16[32,32], index: 13, kind: input, shape index: {}]
  %s14 = inlined_call_operand.vmem [shape: f32[1,32], index: 14, kind: input, shape index: {}, may-alias: {4,6,8,10,12,14,16}]
  %s15 = inlined_call_operand.vmem [shape: bf16[32,32], index: 15, kind: input, shape index: {}]
  %s16 = inlined_call_operand.vmem [shape: f32[1,32], index: 16, kind: input, shape index: {}, may-alias: {4,6,8,10,12,14,16}]
  %s17 = inlined_call_operand.vmem [shape: f32[64,32], index: 17, kind: output, shape index: {}]
  %s18 = sld [smem:[#allocation0]]
  $region101: #{_lambda_.15} parent=0
    _
  %s20 = ssub.s32 1, %s18
  %s21 = scalar_select 0, %s20, %s18
  loop: start=0, step=1, limit=4
  $region2: #{_lambda_.15} parent=0 // loop_pre_header
    _
  $region3: #{_lambda_.15} parent=0 // loop_header
    %s23 = sphi 0, %s27
    %p24 = scmp.ge.s32.totalorder %s23, 4
    %s33 = sphi 0, %s35
    %s36 = sphi 0, %s33
    %s37 = sphi 0, %s36
    %s53 = sphi 0, %s37
    %s59 = sphi 0, %s61
    %s62 = sphi 0, %s59
    %s63 = sphi 0, %s62
    %s79 = sphi 0, %s63
    %s85 = sphi 0, %s87
    %s88 = sphi 0, %s85
    %s89 = sphi 0, %s88
    %s105 = sphi 0, %s89
    %s109 = sphi 0, %s109
    %s111 = sphi 0, %s109
    %s112 = sphi 0, %s111
    %s126 = sphi 0, %s112
    %s130 = sphi 0, %s130
    %s132 = sphi 0, %s130
    %s133 = sphi 0, %s132
    %s147 = sphi 0, %s133
    %s151 = sphi 0, %s151
    %s153 = sphi 0, %s151
    %s154 = sphi 0, %s153
    %s168 = sphi 0, %s154
    %s172 = sphi 0, %s172
    %s174 = sphi 0, %s172
    %s175 = sphi 0, %s174
    %s189 = sphi 0, %s175
    %s193 = sphi 0, %s193
    %s195 = sphi 0, %s193
    %s196 = sphi 0, %s195
    %s210 = sphi 0, %s196
    %s214 = sphi 0, %s214
    %s216 = sphi 0, %s214
    %s217 = sphi 0, %s216
    %s231 = sphi 0, %s217
    %s235 = sphi 0, %s235
    %s237 = sphi 0, %s235
    %s238 = sphi 0, %s237
    %s252 = sphi 0, %s238
    %s256 = sphi 0, %s256
    %s258 = sphi 0, %s256
    %s259 = sphi 0, %s258
    %s273 = sphi 0, %s259
    %s277 = sphi 0, %s277
    %s279 = sphi 0, %s277
    %s280 = sphi 0, %s279
    %s294 = sphi 0, %s280
    %s298 = sphi 0, %s298
    %s300 = sphi 0, %s298
    %s301 = sphi 0, %s300
    %s315 = sphi 0, %s301
    %s319 = sphi 0, %s319
    %s321 = sphi 0, %s319
    %s322 = sphi 0, %s321
    %s336 = sphi 0, %s322
    %s340 = sphi 0, %s340
    %s342 = sphi 0, %s340
    %s343 = sphi 0, %s342
    %s357 = sphi 0, %s343
    %s361 = sphi 0, %s361
    %s363 = sphi 0, %s361
    %s364 = sphi 0, %s363
    %s378 = sphi 0, %s364
    %s382 = sphi 0, %s382
    %s384 = sphi 0, %s382
    %s385 = sphi 0, %s384
    %s399 = sphi 0, %s385
    %s405 = sphi 0, %s407
    %s408 = sphi 0, %s405
    %s409 = sphi 0, %s408
    %s425 = sphi 0, %s409
  $region4: #{_lambda_.15} parent=0 // loop_header_branch
    %26 = sbr.rel (%p24) target = $region8
  $region5: #{_lambda_.15} parent=0 // loop_body
    %s28 = ssub.s32 %s23, 1
    %s29 = ssub.s32 %s23, 2
    %s30 = sadd.s32 %s23, 1
    %s31 = ssub.s32 %s23, %s30
    %p32 = scmp.eq.s32.totalorder %s31, 0
    %s34 = sadd.s32 %s33, 1
    %s35 = scalar_select %p32, %s33, %s34
    %p38 = pneg %p32
    %p39 = scmp.eq.s32.totalorder %s23, 1
    %p40 = por %p38, %p39
    %p41 = scmp.ne.s32.totalorder %s33, %s36
    %p42 = scmp.eq.s32.totalorder %s23, 0
    %p43 = por %p41, %p42
    %p44 = scmp.ne.s32.totalorder %s33, %s36
    %p45 = scmp.eq.s32.totalorder %s28, 1
    %p46 = por %p44, %p45
    %p47 = scmp.ne.s32.totalorder %s36, %s37
    %p48 = scmp.eq.s32.totalorder %s28, 0
    %p49 = por %p47, %p48
    %p50 = scmp.ne.s32.totalorder %s36, %s37
    %p51 = scmp.eq.s32.totalorder %s29, 1
    %p52 = por %p50, %p51
    %p54 = scmp.ne.s32.totalorder %s37, %s53
    %p55 = scmp.eq.s32.totalorder %s29, 0
    %p56 = por %p54, %p55
    %s57 = ssub.s32 %s23, %s30
    %p58 = scmp.eq.s32.totalorder %s57, 0
    %s60 = sadd.s32 %s59, 1
    %s61 = scalar_select %p58, %s59, %s60
    %p64 = pneg %p58
    %p65 = scmp.eq.s32.totalorder %s23, 1
    %p66 = por %p64, %p65
    %p67 = scmp.ne.s32.totalorder %s59, %s62
    %p68 = scmp.eq.s32.totalorder %s23, 0
    %p69 = por %p67, %p68
    %p70 = scmp.ne.s32.totalorder %s59, %s62
    %p71 = scmp.eq.s32.totalorder %s28, 1
    %p72 = por %p70, %p71
    %p73 = scmp.ne.s32.totalorder %s62, %s63
    %p74 = scmp.eq.s32.totalorder %s28, 0
    %p75 = por %p73, %p74
    %p76 = scmp.ne.s32.totalorder %s62, %s63
    %p77 = scmp.eq.s32.totalorder %s29, 1
    %p78 = por %p76, %p77
    %p80 = scmp.ne.s32.totalorder %s63, %s79
    %p81 = scmp.eq.s32.totalorder %s29, 0
    %p82 = por %p80, %p81
    %s83 = ssub.s32 %s23, %s30
    %p84 = scmp.eq.s32.totalorder %s83, 0
    %s86 = sadd.s32 %s85, 1
    %s87 = scalar_select %p84, %s85, %s86
    %p90 = pneg %p84
    %p91 = scmp.eq.s32.totalorder %s23, 1
    %p92 = por %p90, %p91
    %p93 = scmp.ne.s32.totalorder %s85, %s88
    %p94 = scmp.eq.s32.totalorder %s23, 0
    %p95 = por %p93, %p94
    %p96 = scmp.ne.s32.totalorder %s85, %s88
    %p97 = scmp.eq.s32.totalorder %s28, 1
    %p98 = por %p96, %p97
    %p99 = scmp.ne.s32.totalorder %s88, %s89
    %p100 = scmp.eq.s32.totalorder %s28, 0
    %p101 = por %p99, %p100
    %p102 = scmp.ne.s32.totalorder %s88, %s89
    %p103 = scmp.eq.s32.totalorder %s29, 1
    %p104 = por %p102, %p103
    %p106 = scmp.ne.s32.totalorder %s89, %s105
    %p107 = scmp.eq.s32.totalorder %s29, 0
    %p108 = por %p106, %p107
    %s110 = sadd.s32 %s109, 1
    %p113 = scmp.eq.s32.totalorder %s23, 1
    %p114 = scmp.ne.s32.totalorder %s109, %s111
    %p115 = scmp.eq.s32.totalorder %s23, 0
    %p116 = por %p114, %p115
    %p117 = scmp.ne.s32.totalorder %s109, %s111
    %p118 = scmp.eq.s32.totalorder %s28, 1
    %p119 = por %p117, %p118
    %p120 = scmp.ne.s32.totalorder %s111, %s112
    %p121 = scmp.eq.s32.totalorder %s28, 0
    %p122 = por %p120, %p121
    %p123 = scmp.ne.s32.totalorder %s111, %s112
    %p124 = scmp.eq.s32.totalorder %s29, 1
    %p125 = por %p123, %p124
    %p127 = scmp.ne.s32.totalorder %s112, %s126
    %p128 = scmp.eq.s32.totalorder %s29, 0
    %p129 = por %p127, %p128
    %s131 = sadd.s32 %s130, 1
    %p134 = scmp.eq.s32.totalorder %s23, 1
    %p135 = scmp.ne.s32.totalorder %s130, %s132
    %p136 = scmp.eq.s32.totalorder %s23, 0
    %p137 = por %p135, %p136
    %p138 = scmp.ne.s32.totalorder %s130, %s132
    %p139 = scmp.eq.s32.totalorder %s28, 1
    %p140 = por %p138, %p139
    %p141 = scmp.ne.s32.totalorder %s132, %s133
    %p142 = scmp.eq.s32.totalorder %s28, 0
    %p143 = por %p141, %p142
    %p144 = scmp.ne.s32.totalorder %s132, %s133
    %p145 = scmp.eq.s32.totalorder %s29, 1
    %p146 = por %p144, %p145
    %p148 = scmp.ne.s32.totalorder %s133, %s147
    %p149 = scmp.eq.s32.totalorder %s29, 0
    %p150 = por %p148, %p149
    %s152 = sadd.s32 %s151, 1
    %p155 = scmp.eq.s32.totalorder %s23, 1
    %p156 = scmp.ne.s32.totalorder %s151, %s153
    %p157 = scmp.eq.s32.totalorder %s23, 0
    %p158 = por %p156, %p157
    %p159 = scmp.ne.s32.totalorder %s151, %s153
    %p160 = scmp.eq.s32.totalorder %s28, 1
    %p161 = por %p159, %p160
    %p162 = scmp.ne.s32.totalorder %s153, %s154
    %p163 = scmp.eq.s32.totalorder %s28, 0
    %p164 = por %p162, %p163
    %p165 = scmp.ne.s32.totalorder %s153, %s154
    %p166 = scmp.eq.s32.totalorder %s29, 1
    %p167 = por %p165, %p166
    %p169 = scmp.ne.s32.totalorder %s154, %s168
    %p170 = scmp.eq.s32.totalorder %s29, 0
    %p171 = por %p169, %p170
    %s173 = sadd.s32 %s172, 1
    %p176 = scmp.eq.s32.totalorder %s23, 1
    %p177 = scmp.ne.s32.totalorder %s172, %s174
    %p178 = scmp.eq.s32.totalorder %s23, 0
    %p179 = por %p177, %p178
    %p180 = scmp.ne.s32.totalorder %s172, %s174
    %p181 = scmp.eq.s32.totalorder %s28, 1
    %p182 = por %p180, %p181
    %p183 = scmp.ne.s32.totalorder %s174, %s175
    %p184 = scmp.eq.s32.totalorder %s28, 0
    %p185 = por %p183, %p184
    %p186 = scmp.ne.s32.totalorder %s174, %s175
    %p187 = scmp.eq.s32.totalorder %s29, 1
    %p188 = por %p186, %p187
    %p190 = scmp.ne.s32.totalorder %s175, %s189
    %p191 = scmp.eq.s32.totalorder %s29, 0
    %p192 = por %p190, %p191
    %s194 = sadd.s32 %s193, 1
    %p197 = scmp.eq.s32.totalorder %s23, 1
    %p198 = scmp.ne.s32.totalorder %s193, %s195
    %p199 = scmp.eq.s32.totalorder %s23, 0
    %p200 = por %p198, %p199
    %p201 = scmp.ne.s32.totalorder %s193, %s195
    %p202 = scmp.eq.s32.totalorder %s28, 1
    %p203 = por %p201, %p202
    %p204 = scmp.ne.s32.totalorder %s195, %s196
    %p205 = scmp.eq.s32.totalorder %s28, 0
    %p206 = por %p204, %p205
    %p207 = scmp.ne.s32.totalorder %s195, %s196
    %p208 = scmp.eq.s32.totalorder %s29, 1
    %p209 = por %p207, %p208
    %p211 = scmp.ne.s32.totalorder %s196, %s210
    %p212 = scmp.eq.s32.totalorder %s29, 0
    %p213 = por %p211, %p212
    %s215 = sadd.s32 %s214, 1
    %p218 = scmp.eq.s32.totalorder %s23, 1
    %p219 = scmp.ne.s32.totalorder %s214, %s216
    %p220 = scmp.eq.s32.totalorder %s23, 0
    %p221 = por %p219, %p220
    %p222 = scmp.ne.s32.totalorder %s214, %s216
    %p223 = scmp.eq.s32.totalorder %s28, 1
    %p224 = por %p222, %p223
    %p225 = scmp.ne.s32.totalorder %s216, %s217
    %p226 = scmp.eq.s32.totalorder %s28, 0
    %p227 = por %p225, %p226
    %p228 = scmp.ne.s32.totalorder %s216, %s217
    %p229 = scmp.eq.s32.totalorder %s29, 1
    %p230 = por %p228, %p229
    %p232 = scmp.ne.s32.totalorder %s217, %s231
    %p233 = scmp.eq.s32.totalorder %s29, 0
    %p234 = por %p232, %p233
    %s236 = sadd.s32 %s235, 1
    %p239 = scmp.eq.s32.totalorder %s23, 1
    %p240 = scmp.ne.s32.totalorder %s235, %s237
    %p241 = scmp.eq.s32.totalorder %s23, 0
    %p242 = por %p240, %p241
    %p243 = scmp.ne.s32.totalorder %s235, %s237
    %p244 = scmp.eq.s32.totalorder %s28, 1
    %p245 = por %p243, %p244
    %p246 = scmp.ne.s32.totalorder %s237, %s238
    %p247 = scmp.eq.s32.totalorder %s28, 0
    %p248 = por %p246, %p247
    %p249 = scmp.ne.s32.totalorder %s237, %s238
    %p250 = scmp.eq.s32.totalorder %s29, 1
    %p251 = por %p249, %p250
    %p253 = scmp.ne.s32.totalorder %s238, %s252
    %p254 = scmp.eq.s32.totalorder %s29, 0
    %p255 = por %p253, %p254
    %s257 = sadd.s32 %s256, 1
    %p260 = scmp.eq.s32.totalorder %s23, 1
    %p261 = scmp.ne.s32.totalorder %s256, %s258
    %p262 = scmp.eq.s32.totalorder %s23, 0
    %p263 = por %p261, %p262
    %p264 = scmp.ne.s32.totalorder %s256, %s258
    %p265 = scmp.eq.s32.totalorder %s28, 1
    %p266 = por %p264, %p265
    %p267 = scmp.ne.s32.totalorder %s258, %s259
    %p268 = scmp.eq.s32.totalorder %s28, 0
    %p269 = por %p267, %p268
    %p270 = scmp.ne.s32.totalorder %s258, %s259
    %p271 = scmp.eq.s32.totalorder %s29, 1
    %p272 = por %p270, %p271
    %p274 = scmp.ne.s32.totalorder %s259, %s273
    %p275 = scmp.eq.s32.totalorder %s29, 0
    %p276 = por %p274, %p275
    %s278 = sadd.s32 %s277, 1
    %p281 = scmp.eq.s32.totalorder %s23, 1
    %p282 = scmp.ne.s32.totalorder %s277, %s279
    %p283 = scmp.eq.s32.totalorder %s23, 0
    %p284 = por %p282, %p283
    %p285 = scmp.ne.s32.totalorder %s277, %s279
    %p286 = scmp.eq.s32.totalorder %s28, 1
    %p287 = por %p285, %p286
    %p288 = scmp.ne.s32.totalorder %s279, %s280
    %p289 = scmp.eq.s32.totalorder %s28, 0
    %p290 = por %p288, %p289
    %p291 = scmp.ne.s32.totalorder %s279, %s280
    %p292 = scmp.eq.s32.totalorder %s29, 1
    %p293 = por %p291, %p292
    %p295 = scmp.ne.s32.totalorder %s280, %s294
    %p296 = scmp.eq.s32.totalorder %s29, 0
    %p297 = por %p295, %p296
    %s299 = sadd.s32 %s298, 1
    %p302 = scmp.eq.s32.totalorder %s23, 1
    %p303 = scmp.ne.s32.totalorder %s298, %s300
    %p304 = scmp.eq.s32.totalorder %s23, 0
    %p305 = por %p303, %p304
    %p306 = scmp.ne.s32.totalorder %s298, %s300
    %p307 = scmp.eq.s32.totalorder %s28, 1
    %p308 = por %p306, %p307
    %p309 = scmp.ne.s32.totalorder %s300, %s301
    %p310 = scmp.eq.s32.totalorder %s28, 0
    %p311 = por %p309, %p310
    %p312 = scmp.ne.s32.totalorder %s300, %s301
    %p313 = scmp.eq.s32.totalorder %s29, 1
    %p314 = por %p312, %p313
    %p316 = scmp.ne.s32.totalorder %s301, %s315
    %p317 = scmp.eq.s32.totalorder %s29, 0
    %p318 = por %p316, %p317
    %s320 = sadd.s32 %s319, 1
    %p323 = scmp.eq.s32.totalorder %s23, 1
    %p324 = scmp.ne.s32.totalorder %s319, %s321
    %p325 = scmp.eq.s32.totalorder %s23, 0
    %p326 = por %p324, %p325
    %p327 = scmp.ne.s32.totalorder %s319, %s321
    %p328 = scmp.eq.s32.totalorder %s28, 1
    %p329 = por %p327, %p328
    %p330 = scmp.ne.s32.totalorder %s321, %s322
    %p331 = scmp.eq.s32.totalorder %s28, 0
    %p332 = por %p330, %p331
    %p333 = scmp.ne.s32.totalorder %s321, %s322
    %p334 = scmp.eq.s32.totalorder %s29, 1
    %p335 = por %p333, %p334
    %p337 = scmp.ne.s32.totalorder %s322, %s336
    %p338 = scmp.eq.s32.totalorder %s29, 0
    %p339 = por %p337, %p338
    %s341 = sadd.s32 %s340, 1
    %p344 = scmp.eq.s32.totalorder %s23, 1
    %p345 = scmp.ne.s32.totalorder %s340, %s342
    %p346 = scmp.eq.s32.totalorder %s23, 0
    %p347 = por %p345, %p346
    %p348 = scmp.ne.s32.totalorder %s340, %s342
    %p349 = scmp.eq.s32.totalorder %s28, 1
    %p350 = por %p348, %p349
    %p351 = scmp.ne.s32.totalorder %s342, %s343
    %p352 = scmp.eq.s32.totalorder %s28, 0
    %p353 = por %p351, %p352
    %p354 = scmp.ne.s32.totalorder %s342, %s343
    %p355 = scmp.eq.s32.totalorder %s29, 1
    %p356 = por %p354, %p355
    %p358 = scmp.ne.s32.totalorder %s343, %s357
    %p359 = scmp.eq.s32.totalorder %s29, 0
    %p360 = por %p358, %p359
    %s362 = sadd.s32 %s361, 1
    %p365 = scmp.eq.s32.totalorder %s23, 1
    %p366 = scmp.ne.s32.totalorder %s361, %s363
    %p367 = scmp.eq.s32.totalorder %s23, 0
    %p368 = por %p366, %p367
    %p369 = scmp.ne.s32.totalorder %s361, %s363
    %p370 = scmp.eq.s32.totalorder %s28, 1
    %p371 = por %p369, %p370
    %p372 = scmp.ne.s32.totalorder %s363, %s364
    %p373 = scmp.eq.s32.totalorder %s28, 0
    %p374 = por %p372, %p373
    %p375 = scmp.ne.s32.totalorder %s363, %s364
    %p376 = scmp.eq.s32.totalorder %s29, 1
    %p377 = por %p375, %p376
    %p379 = scmp.ne.s32.totalorder %s364, %s378
    %p380 = scmp.eq.s32.totalorder %s29, 0
    %p381 = por %p379, %p380
    %s383 = sadd.s32 %s382, 1
    %p386 = scmp.eq.s32.totalorder %s23, 1
    %p387 = scmp.ne.s32.totalorder %s382, %s384
    %p388 = scmp.eq.s32.totalorder %s23, 0
    %p389 = por %p387, %p388
    %p390 = scmp.ne.s32.totalorder %s382, %s384
    %p391 = scmp.eq.s32.totalorder %s28, 1
    %p392 = por %p390, %p391
    %p393 = scmp.ne.s32.totalorder %s384, %s385
    %p394 = scmp.eq.s32.totalorder %s28, 0
    %p395 = por %p393, %p394
    %p396 = scmp.ne.s32.totalorder %s384, %s385
    %p397 = scmp.eq.s32.totalorder %s29, 1
    %p398 = por %p396, %p397
    %p400 = scmp.ne.s32.totalorder %s385, %s399
    %p401 = scmp.eq.s32.totalorder %s29, 0
    %p402 = por %p400, %p401
    %s403 = ssub.s32 %s23, %s30
    %p404 = scmp.eq.s32.totalorder %s403, 0
    %s406 = sadd.s32 %s405, 1
    %s407 = scalar_select %p404, %s405, %s406
    %p410 = pneg %p404
    %p411 = scmp.eq.s32.totalorder %s23, 1
    %p412 = por %p410, %p411
    %p413 = scmp.ne.s32.totalorder %s405, %s408
    %p414 = scmp.eq.s32.totalorder %s23, 0
    %p415 = por %p413, %p414
    %p416 = scmp.ne.s32.totalorder %s405, %s408
    %p417 = scmp.eq.s32.totalorder %s28, 1
    %p418 = por %p416, %p417
    %p419 = scmp.ne.s32.totalorder %s408, %s409
    %p420 = scmp.eq.s32.totalorder %s28, 0
    %p421 = por %p419, %p420
    %p422 = scmp.ne.s32.totalorder %s408, %s409
    %p423 = scmp.eq.s32.totalorder %s29, 1
    %p424 = por %p422, %p423
    %p426 = scmp.ne.s32.totalorder %s409, %s425
    %p427 = scmp.eq.s32.totalorder %s29, 0
    %p428 = por %p426, %p427
    %p429 = scmp.le.s32.totalorder 1, %s23
    %p430 = scmp.lt.s32.totalorder %s23, 3
    %p431 = pnand %p429, %p430
    %p432 = pneg %p431
    // Predicated region
    $region9: #{_lambda_.15} parent=5 // pred_check
      _
    $region10: #{_lambda_.15} parent=5 // pred_check_branch
      %434 = sbr.rel (%p431) target = $region12
    $region11: #{_lambda_.15} parent=5 // pred_region
      %s435 = ssub.s32 %s23, 1
      // Predicated region
      $region13: #{_lambda_.15} parent=11 // pred_check
        %p436 = pneg %p122
      $region14: #{_lambda_.15} parent=11 // pred_check_branch
        %438 = sbr.rel (%p436) target = $region16
      $region15: #{_lambda_.15} parent=11 // pred_region
        _
      $region16: #{_lambda_.15} parent=11 // pred_fallthru
        _
      // Predicated region
      $region17: #{_lambda_.15} parent=11 // pred_check
        %p439 = pneg %p143
      $region18: #{_lambda_.15} parent=11 // pred_check_branch
        %441 = sbr.rel (%p439) target = $region20
      $region19: #{_lambda_.15} parent=11 // pred_region
        _
      $region20: #{_lambda_.15} parent=11 // pred_fallthru
        _
      // Predicated region
      $region21: #{_lambda_.15} parent=11 // pred_check
        %p442 = pneg %p164
      $region22: #{_lambda_.15} parent=11 // pred_check_branch
        %444 = sbr.rel (%p442) target = $region24
      $region23: #{_lambda_.15} parent=11 // pred_region
        _
      $region24: #{_lambda_.15} parent=11 // pred_fallthru
        _
      // Predicated region
      $region25: #{_lambda_.15} parent=11 // pred_check
        %p445 = pneg %p185
      $region26: #{_lambda_.15} parent=11 // pred_check_branch
        %447 = sbr.rel (%p445) target = $region28
      $region27: #{_lambda_.15} parent=11 // pred_region
        _
      $region28: #{_lambda_.15} parent=11 // pred_fallthru
        _
      // Predicated region
      $region29: #{_lambda_.15} parent=11 // pred_check
        %p448 = pneg %p206
      $region30: #{_lambda_.15} parent=11 // pred_check_branch
        %450 = sbr.rel (%p448) target = $region32
      $region31: #{_lambda_.15} parent=11 // pred_region
        _
      $region32: #{_lambda_.15} parent=11 // pred_fallthru
        _
      // Predicated region
      $region33: #{_lambda_.15} parent=11 // pred_check
        %p451 = pneg %p227
      $region34: #{_lambda_.15} parent=11 // pred_check_branch
        %453 = sbr.rel (%p451) target = $region36
      $region35: #{_lambda_.15} parent=11 // pred_region
        _
      $region36: #{_lambda_.15} parent=11 // pred_fallthru
        _
      // Predicated region
      $region37: #{_lambda_.15} parent=11 // pred_check
        %p454 = pneg %p248
      $region38: #{_lambda_.15} parent=11 // pred_check_branch
        %456 = sbr.rel (%p454) target = $region40
      $region39: #{_lambda_.15} parent=11 // pred_region
        _
      $region40: #{_lambda_.15} parent=11 // pred_fallthru
        _
      // Predicated region
      $region41: #{_lambda_.15} parent=11 // pred_check
        %p457 = pneg %p269
      $region42: #{_lambda_.15} parent=11 // pred_check_branch
        %459 = sbr.rel (%p457) target = $region44
      $region43: #{_lambda_.15} parent=11 // pred_region
        _
      $region44: #{_lambda_.15} parent=11 // pred_fallthru
        _
      // Predicated region
      $region45: #{_lambda_.15} parent=11 // pred_check
        %p460 = pneg %p290
      $region46: #{_lambda_.15} parent=11 // pred_check_branch
        %462 = sbr.rel (%p460) target = $region48
      $region47: #{_lambda_.15} parent=11 // pred_region
        _
      $region48: #{_lambda_.15} parent=11 // pred_fallthru
        _
      // Predicated region
      $region49: #{_lambda_.15} parent=11 // pred_check
        %p463 = pneg %p311
      $region50: #{_lambda_.15} parent=11 // pred_check_branch
        %465 = sbr.rel (%p463) target = $region52
      $region51: #{_lambda_.15} parent=11 // pred_region
        _
      $region52: #{_lambda_.15} parent=11 // pred_fallthru
        _
      // Predicated region
      $region53: #{_lambda_.15} parent=11 // pred_check
        %p466 = pneg %p332
      $region54: #{_lambda_.15} parent=11 // pred_check_branch
        %468 = sbr.rel (%p466) target = $region56
      $region55: #{_lambda_.15} parent=11 // pred_region
        _
      $region56: #{_lambda_.15} parent=11 // pred_fallthru
        _
      // Predicated region
      $region57: #{_lambda_.15} parent=11 // pred_check
        %p469 = pneg %p353
      $region58: #{_lambda_.15} parent=11 // pred_check_branch
        %471 = sbr.rel (%p469) target = $region60
      $region59: #{_lambda_.15} parent=11 // pred_region
        _
      $region60: #{_lambda_.15} parent=11 // pred_fallthru
        _
      // Predicated region
      $region61: #{_lambda_.15} parent=11 // pred_check
        %p472 = pneg %p374
      $region62: #{_lambda_.15} parent=11 // pred_check_branch
        %474 = sbr.rel (%p472) target = $region64
      $region63: #{_lambda_.15} parent=11 // pred_region
        _
      $region64: #{_lambda_.15} parent=11 // pred_fallthru
        _
      // Predicated region
      $region65: #{_lambda_.15} parent=11 // pred_check
        %p475 = pneg %p395
      $region66: #{_lambda_.15} parent=11 // pred_check_branch
        %477 = sbr.rel (%p475) target = $region68
      $region67: #{_lambda_.15} parent=11 // pred_region
        _
      $region68: #{_lambda_.15} parent=11 // pred_fallthru
        _
    $region12: #{_lambda_.15} parent=5 // pred_fallthru
      _
    %p478 = scmp.lt.s32.totalorder %s23, 2
    // Predicated region
    $region69: #{_lambda_.15} parent=5 // pred_check
      %p479 = pneg %p478
    $region70: #{_lambda_.15} parent=5 // pred_check_branch
      %481 = sbr.rel (%p479) target = $region72
    $region71: #{_lambda_.15} parent=5 // pred_region
      // Predicated region
      $region73: #{_lambda_.15} parent=71 // pred_check
        %p482 = pneg %p43
      $region74: #{_lambda_.15} parent=71 // pred_check_branch
        %484 = sbr.rel (%p482) target = $region76
      $region75: #{_lambda_.15} parent=71 // pred_region
        %s485 = smul.u32 4, %s23
        %p486 = scmp.lt.s32.totalorder %s485, 7
        %s487 = scalar_select %p486, %s485, 7
        %s488 = smul.addr %s487, 8
        %s489 = scalar_lea.vmem %s0, %s488
        %s490 = smul.u32 4, %s23
      $region76: #{_lambda_.15} parent=71 // pred_fallthru
        _
      // Predicated region
      $region77: #{_lambda_.15} parent=71 // pred_check
        %p491 = pneg %p69
      $region78: #{_lambda_.15} parent=71 // pred_check_branch
        %493 = sbr.rel (%p491) target = $region80
      $region79: #{_lambda_.15} parent=71 // pred_region
        %s494 = smul.u32 4, %s23
        %p495 = scmp.lt.s32.totalorder %s494, 7
        %s496 = scalar_select %p495, %s494, 7
        %s497 = smul.addr %s496, 8
        %s498 = scalar_lea.vmem %s1, %s497
        %s499 = smul.u32 4, %s23
      $region80: #{_lambda_.15} parent=71 // pred_fallthru
        _
      // Predicated region
      $region81: #{_lambda_.15} parent=71 // pred_check
        %p500 = pneg %p95
      $region82: #{_lambda_.15} parent=71 // pred_check_branch
        %502 = sbr.rel (%p500) target = $region84
      $region83: #{_lambda_.15} parent=71 // pred_region
        %s503 = smul.u32 4, %s23
        %p504 = scmp.lt.s32.totalorder %s503, 7
        %s505 = scalar_select %p504, %s503, 7
        %s506 = smul.addr %s505, 8
        %s507 = scalar_lea.vmem %s2, %s506
        %s508 = smul.u32 4, %s23
      $region84: #{_lambda_.15} parent=71 // pred_fallthru
        _
    $region72: #{_lambda_.15} parent=5 // pred_fallthru
      _
    %p509 = scmp.le.s32.totalorder 1, %s23
    %p510 = scmp.lt.s32.totalorder %s23, 3
    %p511 = pnand %p509, %p510
    %p512 = pneg %p511
    // Predicated region
    $region85: #{_lambda_.15} parent=5 // pred_check
      _
    $region86: #{_lambda_.15} parent=5 // pred_check_branch
      %514 = sbr.rel (%p511) target = $region88
    $region87: #{_lambda_.15} parent=5 // pred_region
      %s515 = ssub.s32 %s23, 1
      %s516 = smul.u32 4, %s28
      %p517 = scmp.lt.s32.totalorder %s516, 7
      %s518 = scalar_select %p517, %s516, 7
      %s519 = smul.addr %s518, 8
      %s520 = scalar_lea.vmem %s0, %s519
      %p521 = pneg %p49
      %p522 = pneg %p46
      %s523 = smul.u32 4, %s28
      %p524 = scmp.lt.s32.totalorder %s523, 7
      %s525 = scalar_select %p524, %s523, 7
      %s526 = smul.addr %s525, 8
      %s527 = scalar_lea.vmem %s1, %s526
      %p528 = pneg %p75
      %p529 = pneg %p72
      %s530 = smul.u32 4, %s28
      %p531 = scmp.lt.s32.totalorder %s530, 7
      %s532 = scalar_select %p531, %s530, 7
      %s533 = smul.addr %s532, 8
      %s534 = scalar_lea.vmem %s2, %s533
      %p535 = pneg %p101
      %p536 = pneg %p98
      %p537 = pneg %p122
      %p538 = pneg %p119
      %p539 = pneg %p143
      %p540 = pneg %p140
      %p541 = pneg %p164
      %p542 = pneg %p161
      %p543 = pneg %p185
      %p544 = pneg %p182
      %p545 = pneg %p206
      %p546 = pneg %p203
      %p547 = pneg %p227
      %p548 = pneg %p224
      %p549 = pneg %p248
      %p550 = pneg %p245
      %p551 = pneg %p269
      %p552 = pneg %p266
      %p553 = pneg %p290
      %p554 = pneg %p287
      %p555 = pneg %p311
      %p556 = pneg %p308
      %p557 = pneg %p332
      %p558 = pneg %p329
      %p559 = pneg %p353
      %p560 = pneg %p350
      %p561 = pneg %p374
      %p562 = pneg %p371
      %p563 = pneg %p395
      %p564 = pneg %p392
      %p565 = pneg %p421
      %p566 = pneg %p418
      %s567 = smul.u32 4, %s28
      %p568 = scmp.lt.s32.totalorder %s567, 7
      %s569 = scalar_select %p568, %s567, 7
      %s570 = smul.addr %s569, 8
      %s571 = scalar_lea.vmem %s17, %s570
      %s572 = smul.u32 4, %s28
      %p573 = scmp.lt.s32.totalorder %s572, 7
      %s574 = scalar_select %p573, %s572, 7
      %s575 = smul.addr %s574, 8
      %s576 = scalar_lea.vmem %s0, %s575
      %s577 = smul.u32 4, %s28
      %s578 = smul.u32 4, %s28
      %p579 = scmp.lt.s32.totalorder %s578, 7
      %s580 = scalar_select %p579, %s578, 7
      %s581 = smul.addr %s580, 8
      %s582 = scalar_lea.vmem %s1, %s581
      %s583 = smul.u32 4, %s28
      %s584 = smul.u32 4, %s28
      %p585 = scmp.lt.s32.totalorder %s584, 7
      %s586 = scalar_select %p585, %s584, 7
      %s587 = smul.addr %s586, 8
      %s588 = scalar_lea.vmem %s2, %s587
      %s589 = smul.u32 4, %s28
      %s590 = smul.u32 4, %s28
      %p591 = scmp.lt.s32.totalorder %s590, 7
      %s592 = scalar_select %p591, %s590, 7
      %s593 = smul.addr %s592, 8
      %s594 = scalar_lea.vmem %s17, %s593
      %s595 = smul.u32 4, %s28
      %v597 = vld [vmem:[%s576] sm:$0xff]
      %v598 = vld [vmem:[%s576 + $0x8] sm:$0xff]
      %v599 = vld [vmem:[%s576 + $0x10] sm:$0xff]
      %v600 = vld [vmem:[%s576 + $0x18] sm:$0xff]
      %v601 = vld [vmem:[%s582] sm:$0xff]
      %v602 = vld [vmem:[%s582 + $0x8] sm:$0xff]
      %v603 = vld [vmem:[%s582 + $0x10] sm:$0xff]
      %v604 = vld [vmem:[%s582 + $0x18] sm:$0xff]
      %v605 = vadd.f32 %v597, %v601
      %v606 = vadd.f32 %v598, %v602
      %v607 = vadd.f32 %v599, %v603
      %v608 = vadd.f32 %v600, %v604
      %v609 = vpack.c.bf16 %v606, %v605
      %v610 = vpack.c.bf16 %v608, %v607
      %v611 = vld [vmem:[%s3] sm:$0xf]
      %v612 = vld [vmem:[%s3 + $0x4] sm:$0xf]
      %v613 = vld [vmem:[%s3 + $0x8] sm:$0xf]
      %v614 = vld [vmem:[%s3 + $0xc] sm:$0xf]
      %v615 = vld [vmem:[%s4] sm:$0x1]
      %v617 = vperm.slane %v615, 0
      %v623 = vunpack.c.l.b16 %v611
      %v624 = vunpack.c.l.b16 %v612
      %v625 = vunpack.c.l.b16 %v613
      %v626 = vunpack.c.l.b16 %v614
      %v627 = vpack.c.b16 %v624, %v623
      %v628 = vpack.c.b16 %v626, %v625
      %vm631 = vcmask 261120
      %v633 = vsel %vm631, %v609, 0
      %v636 = vsel %vm631, %v610, 0
      %638 = vmatpush.bf16.msra.mxu0 0
      %639 = vmatpush.bf16.msra.mxu0 0
      %640 = vmatpush.bf16.msra.mxu0 0
      %641 = vmatpush.bf16.msra.mxu0 0
      %642 = vmatpush.bf16.msra.mxu0 0
      %643 = vmatpush.bf16.msra.mxu0 0
      %644 = vmatpush.bf16.msra.mxu0 %v628
      %645 = vmatpush.bf16.msra.mxu0 %v627
      %646 = vmatmul.bf16.gmra.mxu0 %v633
      %v647 = vpop.f32.mrf.mxu0
      %v648 = vadd.f32 %v617, %v647
      %v649 = vpop.f32.mrf.mxu0
      %v650 = vadd.f32 %v617, %v649
      %651 = vmatmul.bf16.gmra.mxu0 %v636
      %v652 = vpop.f32.mrf.mxu0
      %v653 = vadd.f32 %v617, %v652
      %v654 = vpop.f32.mrf.mxu0
      %v655 = vadd.f32 %v617, %v654
      %656 = vdwg.mxu0
      %v657 = vxor.u32 %v648, 2147483648
      %v658 = vxor.u32 %v650, 2147483648
      %v659 = vxor.u32 %v653, 2147483648
      %v660 = vxor.u32 %v655, 2147483648
      %v661 = vmul.f32 %v657, 1.442695
      %v662 = vpow.pop %v661
      %v663 = vmul.f32 %v658, 1.442695
      %v664 = vpow.pop %v663
      %v665 = vmul.f32 %v659, 1.442695
      %v666 = vpow.pop %v665
      %v667 = vmul.f32 %v660, 1.442695
      %v668 = vpow.pop %v667
      %v669 = vadd.f32 %v662, 1.0
      %v670 = vadd.f32 %v664, 1.0
      %v671 = vadd.f32 %v666, 1.0
      %v672 = vadd.f32 %v668, 1.0
      %v673 = vrcp.pop %v669
      %v674 = vmul.f32 %v669, %v673
      %v675 = vsub.f32 1.0, %v674
      %v676 = vmul.f32 %v673, %v675
      %v677 = vadd.f32 %v673, %v676
      %vm678 = vweird.f32 %v669
      %vm679 = vweird.f32 %v673
      %vm680 = vmor %vm678, %vm679
      %v681 = vsel %vm680, %v673, %v677
      %v682 = vand.u32 2147483647, %v669
      %vm683 = vcmp.eq.f32.partialorder %v682, 8.507059e+37
      %v684 = vand.u32 %v669, 2147483648
      %v685 = vor.u32 1.1754944e-38, %v684
      %v686 = vsel %vm683, %v685, %v681
      %v687 = vmul.f32 1.0, %v686
      %v688 = vrcp.pop %v670
      %v689 = vmul.f32 %v670, %v688
      %v690 = vsub.f32 1.0, %v689
      %v691 = vmul.f32 %v688, %v690
      %v692 = vadd.f32 %v688, %v691
      %vm693 = vweird.f32 %v670
      %vm694 = vweird.f32 %v688
      %vm695 = vmor %vm693, %vm694
      %v696 = vsel %vm695, %v688, %v692
      %v697 = vand.u32 2147483647, %v670
      %vm698 = vcmp.eq.f32.partialorder %v697, 8.507059e+37
      %v699 = vand.u32 %v670, 2147483648
      %v700 = vor.u32 1.1754944e-38, %v699
      %v701 = vsel %vm698, %v700, %v696
      %v702 = vmul.f32 1.0, %v701
      %v703 = vrcp.pop %v671
      %v704 = vmul.f32 %v671, %v703
      %v705 = vsub.f32 1.0, %v704
      %v706 = vmul.f32 %v703, %v705
      %v707 = vadd.f32 %v703, %v706
      %vm708 = vweird.f32 %v671
      %vm709 = vweird.f32 %v703
      %vm710 = vmor %vm708, %vm709
      %v711 = vsel %vm710, %v703, %v707
      %v712 = vand.u32 2147483647, %v671
      %vm713 = vcmp.eq.f32.partialorder %v712, 8.507059e+37
      %v714 = vand.u32 %v671, 2147483648
      %v715 = vor.u32 1.1754944e-38, %v714
      %v716 = vsel %vm713, %v715, %v711
      %v717 = vmul.f32 1.0, %v716
      %v718 = vrcp.pop %v672
      %v719 = vmul.f32 %v672, %v718
      %v720 = vsub.f32 1.0, %v719
      %v721 = vmul.f32 %v718, %v720
      %v722 = vadd.f32 %v718, %v721
      %vm723 = vweird.f32 %v672
      %vm724 = vweird.f32 %v718
      %vm725 = vmor %vm723, %vm724
      %v726 = vsel %vm725, %v718, %v722
      %v727 = vand.u32 2147483647, %v672
      %vm728 = vcmp.eq.f32.partialorder %v727, 8.507059e+37
      %v729 = vand.u32 %v672, 2147483648
      %v730 = vor.u32 1.1754944e-38, %v729
      %v731 = vsel %vm728, %v730, %v726
      %v732 = vmul.f32 1.0, %v731
      %v733 = vmul.f32 %v648, %v687
      %v734 = vmul.f32 %v650, %v702
      %v735 = vmul.f32 %v653, %v717
      %v736 = vmul.f32 %v655, %v732
      %v737 = vpack.c.bf16 %v734, %v733
      %v738 = vpack.c.bf16 %v736, %v735
      %v739 = vld [vmem:[%s5] sm:$0xf]
      %v740 = vld [vmem:[%s5 + $0x4] sm:$0xf]
      %v741 = vld [vmem:[%s5 + $0x8] sm:$0xf]
      %v742 = vld [vmem:[%s5 + $0xc] sm:$0xf]
      %v743 = vld [vmem:[%s6] sm:$0x1]
      %v745 = vperm.slane %v743, 0
      %v751 = vunpack.c.l.b16 %v739
      %v752 = vunpack.c.l.b16 %v740
      %v753 = vunpack.c.l.b16 %v741
      %v754 = vunpack.c.l.b16 %v742
      %v755 = vpack.c.b16 %v752, %v751
      %v756 = vpack.c.b16 %v754, %v753
      %v760 = vsel %vm631, %v737, 0
      %v763 = vsel %vm631, %v738, 0
      %765 = vmatpush.bf16.msra.mxu0 0
      %766 = vmatpush.bf16.msra.mxu0 0
      %767 = vmatpush.bf16.msra.mxu0 0
      %768 = vmatpush.bf16.msra.mxu0 0
      %769 = vmatpush.bf16.msra.mxu0 0
      %770 = vmatpush.bf16.msra.mxu0 0
      %771 = vmatpush.bf16.msra.mxu0 %v756
      %772 = vmatpush.bf16.msra.mxu0 %v755
      %773 = vmatmul.bf16.gmra.mxu0 %v760
      %v774 = vpop.f32.mrf.mxu0
      %v775 = vadd.f32 %v745, %v774
      %v776 = vpop.f32.mrf.mxu0
      %v777 = vadd.f32 %v745, %v776
      %778 = vmatmul.bf16.gmra.mxu0 %v763
      %v779 = vpop.f32.mrf.mxu0
      %v780 = vadd.f32 %v745, %v779
      %v781 = vpop.f32.mrf.mxu0
      %v782 = vadd.f32 %v745, %v781
      %783 = vdwg.mxu0
      %v784 = vxor.u32 %v775, 2147483648
      %v785 = vxor.u32 %v777, 2147483648
      %v786 = vxor.u32 %v780, 2147483648
      %v787 = vxor.u32 %v782, 2147483648
      %v788 = vmul.f32 %v784, 1.442695
      %v789 = vpow.pop %v788
      %v790 = vmul.f32 %v785, 1.442695
      %v791 = vpow.pop %v790
      %v792 = vmul.f32 %v786, 1.442695
      %v793 = vpow.pop %v792
      %v794 = vmul.f32 %v787, 1.442695
      %v795 = vpow.pop %v794
      %v796 = vadd.f32 %v789, 1.0
      %v797 = vadd.f32 %v791, 1.0
      %v798 = vadd.f32 %v793, 1.0
      %v799 = vadd.f32 %v795, 1.0
      %v800 = vrcp.pop %v796
      %v801 = vmul.f32 %v796, %v800
      %v802 = vsub.f32 1.0, %v801
      %v803 = vmul.f32 %v800, %v802
      %v804 = vadd.f32 %v800, %v803
      %vm805 = vweird.f32 %v796
      %vm806 = vweird.f32 %v800
      %vm807 = vmor %vm805, %vm806
      %v808 = vsel %vm807, %v800, %v804
      %v809 = vand.u32 2147483647, %v796
      %vm810 = vcmp.eq.f32.partialorder %v809, 8.507059e+37
      %v811 = vand.u32 %v796, 2147483648
      %v812 = vor.u32 1.1754944e-38, %v811
      %v813 = vsel %vm810, %v812, %v808
      %v814 = vmul.f32 1.0, %v813
      %v815 = vrcp.pop %v797
      %v816 = vmul.f32 %v797, %v815
      %v817 = vsub.f32 1.0, %v816
      %v818 = vmul.f32 %v815, %v817
      %v819 = vadd.f32 %v815, %v818
      %vm820 = vweird.f32 %v797
      %vm821 = vweird.f32 %v815
      %vm822 = vmor %vm820, %vm821
      %v823 = vsel %vm822, %v815, %v819
      %v824 = vand.u32 2147483647, %v797
      %vm825 = vcmp.eq.f32.partialorder %v824, 8.507059e+37
      %v826 = vand.u32 %v797, 2147483648
      %v827 = vor.u32 1.1754944e-38, %v826
      %v828 = vsel %vm825, %v827, %v823
      %v829 = vmul.f32 1.0, %v828
      %v830 = vrcp.pop %v798
      %v831 = vmul.f32 %v798, %v830
      %v832 = vsub.f32 1.0, %v831
      %v833 = vmul.f32 %v830, %v832
      %v834 = vadd.f32 %v830, %v833
      %vm835 = vweird.f32 %v798
      %vm836 = vweird.f32 %v830
      %vm837 = vmor %vm835, %vm836
      %v838 = vsel %vm837, %v830, %v834
      %v839 = vand.u32 2147483647, %v798
      %vm840 = vcmp.eq.f32.partialorder %v839, 8.507059e+37
      %v841 = vand.u32 %v798, 2147483648
      %v842 = vor.u32 1.1754944e-38, %v841
      %v843 = vsel %vm840, %v842, %v838
      %v844 = vmul.f32 1.0, %v843
      %v845 = vrcp.pop %v799
      %v846 = vmul.f32 %v799, %v845
      %v847 = vsub.f32 1.0, %v846
      %v848 = vmul.f32 %v845, %v847
      %v849 = vadd.f32 %v845, %v848
      %vm850 = vweird.f32 %v799
      %vm851 = vweird.f32 %v845
      %vm852 = vmor %vm850, %vm851
      %v853 = vsel %vm852, %v845, %v849
      %v854 = vand.u32 2147483647, %v799
      %vm855 = vcmp.eq.f32.partialorder %v854, 8.507059e+37
      %v856 = vand.u32 %v799, 2147483648
      %v857 = vor.u32 1.1754944e-38, %v856
      %v858 = vsel %vm855, %v857, %v853
      %v859 = vmul.f32 1.0, %v858
      %v860 = vmul.f32 %v775, %v814
      %v861 = vmul.f32 %v777, %v829
      %v862 = vmul.f32 %v780, %v844
      %v863 = vmul.f32 %v782, %v859
      %v864 = vadd.f32 %v605, %v860
      %v865 = vadd.f32 %v606, %v861
      %v866 = vadd.f32 %v607, %v862
      %v867 = vadd.f32 %v608, %v863
      %v868 = vpack.c.bf16 %v865, %v864
      %v869 = vpack.c.bf16 %v867, %v866
      %v870 = vld [vmem:[%s7] sm:$0xf]
      %v871 = vld [vmem:[%s7 + $0x4] sm:$0xf]
      %v872 = vld [vmem:[%s7 + $0x8] sm:$0xf]
      %v873 = vld [vmem:[%s7 + $0xc] sm:$0xf]
      %v874 = vld [vmem:[%s8] sm:$0x1]
      %v876 = vperm.slane %v874, 0
      %v882 = vunpack.c.l.b16 %v870
      %v883 = vunpack.c.l.b16 %v871
      %v884 = vunpack.c.l.b16 %v872
      %v885 = vunpack.c.l.b16 %v873
      %v886 = vpack.c.b16 %v883, %v882
      %v887 = vpack.c.b16 %v885, %v884
      %v891 = vsel %vm631, %v868, 0
      %v894 = vsel %vm631, %v869, 0
      %896 = vmatpush.bf16.msra.mxu0 0
      %897 = vmatpush.bf16.msra.mxu0 0
      %898 = vmatpush.bf16.msra.mxu0 0
      %899 = vmatpush.bf16.msra.mxu0 0
      %900 = vmatpush.bf16.msra.mxu0 0
      %901 = vmatpush.bf16.msra.mxu0 0
      %902 = vmatpush.bf16.msra.mxu0 %v887
      %903 = vmatpush.bf16.msra.mxu0 %v886
      %904 = vmatmul.bf16.gmra.mxu0 %v891
      %v905 = vpop.f32.mrf.mxu0
      %v906 = vadd.f32 %v876, %v905
      %v907 = vpop.f32.mrf.mxu0
      %v908 = vadd.f32 %v876, %v907
      %909 = vmatmul.bf16.gmra.mxu0 %v894
      %v910 = vpop.f32.mrf.mxu0
      %v911 = vadd.f32 %v876, %v910
      %v912 = vpop.f32.mrf.mxu0
      %v913 = vadd.f32 %v876, %v912
      %914 = vdwg.mxu0
      %v915 = vxor.u32 %v906, 2147483648
      %v916 = vxor.u32 %v908, 2147483648
      %v917 = vxor.u32 %v911, 2147483648
      %v918 = vxor.u32 %v913, 2147483648
      %v919 = vmul.f32 %v915, 1.442695
      %v920 = vpow.pop %v919
      %v921 = vmul.f32 %v916, 1.442695
      %v922 = vpow.pop %v921
      %v923 = vmul.f32 %v917, 1.442695
      %v924 = vpow.pop %v923
      %v925 = vmul.f32 %v918, 1.442695
      %v926 = vpow.pop %v925
      %v927 = vadd.f32 %v920, 1.0
      %v928 = vadd.f32 %v922, 1.0
      %v929 = vadd.f32 %v924, 1.0
      %v930 = vadd.f32 %v926, 1.0
      %v931 = vrcp.pop %v927
      %v932 = vmul.f32 %v927, %v931
      %v933 = vsub.f32 1.0, %v932
      %v934 = vmul.f32 %v931, %v933
      %v935 = vadd.f32 %v931, %v934
      %vm936 = vweird.f32 %v927
      %vm937 = vweird.f32 %v931
      %vm938 = vmor %vm936, %vm937
      %v939 = vsel %vm938, %v931, %v935
      %v940 = vand.u32 2147483647, %v927
      %vm941 = vcmp.eq.f32.partialorder %v940, 8.507059e+37
      %v942 = vand.u32 %v927, 2147483648
      %v943 = vor.u32 1.1754944e-38, %v942
      %v944 = vsel %vm941, %v943, %v939
      %v945 = vmul.f32 1.0, %v944
      %v946 = vrcp.pop %v928
      %v947 = vmul.f32 %v928, %v946
      %v948 = vsub.f32 1.0, %v947
      %v949 = vmul.f32 %v946, %v948
      %v950 = vadd.f32 %v946, %v949
      %vm951 = vweird.f32 %v928
      %vm952 = vweird.f32 %v946
      %vm953 = vmor %vm951, %vm952
      %v954 = vsel %vm953, %v946, %v950
      %v955 = vand.u32 2147483647, %v928
      %vm956 = vcmp.eq.f32.partialorder %v955, 8.507059e+37
      %v957 = vand.u32 %v928, 2147483648
      %v958 = vor.u32 1.1754944e-38, %v957
      %v959 = vsel %vm956, %v958, %v954
      %v960 = vmul.f32 1.0, %v959
      %v961 = vrcp.pop %v929
      %v962 = vmul.f32 %v929, %v961
      %v963 = vsub.f32 1.0, %v962
      %v964 = vmul.f32 %v961, %v963
      %v965 = vadd.f32 %v961, %v964
      %vm966 = vweird.f32 %v929
      %vm967 = vweird.f32 %v961
      %vm968 = vmor %vm966, %vm967
      %v969 = vsel %vm968, %v961, %v965
      %v970 = vand.u32 2147483647, %v929
      %vm971 = vcmp.eq.f32.partialorder %v970, 8.507059e+37
      %v972 = vand.u32 %v929, 2147483648
      %v973 = vor.u32 1.1754944e-38, %v972
      %v974 = vsel %vm971, %v973, %v969
      %v975 = vmul.f32 1.0, %v974
      %v976 = vrcp.pop %v930
      %v977 = vmul.f32 %v930, %v976
      %v978 = vsub.f32 1.0, %v977
      %v979 = vmul.f32 %v976, %v978
      %v980 = vadd.f32 %v976, %v979
      %vm981 = vweird.f32 %v930
      %vm982 = vweird.f32 %v976
      %vm983 = vmor %vm981, %vm982
      %v984 = vsel %vm983, %v976, %v980
      %v985 = vand.u32 2147483647, %v930
      %vm986 = vcmp.eq.f32.partialorder %v985, 8.507059e+37
      %v987 = vand.u32 %v930, 2147483648
      %v988 = vor.u32 1.1754944e-38, %v987
      %v989 = vsel %vm986, %v988, %v984
      %v990 = vmul.f32 1.0, %v989
      %v991 = vmul.f32 %v906, %v945
      %v992 = vmul.f32 %v908, %v960
      %v993 = vmul.f32 %v911, %v975
      %v994 = vmul.f32 %v913, %v990
      %v995 = vld [vmem:[%s588] sm:$0xff]
      %v996 = vld [vmem:[%s588 + $0x8] sm:$0xff]
      %v997 = vld [vmem:[%s588 + $0x10] sm:$0xff]
      %v998 = vld [vmem:[%s588 + $0x18] sm:$0xff]
      %v999 = vadd.f32 %v991, %v995
      %v1000 = vadd.f32 %v992, %v996
      %v1001 = vadd.f32 %v993, %v997
      %v1002 = vadd.f32 %v994, %v998
      %v1003 = vpack.c.bf16 %v1000, %v999
      %v1004 = vpack.c.bf16 %v1002, %v1001
      %v1005 = vld [vmem:[%s9] sm:$0xf]
      %v1006 = vld [vmem:[%s9 + $0x4] sm:$0xf]
      %v1007 = vld [vmem:[%s9 + $0x8] sm:$0xf]
      %v1008 = vld [vmem:[%s9 + $0xc] sm:$0xf]
      %v1009 = vld [vmem:[%s10] sm:$0x1]
      %v1011 = vperm.slane %v1009, 0
      %v1017 = vunpack.c.l.b16 %v1005
      %v1018 = vunpack.c.l.b16 %v1006
      %v1019 = vunpack.c.l.b16 %v1007
      %v1020 = vunpack.c.l.b16 %v1008
      %v1021 = vpack.c.b16 %v1018, %v1017
      %v1022 = vpack.c.b16 %v1020, %v1019
      %v1026 = vsel %vm631, %v1003, 0
      %v1029 = vsel %vm631, %v1004, 0
      %1031 = vmatpush.bf16.msra.mxu0 0
      %1032 = vmatpush.bf16.msra.mxu0 0
      %1033 = vmatpush.bf16.msra.mxu0 0
      %1034 = vmatpush.bf16.msra.mxu0 0
      %1035 = vmatpush.bf16.msra.mxu0 0
      %1036 = vmatpush.bf16.msra.mxu0 0
      %1037 = vmatpush.bf16.msra.mxu0 %v1022
      %1038 = vmatpush.bf16.msra.mxu0 %v1021
      %1039 = vmatmul.bf16.gmra.mxu0 %v1026
      %v1040 = vpop.f32.mrf.mxu0
      %v1041 = vadd.f32 %v1011, %v1040
      %v1042 = vpop.f32.mrf.mxu0
      %v1043 = vadd.f32 %v1011, %v1042
      %1044 = vmatmul.bf16.gmra.mxu0 %v1029
      %v1045 = vpop.f32.mrf.mxu0
      %v1046 = vadd.f32 %v1011, %v1045
      %v1047 = vpop.f32.mrf.mxu0
      %v1048 = vadd.f32 %v1011, %v1047
      %1049 = vdwg.mxu0
      %v1050 = vxor.u32 %v1041, 2147483648
      %v1051 = vxor.u32 %v1043, 2147483648
      %v1052 = vxor.u32 %v1046, 2147483648
      %v1053 = vxor.u32 %v1048, 2147483648
      %v1054 = vmul.f32 %v1050, 1.442695
      %v1055 = vpow.pop %v1054
      %v1056 = vmul.f32 %v1051, 1.442695
      %v1057 = vpow.pop %v1056
      %v1058 = vmul.f32 %v1052, 1.442695
      %v1059 = vpow.pop %v1058
      %v1060 = vmul.f32 %v1053, 1.442695
      %v1061 = vpow.pop %v1060
      %v1062 = vadd.f32 %v1055, 1.0
      %v1063 = vadd.f32 %v1057, 1.0
      %v1064 = vadd.f32 %v1059, 1.0
      %v1065 = vadd.f32 %v1061, 1.0
      %v1066 = vrcp.pop %v1062
      %v1067 = vmul.f32 %v1062, %v1066
      %v1068 = vsub.f32 1.0, %v1067
      %v1069 = vmul.f32 %v1066, %v1068
      %v1070 = vadd.f32 %v1066, %v1069
      %vm1071 = vweird.f32 %v1062
      %vm1072 = vweird.f32 %v1066
      %vm1073 = vmor %vm1071, %vm1072
      %v1074 = vsel %vm1073, %v1066, %v1070
      %v1075 = vand.u32 2147483647, %v1062
      %vm1076 = vcmp.eq.f32.partialorder %v1075, 8.507059e+37
      %v1077 = vand.u32 %v1062, 2147483648
      %v1078 = vor.u32 1.1754944e-38, %v1077
      %v1079 = vsel %vm1076, %v1078, %v1074
      %v1080 = vmul.f32 1.0, %v1079
      %v1081 = vrcp.pop %v1063
      %v1082 = vmul.f32 %v1063, %v1081
      %v1083 = vsub.f32 1.0, %v1082
      %v1084 = vmul.f32 %v1081, %v1083
      %v1085 = vadd.f32 %v1081, %v1084
      %vm1086 = vweird.f32 %v1063
      %vm1087 = vweird.f32 %v1081
      %vm1088 = vmor %vm1086, %vm1087
      %v1089 = vsel %vm1088, %v1081, %v1085
      %v1090 = vand.u32 2147483647, %v1063
      %vm1091 = vcmp.eq.f32.partialorder %v1090, 8.507059e+37
      %v1092 = vand.u32 %v1063, 2147483648
      %v1093 = vor.u32 1.1754944e-38, %v1092
      %v1094 = vsel %vm1091, %v1093, %v1089
      %v1095 = vmul.f32 1.0, %v1094
      %v1096 = vrcp.pop %v1064
      %v1097 = vmul.f32 %v1064, %v1096
      %v1098 = vsub.f32 1.0, %v1097
      %v1099 = vmul.f32 %v1096, %v1098
      %v1100 = vadd.f32 %v1096, %v1099
      %vm1101 = vweird.f32 %v1064
      %vm1102 = vweird.f32 %v1096
      %vm1103 = vmor %vm1101, %vm1102
      %v1104 = vsel %vm1103, %v1096, %v1100
      %v1105 = vand.u32 2147483647, %v1064
      %vm1106 = vcmp.eq.f32.partialorder %v1105, 8.507059e+37
      %v1107 = vand.u32 %v1064, 2147483648
      %v1108 = vor.u32 1.1754944e-38, %v1107
      %v1109 = vsel %vm1106, %v1108, %v1104
      %v1110 = vmul.f32 1.0, %v1109
      %v1111 = vrcp.pop %v1065
      %v1112 = vmul.f32 %v1065, %v1111
      %v1113 = vsub.f32 1.0, %v1112
      %v1114 = vmul.f32 %v1111, %v1113
      %v1115 = vadd.f32 %v1111, %v1114
      %vm1116 = vweird.f32 %v1065
      %vm1117 = vweird.f32 %v1111
      %vm1118 = vmor %vm1116, %vm1117
      %v1119 = vsel %vm1118, %v1111, %v1115
      %v1120 = vand.u32 2147483647, %v1065
      %vm1121 = vcmp.eq.f32.partialorder %v1120, 8.507059e+37
      %v1122 = vand.u32 %v1065, 2147483648
      %v1123 = vor.u32 1.1754944e-38, %v1122
      %v1124 = vsel %vm1121, %v1123, %v1119
      %v1125 = vmul.f32 1.0, %v1124
      %v1126 = vmul.f32 %v1041, %v1080
      %v1127 = vmul.f32 %v1043, %v1095
      %v1128 = vmul.f32 %v1046, %v1110
      %v1129 = vmul.f32 %v1048, %v1125
      %v1130 = vpack.c.bf16 %v1127, %v1126
      %v1131 = vpack.c.bf16 %v1129, %v1128
      %v1132 = vld [vmem:[%s11] sm:$0xf]
      %v1133 = vld [vmem:[%s11 + $0x4] sm:$0xf]
      %v1134 = vld [vmem:[%s11 + $0x8] sm:$0xf]
      %v1135 = vld [vmem:[%s11 + $0xc] sm:$0xf]
      %v1136 = vld [vmem:[%s12] sm:$0x1]
      %v1138 = vperm.slane %v1136, 0
      %v1144 = vunpack.c.l.b16 %v1132
      %v1145 = vunpack.c.l.b16 %v1133
      %v1146 = vunpack.c.l.b16 %v1134
      %v1147 = vunpack.c.l.b16 %v1135
      %v1148 = vpack.c.b16 %v1145, %v1144
      %v1149 = vpack.c.b16 %v1147, %v1146
      %v1153 = vsel %vm631, %v1130, 0
      %v1156 = vsel %vm631, %v1131, 0
      %1158 = vmatpush.bf16.msra.mxu0 0
      %1159 = vmatpush.bf16.msra.mxu0 0
      %1160 = vmatpush.bf16.msra.mxu0 0
      %1161 = vmatpush.bf16.msra.mxu0 0
      %1162 = vmatpush.bf16.msra.mxu0 0
      %1163 = vmatpush.bf16.msra.mxu0 0
      %1164 = vmatpush.bf16.msra.mxu0 %v1149
      %1165 = vmatpush.bf16.msra.mxu0 %v1148
      %1166 = vmatmul.bf16.gmra.mxu0 %v1153
      %v1167 = vpop.f32.mrf.mxu0
      %v1168 = vadd.f32 %v1138, %v1167
      %v1169 = vpop.f32.mrf.mxu0
      %v1170 = vadd.f32 %v1138, %v1169
      %1171 = vmatmul.bf16.gmra.mxu0 %v1156
      %v1172 = vpop.f32.mrf.mxu0
      %v1173 = vadd.f32 %v1138, %v1172
      %v1174 = vpop.f32.mrf.mxu0
      %v1175 = vadd.f32 %v1138, %v1174
      %1176 = vdwg.mxu0
      %v1177 = vxor.u32 %v1168, 2147483648
      %v1178 = vxor.u32 %v1170, 2147483648
      %v1179 = vxor.u32 %v1173, 2147483648
      %v1180 = vxor.u32 %v1175, 2147483648
      %v1181 = vmul.f32 %v1177, 1.442695
      %v1182 = vpow.pop %v1181
      %v1183 = vmul.f32 %v1178, 1.442695
      %v1184 = vpow.pop %v1183
      %v1185 = vmul.f32 %v1179, 1.442695
      %v1186 = vpow.pop %v1185
      %v1187 = vmul.f32 %v1180, 1.442695
      %v1188 = vpow.pop %v1187
      %v1189 = vadd.f32 %v1182, 1.0
      %v1190 = vadd.f32 %v1184, 1.0
      %v1191 = vadd.f32 %v1186, 1.0
      %v1192 = vadd.f32 %v1188, 1.0
      %v1193 = vrcp.pop %v1189
      %v1194 = vmul.f32 %v1189, %v1193
      %v1195 = vsub.f32 1.0, %v1194
      %v1196 = vmul.f32 %v1193, %v1195
      %v1197 = vadd.f32 %v1193, %v1196
      %vm1198 = vweird.f32 %v1189
      %vm1199 = vweird.f32 %v1193
      %vm1200 = vmor %vm1198, %vm1199
      %v1201 = vsel %vm1200, %v1193, %v1197
      %v1202 = vand.u32 2147483647, %v1189
      %vm1203 = vcmp.eq.f32.partialorder %v1202, 8.507059e+37
      %v1204 = vand.u32 %v1189, 2147483648
      %v1205 = vor.u32 1.1754944e-38, %v1204
      %v1206 = vsel %vm1203, %v1205, %v1201
      %v1207 = vmul.f32 1.0, %v1206
      %v1208 = vrcp.pop %v1190
      %v1209 = vmul.f32 %v1190, %v1208
      %v1210 = vsub.f32 1.0, %v1209
      %v1211 = vmul.f32 %v1208, %v1210
      %v1212 = vadd.f32 %v1208, %v1211
      %vm1213 = vweird.f32 %v1190
      %vm1214 = vweird.f32 %v1208
      %vm1215 = vmor %vm1213, %vm1214
      %v1216 = vsel %vm1215, %v1208, %v1212
      %v1217 = vand.u32 2147483647, %v1190
      %vm1218 = vcmp.eq.f32.partialorder %v1217, 8.507059e+37
      %v1219 = vand.u32 %v1190, 2147483648
      %v1220 = vor.u32 1.1754944e-38, %v1219
      %v1221 = vsel %vm1218, %v1220, %v1216
      %v1222 = vmul.f32 1.0, %v1221
      %v1223 = vrcp.pop %v1191
      %v1224 = vmul.f32 %v1191, %v1223
      %v1225 = vsub.f32 1.0, %v1224
      %v1226 = vmul.f32 %v1223, %v1225
      %v1227 = vadd.f32 %v1223, %v1226
      %vm1228 = vweird.f32 %v1191
      %vm1229 = vweird.f32 %v1223
      %vm1230 = vmor %vm1228, %vm1229
      %v1231 = vsel %vm1230, %v1223, %v1227
      %v1232 = vand.u32 2147483647, %v1191
      %vm1233 = vcmp.eq.f32.partialorder %v1232, 8.507059e+37
      %v1234 = vand.u32 %v1191, 2147483648
      %v1235 = vor.u32 1.1754944e-38, %v1234
      %v1236 = vsel %vm1233, %v1235, %v1231
      %v1237 = vmul.f32 1.0, %v1236
      %v1238 = vrcp.pop %v1192
      %v1239 = vmul.f32 %v1192, %v1238
      %v1240 = vsub.f32 1.0, %v1239
      %v1241 = vmul.f32 %v1238, %v1240
      %v1242 = vadd.f32 %v1238, %v1241
      %vm1243 = vweird.f32 %v1192
      %vm1244 = vweird.f32 %v1238
      %vm1245 = vmor %vm1243, %vm1244
      %v1246 = vsel %vm1245, %v1238, %v1242
      %v1247 = vand.u32 2147483647, %v1192
      %vm1248 = vcmp.eq.f32.partialorder %v1247, 8.507059e+37
      %v1249 = vand.u32 %v1192, 2147483648
      %v1250 = vor.u32 1.1754944e-38, %v1249
      %v1251 = vsel %vm1248, %v1250, %v1246
      %v1252 = vmul.f32 1.0, %v1251
      %v1253 = vmul.f32 %v1168, %v1207
      %v1254 = vmul.f32 %v1170, %v1222
      %v1255 = vmul.f32 %v1173, %v1237
      %v1256 = vmul.f32 %v1175, %v1252
      %v1257 = vadd.f32 %v999, %v1253
      %v1258 = vadd.f32 %v1000, %v1254
      %v1259 = vadd.f32 %v1001, %v1255
      %v1260 = vadd.f32 %v1002, %v1256
      %v1261 = vpack.c.bf16 %v1258, %v1257
      %v1262 = vpack.c.bf16 %v1260, %v1259
      %v1263 = vld [vmem:[%s13] sm:$0xf]
      %v1264 = vld [vmem:[%s13 + $0x4] sm:$0xf]
      %v1265 = vld [vmem:[%s13 + $0x8] sm:$0xf]
      %v1266 = vld [vmem:[%s13 + $0xc] sm:$0xf]
      %v1267 = vld [vmem:[%s14] sm:$0x1]
      %v1269 = vperm.slane %v1267, 0
      %v1275 = vunpack.c.l.b16 %v1263
      %v1276 = vunpack.c.l.b16 %v1264
      %v1277 = vunpack.c.l.b16 %v1265
      %v1278 = vunpack.c.l.b16 %v1266
      %v1279 = vpack.c.b16 %v1276, %v1275
      %v1280 = vpack.c.b16 %v1278, %v1277
      %v1284 = vsel %vm631, %v1261, 0
      %v1287 = vsel %vm631, %v1262, 0
      %1289 = vmatpush.bf16.msra.mxu0 0
      %1290 = vmatpush.bf16.msra.mxu0 0
      %1291 = vmatpush.bf16.msra.mxu0 0
      %1292 = vmatpush.bf16.msra.mxu0 0
      %1293 = vmatpush.bf16.msra.mxu0 0
      %1294 = vmatpush.bf16.msra.mxu0 0
      %1295 = vmatpush.bf16.msra.mxu0 %v1280
      %1296 = vmatpush.bf16.msra.mxu0 %v1279
      %1297 = vmatmul.bf16.gmra.mxu0 %v1284
      %v1298 = vpop.f32.mrf.mxu0
      %v1299 = vadd.f32 %v1269, %v1298
      %v1300 = vpop.f32.mrf.mxu0
      %v1301 = vadd.f32 %v1269, %v1300
      %1302 = vmatmul.bf16.gmra.mxu0 %v1287
      %v1303 = vpop.f32.mrf.mxu0
      %v1304 = vadd.f32 %v1269, %v1303
      %v1305 = vpop.f32.mrf.mxu0
      %v1306 = vadd.f32 %v1269, %v1305
      %1307 = vdwg.mxu0
      %v1308 = vxor.u32 %v1299, 2147483648
      %v1309 = vxor.u32 %v1301, 2147483648
      %v1310 = vxor.u32 %v1304, 2147483648
      %v1311 = vxor.u32 %v1306, 2147483648
      %v1312 = vmul.f32 %v1308, 1.442695
      %v1313 = vpow.pop %v1312
      %v1314 = vmul.f32 %v1309, 1.442695
      %v1315 = vpow.pop %v1314
      %v1316 = vmul.f32 %v1310, 1.442695
      %v1317 = vpow.pop %v1316
      %v1318 = vmul.f32 %v1311, 1.442695
      %v1319 = vpow.pop %v1318
      %v1320 = vadd.f32 %v1313, 1.0
      %v1321 = vadd.f32 %v1315, 1.0
      %v1322 = vadd.f32 %v1317, 1.0
      %v1323 = vadd.f32 %v1319, 1.0
      %v1324 = vrcp.pop %v1320
      %v1325 = vmul.f32 %v1320, %v1324
      %v1326 = vsub.f32 1.0, %v1325
      %v1327 = vmul.f32 %v1324, %v1326
      %v1328 = vadd.f32 %v1324, %v1327
      %vm1329 = vweird.f32 %v1320
      %vm1330 = vweird.f32 %v1324
      %vm1331 = vmor %vm1329, %vm1330
      %v1332 = vsel %vm1331, %v1324, %v1328
      %v1333 = vand.u32 2147483647, %v1320
      %vm1334 = vcmp.eq.f32.partialorder %v1333, 8.507059e+37
      %v1335 = vand.u32 %v1320, 2147483648
      %v1336 = vor.u32 1.1754944e-38, %v1335
      %v1337 = vsel %vm1334, %v1336, %v1332
      %v1338 = vmul.f32 1.0, %v1337
      %v1339 = vrcp.pop %v1321
      %v1340 = vmul.f32 %v1321, %v1339
      %v1341 = vsub.f32 1.0, %v1340
      %v1342 = vmul.f32 %v1339, %v1341
      %v1343 = vadd.f32 %v1339, %v1342
      %vm1344 = vweird.f32 %v1321
      %vm1345 = vweird.f32 %v1339
      %vm1346 = vmor %vm1344, %vm1345
      %v1347 = vsel %vm1346, %v1339, %v1343
      %v1348 = vand.u32 2147483647, %v1321
      %vm1349 = vcmp.eq.f32.partialorder %v1348, 8.507059e+37
      %v1350 = vand.u32 %v1321, 2147483648
      %v1351 = vor.u32 1.1754944e-38, %v1350
      %v1352 = vsel %vm1349, %v1351, %v1347
      %v1353 = vmul.f32 1.0, %v1352
      %v1354 = vrcp.pop %v1322
      %v1355 = vmul.f32 %v1322, %v1354
      %v1356 = vsub.f32 1.0, %v1355
      %v1357 = vmul.f32 %v1354, %v1356
      %v1358 = vadd.f32 %v1354, %v1357
      %vm1359 = vweird.f32 %v1322
      %vm1360 = vweird.f32 %v1354
      %vm1361 = vmor %vm1359, %vm1360
      %v1362 = vsel %vm1361, %v1354, %v1358
      %v1363 = vand.u32 2147483647, %v1322
      %vm1364 = vcmp.eq.f32.partialorder %v1363, 8.507059e+37
      %v1365 = vand.u32 %v1322, 2147483648
      %v1366 = vor.u32 1.1754944e-38, %v1365
      %v1367 = vsel %vm1364, %v1366, %v1362
      %v1368 = vmul.f32 1.0, %v1367
      %v1369 = vrcp.pop %v1323
      %v1370 = vmul.f32 %v1323, %v1369
      %v1371 = vsub.f32 1.0, %v1370
      %v1372 = vmul.f32 %v1369, %v1371
      %v1373 = vadd.f32 %v1369, %v1372
      %vm1374 = vweird.f32 %v1323
      %vm1375 = vweird.f32 %v1369
      %vm1376 = vmor %vm1374, %vm1375
      %v1377 = vsel %vm1376, %v1369, %v1373
      %v1378 = vand.u32 2147483647, %v1323
      %vm1379 = vcmp.eq.f32.partialorder %v1378, 8.507059e+37
      %v1380 = vand.u32 %v1323, 2147483648
      %v1381 = vor.u32 1.1754944e-38, %v1380
      %v1382 = vsel %vm1379, %v1381, %v1377
      %v1383 = vmul.f32 1.0, %v1382
      %v1384 = vmul.f32 %v1299, %v1338
      %v1385 = vmul.f32 %v1301, %v1353
      %v1386 = vmul.f32 %v1304, %v1368
      %v1387 = vmul.f32 %v1306, %v1383
      %v1388 = vpack.c.bf16 %v1385, %v1384
      %v1389 = vpack.c.bf16 %v1387, %v1386
      %v1390 = vld [vmem:[%s15] sm:$0xf]
      %v1391 = vld [vmem:[%s15 + $0x4] sm:$0xf]
      %v1392 = vld [vmem:[%s15 + $0x8] sm:$0xf]
      %v1393 = vld [vmem:[%s15 + $0xc] sm:$0xf]
      %v1394 = vld [vmem:[%s16] sm:$0x1]
      %v1396 = vperm.slane %v1394, 0
      %v1402 = vunpack.c.l.b16 %v1390
      %v1403 = vunpack.c.l.b16 %v1391
      %v1404 = vunpack.c.l.b16 %v1392
      %v1405 = vunpack.c.l.b16 %v1393
      %v1406 = vpack.c.b16 %v1403, %v1402
      %v1407 = vpack.c.b16 %v1405, %v1404
      %v1411 = vsel %vm631, %v1388, 0
      %v1414 = vsel %vm631, %v1389, 0
      %1416 = vmatpush.bf16.msra.mxu0 0
      %1417 = vmatpush.bf16.msra.mxu0 0
      %1418 = vmatpush.bf16.msra.mxu0 0
      %1419 = vmatpush.bf16.msra.mxu0 0
      %1420 = vmatpush.bf16.msra.mxu0 0
      %1421 = vmatpush.bf16.msra.mxu0 0
      %1422 = vmatpush.bf16.msra.mxu0 %v1407
      %1423 = vmatpush.bf16.msra.mxu0 %v1406
      %1424 = vmatmul.bf16.gmra.mxu0 %v1411
      %v1425 = vpop.f32.mrf.mxu0
      %v1426 = vadd.f32 %v1396, %v1425
      %v1427 = vpop.f32.mrf.mxu0
      %v1428 = vadd.f32 %v1396, %v1427
      %1429 = vmatmul.bf16.gmra.mxu0 %v1414
      %v1430 = vpop.f32.mrf.mxu0
      %v1431 = vadd.f32 %v1396, %v1430
      %v1432 = vpop.f32.mrf.mxu0
      %v1433 = vadd.f32 %v1396, %v1432
      %1434 = vdwg.mxu0
      %v1435 = vxor.u32 %v1426, 2147483648
      %v1436 = vxor.u32 %v1428, 2147483648
      %v1437 = vxor.u32 %v1431, 2147483648
      %v1438 = vxor.u32 %v1433, 2147483648
      %v1439 = vmul.f32 %v1435, 1.442695
      %v1440 = vpow.pop %v1439
      %v1441 = vmul.f32 %v1436, 1.442695
      %v1442 = vpow.pop %v1441
      %v1443 = vmul.f32 %v1437, 1.442695
      %v1444 = vpow.pop %v1443
      %v1445 = vmul.f32 %v1438, 1.442695
      %v1446 = vpow.pop %v1445
      %v1447 = vadd.f32 %v1440, 1.0
      %v1448 = vadd.f32 %v1442, 1.0
      %v1449 = vadd.f32 %v1444, 1.0
      %v1450 = vadd.f32 %v1446, 1.0
      %v1451 = vrcp.pop %v1447
      %v1452 = vmul.f32 %v1447, %v1451
      %v1453 = vsub.f32 1.0, %v1452
      %v1454 = vmul.f32 %v1451, %v1453
      %v1455 = vadd.f32 %v1451, %v1454
      %vm1456 = vweird.f32 %v1447
      %vm1457 = vweird.f32 %v1451
      %vm1458 = vmor %vm1456, %vm1457
      %v1459 = vsel %vm1458, %v1451, %v1455
      %v1460 = vand.u32 2147483647, %v1447
      %vm1461 = vcmp.eq.f32.partialorder %v1460, 8.507059e+37
      %v1462 = vand.u32 %v1447, 2147483648
      %v1463 = vor.u32 1.1754944e-38, %v1462
      %v1464 = vsel %vm1461, %v1463, %v1459
      %v1465 = vmul.f32 1.0, %v1464
      %v1466 = vrcp.pop %v1448
      %v1467 = vmul.f32 %v1448, %v1466
      %v1468 = vsub.f32 1.0, %v1467
      %v1469 = vmul.f32 %v1466, %v1468
      %v1470 = vadd.f32 %v1466, %v1469
      %vm1471 = vweird.f32 %v1448
      %vm1472 = vweird.f32 %v1466
      %vm1473 = vmor %vm1471, %vm1472
      %v1474 = vsel %vm1473, %v1466, %v1470
      %v1475 = vand.u32 2147483647, %v1448
      %vm1476 = vcmp.eq.f32.partialorder %v1475, 8.507059e+37
      %v1477 = vand.u32 %v1448, 2147483648
      %v1478 = vor.u32 1.1754944e-38, %v1477
      %v1479 = vsel %vm1476, %v1478, %v1474
      %v1480 = vmul.f32 1.0, %v1479
      %v1481 = vrcp.pop %v1449
      %v1482 = vmul.f32 %v1449, %v1481
      %v1483 = vsub.f32 1.0, %v1482
      %v1484 = vmul.f32 %v1481, %v1483
      %v1485 = vadd.f32 %v1481, %v1484
      %vm1486 = vweird.f32 %v1449
      %vm1487 = vweird.f32 %v1481
      %vm1488 = vmor %vm1486, %vm1487
      %v1489 = vsel %vm1488, %v1481, %v1485
      %v1490 = vand.u32 2147483647, %v1449
      %vm1491 = vcmp.eq.f32.partialorder %v1490, 8.507059e+37
      %v1492 = vand.u32 %v1449, 2147483648
      %v1493 = vor.u32 1.1754944e-38, %v1492
      %v1494 = vsel %vm1491, %v1493, %v1489
      %v1495 = vmul.f32 1.0, %v1494
      %v1496 = vrcp.pop %v1450
      %v1497 = vmul.f32 %v1450, %v1496
      %v1498 = vsub.f32 1.0, %v1497
      %v1499 = vmul.f32 %v1496, %v1498
      %v1500 = vadd.f32 %v1496, %v1499
      %vm1501 = vweird.f32 %v1450
      %vm1502 = vweird.f32 %v1496
      %vm1503 = vmor %vm1501, %vm1502
      %v1504 = vsel %vm1503, %v1496, %v1500
      %v1505 = vand.u32 2147483647, %v1450
      %vm1506 = vcmp.eq.f32.partialorder %v1505, 8.507059e+37
      %v1507 = vand.u32 %v1450, 2147483648
      %v1508 = vor.u32 1.1754944e-38, %v1507
      %v1509 = vsel %vm1506, %v1508, %v1504
      %v1510 = vmul.f32 1.0, %v1509
      %v1511 = vmul.f32 %v1426, %v1465
      %v1512 = vmul.f32 %v1428, %v1480
      %v1513 = vmul.f32 %v1431, %v1495
      %v1514 = vmul.f32 %v1433, %v1510
      %v1515 = vadd.f32 %v1257, %v1511
      %v1516 = vadd.f32 %v1258, %v1512
      %v1517 = vadd.f32 %v1259, %v1513
      %v1518 = vadd.f32 %v1260, %v1514
      %1519 = vst.msk [vmem:[%s594] sm:$0xff] %vm631, %v1515
      %1520 = vst.msk [vmem:[%s594 + $0x8] sm:$0xff] %vm631, %v1516
      %1521 = vst.msk [vmem:[%s594 + $0x10] sm:$0xff] %vm631, %v1517
      %1522 = vst.msk [vmem:[%s594 + $0x18] sm:$0xff] %vm631, %v1518
      %s1523 = smul.u32 4, %s28
      %p1524 = scmp.lt.s32.totalorder %s1523, 7
      %s1525 = scalar_select %p1524, %s1523, 7
      %s1526 = smul.addr %s1525, 8
      %s1527 = scalar_lea.vmem %s17, %s1526
      // Predicated region
      $region89: #{_lambda_.15} parent=87 // pred_check
        %p1528 = pneg %p418
      $region90: #{_lambda_.15} parent=87 // pred_check_branch
        %1530 = sbr.rel (%p1528) target = $region92
      $region91: #{_lambda_.15} parent=87 // pred_region
        %s1531 = smul.u32 4, %s28
      $region92: #{_lambda_.15} parent=87 // pred_fallthru
        _
    $region88: #{_lambda_.15} parent=5 // pred_fallthru
      _
    %p1532 = scmp.le.s32.totalorder 2, %s23
    // Predicated region
    $region93: #{_lambda_.15} parent=5 // pred_check
      %p1533 = pneg %p1532
    $region94: #{_lambda_.15} parent=5 // pred_check_branch
      %1535 = sbr.rel (%p1533) target = $region96
    $region95: #{_lambda_.15} parent=5 // pred_region
      %s1536 = ssub.s32 %s23, 2
      // Predicated region
      $region97: #{_lambda_.15} parent=95 // pred_check
        %p1537 = pneg %p424
      $region98: #{_lambda_.15} parent=95 // pred_check_branch
        %1539 = sbr.rel (%p1537) target = $region100
      $region99: #{_lambda_.15} parent=95 // pred_region
        %s1540 = smul.u32 4, %s29
        %p1541 = scmp.lt.s32.totalorder %s1540, 7
        %s1542 = scalar_select %p1541, %s1540, 7
        %s1543 = smul.addr %s1542, 8
        %s1544 = scalar_lea.vmem %s17, %s1543
      $region100: #{_lambda_.15} parent=95 // pred_fallthru
        _
    $region96: #{_lambda_.15} parent=5 // pred_fallthru
      _
  $region6: #{_lambda_.15} parent=0 // loop_footer
    %s27 = sadd.s32 1, %s23
  $region7: #{_lambda_.15} parent=0 // loop_footer_branch
    %22 = sbr.rel target = $region3
  $region8: #{_lambda_.15} parent=0 // loop_exit
    _

// kernel: _lambda_.21
$region0: #{_lambda_.21}
  #allocation0 [shape = 'u32[]', space=smem, size = 0x4, offset = 0x4, fixed_abs, tag = 'smem constant byte address 0x4 - core index']
  #allocation1 [shape = 'u32[72,128]{1,0:T(1,128)}', space=vmem, size = 0x9000, scoped, tag = 'internal scratch']
  %s0 = inlined_call_operand.vmem [shape: s32[1,16], index: 0, kind: input, shape index: {}]
  %s1 = inlined_call_operand.vmem [shape: f32[16,4], index: 1, kind: input, shape index: {}]
  %s2 = inlined_call_operand.vmem [shape: f32[8,4], index: 2, kind: output, shape index: {}]
  %s3 = sld [smem:[#allocation0]]
  $region22: #{_lambda_.21} parent=0
    _
  %s5 = ssub.s32 1, %s3
  %s6 = scalar_select 0, %s5, %s3
  // Predicated region
  $region2: #{_lambda_.21} parent=0 // pred_check
    _
  $region3: #{_lambda_.21} parent=0 // pred_check_branch
    %8 = sbr.rel (0) target = $region5
  $region4: #{_lambda_.21} parent=0 // pred_region
    _
  $region5: #{_lambda_.21} parent=0 // pred_fallthru
    _
  // Predicated region
  $region6: #{_lambda_.21} parent=0 // pred_check
    _
  $region7: #{_lambda_.21} parent=0 // pred_check_branch
    %10 = sbr.rel (0) target = $region9
  $region8: #{_lambda_.21} parent=0 // pred_region
    _
  $region9: #{_lambda_.21} parent=0 // pred_fallthru
    _
  %p12 = scmp.eq.s32.totalorder 0, 0
  // Predicated region
  $region10: #{_lambda_.21} parent=0 // pred_check
    %p13 = pneg %p12
  $region11: #{_lambda_.21} parent=0 // pred_check_branch
    %15 = sbr.rel (%p13) target = $region13
  $region12: #{_lambda_.21} parent=0 // pred_region
    %vm16 = vcmask 31744
    %17 = vst.msk [vmem:[%s2] sm:$0xff] %vm16, 0.0
  $region13: #{_lambda_.21} parent=0 // pred_fallthru
    _
  %s18 = smul.u32 0, 8
  %v19 = vlaneseq
  %v20 = vshrl.u32 %v19, 7
  %v21 = vstv %s18
  %v22 = vadd.s32 %v21, %v20
  %v23 = vld [vmem:[%s0] sm:$0x1]
  %v24 = vperm.slane %v23, 0
  %vm25 = vcmp.eq.s32.totalorder %v24, %v22
  %v26 = vsel %vm25, 1, 0
  %v27 = vcvt.s32.f32 %v26
  %v28 = vpack.c.bf16 %v27, %v27
  %v29 = vld [vmem:[%s2] sm:$0xff]
  %v30 = vld [vmem:[%s1] sm:$0xff]
  %v31 = vld [vmem:[%s1 + $0x8] sm:$0xff]
  %v32 = vpack.c.bf16 %v31, %v30
  %vm33 = vcmask 130048
  %v35 = vsel %vm33, %v28, 0
  %37 = vmatpush.bf16.msra.mxu0 0
  %38 = vmatpush.bf16.msra.mxu0 0
  %39 = vmatpush.bf16.msra.mxu0 0
  %40 = vmatpush.bf16.msra.mxu0 0
  %41 = vmatpush.bf16.msra.mxu0 0
  %42 = vmatpush.bf16.msra.mxu0 0
  %43 = vmatpush.bf16.msra.mxu0 0
  %44 = vmatpush.bf16.msra.mxu0 %v32
  %45 = vmatmul.bf16.gmra.mxu0 %v35
  %v46 = vpop.f32.mrf.mxu0
  %v47 = vadd.f32 0.0, %v46
  %v48 = vpop.f32.mrf.mxu0
  %49 = vdwg.mxu0
  %v50 = vadd.f32 %v29, %v47
  %vm51 = vcmask 31744
  %52 = vst.msk [vmem:[%s2] sm:$0xff] %vm51, %v50
  // Predicated region
  $region14: #{_lambda_.21} parent=0 // pred_check
    _
  $region15: #{_lambda_.21} parent=0 // pred_check_branch
    %54 = sbr.rel (0) target = $region17
  $region16: #{_lambda_.21} parent=0 // pred_region
    _
  $region17: #{_lambda_.21} parent=0 // pred_fallthru
    _
  // Predicated region
  $region18: #{_lambda_.21} parent=0 // pred_check
    _
  $region19: #{_lambda_.21} parent=0 // pred_check_branch
    %56 = sbr.rel (0) target = $region21
  $region20: #{_lambda_.21} parent=0 // pred_region
    _
  $region21: #{_lambda_.21} parent=0 // pred_fallthru
    _

// kernel: _lambda_.20
$region0: #{_lambda_.20}
  #allocation0 [shape = 'u32[]', space=smem, size = 0x4, offset = 0x4, fixed_abs, tag = 'smem constant byte address 0x4 - core index']
  #allocation1 [shape = 'u32[72,128]{1,0:T(1,128)}', space=vmem, size = 0x9000, scoped, tag = 'internal scratch']
  #allocation2 [shape = 'f32[8,32]{1,0:T(8,128)}', space=vmem, size = 0x1000, scoped, tag = 'scratch operand']
  #allocation3 [shape = 's32[1]{0}', space=sflag, size = 0x4, scoped, tag = 'scoped memory for _lambda_.20']
  #allocation4 [shape = 's32[1]{0:T(128)S(6)}', space=smem, size = 0x200, scoped, tag = 'prefetched SMEM operand 0']
  #allocation5 [shape = 's32[1]{0:T(128)S(6)}', space=smem, size = 0x200, scoped, tag = 'prefetched SMEM operand 1']
  %s0 = inlined_call_operand.<no memory space> [shape: s32[1], index: 0, kind: input, shape index: {}]
  %s1 = inlined_call_operand.<no memory space> [shape: s32[1], index: 1, kind: input, shape index: {}]
  %s2 = inlined_call_operand.vmem [shape: s32[1,64], index: 2, kind: input, shape index: {}]
  %s3 = inlined_call_operand.vmem [shape: f32[64,1], index: 3, kind: input, shape index: {}]
  %s4 = inlined_call_operand.vmem [shape: f32[64,32], index: 4, kind: input, shape index: {}]
  %s5 = inlined_call_operand.vmem [shape: f32[1,6], index: 5, kind: input, shape index: {}]
  %s6 = inlined_call_operand.vmem [shape: bf16[6,32], index: 6, kind: input, shape index: {}]
  %s7 = inlined_call_operand.vmem [shape: bf16[32,32], index: 7, kind: input, shape index: {}]
  %s8 = inlined_call_operand.vmem [shape: f32[1,32], index: 8, kind: input, shape index: {}, may-alias: {8,10,12}]
  %s9 = inlined_call_operand.vmem [shape: bf16[32,32], index: 9, kind: input, shape index: {}]
  %s10 = inlined_call_operand.vmem [shape: f32[1,32], index: 10, kind: input, shape index: {}, may-alias: {8,10,12}]
  %s11 = inlined_call_operand.vmem [shape: bf16[32,32], index: 11, kind: input, shape index: {}]
  %s12 = inlined_call_operand.vmem [shape: f32[1,32], index: 12, kind: input, shape index: {}, may-alias: {8,10,12}]
  %s13 = inlined_call_operand.vmem [shape: bf16[32,4], index: 13, kind: input, shape index: {}]
  %s14 = inlined_call_operand.vmem [shape: f32[16,4], index: 14, kind: output, shape index: {}]
  %s15 = sld [smem:[#allocation0]]
  $region93: #{_lambda_.20} parent=0
    _
  %s17 = ssub.s32 1, %s15
  %s18 = scalar_select 0, %s17, %s15
  %19 = sst [smem:[#allocation4]] %s0
  %20 = sst [smem:[#allocation5]] %s1
  loop: start=0, step=1, limit=4
  $region2: #{_lambda_.20} parent=0 // loop_pre_header
    _
  $region3: #{_lambda_.20} parent=0 // loop_header
    %s22 = sphi 0, %s26
    %p23 = scmp.ge.s32.totalorder %s22, 4
    %s29 = sphi 0, %s41
    %s30 = sphi 0, %s37
    %s31 = sphi 0, %s29
    %s32 = sphi 0, %s30
    %s33 = sphi 0, %s31
    %s34 = sphi 0, %s32
    %s44 = sphi 0, %s46
    %s47 = sphi 0, %s44
    %s48 = sphi 0, %s47
    %s64 = sphi 0, %s48
    %s70 = sphi 0, %s72
    %s73 = sphi 0, %s70
    %s74 = sphi 0, %s73
    %s90 = sphi 0, %s74
    %s96 = sphi 0, %s98
    %s99 = sphi 0, %s96
    %s100 = sphi 0, %s99
    %s116 = sphi 0, %s100
    %s120 = sphi 0, %s120
    %s122 = sphi 0, %s120
    %s123 = sphi 0, %s122
    %s137 = sphi 0, %s123
    %s141 = sphi 0, %s141
    %s143 = sphi 0, %s141
    %s144 = sphi 0, %s143
    %s158 = sphi 0, %s144
    %s162 = sphi 0, %s162
    %s164 = sphi 0, %s162
    %s165 = sphi 0, %s164
    %s179 = sphi 0, %s165
    %s183 = sphi 0, %s183
    %s185 = sphi 0, %s183
    %s186 = sphi 0, %s185
    %s200 = sphi 0, %s186
    %s204 = sphi 0, %s204
    %s206 = sphi 0, %s204
    %s207 = sphi 0, %s206
    %s221 = sphi 0, %s207
    %s225 = sphi 0, %s225
    %s227 = sphi 0, %s225
    %s228 = sphi 0, %s227
    %s242 = sphi 0, %s228
    %s246 = sphi 0, %s246
    %s248 = sphi 0, %s246
    %s249 = sphi 0, %s248
    %s263 = sphi 0, %s249
    %s267 = sphi 0, %s267
    %s269 = sphi 0, %s267
    %s270 = sphi 0, %s269
    %s284 = sphi 0, %s270
    %s288 = sphi 0, %s288
    %s290 = sphi 0, %s288
    %s291 = sphi 0, %s290
    %s305 = sphi 0, %s291
    %s311 = sphi 0, %s313
    %s314 = sphi 0, %s311
    %s315 = sphi 0, %s314
    %s331 = sphi 0, %s315
  $region4: #{_lambda_.20} parent=0 // loop_header_branch
    %25 = sbr.rel (%p23) target = $region8
  $region5: #{_lambda_.20} parent=0 // loop_body
    %s27 = ssub.s32 %s22, 1
    %s28 = ssub.s32 %s22, 2
    %s35 = sadd.s32 1, %s30
    %p36 = scmp.ge.s32.totalorder %s35, 1
    %s37 = scalar_select %p36, 0, %s35
    %s38 = sadd.s32 1, %s29
    %s39 = scalar_select %p36, %s38, %s29
    %p40 = scmp.ge.s32.totalorder %s39, 2
    %s41 = scalar_select %p40, 0, %s39
    %s42 = ssub.s32 %s30, %s37
    %p43 = scmp.eq.s32.totalorder %s42, 0
    %s45 = sadd.s32 %s44, 1
    %s46 = scalar_select %p43, %s44, %s45
    %p49 = pneg %p43
    %p50 = scmp.eq.s32.totalorder %s22, 1
    %p51 = por %p49, %p50
    %p52 = scmp.ne.s32.totalorder %s44, %s47
    %p53 = scmp.eq.s32.totalorder %s22, 0
    %p54 = por %p52, %p53
    %p55 = scmp.ne.s32.totalorder %s44, %s47
    %p56 = scmp.eq.s32.totalorder %s27, 1
    %p57 = por %p55, %p56
    %p58 = scmp.ne.s32.totalorder %s47, %s48
    %p59 = scmp.eq.s32.totalorder %s27, 0
    %p60 = por %p58, %p59
    %p61 = scmp.ne.s32.totalorder %s47, %s48
    %p62 = scmp.eq.s32.totalorder %s28, 1
    %p63 = por %p61, %p62
    %p65 = scmp.ne.s32.totalorder %s48, %s64
    %p66 = scmp.eq.s32.totalorder %s28, 0
    %p67 = por %p65, %p66
    %s68 = ssub.s32 %s30, %s37
    %p69 = scmp.eq.s32.totalorder %s68, 0
    %s71 = sadd.s32 %s70, 1
    %s72 = scalar_select %p69, %s70, %s71
    %p75 = pneg %p69
    %p76 = scmp.eq.s32.totalorder %s22, 1
    %p77 = por %p75, %p76
    %p78 = scmp.ne.s32.totalorder %s70, %s73
    %p79 = scmp.eq.s32.totalorder %s22, 0
    %p80 = por %p78, %p79
    %p81 = scmp.ne.s32.totalorder %s70, %s73
    %p82 = scmp.eq.s32.totalorder %s27, 1
    %p83 = por %p81, %p82
    %p84 = scmp.ne.s32.totalorder %s73, %s74
    %p85 = scmp.eq.s32.totalorder %s27, 0
    %p86 = por %p84, %p85
    %p87 = scmp.ne.s32.totalorder %s73, %s74
    %p88 = scmp.eq.s32.totalorder %s28, 1
    %p89 = por %p87, %p88
    %p91 = scmp.ne.s32.totalorder %s74, %s90
    %p92 = scmp.eq.s32.totalorder %s28, 0
    %p93 = por %p91, %p92
    %s94 = ssub.s32 %s30, %s37
    %p95 = scmp.eq.s32.totalorder %s94, 0
    %s97 = sadd.s32 %s96, 1
    %s98 = scalar_select %p95, %s96, %s97
    %p101 = pneg %p95
    %p102 = scmp.eq.s32.totalorder %s22, 1
    %p103 = por %p101, %p102
    %p104 = scmp.ne.s32.totalorder %s96, %s99
    %p105 = scmp.eq.s32.totalorder %s22, 0
    %p106 = por %p104, %p105
    %p107 = scmp.ne.s32.totalorder %s96, %s99
    %p108 = scmp.eq.s32.totalorder %s27, 1
    %p109 = por %p107, %p108
    %p110 = scmp.ne.s32.totalorder %s99, %s100
    %p111 = scmp.eq.s32.totalorder %s27, 0
    %p112 = por %p110, %p111
    %p113 = scmp.ne.s32.totalorder %s99, %s100
    %p114 = scmp.eq.s32.totalorder %s28, 1
    %p115 = por %p113, %p114
    %p117 = scmp.ne.s32.totalorder %s100, %s116
    %p118 = scmp.eq.s32.totalorder %s28, 0
    %p119 = por %p117, %p118
    %s121 = sadd.s32 %s120, 1
    %p124 = scmp.eq.s32.totalorder %s22, 1
    %p125 = scmp.ne.s32.totalorder %s120, %s122
    %p126 = scmp.eq.s32.totalorder %s22, 0
    %p127 = por %p125, %p126
    %p128 = scmp.ne.s32.totalorder %s120, %s122
    %p129 = scmp.eq.s32.totalorder %s27, 1
    %p130 = por %p128, %p129
    %p131 = scmp.ne.s32.totalorder %s122, %s123
    %p132 = scmp.eq.s32.totalorder %s27, 0
    %p133 = por %p131, %p132
    %p134 = scmp.ne.s32.totalorder %s122, %s123
    %p135 = scmp.eq.s32.totalorder %s28, 1
    %p136 = por %p134, %p135
    %p138 = scmp.ne.s32.totalorder %s123, %s137
    %p139 = scmp.eq.s32.totalorder %s28, 0
    %p140 = por %p138, %p139
    %s142 = sadd.s32 %s141, 1
    %p145 = scmp.eq.s32.totalorder %s22, 1
    %p146 = scmp.ne.s32.totalorder %s141, %s143
    %p147 = scmp.eq.s32.totalorder %s22, 0
    %p148 = por %p146, %p147
    %p149 = scmp.ne.s32.totalorder %s141, %s143
    %p150 = scmp.eq.s32.totalorder %s27, 1
    %p151 = por %p149, %p150
    %p152 = scmp.ne.s32.totalorder %s143, %s144
    %p153 = scmp.eq.s32.totalorder %s27, 0
    %p154 = por %p152, %p153
    %p155 = scmp.ne.s32.totalorder %s143, %s144
    %p156 = scmp.eq.s32.totalorder %s28, 1
    %p157 = por %p155, %p156
    %p159 = scmp.ne.s32.totalorder %s144, %s158
    %p160 = scmp.eq.s32.totalorder %s28, 0
    %p161 = por %p159, %p160
    %s163 = sadd.s32 %s162, 1
    %p166 = scmp.eq.s32.totalorder %s22, 1
    %p167 = scmp.ne.s32.totalorder %s162, %s164
    %p168 = scmp.eq.s32.totalorder %s22, 0
    %p169 = por %p167, %p168
    %p170 = scmp.ne.s32.totalorder %s162, %s164
    %p171 = scmp.eq.s32.totalorder %s27, 1
    %p172 = por %p170, %p171
    %p173 = scmp.ne.s32.totalorder %s164, %s165
    %p174 = scmp.eq.s32.totalorder %s27, 0
    %p175 = por %p173, %p174
    %p176 = scmp.ne.s32.totalorder %s164, %s165
    %p177 = scmp.eq.s32.totalorder %s28, 1
    %p178 = por %p176, %p177
    %p180 = scmp.ne.s32.totalorder %s165, %s179
    %p181 = scmp.eq.s32.totalorder %s28, 0
    %p182 = por %p180, %p181
    %s184 = sadd.s32 %s183, 1
    %p187 = scmp.eq.s32.totalorder %s22, 1
    %p188 = scmp.ne.s32.totalorder %s183, %s185
    %p189 = scmp.eq.s32.totalorder %s22, 0
    %p190 = por %p188, %p189
    %p191 = scmp.ne.s32.totalorder %s183, %s185
    %p192 = scmp.eq.s32.totalorder %s27, 1
    %p193 = por %p191, %p192
    %p194 = scmp.ne.s32.totalorder %s185, %s186
    %p195 = scmp.eq.s32.totalorder %s27, 0
    %p196 = por %p194, %p195
    %p197 = scmp.ne.s32.totalorder %s185, %s186
    %p198 = scmp.eq.s32.totalorder %s28, 1
    %p199 = por %p197, %p198
    %p201 = scmp.ne.s32.totalorder %s186, %s200
    %p202 = scmp.eq.s32.totalorder %s28, 0
    %p203 = por %p201, %p202
    %s205 = sadd.s32 %s204, 1
    %p208 = scmp.eq.s32.totalorder %s22, 1
    %p209 = scmp.ne.s32.totalorder %s204, %s206
    %p210 = scmp.eq.s32.totalorder %s22, 0
    %p211 = por %p209, %p210
    %p212 = scmp.ne.s32.totalorder %s204, %s206
    %p213 = scmp.eq.s32.totalorder %s27, 1
    %p214 = por %p212, %p213
    %p215 = scmp.ne.s32.totalorder %s206, %s207
    %p216 = scmp.eq.s32.totalorder %s27, 0
    %p217 = por %p215, %p216
    %p218 = scmp.ne.s32.totalorder %s206, %s207
    %p219 = scmp.eq.s32.totalorder %s28, 1
    %p220 = por %p218, %p219
    %p222 = scmp.ne.s32.totalorder %s207, %s221
    %p223 = scmp.eq.s32.totalorder %s28, 0
    %p224 = por %p222, %p223
    %s226 = sadd.s32 %s225, 1
    %p229 = scmp.eq.s32.totalorder %s22, 1
    %p230 = scmp.ne.s32.totalorder %s225, %s227
    %p231 = scmp.eq.s32.totalorder %s22, 0
    %p232 = por %p230, %p231
    %p233 = scmp.ne.s32.totalorder %s225, %s227
    %p234 = scmp.eq.s32.totalorder %s27, 1
    %p235 = por %p233, %p234
    %p236 = scmp.ne.s32.totalorder %s227, %s228
    %p237 = scmp.eq.s32.totalorder %s27, 0
    %p238 = por %p236, %p237
    %p239 = scmp.ne.s32.totalorder %s227, %s228
    %p240 = scmp.eq.s32.totalorder %s28, 1
    %p241 = por %p239, %p240
    %p243 = scmp.ne.s32.totalorder %s228, %s242
    %p244 = scmp.eq.s32.totalorder %s28, 0
    %p245 = por %p243, %p244
    %s247 = sadd.s32 %s246, 1
    %p250 = scmp.eq.s32.totalorder %s22, 1
    %p251 = scmp.ne.s32.totalorder %s246, %s248
    %p252 = scmp.eq.s32.totalorder %s22, 0
    %p253 = por %p251, %p252
    %p254 = scmp.ne.s32.totalorder %s246, %s248
    %p255 = scmp.eq.s32.totalorder %s27, 1
    %p256 = por %p254, %p255
    %p257 = scmp.ne.s32.totalorder %s248, %s249
    %p258 = scmp.eq.s32.totalorder %s27, 0
    %p259 = por %p257, %p258
    %p260 = scmp.ne.s32.totalorder %s248, %s249
    %p261 = scmp.eq.s32.totalorder %s28, 1
    %p262 = por %p260, %p261
    %p264 = scmp.ne.s32.totalorder %s249, %s263
    %p265 = scmp.eq.s32.totalorder %s28, 0
    %p266 = por %p264, %p265
    %s268 = sadd.s32 %s267, 1
    %p271 = scmp.eq.s32.totalorder %s22, 1
    %p272 = scmp.ne.s32.totalorder %s267, %s269
    %p273 = scmp.eq.s32.totalorder %s22, 0
    %p274 = por %p272, %p273
    %p275 = scmp.ne.s32.totalorder %s267, %s269
    %p276 = scmp.eq.s32.totalorder %s27, 1
    %p277 = por %p275, %p276
    %p278 = scmp.ne.s32.totalorder %s269, %s270
    %p279 = scmp.eq.s32.totalorder %s27, 0
    %p280 = por %p278, %p279
    %p281 = scmp.ne.s32.totalorder %s269, %s270
    %p282 = scmp.eq.s32.totalorder %s28, 1
    %p283 = por %p281, %p282
    %p285 = scmp.ne.s32.totalorder %s270, %s284
    %p286 = scmp.eq.s32.totalorder %s28, 0
    %p287 = por %p285, %p286
    %s289 = sadd.s32 %s288, 1
    %p292 = scmp.eq.s32.totalorder %s22, 1
    %p293 = scmp.ne.s32.totalorder %s288, %s290
    %p294 = scmp.eq.s32.totalorder %s22, 0
    %p295 = por %p293, %p294
    %p296 = scmp.ne.s32.totalorder %s288, %s290
    %p297 = scmp.eq.s32.totalorder %s27, 1
    %p298 = por %p296, %p297
    %p299 = scmp.ne.s32.totalorder %s290, %s291
    %p300 = scmp.eq.s32.totalorder %s27, 0
    %p301 = por %p299, %p300
    %p302 = scmp.ne.s32.totalorder %s290, %s291
    %p303 = scmp.eq.s32.totalorder %s28, 1
    %p304 = por %p302, %p303
    %p306 = scmp.ne.s32.totalorder %s291, %s305
    %p307 = scmp.eq.s32.totalorder %s28, 0
    %p308 = por %p306, %p307
    %s309 = ssub.s32 %s29, %s41
    %p310 = scmp.eq.s32.totalorder %s309, 0
    %s312 = sadd.s32 %s311, 1
    %s313 = scalar_select %p310, %s311, %s312
    %p316 = pneg %p310
    %p317 = scmp.eq.s32.totalorder %s22, 1
    %p318 = por %p316, %p317
    %p319 = scmp.ne.s32.totalorder %s311, %s314
    %p320 = scmp.eq.s32.totalorder %s22, 0
    %p321 = por %p319, %p320
    %p322 = scmp.ne.s32.totalorder %s311, %s314
    %p323 = scmp.eq.s32.totalorder %s27, 1
    %p324 = por %p322, %p323
    %p325 = scmp.ne.s32.totalorder %s314, %s315
    %p326 = scmp.eq.s32.totalorder %s27, 0
    %p327 = por %p325, %p326
    %p328 = scmp.ne.s32.totalorder %s314, %s315
    %p329 = scmp.eq.s32.totalorder %s28, 1
    %p330 = por %p328, %p329
    %p332 = scmp.ne.s32.totalorder %s315, %s331
    %p333 = scmp.eq.s32.totalorder %s28, 0
    %p334 = por %p332, %p333
    %p335 = scmp.le.s32.totalorder 1, %s22
    %p336 = scmp.lt.s32.totalorder %s22, 3
    %p337 = pnand %p335, %p336
    %p338 = pneg %p337
    // Predicated region
    $region9: #{_lambda_.20} parent=5 // pred_check
      _
    $region10: #{_lambda_.20} parent=5 // pred_check_branch
      %340 = sbr.rel (%p337) target = $region12
    $region11: #{_lambda_.20} parent=5 // pred_region
      %s341 = ssub.s32 %s22, 1
      // Predicated region
      $region13: #{_lambda_.20} parent=11 // pred_check
        %p342 = pneg %p60
      $region14: #{_lambda_.20} parent=11 // pred_check_branch
        %344 = sbr.rel (%p342) target = $region16
      $region15: #{_lambda_.20} parent=11 // pred_region
        %p345 = scmp.lt.s32.totalorder %s32, 0
        %s346 = scalar_select %p345, %s32, 0
        %s347 = scalar_lea.vmem %s2, %s346
      $region16: #{_lambda_.20} parent=11 // pred_fallthru
        _
      // Predicated region
      $region17: #{_lambda_.20} parent=11 // pred_check
        %p348 = pneg %p86
      $region18: #{_lambda_.20} parent=11 // pred_check_branch
        %350 = sbr.rel (%p348) target = $region20
      $region19: #{_lambda_.20} parent=11 // pred_region
        %s351 = smul.u32 8, %s32
        %p352 = scmp.lt.s32.totalorder %s351, 7
        %s353 = scalar_select %p352, %s351, 7
        %s354 = smul.addr %s353, 8
        %s355 = scalar_lea.vmem %s3, %s354
        %s356 = smul.u32 8, %s32
      $region20: #{_lambda_.20} parent=11 // pred_fallthru
        _
      // Predicated region
      $region21: #{_lambda_.20} parent=11 // pred_check
        %p357 = pneg %p112
      $region22: #{_lambda_.20} parent=11 // pred_check_branch
        %359 = sbr.rel (%p357) target = $region24
      $region23: #{_lambda_.20} parent=11 // pred_region
        %s360 = smul.u32 8, %s32
        %p361 = scmp.lt.s32.totalorder %s360, 7
        %s362 = scalar_select %p361, %s360, 7
        %s363 = smul.addr %s362, 8
        %s364 = scalar_lea.vmem %s4, %s363
        %s365 = smul.u32 8, %s32
      $region24: #{_lambda_.20} parent=11 // pred_fallthru
        _
      // Predicated region
      $region25: #{_lambda_.20} parent=11 // pred_check
        %p366 = pneg %p133
      $region26: #{_lambda_.20} parent=11 // pred_check_branch
        %368 = sbr.rel (%p366) target = $region28
      $region27: #{_lambda_.20} parent=11 // pred_region
        _
      $region28: #{_lambda_.20} parent=11 // pred_fallthru
        _
      // Predicated region
      $region29: #{_lambda_.20} parent=11 // pred_check
        %p369 = pneg %p154
      $region30: #{_lambda_.20} parent=11 // pred_check_branch
        %371 = sbr.rel (%p369) target = $region32
      $region31: #{_lambda_.20} parent=11 // pred_region
        _
      $region32: #{_lambda_.20} parent=11 // pred_fallthru
        _
      // Predicated region
      $region33: #{_lambda_.20} parent=11 // pred_check
        %p372 = pneg %p175
      $region34: #{_lambda_.20} parent=11 // pred_check_branch
        %374 = sbr.rel (%p372) target = $region36
      $region35: #{_lambda_.20} parent=11 // pred_region
        _
      $region36: #{_lambda_.20} parent=11 // pred_fallthru
        _
      // Predicated region
      $region37: #{_lambda_.20} parent=11 // pred_check
        %p375 = pneg %p196
      $region38: #{_lambda_.20} parent=11 // pred_check_branch
        %377 = sbr.rel (%p375) target = $region40
      $region39: #{_lambda_.20} parent=11 // pred_region
        _
      $region40: #{_lambda_.20} parent=11 // pred_fallthru
        _
      // Predicated region
      $region41: #{_lambda_.20} parent=11 // pred_check
        %p378 = pneg %p217
      $region42: #{_lambda_.20} parent=11 // pred_check_branch
        %380 = sbr.rel (%p378) target = $region44
      $region43: #{_lambda_.20} parent=11 // pred_region
        _
      $region44: #{_lambda_.20} parent=11 // pred_fallthru
        _
      // Predicated region
      $region45: #{_lambda_.20} parent=11 // pred_check
        %p381 = pneg %p238
      $region46: #{_lambda_.20} parent=11 // pred_check_branch
        %383 = sbr.rel (%p381) target = $region48
      $region47: #{_lambda_.20} parent=11 // pred_region
        _
      $region48: #{_lambda_.20} parent=11 // pred_fallthru
        _
      // Predicated region
      $region49: #{_lambda_.20} parent=11 // pred_check
        %p384 = pneg %p259
      $region50: #{_lambda_.20} parent=11 // pred_check_branch
        %386 = sbr.rel (%p384) target = $region52
      $region51: #{_lambda_.20} parent=11 // pred_region
        _
      $region52: #{_lambda_.20} parent=11 // pred_fallthru
        _
      // Predicated region
      $region53: #{_lambda_.20} parent=11 // pred_check
        %p387 = pneg %p280
      $region54: #{_lambda_.20} parent=11 // pred_check_branch
        %389 = sbr.rel (%p387) target = $region56
      $region55: #{_lambda_.20} parent=11 // pred_region
        _
      $region56: #{_lambda_.20} parent=11 // pred_fallthru
        _
      // Predicated region
      $region57: #{_lambda_.20} parent=11 // pred_check
        %p390 = pneg %p301
      $region58: #{_lambda_.20} parent=11 // pred_check_branch
        %392 = sbr.rel (%p390) target = $region60
      $region59: #{_lambda_.20} parent=11 // pred_region
        _
      $region60: #{_lambda_.20} parent=11 // pred_fallthru
        _
    $region12: #{_lambda_.20} parent=5 // pred_fallthru
      _
    %p393 = scmp.lt.s32.totalorder %s22, 2
    // Predicated region
    $region61: #{_lambda_.20} parent=5 // pred_check
      %p394 = pneg %p393
    $region62: #{_lambda_.20} parent=5 // pred_check_branch
      %396 = sbr.rel (%p394) target = $region64
    $region63: #{_lambda_.20} parent=5 // pred_region
      _
    $region64: #{_lambda_.20} parent=5 // pred_fallthru
      _
    %p397 = scmp.le.s32.totalorder 1, %s22
    %p398 = scmp.lt.s32.totalorder %s22, 3
    %p399 = pnand %p397, %p398
    %p400 = pneg %p399
    // Predicated region
    $region65: #{_lambda_.20} parent=5 // pred_check
      _
    $region66: #{_lambda_.20} parent=5 // pred_check_branch
      %402 = sbr.rel (%p399) target = $region68
    $region67: #{_lambda_.20} parent=5 // pred_region
      %s403 = ssub.s32 %s22, 1
      %p404 = scmp.lt.s32.totalorder %s32, 0
      %s405 = scalar_select %p404, %s32, 0
      %s406 = scalar_lea.vmem %s2, %s405
      %p407 = pneg %p60
      %p408 = pneg %p57
      %s409 = smul.u32 8, %s32
      %p410 = scmp.lt.s32.totalorder %s409, 7
      %s411 = scalar_select %p410, %s409, 7
      %s412 = smul.addr %s411, 8
      %s413 = scalar_lea.vmem %s3, %s412
      %p414 = pneg %p86
      %p415 = pneg %p83
      %s416 = smul.u32 8, %s32
      %p417 = scmp.lt.s32.totalorder %s416, 7
      %s418 = scalar_select %p417, %s416, 7
      %s419 = smul.addr %s418, 8
      %s420 = scalar_lea.vmem %s4, %s419
      %p421 = pneg %p112
      %p422 = pneg %p109
      %p423 = pneg %p133
      %p424 = pneg %p130
      %p425 = pneg %p154
      %p426 = pneg %p151
      %p427 = pneg %p175
      %p428 = pneg %p172
      %p429 = pneg %p196
      %p430 = pneg %p193
      %p431 = pneg %p217
      %p432 = pneg %p214
      %p433 = pneg %p238
      %p434 = pneg %p235
      %p435 = pneg %p259
      %p436 = pneg %p256
      %p437 = pneg %p280
      %p438 = pneg %p277
      %p439 = pneg %p301
      %p440 = pneg %p298
      %p441 = pneg %p327
      %p442 = pneg %p324
      %p443 = scmp.lt.s32.totalorder %s31, 1
      %s444 = scalar_select %p443, %s31, 1
      %s445 = smul.addr %s444, 8
      %s446 = scalar_lea.vmem %s14, %s445
      %p447 = scmp.lt.s32.totalorder %s32, 0
      %s448 = scalar_select %p447, %s32, 0
      %s449 = scalar_lea.vmem %s2, %s448
      %s450 = smul.u32 8, %s32
      %p451 = scmp.lt.s32.totalorder %s450, 7
      %s452 = scalar_select %p451, %s450, 7
      %s453 = smul.addr %s452, 8
      %s454 = scalar_lea.vmem %s3, %s453
      %s455 = smul.u32 8, %s32
      %s456 = smul.u32 8, %s32
      %p457 = scmp.lt.s32.totalorder %s456, 7
      %s458 = scalar_select %p457, %s456, 7
      %s459 = smul.addr %s458, 8
      %s460 = scalar_lea.vmem %s4, %s459
      %s461 = smul.u32 8, %s32
      %p462 = scmp.lt.s32.totalorder %s31, 1
      %s463 = scalar_select %p462, %s31, 1
      %s464 = smul.addr %s463, 8
      %s465 = scalar_lea.vmem %s14, %s464
      %p467 = scmp.eq.s32.totalorder %s32, 0
      // Predicated region
      $region69: #{_lambda_.20} parent=67 // pred_check
        %p468 = pneg %p467
      $region70: #{_lambda_.20} parent=67 // pred_check_branch
        %470 = sbr.rel (%p468) target = $region72
      $region71: #{_lambda_.20} parent=67 // pred_region
        %vm471 = vcmask 261120
        %472 = vst.msk [vmem:[#allocation2] sm:$0xff] %vm471, 0.0
      $region72: #{_lambda_.20} parent=67 // pred_fallthru
        _
      %s473 = smul.u32 %s31, 8
      %s474 = sld [smem:[#allocation5 + %s32]]
      %p475 = scmp.ge.s32.totalorder %s474, %s473
      %s476 = sld [smem:[#allocation4 + %s32]]
      %s477 = sadd.s32 %s473, 8
      %p478 = scmp.lt.s32.totalorder %s476, %s477
      %p479 = pnand %p475, %p478
      %p480 = pneg %p479
      // Predicated region
      $region73: #{_lambda_.20} parent=67 // pred_check
        _
      $region74: #{_lambda_.20} parent=67 // pred_check_branch
        %482 = sbr.rel (%p479) target = $region76
      $region75: #{_lambda_.20} parent=67 // pred_region
        %v483 = vld [vmem:[%s454] sm:$0xff]
        %v484 = vld [vmem:[%s454 + $0x8] sm:$0xff]
        %v485 = vld [vmem:[%s454 + $0x10] sm:$0xff]
        %v486 = vld [vmem:[%s454 + $0x18] sm:$0xff]
        %v487 = vld [vmem:[%s454 + $0x20] sm:$0xff]
        %v488 = vld [vmem:[%s454 + $0x28] sm:$0xff]
        %v489 = vld [vmem:[%s454 + $0x30] sm:$0xff]
        %v490 = vld [vmem:[%s454 + $0x38] sm:$0xff]
        %v491 = vmul.f32 %v483, 0.2
        %v492 = vmul.f32 %v484, 0.2
        %v493 = vmul.f32 %v485, 0.2
        %v494 = vmul.f32 %v486, 0.2
        %v495 = vmul.f32 %v487, 0.2
        %v496 = vmul.f32 %v488, 0.2
        %v497 = vmul.f32 %v489, 0.2
        %v498 = vmul.f32 %v490, 0.2
        %v499 = vrcp.pop %v491
        %v500 = vmul.f32 %v491, %v499
        %v501 = vsub.f32 1.0, %v500
        %v502 = vmul.f32 %v499, %v501
        %v503 = vadd.f32 %v499, %v502
        %vm504 = vweird.f32 %v491
        %vm505 = vweird.f32 %v499
        %vm506 = vmor %vm504, %vm505
        %v507 = vsel %vm506, %v499, %v503
        %v508 = vand.u32 2147483647, %v491
        %vm509 = vcmp.eq.f32.partialorder %v508, 8.507059e+37
        %v510 = vand.u32 %v491, 2147483648
        %v511 = vor.u32 1.1754944e-38, %v510
        %v512 = vsel %vm509, %v511, %v507
        %v513 = vmul.f32 1.0, %v512
        %v514 = vrcp.pop %v492
        %v515 = vmul.f32 %v492, %v514
        %v516 = vsub.f32 1.0, %v515
        %v517 = vmul.f32 %v514, %v516
        %v518 = vadd.f32 %v514, %v517
        %vm519 = vweird.f32 %v492
        %vm520 = vweird.f32 %v514
        %vm521 = vmor %vm519, %vm520
        %v522 = vsel %vm521, %v514, %v518
        %v523 = vand.u32 2147483647, %v492
        %vm524 = vcmp.eq.f32.partialorder %v523, 8.507059e+37
        %v525 = vand.u32 %v492, 2147483648
        %v526 = vor.u32 1.1754944e-38, %v525
        %v527 = vsel %vm524, %v526, %v522
        %v528 = vmul.f32 1.0, %v527
        %v529 = vrcp.pop %v493
        %v530 = vmul.f32 %v493, %v529
        %v531 = vsub.f32 1.0, %v530
        %v532 = vmul.f32 %v529, %v531
        %v533 = vadd.f32 %v529, %v532
        %vm534 = vweird.f32 %v493
        %vm535 = vweird.f32 %v529
        %vm536 = vmor %vm534, %vm535
        %v537 = vsel %vm536, %v529, %v533
        %v538 = vand.u32 2147483647, %v493
        %vm539 = vcmp.eq.f32.partialorder %v538, 8.507059e+37
        %v540 = vand.u32 %v493, 2147483648
        %v541 = vor.u32 1.1754944e-38, %v540
        %v542 = vsel %vm539, %v541, %v537
        %v543 = vmul.f32 1.0, %v542
        %v544 = vrcp.pop %v494
        %v545 = vmul.f32 %v494, %v544
        %v546 = vsub.f32 1.0, %v545
        %v547 = vmul.f32 %v544, %v546
        %v548 = vadd.f32 %v544, %v547
        %vm549 = vweird.f32 %v494
        %vm550 = vweird.f32 %v544
        %vm551 = vmor %vm549, %vm550
        %v552 = vsel %vm551, %v544, %v548
        %v553 = vand.u32 2147483647, %v494
        %vm554 = vcmp.eq.f32.partialorder %v553, 8.507059e+37
        %v555 = vand.u32 %v494, 2147483648
        %v556 = vor.u32 1.1754944e-38, %v555
        %v557 = vsel %vm554, %v556, %v552
        %v558 = vmul.f32 1.0, %v557
        %v559 = vrcp.pop %v495
        %v560 = vmul.f32 %v495, %v559
        %v561 = vsub.f32 1.0, %v560
        %v562 = vmul.f32 %v559, %v561
        %v563 = vadd.f32 %v559, %v562
        %vm564 = vweird.f32 %v495
        %vm565 = vweird.f32 %v559
        %vm566 = vmor %vm564, %vm565
        %v567 = vsel %vm566, %v559, %v563
        %v568 = vand.u32 2147483647, %v495
        %vm569 = vcmp.eq.f32.partialorder %v568, 8.507059e+37
        %v570 = vand.u32 %v495, 2147483648
        %v571 = vor.u32 1.1754944e-38, %v570
        %v572 = vsel %vm569, %v571, %v567
        %v573 = vmul.f32 1.0, %v572
        %v574 = vrcp.pop %v496
        %v575 = vmul.f32 %v496, %v574
        %v576 = vsub.f32 1.0, %v575
        %v577 = vmul.f32 %v574, %v576
        %v578 = vadd.f32 %v574, %v577
        %vm579 = vweird.f32 %v496
        %vm580 = vweird.f32 %v574
        %vm581 = vmor %vm579, %vm580
        %v582 = vsel %vm581, %v574, %v578
        %v583 = vand.u32 2147483647, %v496
        %vm584 = vcmp.eq.f32.partialorder %v583, 8.507059e+37
        %v585 = vand.u32 %v496, 2147483648
        %v586 = vor.u32 1.1754944e-38, %v585
        %v587 = vsel %vm584, %v586, %v582
        %v588 = vmul.f32 1.0, %v587
        %v589 = vrcp.pop %v497
        %v590 = vmul.f32 %v497, %v589
        %v591 = vsub.f32 1.0, %v590
        %v592 = vmul.f32 %v589, %v591
        %v593 = vadd.f32 %v589, %v592
        %vm594 = vweird.f32 %v497
        %vm595 = vweird.f32 %v589
        %vm596 = vmor %vm594, %vm595
        %v597 = vsel %vm596, %v589, %v593
        %v598 = vand.u32 2147483647, %v497
        %vm599 = vcmp.eq.f32.partialorder %v598, 8.507059e+37
        %v600 = vand.u32 %v497, 2147483648
        %v601 = vor.u32 1.1754944e-38, %v600
        %v602 = vsel %vm599, %v601, %v597
        %v603 = vmul.f32 1.0, %v602
        %v604 = vrcp.pop %v498
        %v605 = vmul.f32 %v498, %v604
        %v606 = vsub.f32 1.0, %v605
        %v607 = vmul.f32 %v604, %v606
        %v608 = vadd.f32 %v604, %v607
        %vm609 = vweird.f32 %v498
        %vm610 = vweird.f32 %v604
        %vm611 = vmor %vm609, %vm610
        %v612 = vsel %vm611, %v604, %v608
        %v613 = vand.u32 2147483647, %v498
        %vm614 = vcmp.eq.f32.partialorder %v613, 8.507059e+37
        %v615 = vand.u32 %v498, 2147483648
        %v616 = vor.u32 1.1754944e-38, %v615
        %v617 = vsel %vm614, %v616, %v612
        %v618 = vmul.f32 1.0, %v617
        %v619 = vmul.f32 %v491, %v491
        %v620 = vmul.f32 %v492, %v492
        %v621 = vmul.f32 %v493, %v493
        %v622 = vmul.f32 %v494, %v494
        %v623 = vmul.f32 %v495, %v495
        %v624 = vmul.f32 %v496, %v496
        %v625 = vmul.f32 %v497, %v497
        %v626 = vmul.f32 %v498, %v498
        %v627 = vmul.f32 %v619, %v619
        %v628 = vmul.f32 %v620, %v620
        %v629 = vmul.f32 %v621, %v621
        %v630 = vmul.f32 %v622, %v622
        %v631 = vmul.f32 %v623, %v623
        %v632 = vmul.f32 %v624, %v624
        %v633 = vmul.f32 %v625, %v625
        %v634 = vmul.f32 %v626, %v626
        %v635 = vmul.f32 %v491, %v627
        %v636 = vmul.f32 %v492, %v628
        %v637 = vmul.f32 %v493, %v629
        %v638 = vmul.f32 %v494, %v630
        %v639 = vmul.f32 %v495, %v631
        %v640 = vmul.f32 %v496, %v632
        %v641 = vmul.f32 %v497, %v633
        %v642 = vmul.f32 %v498, %v634
        %v643 = vmul.f32 %v635, -28.0
        %v644 = vmul.f32 %v636, -28.0
        %v645 = vmul.f32 %v637, -28.0
        %v646 = vmul.f32 %v638, -28.0
        %v647 = vmul.f32 %v639, -28.0
        %v648 = vmul.f32 %v640, -28.0
        %v649 = vmul.f32 %v641, -28.0
        %v650 = vmul.f32 %v642, -28.0
        %v651 = vadd.f32 %v513, %v643
        %v652 = vadd.f32 %v528, %v644
        %v653 = vadd.f32 %v543, %v645
        %v654 = vadd.f32 %v558, %v646
        %v655 = vadd.f32 %v573, %v647
        %v656 = vadd.f32 %v588, %v648
        %v657 = vadd.f32 %v603, %v649
        %v658 = vadd.f32 %v618, %v650
        %v659 = vmul.f32 %v619, %v627
        %v660 = vmul.f32 %v620, %v628
        %v661 = vmul.f32 %v621, %v629
        %v662 = vmul.f32 %v622, %v630
        %v663 = vmul.f32 %v623, %v631
        %v664 = vmul.f32 %v624, %v632
        %v665 = vmul.f32 %v625, %v633
        %v666 = vmul.f32 %v626, %v634
        %v667 = vmul.f32 %v659, 48.0
        %v668 = vmul.f32 %v660, 48.0
        %v669 = vmul.f32 %v661, 48.0
        %v670 = vmul.f32 %v662, 48.0
        %v671 = vmul.f32 %v663, 48.0
        %v672 = vmul.f32 %v664, 48.0
        %v673 = vmul.f32 %v665, 48.0
        %v674 = vmul.f32 %v666, 48.0
        %v675 = vadd.f32 %v651, %v667
        %v676 = vadd.f32 %v652, %v668
        %v677 = vadd.f32 %v653, %v669
        %v678 = vadd.f32 %v654, %v670
        %v679 = vadd.f32 %v655, %v671
        %v680 = vadd.f32 %v656, %v672
        %v681 = vadd.f32 %v657, %v673
        %v682 = vadd.f32 %v658, %v674
        %v683 = vmul.f32 %v491, %v619
        %v684 = vmul.f32 %v492, %v620
        %v685 = vmul.f32 %v493, %v621
        %v686 = vmul.f32 %v494, %v622
        %v687 = vmul.f32 %v495, %v623
        %v688 = vmul.f32 %v496, %v624
        %v689 = vmul.f32 %v497, %v625
        %v690 = vmul.f32 %v498, %v626
        %v691 = vmul.f32 %v683, %v627
        %v692 = vmul.f32 %v684, %v628
        %v693 = vmul.f32 %v685, %v629
        %v694 = vmul.f32 %v686, %v630
        %v695 = vmul.f32 %v687, %v631
        %v696 = vmul.f32 %v688, %v632
        %v697 = vmul.f32 %v689, %v633
        %v698 = vmul.f32 %v690, %v634
        %v699 = vmul.f32 %v691, -21.0
        %v700 = vmul.f32 %v692, -21.0
        %v701 = vmul.f32 %v693, -21.0
        %v702 = vmul.f32 %v694, -21.0
        %v703 = vmul.f32 %v695, -21.0
        %v704 = vmul.f32 %v696, -21.0
        %v705 = vmul.f32 %v697, -21.0
        %v706 = vmul.f32 %v698, -21.0
        %v707 = vadd.f32 %v675, %v699
        %v708 = vadd.f32 %v676, %v700
        %v709 = vadd.f32 %v677, %v701
        %v710 = vadd.f32 %v678, %v702
        %v711 = vadd.f32 %v679, %v703
        %v712 = vadd.f32 %v680, %v704
        %v713 = vadd.f32 %v681, %v705
        %v714 = vadd.f32 %v682, %v706
        %vm715 = vcmp.lt.f32.partialorder %v491, 1.0
        %vm716 = vcmp.lt.f32.partialorder %v492, 1.0
        %vm717 = vcmp.lt.f32.partialorder %v493, 1.0
        %vm718 = vcmp.lt.f32.partialorder %v494, 1.0
        %vm719 = vcmp.lt.f32.partialorder %v495, 1.0
        %vm720 = vcmp.lt.f32.partialorder %v496, 1.0
        %vm721 = vcmp.lt.f32.partialorder %v497, 1.0
        %vm722 = vcmp.lt.f32.partialorder %v498, 1.0
        %v723 = vsel %vm715, %v707, 0.0
        %v724 = vsel %vm716, %v708, 0.0
        %v725 = vsel %vm717, %v709, 0.0
        %v726 = vsel %vm718, %v710, 0.0
        %v727 = vsel %vm719, %v711, 0.0
        %v728 = vsel %vm720, %v712, 0.0
        %v729 = vsel %vm721, %v713, 0.0
        %v730 = vsel %vm722, %v714, 0.0
        %v731 = vld [vmem:[%s5] sm:$0x1]
        %v733 = vperm.slane %v731, 0
        %736 = vset.pattern.permute.xlu0 0
        %737 = vperm.xlu0 %736, %v491
        %v738 = vpop.permute.xlu0 %737
        %741 = vset.pattern.permute.xlu0 0
        %742 = vperm.xlu0 %741, %v492
        %v743 = vpop.permute.xlu0 %742
        %746 = vset.pattern.permute.xlu0 0
        %747 = vperm.xlu0 %746, %v493
        %v748 = vpop.permute.xlu0 %747
        %751 = vset.pattern.permute.xlu0 0
        %752 = vperm.xlu0 %751, %v494
        %v753 = vpop.permute.xlu0 %752
        %756 = vset.pattern.permute.xlu0 0
        %757 = vperm.xlu0 %756, %v495
        %v758 = vpop.permute.xlu0 %757
        %761 = vset.pattern.permute.xlu0 0
        %762 = vperm.xlu0 %761, %v496
        %v763 = vpop.permute.xlu0 %762
        %766 = vset.pattern.permute.xlu0 0
        %767 = vperm.xlu0 %766, %v497
        %v768 = vpop.permute.xlu0 %767
        %771 = vset.pattern.permute.xlu0 0
        %772 = vperm.xlu0 %771, %v498
        %v773 = vpop.permute.xlu0 %772
        %v775 = vmul.f32 %v733, %v738
        %v776 = vmul.f32 %v733, %v743
        %v777 = vmul.f32 %v733, %v748
        %v778 = vmul.f32 %v733, %v753
        %v779 = vmul.f32 %v733, %v758
        %v780 = vmul.f32 %v733, %v763
        %v781 = vmul.f32 %v733, %v768
        %v782 = vmul.f32 %v733, %v773
        %v783 = vand.u32 2147483647, %v775
        %vm784 = vcmp.le.f32.partialorder %v783, 0.7853982
        %vm785 = vcmp.lt.s32.totalorder %v775, 0
        %v786 = vand.u32 %v775, 2139095040
        %v787 = vshrl.u32 %v786, 23
        %v788 = vsub.s32 %v787, 127
        %v789 = vand.u32 2147483647, %v775
        %v790 = vand.u32 %v789, 8388607
        %v791 = vor.u32 %v790, 8388608
        %v792 = vsub.s32 0, %v791
        %v793 = vadd.s32 %v788, 1
        %vm794 = vcmp.gt.s32.totalorder %v793, 0
        %v795 = vsel %vm794, %v793, 0
        %v796 = vshrl.u32 %v795, 5
        %v797 = vand.u32 %v795, 31
        %v798 = vsub.s32 32, %v797
        %v799 = vshrl.u32 683565275, %v798
        %v800 = vshll.u32 683565275, %v797
        %v801 = vshrl.u32 2475754826, %v798
        %v802 = vor.u32 %v800, %v801
        %v803 = vshll.u32 2475754826, %v797
        %v804 = vshrl.u32 2131351028, %v798
        %v805 = vor.u32 %v803, %v804
        %v806 = vshll.u32 2131351028, %v797
        %v807 = vshrl.u32 2102212464, %v798
        %v808 = vor.u32 %v806, %v807
        %v809 = vshll.u32 2102212464, %v797
        %v810 = vshrl.u32 920167782, %v798
        %v811 = vor.u32 %v809, %v810
        %v812 = vshll.u32 920167782, %v797
        %v813 = vshrl.u32 1326507024, %v798
        %v814 = vor.u32 %v812, %v813
        %vm815 = vcmp.lt.s32.totalorder %v796, 1
        %vm816 = vcmp.lt.s32.totalorder %v796, 2
        %vm817 = vcmp.lt.s32.totalorder %v796, 3
        %vm818 = vcmp.lt.s32.totalorder %v796, 4
        %v819 = vsel %vm815, %v799, %v802
        %v820 = vsel %vm818, %v808, 2102212464
        %v821 = vsel %vm817, %v805, %v820
        %v822 = vsel %vm816, %v819, %v821
        %v823 = vsel %vm815, %v802, %v805
        %v824 = vsel %vm818, %v811, 920167782
        %v825 = vsel %vm817, %v808, %v824
        %v826 = vsel %vm816, %v823, %v825
        %v827 = vsel %vm815, %v805, %v808
        %v828 = vsel %vm818, %v814, 1326507024
        %v829 = vsel %vm817, %v811, %v828
        %v830 = vsel %vm816, %v827, %v829
        %v831 = vshll.u32 %v791, 8
        %v832 = vand.u32 %v831, 65535
        %v833 = vshrl.u32 %v831, 16
        %v834 = vand.u32 %v830, 65535
        %v835 = vshrl.u32 %v830, 16
        %v836 = vmul.u32 %v832, %v834
        %v837 = vmul.u32 %v832, %v835
        %v838 = vmul.u32 %v833, %v834
        %v839 = vmul.u32 %v833, %v835
        %v840 = vshll.u32 %v837, 16
        %v841 = vshrl.u32 %v837, 16
        %v842 = vshll.u32 %v838, 16
        %v843 = vshrl.u32 %v838, 16
        %vm844 = vc.u32 %v836, %v840
        %v845 = vsel %vm844, 1, 0
        %v846 = vadd.s32 %v836, %v840
        %v847 = vadd.s32 %v839, %v845
        %vm848 = vc.u32 %v846, %v842
        %v849 = vsel %vm848, 1, 0
        %v850 = vadd.s32 %v846, %v842
        %v851 = vadd.s32 %v847, %v849
        %v852 = vadd.s32 %v851, %v841
        %v853 = vadd.s32 %v852, %v843
        %v854 = vand.u32 %v831, 65535
        %v855 = vshrl.u32 %v831, 16
        %v856 = vand.u32 %v826, 65535
        %v857 = vshrl.u32 %v826, 16
        %v858 = vmul.u32 %v854, %v856
        %v859 = vmul.u32 %v854, %v857
        %v860 = vmul.u32 %v855, %v856
        %v861 = vmul.u32 %v855, %v857
        %v862 = vshll.u32 %v859, 16
        %v863 = vshrl.u32 %v859, 16
        %v864 = vshll.u32 %v860, 16
        %v865 = vshrl.u32 %v860, 16
        %vm866 = vc.u32 %v858, %v862
        %v867 = vsel %vm866, 1, 0
        %v868 = vadd.s32 %v858, %v862
        %v869 = vadd.s32 %v861, %v867
        %vm870 = vc.u32 %v868, %v864
        %v871 = vsel %vm870, 1, 0
        %v872 = vadd.s32 %v868, %v864
        %v873 = vadd.s32 %v869, %v871
        %v874 = vadd.s32 %v873, %v863
        %v875 = vadd.s32 %v874, %v865
        %v876 = vmul.u32 %v831, %v822
        %v877 = vadd.s32 %v853, %v872
        %vm878 = vc.u32 %v853, %v872
        %v879 = vadd.s32 %v875, 1
        %v880 = vsel %vm878, %v879, %v875
        %v881 = vadd.s32 %v876, %v880
        %v882 = vadd.s32 %v881, 536870912
        %v883 = vshrl.u32 %v882, 30
        %v884 = vshll.u32 %v883, 30
        %v885 = vsub.s32 %v881, %v884
        %vm886 = vcmp.lt.s32.totalorder %v885, 0
        %v887 = vsub.s32 0, %v885
        %v888 = vsel %vm886, %v887, %v885
        %v889 = vclz %v888
        %v890 = vsub.s32 %v889, 2
        %vm891 = vcmp.gt.s32.totalorder 0, %v890
        %v892 = vsel %vm891, 0, %v890
        %v893 = vsub.s32 32, %v892
        %v894 = vshll.u32 %v885, %v892
        %v895 = vshrl.u32 %v877, %v893
        %v896 = vor.u32 %v894, %v895
        %v897 = vsub.s32 4294967266, %v892
        %v898 = vadd.s32 %v897, 127
        %v899 = vshll.u32 %v898, 23
        %v900 = vor.u32 4788187, %v899
        %v901 = vand.u32 2147483647, %v900
        %v903 = vcvt.s32.f32 %v896
        %v904 = vmul.f32 %v903, %v901
        %v905 = vxor.u32 %v904, 2147483648
        %v906 = vsel %vm785, %v905, %v904
        %v907 = vsub.s32 4, %v883
        %v908 = vsel %vm785, %v907, %v883
        %v909 = vsel %vm784, %v775, %v906
        %v910 = vsel %vm784, 0, %v908
        %v911 = vmul.f32 %v909, %v909
        %v912 = vmul.f32 %v911, -0.001358992
        %v913 = vadd.f32 %v912, 0.041655596
        %v914 = vmul.f32 %v911, %v913
        %v915 = vadd.f32 %v914, -0.4999988
        %v916 = vmul.f32 %v911, %v915
        %v917 = vadd.f32 1.0, %v916
        %v918 = vmul.f32 %v909, %v909
        %v919 = vmul.f32 %v918, -0.00019511016
        %v920 = vadd.f32 %v919, 0.008332121
        %v921 = vmul.f32 %v918, %v920
        %v922 = vadd.f32 %v921, -0.16666654
        %v923 = vmul.f32 %v918, %v922
        %v924 = vadd.f32 %v923, 1.0
        %v925 = vmul.f32 %v924, %v909
        %vm926 = vweird.f32 %v775
        %v927 = vadd.s32 %v910, 3
        %v928 = vand.u32 %v927, 3
        %vm929 = vcmp.lt.s32.totalorder %v928, 2
        %vm930 = vcmp.eq.s32.totalorder %v928, 0
        %v931 = vxor.u32 %v925, 2147483648
        %v932 = vsel %vm930, %v917, %v931
        %vm933 = vcmp.eq.s32.totalorder %v928, 2
        %v934 = vxor.u32 %v917, 2147483648
        %v935 = vsel %vm933, %v934, %v925
        %v936 = vsel %vm929, %v932, %v935
        %v937 = vsel %vm926, nan, %v936
        %v938 = vand.u32 2147483647, %v776
        %vm939 = vcmp.le.f32.partialorder %v938, 0.7853982
        %vm940 = vcmp.lt.s32.totalorder %v776, 0
        %v941 = vand.u32 %v776, 2139095040
        %v942 = vshrl.u32 %v941, 23
        %v943 = vsub.s32 %v942, 127
        %v944 = vand.u32 2147483647, %v776
        %v945 = vand.u32 %v944, 8388607
        %v946 = vor.u32 %v945, 8388608
        %v947 = vsub.s32 0, %v946
        %v948 = vadd.s32 %v943, 1
        %vm949 = vcmp.gt.s32.totalorder %v948, 0
        %v950 = vsel %vm949, %v948, 0
        %v951 = vshrl.u32 %v950, 5
        %v952 = vand.u32 %v950, 31
        %v953 = vsub.s32 32, %v952
        %v954 = vshrl.u32 683565275, %v953
        %v955 = vshll.u32 683565275, %v952
        %v956 = vshrl.u32 2475754826, %v953
        %v957 = vor.u32 %v955, %v956
        %v958 = vshll.u32 2475754826, %v952
        %v959 = vshrl.u32 2131351028, %v953
        %v960 = vor.u32 %v958, %v959
        %v961 = vshll.u32 2131351028, %v952
        %v962 = vshrl.u32 2102212464, %v953
        %v963 = vor.u32 %v961, %v962
        %v964 = vshll.u32 2102212464, %v952
        %v965 = vshrl.u32 920167782, %v953
        %v966 = vor.u32 %v964, %v965
        %v967 = vshll.u32 920167782, %v952
        %v968 = vshrl.u32 1326507024, %v953
        %v969 = vor.u32 %v967, %v968
        %vm970 = vcmp.lt.s32.totalorder %v951, 1
        %vm971 = vcmp.lt.s32.totalorder %v951, 2
        %vm972 = vcmp.lt.s32.totalorder %v951, 3
        %vm973 = vcmp.lt.s32.totalorder %v951, 4
        %v974 = vsel %vm970, %v954, %v957
        %v975 = vsel %vm973, %v963, 2102212464
        %v976 = vsel %vm972, %v960, %v975
        %v977 = vsel %vm971, %v974, %v976
        %v978 = vsel %vm970, %v957, %v960
        %v979 = vsel %vm973, %v966, 920167782
        %v980 = vsel %vm972, %v963, %v979
        %v981 = vsel %vm971, %v978, %v980
        %v982 = vsel %vm970, %v960, %v963
        %v983 = vsel %vm973, %v969, 1326507024
        %v984 = vsel %vm972, %v966, %v983
        %v985 = vsel %vm971, %v982, %v984
        %v986 = vshll.u32 %v946, 8
        %v987 = vand.u32 %v986, 65535
        %v988 = vshrl.u32 %v986, 16
        %v989 = vand.u32 %v985, 65535
        %v990 = vshrl.u32 %v985, 16
        %v991 = vmul.u32 %v987, %v989
        %v992 = vmul.u32 %v987, %v990
        %v993 = vmul.u32 %v988, %v989
        %v994 = vmul.u32 %v988, %v990
        %v995 = vshll.u32 %v992, 16
        %v996 = vshrl.u32 %v992, 16
        %v997 = vshll.u32 %v993, 16
        %v998 = vshrl.u32 %v993, 16
        %vm999 = vc.u32 %v991, %v995
        %v1000 = vsel %vm999, 1, 0
        %v1001 = vadd.s32 %v991, %v995
        %v1002 = vadd.s32 %v994, %v1000
        %vm1003 = vc.u32 %v1001, %v997
        %v1004 = vsel %vm1003, 1, 0
        %v1005 = vadd.s32 %v1001, %v997
        %v1006 = vadd.s32 %v1002, %v1004
        %v1007 = vadd.s32 %v1006, %v996
        %v1008 = vadd.s32 %v1007, %v998
        %v1009 = vand.u32 %v986, 65535
        %v1010 = vshrl.u32 %v986, 16
        %v1011 = vand.u32 %v981, 65535
        %v1012 = vshrl.u32 %v981, 16
        %v1013 = vmul.u32 %v1009, %v1011
        %v1014 = vmul.u32 %v1009, %v1012
        %v1015 = vmul.u32 %v1010, %v1011
        %v1016 = vmul.u32 %v1010, %v1012
        %v1017 = vshll.u32 %v1014, 16
        %v1018 = vshrl.u32 %v1014, 16
        %v1019 = vshll.u32 %v1015, 16
        %v1020 = vshrl.u32 %v1015, 16
        %vm1021 = vc.u32 %v1013, %v1017
        %v1022 = vsel %vm1021, 1, 0
        %v1023 = vadd.s32 %v1013, %v1017
        %v1024 = vadd.s32 %v1016, %v1022
        %vm1025 = vc.u32 %v1023, %v1019
        %v1026 = vsel %vm1025, 1, 0
        %v1027 = vadd.s32 %v1023, %v1019
        %v1028 = vadd.s32 %v1024, %v1026
        %v1029 = vadd.s32 %v1028, %v1018
        %v1030 = vadd.s32 %v1029, %v1020
        %v1031 = vmul.u32 %v986, %v977
        %v1032 = vadd.s32 %v1008, %v1027
        %vm1033 = vc.u32 %v1008, %v1027
        %v1034 = vadd.s32 %v1030, 1
        %v1035 = vsel %vm1033, %v1034, %v1030
        %v1036 = vadd.s32 %v1031, %v1035
        %v1037 = vadd.s32 %v1036, 536870912
        %v1038 = vshrl.u32 %v1037, 30
        %v1039 = vshll.u32 %v1038, 30
        %v1040 = vsub.s32 %v1036, %v1039
        %vm1041 = vcmp.lt.s32.totalorder %v1040, 0
        %v1042 = vsub.s32 0, %v1040
        %v1043 = vsel %vm1041, %v1042, %v1040
        %v1044 = vclz %v1043
        %v1045 = vsub.s32 %v1044, 2
        %vm1046 = vcmp.gt.s32.totalorder 0, %v1045
        %v1047 = vsel %vm1046, 0, %v1045
        %v1048 = vsub.s32 32, %v1047
        %v1049 = vshll.u32 %v1040, %v1047
        %v1050 = vshrl.u32 %v1032, %v1048
        %v1051 = vor.u32 %v1049, %v1050
        %v1052 = vsub.s32 4294967266, %v1047
        %v1053 = vadd.s32 %v1052, 127
        %v1054 = vshll.u32 %v1053, 23
        %v1055 = vor.u32 4788187, %v1054
        %v1056 = vand.u32 2147483647, %v1055
        %v1058 = vcvt.s32.f32 %v1051
        %v1059 = vmul.f32 %v1058, %v1056
        %v1060 = vxor.u32 %v1059, 2147483648
        %v1061 = vsel %vm940, %v1060, %v1059
        %v1062 = vsub.s32 4, %v1038
        %v1063 = vsel %vm940, %v1062, %v1038
        %v1064 = vsel %vm939, %v776, %v1061
        %v1065 = vsel %vm939, 0, %v1063
        %v1066 = vmul.f32 %v1064, %v1064
        %v1067 = vmul.f32 %v1066, -0.001358992
        %v1068 = vadd.f32 %v1067, 0.041655596
        %v1069 = vmul.f32 %v1066, %v1068
        %v1070 = vadd.f32 %v1069, -0.4999988
        %v1071 = vmul.f32 %v1066, %v1070
        %v1072 = vadd.f32 1.0, %v1071
        %v1073 = vmul.f32 %v1064, %v1064
        %v1074 = vmul.f32 %v1073, -0.00019511016
        %v1075 = vadd.f32 %v1074, 0.008332121
        %v1076 = vmul.f32 %v1073, %v1075
        %v1077 = vadd.f32 %v1076, -0.16666654
        %v1078 = vmul.f32 %v1073, %v1077
        %v1079 = vadd.f32 %v1078, 1.0
        %v1080 = vmul.f32 %v1079, %v1064
        %vm1081 = vweird.f32 %v776
        %v1082 = vadd.s32 %v1065, 3
        %v1083 = vand.u32 %v1082, 3
        %vm1084 = vcmp.lt.s32.totalorder %v1083, 2
        %vm1085 = vcmp.eq.s32.totalorder %v1083, 0
        %v1086 = vxor.u32 %v1080, 2147483648
        %v1087 = vsel %vm1085, %v1072, %v1086
        %vm1088 = vcmp.eq.s32.totalorder %v1083, 2
        %v1089 = vxor.u32 %v1072, 2147483648
        %v1090 = vsel %vm1088, %v1089, %v1080
        %v1091 = vsel %vm1084, %v1087, %v1090
        %v1092 = vsel %vm1081, nan, %v1091
        %v1093 = vand.u32 2147483647, %v777
        %vm1094 = vcmp.le.f32.partialorder %v1093, 0.7853982
        %vm1095 = vcmp.lt.s32.totalorder %v777, 0
        %v1096 = vand.u32 %v777, 2139095040
        %v1097 = vshrl.u32 %v1096, 23
        %v1098 = vsub.s32 %v1097, 127
        %v1099 = vand.u32 2147483647, %v777
        %v1100 = vand.u32 %v1099, 8388607
        %v1101 = vor.u32 %v1100, 8388608
        %v1102 = vsub.s32 0, %v1101
        %v1103 = vadd.s32 %v1098, 1
        %vm1104 = vcmp.gt.s32.totalorder %v1103, 0
        %v1105 = vsel %vm1104, %v1103, 0
        %v1106 = vshrl.u32 %v1105, 5
        %v1107 = vand.u32 %v1105, 31
        %v1108 = vsub.s32 32, %v1107
        %v1109 = vshrl.u32 683565275, %v1108
        %v1110 = vshll.u32 683565275, %v1107
        %v1111 = vshrl.u32 2475754826, %v1108
        %v1112 = vor.u32 %v1110, %v1111
        %v1113 = vshll.u32 2475754826, %v1107
        %v1114 = vshrl.u32 2131351028, %v1108
        %v1115 = vor.u32 %v1113, %v1114
        %v1116 = vshll.u32 2131351028, %v1107
        %v1117 = vshrl.u32 2102212464, %v1108
        %v1118 = vor.u32 %v1116, %v1117
        %v1119 = vshll.u32 2102212464, %v1107
        %v1120 = vshrl.u32 920167782, %v1108
        %v1121 = vor.u32 %v1119, %v1120
        %v1122 = vshll.u32 920167782, %v1107
        %v1123 = vshrl.u32 1326507024, %v1108
        %v1124 = vor.u32 %v1122, %v1123
        %vm1125 = vcmp.lt.s32.totalorder %v1106, 1
        %vm1126 = vcmp.lt.s32.totalorder %v1106, 2
        %vm1127 = vcmp.lt.s32.totalorder %v1106, 3
        %vm1128 = vcmp.lt.s32.totalorder %v1106, 4
        %v1129 = vsel %vm1125, %v1109, %v1112
        %v1130 = vsel %vm1128, %v1118, 2102212464
        %v1131 = vsel %vm1127, %v1115, %v1130
        %v1132 = vsel %vm1126, %v1129, %v1131
        %v1133 = vsel %vm1125, %v1112, %v1115
        %v1134 = vsel %vm1128, %v1121, 920167782
        %v1135 = vsel %vm1127, %v1118, %v1134
        %v1136 = vsel %vm1126, %v1133, %v1135
        %v1137 = vsel %vm1125, %v1115, %v1118
        %v1138 = vsel %vm1128, %v1124, 1326507024
        %v1139 = vsel %vm1127, %v1121, %v1138
        %v1140 = vsel %vm1126, %v1137, %v1139
        %v1141 = vshll.u32 %v1101, 8
        %v1142 = vand.u32 %v1141, 65535
        %v1143 = vshrl.u32 %v1141, 16
        %v1144 = vand.u32 %v1140, 65535
        %v1145 = vshrl.u32 %v1140, 16
        %v1146 = vmul.u32 %v1142, %v1144
        %v1147 = vmul.u32 %v1142, %v1145
        %v1148 = vmul.u32 %v1143, %v1144
        %v1149 = vmul.u32 %v1143, %v1145
        %v1150 = vshll.u32 %v1147, 16
        %v1151 = vshrl.u32 %v1147, 16
        %v1152 = vshll.u32 %v1148, 16
        %v1153 = vshrl.u32 %v1148, 16
        %vm1154 = vc.u32 %v1146, %v1150
        %v1155 = vsel %vm1154, 1, 0
        %v1156 = vadd.s32 %v1146, %v1150
        %v1157 = vadd.s32 %v1149, %v1155
        %vm1158 = vc.u32 %v1156, %v1152
        %v1159 = vsel %vm1158, 1, 0
        %v1160 = vadd.s32 %v1156, %v1152
        %v1161 = vadd.s32 %v1157, %v1159
        %v1162 = vadd.s32 %v1161, %v1151
        %v1163 = vadd.s32 %v1162, %v1153
        %v1164 = vand.u32 %v1141, 65535
        %v1165 = vshrl.u32 %v1141, 16
        %v1166 = vand.u32 %v1136, 65535
        %v1167 = vshrl.u32 %v1136, 16
        %v1168 = vmul.u32 %v1164, %v1166
        %v1169 = vmul.u32 %v1164, %v1167
        %v1170 = vmul.u32 %v1165, %v1166
        %v1171 = vmul.u32 %v1165, %v1167
        %v1172 = vshll.u32 %v1169, 16
        %v1173 = vshrl.u32 %v1169, 16
        %v1174 = vshll.u32 %v1170, 16
        %v1175 = vshrl.u32 %v1170, 16
        %vm1176 = vc.u32 %v1168, %v1172
        %v1177 = vsel %vm1176, 1, 0
        %v1178 = vadd.s32 %v1168, %v1172
        %v1179 = vadd.s32 %v1171, %v1177
        %vm1180 = vc.u32 %v1178, %v1174
        %v1181 = vsel %vm1180, 1, 0
        %v1182 = vadd.s32 %v1178, %v1174
        %v1183 = vadd.s32 %v1179, %v1181
        %v1184 = vadd.s32 %v1183, %v1173
        %v1185 = vadd.s32 %v1184, %v1175
        %v1186 = vmul.u32 %v1141, %v1132
        %v1187 = vadd.s32 %v1163, %v1182
        %vm1188 = vc.u32 %v1163, %v1182
        %v1189 = vadd.s32 %v1185, 1
        %v1190 = vsel %vm1188, %v1189, %v1185
        %v1191 = vadd.s32 %v1186, %v1190
        %v1192 = vadd.s32 %v1191, 536870912
        %v1193 = vshrl.u32 %v1192, 30
        %v1194 = vshll.u32 %v1193, 30
        %v1195 = vsub.s32 %v1191, %v1194
        %vm1196 = vcmp.lt.s32.totalorder %v1195, 0
        %v1197 = vsub.s32 0, %v1195
        %v1198 = vsel %vm1196, %v1197, %v1195
        %v1199 = vclz %v1198
        %v1200 = vsub.s32 %v1199, 2
        %vm1201 = vcmp.gt.s32.totalorder 0, %v1200
        %v1202 = vsel %vm1201, 0, %v1200
        %v1203 = vsub.s32 32, %v1202
        %v1204 = vshll.u32 %v1195, %v1202
        %v1205 = vshrl.u32 %v1187, %v1203
        %v1206 = vor.u32 %v1204, %v1205
        %v1207 = vsub.s32 4294967266, %v1202
        %v1208 = vadd.s32 %v1207, 127
        %v1209 = vshll.u32 %v1208, 23
        %v1210 = vor.u32 4788187, %v1209
        %v1211 = vand.u32 2147483647, %v1210
        %v1213 = vcvt.s32.f32 %v1206
        %v1214 = vmul.f32 %v1213, %v1211
        %v1215 = vxor.u32 %v1214, 2147483648
        %v1216 = vsel %vm1095, %v1215, %v1214
        %v1217 = vsub.s32 4, %v1193
        %v1218 = vsel %vm1095, %v1217, %v1193
        %v1219 = vsel %vm1094, %v777, %v1216
        %v1220 = vsel %vm1094, 0, %v1218
        %v1221 = vmul.f32 %v1219, %v1219
        %v1222 = vmul.f32 %v1221, -0.001358992
        %v1223 = vadd.f32 %v1222, 0.041655596
        %v1224 = vmul.f32 %v1221, %v1223
        %v1225 = vadd.f32 %v1224, -0.4999988
        %v1226 = vmul.f32 %v1221, %v1225
        %v1227 = vadd.f32 1.0, %v1226
        %v1228 = vmul.f32 %v1219, %v1219
        %v1229 = vmul.f32 %v1228, -0.00019511016
        %v1230 = vadd.f32 %v1229, 0.008332121
        %v1231 = vmul.f32 %v1228, %v1230
        %v1232 = vadd.f32 %v1231, -0.16666654
        %v1233 = vmul.f32 %v1228, %v1232
        %v1234 = vadd.f32 %v1233, 1.0
        %v1235 = vmul.f32 %v1234, %v1219
        %vm1236 = vweird.f32 %v777
        %v1237 = vadd.s32 %v1220, 3
        %v1238 = vand.u32 %v1237, 3
        %vm1239 = vcmp.lt.s32.totalorder %v1238, 2
        %vm1240 = vcmp.eq.s32.totalorder %v1238, 0
        %v1241 = vxor.u32 %v1235, 2147483648
        %v1242 = vsel %vm1240, %v1227, %v1241
        %vm1243 = vcmp.eq.s32.totalorder %v1238, 2
        %v1244 = vxor.u32 %v1227, 2147483648
        %v1245 = vsel %vm1243, %v1244, %v1235
        %v1246 = vsel %vm1239, %v1242, %v1245
        %v1247 = vsel %vm1236, nan, %v1246
        %v1248 = vand.u32 2147483647, %v778
        %vm1249 = vcmp.le.f32.partialorder %v1248, 0.7853982
        %vm1250 = vcmp.lt.s32.totalorder %v778, 0
        %v1251 = vand.u32 %v778, 2139095040
        %v1252 = vshrl.u32 %v1251, 23
        %v1253 = vsub.s32 %v1252, 127
        %v1254 = vand.u32 2147483647, %v778
        %v1255 = vand.u32 %v1254, 8388607
        %v1256 = vor.u32 %v1255, 8388608
        %v1257 = vsub.s32 0, %v1256
        %v1258 = vadd.s32 %v1253, 1
        %vm1259 = vcmp.gt.s32.totalorder %v1258, 0
        %v1260 = vsel %vm1259, %v1258, 0
        %v1261 = vshrl.u32 %v1260, 5
        %v1262 = vand.u32 %v1260, 31
        %v1263 = vsub.s32 32, %v1262
        %v1264 = vshrl.u32 683565275, %v1263
        %v1265 = vshll.u32 683565275, %v1262
        %v1266 = vshrl.u32 2475754826, %v1263
        %v1267 = vor.u32 %v1265, %v1266
        %v1268 = vshll.u32 2475754826, %v1262
        %v1269 = vshrl.u32 2131351028, %v1263
        %v1270 = vor.u32 %v1268, %v1269
        %v1271 = vshll.u32 2131351028, %v1262
        %v1272 = vshrl.u32 2102212464, %v1263
        %v1273 = vor.u32 %v1271, %v1272
        %v1274 = vshll.u32 2102212464, %v1262
        %v1275 = vshrl.u32 920167782, %v1263
        %v1276 = vor.u32 %v1274, %v1275
        %v1277 = vshll.u32 920167782, %v1262
        %v1278 = vshrl.u32 1326507024, %v1263
        %v1279 = vor.u32 %v1277, %v1278
        %vm1280 = vcmp.lt.s32.totalorder %v1261, 1
        %vm1281 = vcmp.lt.s32.totalorder %v1261, 2
        %vm1282 = vcmp.lt.s32.totalorder %v1261, 3
        %vm1283 = vcmp.lt.s32.totalorder %v1261, 4
        %v1284 = vsel %vm1280, %v1264, %v1267
        %v1285 = vsel %vm1283, %v1273, 2102212464
        %v1286 = vsel %vm1282, %v1270, %v1285
        %v1287 = vsel %vm1281, %v1284, %v1286
        %v1288 = vsel %vm1280, %v1267, %v1270
        %v1289 = vsel %vm1283, %v1276, 920167782
        %v1290 = vsel %vm1282, %v1273, %v1289
        %v1291 = vsel %vm1281, %v1288, %v1290
        %v1292 = vsel %vm1280, %v1270, %v1273
        %v1293 = vsel %vm1283, %v1279, 1326507024
        %v1294 = vsel %vm1282, %v1276, %v1293
        %v1295 = vsel %vm1281, %v1292, %v1294
        %v1296 = vshll.u32 %v1256, 8
        %v1297 = vand.u32 %v1296, 65535
        %v1298 = vshrl.u32 %v1296, 16
        %v1299 = vand.u32 %v1295, 65535
        %v1300 = vshrl.u32 %v1295, 16
        %v1301 = vmul.u32 %v1297, %v1299
        %v1302 = vmul.u32 %v1297, %v1300
        %v1303 = vmul.u32 %v1298, %v1299
        %v1304 = vmul.u32 %v1298, %v1300
        %v1305 = vshll.u32 %v1302, 16
        %v1306 = vshrl.u32 %v1302, 16
        %v1307 = vshll.u32 %v1303, 16
        %v1308 = vshrl.u32 %v1303, 16
        %vm1309 = vc.u32 %v1301, %v1305
        %v1310 = vsel %vm1309, 1, 0
        %v1311 = vadd.s32 %v1301, %v1305
        %v1312 = vadd.s32 %v1304, %v1310
        %vm1313 = vc.u32 %v1311, %v1307
        %v1314 = vsel %vm1313, 1, 0
        %v1315 = vadd.s32 %v1311, %v1307
        %v1316 = vadd.s32 %v1312, %v1314
        %v1317 = vadd.s32 %v1316, %v1306
        %v1318 = vadd.s32 %v1317, %v1308
        %v1319 = vand.u32 %v1296, 65535
        %v1320 = vshrl.u32 %v1296, 16
        %v1321 = vand.u32 %v1291, 65535
        %v1322 = vshrl.u32 %v1291, 16
        %v1323 = vmul.u32 %v1319, %v1321
        %v1324 = vmul.u32 %v1319, %v1322
        %v1325 = vmul.u32 %v1320, %v1321
        %v1326 = vmul.u32 %v1320, %v1322
        %v1327 = vshll.u32 %v1324, 16
        %v1328 = vshrl.u32 %v1324, 16
        %v1329 = vshll.u32 %v1325, 16
        %v1330 = vshrl.u32 %v1325, 16
        %vm1331 = vc.u32 %v1323, %v1327
        %v1332 = vsel %vm1331, 1, 0
        %v1333 = vadd.s32 %v1323, %v1327
        %v1334 = vadd.s32 %v1326, %v1332
        %vm1335 = vc.u32 %v1333, %v1329
        %v1336 = vsel %vm1335, 1, 0
        %v1337 = vadd.s32 %v1333, %v1329
        %v1338 = vadd.s32 %v1334, %v1336
        %v1339 = vadd.s32 %v1338, %v1328
        %v1340 = vadd.s32 %v1339, %v1330
        %v1341 = vmul.u32 %v1296, %v1287
        %v1342 = vadd.s32 %v1318, %v1337
        %vm1343 = vc.u32 %v1318, %v1337
        %v1344 = vadd.s32 %v1340, 1
        %v1345 = vsel %vm1343, %v1344, %v1340
        %v1346 = vadd.s32 %v1341, %v1345
        %v1347 = vadd.s32 %v1346, 536870912
        %v1348 = vshrl.u32 %v1347, 30
        %v1349 = vshll.u32 %v1348, 30
        %v1350 = vsub.s32 %v1346, %v1349
        %vm1351 = vcmp.lt.s32.totalorder %v1350, 0
        %v1352 = vsub.s32 0, %v1350
        %v1353 = vsel %vm1351, %v1352, %v1350
        %v1354 = vclz %v1353
        %v1355 = vsub.s32 %v1354, 2
        %vm1356 = vcmp.gt.s32.totalorder 0, %v1355
        %v1357 = vsel %vm1356, 0, %v1355
        %v1358 = vsub.s32 32, %v1357
        %v1359 = vshll.u32 %v1350, %v1357
        %v1360 = vshrl.u32 %v1342, %v1358
        %v1361 = vor.u32 %v1359, %v1360
        %v1362 = vsub.s32 4294967266, %v1357
        %v1363 = vadd.s32 %v1362, 127
        %v1364 = vshll.u32 %v1363, 23
        %v1365 = vor.u32 4788187, %v1364
        %v1366 = vand.u32 2147483647, %v1365
        %v1368 = vcvt.s32.f32 %v1361
        %v1369 = vmul.f32 %v1368, %v1366
        %v1370 = vxor.u32 %v1369, 2147483648
        %v1371 = vsel %vm1250, %v1370, %v1369
        %v1372 = vsub.s32 4, %v1348
        %v1373 = vsel %vm1250, %v1372, %v1348
        %v1374 = vsel %vm1249, %v778, %v1371
        %v1375 = vsel %vm1249, 0, %v1373
        %v1376 = vmul.f32 %v1374, %v1374
        %v1377 = vmul.f32 %v1376, -0.001358992
        %v1378 = vadd.f32 %v1377, 0.041655596
        %v1379 = vmul.f32 %v1376, %v1378
        %v1380 = vadd.f32 %v1379, -0.4999988
        %v1381 = vmul.f32 %v1376, %v1380
        %v1382 = vadd.f32 1.0, %v1381
        %v1383 = vmul.f32 %v1374, %v1374
        %v1384 = vmul.f32 %v1383, -0.00019511016
        %v1385 = vadd.f32 %v1384, 0.008332121
        %v1386 = vmul.f32 %v1383, %v1385
        %v1387 = vadd.f32 %v1386, -0.16666654
        %v1388 = vmul.f32 %v1383, %v1387
        %v1389 = vadd.f32 %v1388, 1.0
        %v1390 = vmul.f32 %v1389, %v1374
        %vm1391 = vweird.f32 %v778
        %v1392 = vadd.s32 %v1375, 3
        %v1393 = vand.u32 %v1392, 3
        %vm1394 = vcmp.lt.s32.totalorder %v1393, 2
        %vm1395 = vcmp.eq.s32.totalorder %v1393, 0
        %v1396 = vxor.u32 %v1390, 2147483648
        %v1397 = vsel %vm1395, %v1382, %v1396
        %vm1398 = vcmp.eq.s32.totalorder %v1393, 2
        %v1399 = vxor.u32 %v1382, 2147483648
        %v1400 = vsel %vm1398, %v1399, %v1390
        %v1401 = vsel %vm1394, %v1397, %v1400
        %v1402 = vsel %vm1391, nan, %v1401
        %v1403 = vand.u32 2147483647, %v779
        %vm1404 = vcmp.le.f32.partialorder %v1403, 0.7853982
        %vm1405 = vcmp.lt.s32.totalorder %v779, 0
        %v1406 = vand.u32 %v779, 2139095040
        %v1407 = vshrl.u32 %v1406, 23
        %v1408 = vsub.s32 %v1407, 127
        %v1409 = vand.u32 2147483647, %v779
        %v1410 = vand.u32 %v1409, 8388607
        %v1411 = vor.u32 %v1410, 8388608
        %v1412 = vsub.s32 0, %v1411
        %v1413 = vadd.s32 %v1408, 1
        %vm1414 = vcmp.gt.s32.totalorder %v1413, 0
        %v1415 = vsel %vm1414, %v1413, 0
        %v1416 = vshrl.u32 %v1415, 5
        %v1417 = vand.u32 %v1415, 31
        %v1418 = vsub.s32 32, %v1417
        %v1419 = vshrl.u32 683565275, %v1418
        %v1420 = vshll.u32 683565275, %v1417
        %v1421 = vshrl.u32 2475754826, %v1418
        %v1422 = vor.u32 %v1420, %v1421
        %v1423 = vshll.u32 2475754826, %v1417
        %v1424 = vshrl.u32 2131351028, %v1418
        %v1425 = vor.u32 %v1423, %v1424
        %v1426 = vshll.u32 2131351028, %v1417
        %v1427 = vshrl.u32 2102212464, %v1418
        %v1428 = vor.u32 %v1426, %v1427
        %v1429 = vshll.u32 2102212464, %v1417
        %v1430 = vshrl.u32 920167782, %v1418
        %v1431 = vor.u32 %v1429, %v1430
        %v1432 = vshll.u32 920167782, %v1417
        %v1433 = vshrl.u32 1326507024, %v1418
        %v1434 = vor.u32 %v1432, %v1433
        %vm1435 = vcmp.lt.s32.totalorder %v1416, 1
        %vm1436 = vcmp.lt.s32.totalorder %v1416, 2
        %vm1437 = vcmp.lt.s32.totalorder %v1416, 3
        %vm1438 = vcmp.lt.s32.totalorder %v1416, 4
        %v1439 = vsel %vm1435, %v1419, %v1422
        %v1440 = vsel %vm1438, %v1428, 2102212464
        %v1441 = vsel %vm1437, %v1425, %v1440
        %v1442 = vsel %vm1436, %v1439, %v1441
        %v1443 = vsel %vm1435, %v1422, %v1425
        %v1444 = vsel %vm1438, %v1431, 920167782
        %v1445 = vsel %vm1437, %v1428, %v1444
        %v1446 = vsel %vm1436, %v1443, %v1445
        %v1447 = vsel %vm1435, %v1425, %v1428
        %v1448 = vsel %vm1438, %v1434, 1326507024
        %v1449 = vsel %vm1437, %v1431, %v1448
        %v1450 = vsel %vm1436, %v1447, %v1449
        %v1451 = vshll.u32 %v1411, 8
        %v1452 = vand.u32 %v1451, 65535
        %v1453 = vshrl.u32 %v1451, 16
        %v1454 = vand.u32 %v1450, 65535
        %v1455 = vshrl.u32 %v1450, 16
        %v1456 = vmul.u32 %v1452, %v1454
        %v1457 = vmul.u32 %v1452, %v1455
        %v1458 = vmul.u32 %v1453, %v1454
        %v1459 = vmul.u32 %v1453, %v1455
        %v1460 = vshll.u32 %v1457, 16
        %v1461 = vshrl.u32 %v1457, 16
        %v1462 = vshll.u32 %v1458, 16
        %v1463 = vshrl.u32 %v1458, 16
        %vm1464 = vc.u32 %v1456, %v1460
        %v1465 = vsel %vm1464, 1, 0
        %v1466 = vadd.s32 %v1456, %v1460
        %v1467 = vadd.s32 %v1459, %v1465
        %vm1468 = vc.u32 %v1466, %v1462
        %v1469 = vsel %vm1468, 1, 0
        %v1470 = vadd.s32 %v1466, %v1462
        %v1471 = vadd.s32 %v1467, %v1469
        %v1472 = vadd.s32 %v1471, %v1461
        %v1473 = vadd.s32 %v1472, %v1463
        %v1474 = vand.u32 %v1451, 65535
        %v1475 = vshrl.u32 %v1451, 16
        %v1476 = vand.u32 %v1446, 65535
        %v1477 = vshrl.u32 %v1446, 16
        %v1478 = vmul.u32 %v1474, %v1476
        %v1479 = vmul.u32 %v1474, %v1477
        %v1480 = vmul.u32 %v1475, %v1476
        %v1481 = vmul.u32 %v1475, %v1477
        %v1482 = vshll.u32 %v1479, 16
        %v1483 = vshrl.u32 %v1479, 16
        %v1484 = vshll.u32 %v1480, 16
        %v1485 = vshrl.u32 %v1480, 16
        %vm1486 = vc.u32 %v1478, %v1482
        %v1487 = vsel %vm1486, 1, 0
        %v1488 = vadd.s32 %v1478, %v1482
        %v1489 = vadd.s32 %v1481, %v1487
        %vm1490 = vc.u32 %v1488, %v1484
        %v1491 = vsel %vm1490, 1, 0
        %v1492 = vadd.s32 %v1488, %v1484
        %v1493 = vadd.s32 %v1489, %v1491
        %v1494 = vadd.s32 %v1493, %v1483
        %v1495 = vadd.s32 %v1494, %v1485
        %v1496 = vmul.u32 %v1451, %v1442
        %v1497 = vadd.s32 %v1473, %v1492
        %vm1498 = vc.u32 %v1473, %v1492
        %v1499 = vadd.s32 %v1495, 1
        %v1500 = vsel %vm1498, %v1499, %v1495
        %v1501 = vadd.s32 %v1496, %v1500
        %v1502 = vadd.s32 %v1501, 536870912
        %v1503 = vshrl.u32 %v1502, 30
        %v1504 = vshll.u32 %v1503, 30
        %v1505 = vsub.s32 %v1501, %v1504
        %vm1506 = vcmp.lt.s32.totalorder %v1505, 0
        %v1507 = vsub.s32 0, %v1505
        %v1508 = vsel %vm1506, %v1507, %v1505
        %v1509 = vclz %v1508
        %v1510 = vsub.s32 %v1509, 2
        %vm1511 = vcmp.gt.s32.totalorder 0, %v1510
        %v1512 = vsel %vm1511, 0, %v1510
        %v1513 = vsub.s32 32, %v1512
        %v1514 = vshll.u32 %v1505, %v1512
        %v1515 = vshrl.u32 %v1497, %v1513
        %v1516 = vor.u32 %v1514, %v1515
        %v1517 = vsub.s32 4294967266, %v1512
        %v1518 = vadd.s32 %v1517, 127
        %v1519 = vshll.u32 %v1518, 23
        %v1520 = vor.u32 4788187, %v1519
        %v1521 = vand.u32 2147483647, %v1520
        %v1523 = vcvt.s32.f32 %v1516
        %v1524 = vmul.f32 %v1523, %v1521
        %v1525 = vxor.u32 %v1524, 2147483648
        %v1526 = vsel %vm1405, %v1525, %v1524
        %v1527 = vsub.s32 4, %v1503
        %v1528 = vsel %vm1405, %v1527, %v1503
        %v1529 = vsel %vm1404, %v779, %v1526
        %v1530 = vsel %vm1404, 0, %v1528
        %v1531 = vmul.f32 %v1529, %v1529
        %v1532 = vmul.f32 %v1531, -0.001358992
        %v1533 = vadd.f32 %v1532, 0.041655596
        %v1534 = vmul.f32 %v1531, %v1533
        %v1535 = vadd.f32 %v1534, -0.4999988
        %v1536 = vmul.f32 %v1531, %v1535
        %v1537 = vadd.f32 1.0, %v1536
        %v1538 = vmul.f32 %v1529, %v1529
        %v1539 = vmul.f32 %v1538, -0.00019511016
        %v1540 = vadd.f32 %v1539, 0.008332121
        %v1541 = vmul.f32 %v1538, %v1540
        %v1542 = vadd.f32 %v1541, -0.16666654
        %v1543 = vmul.f32 %v1538, %v1542
        %v1544 = vadd.f32 %v1543, 1.0
        %v1545 = vmul.f32 %v1544, %v1529
        %vm1546 = vweird.f32 %v779
        %v1547 = vadd.s32 %v1530, 3
        %v1548 = vand.u32 %v1547, 3
        %vm1549 = vcmp.lt.s32.totalorder %v1548, 2
        %vm1550 = vcmp.eq.s32.totalorder %v1548, 0
        %v1551 = vxor.u32 %v1545, 2147483648
        %v1552 = vsel %vm1550, %v1537, %v1551
        %vm1553 = vcmp.eq.s32.totalorder %v1548, 2
        %v1554 = vxor.u32 %v1537, 2147483648
        %v1555 = vsel %vm1553, %v1554, %v1545
        %v1556 = vsel %vm1549, %v1552, %v1555
        %v1557 = vsel %vm1546, nan, %v1556
        %v1558 = vand.u32 2147483647, %v780
        %vm1559 = vcmp.le.f32.partialorder %v1558, 0.7853982
        %vm1560 = vcmp.lt.s32.totalorder %v780, 0
        %v1561 = vand.u32 %v780, 2139095040
        %v1562 = vshrl.u32 %v1561, 23
        %v1563 = vsub.s32 %v1562, 127
        %v1564 = vand.u32 2147483647, %v780
        %v1565 = vand.u32 %v1564, 8388607
        %v1566 = vor.u32 %v1565, 8388608
        %v1567 = vsub.s32 0, %v1566
        %v1568 = vadd.s32 %v1563, 1
        %vm1569 = vcmp.gt.s32.totalorder %v1568, 0
        %v1570 = vsel %vm1569, %v1568, 0
        %v1571 = vshrl.u32 %v1570, 5
        %v1572 = vand.u32 %v1570, 31
        %v1573 = vsub.s32 32, %v1572
        %v1574 = vshrl.u32 683565275, %v1573
        %v1575 = vshll.u32 683565275, %v1572
        %v1576 = vshrl.u32 2475754826, %v1573
        %v1577 = vor.u32 %v1575, %v1576
        %v1578 = vshll.u32 2475754826, %v1572
        %v1579 = vshrl.u32 2131351028, %v1573
        %v1580 = vor.u32 %v1578, %v1579
        %v1581 = vshll.u32 2131351028, %v1572
        %v1582 = vshrl.u32 2102212464, %v1573
        %v1583 = vor.u32 %v1581, %v1582
        %v1584 = vshll.u32 2102212464, %v1572
        %v1585 = vshrl.u32 920167782, %v1573
        %v1586 = vor.u32 %v1584, %v1585
        %v1587 = vshll.u32 920167782, %v1572
        %v1588 = vshrl.u32 1326507024, %v1573
        %v1589 = vor.u32 %v1587, %v1588
        %vm1590 = vcmp.lt.s32.totalorder %v1571, 1
        %vm1591 = vcmp.lt.s32.totalorder %v1571, 2
        %vm1592 = vcmp.lt.s32.totalorder %v1571, 3
        %vm1593 = vcmp.lt.s32.totalorder %v1571, 4
        %v1594 = vsel %vm1590, %v1574, %v1577
        %v1595 = vsel %vm1593, %v1583, 2102212464
        %v1596 = vsel %vm1592, %v1580, %v1595
        %v1597 = vsel %vm1591, %v1594, %v1596
        %v1598 = vsel %vm1590, %v1577, %v1580
        %v1599 = vsel %vm1593, %v1586, 920167782
        %v1600 = vsel %vm1592, %v1583, %v1599
        %v1601 = vsel %vm1591, %v1598, %v1600
        %v1602 = vsel %vm1590, %v1580, %v1583
        %v1603 = vsel %vm1593, %v1589, 1326507024
        %v1604 = vsel %vm1592, %v1586, %v1603
        %v1605 = vsel %vm1591, %v1602, %v1604
        %v1606 = vshll.u32 %v1566, 8
        %v1607 = vand.u32 %v1606, 65535
        %v1608 = vshrl.u32 %v1606, 16
        %v1609 = vand.u32 %v1605, 65535
        %v1610 = vshrl.u32 %v1605, 16
        %v1611 = vmul.u32 %v1607, %v1609
        %v1612 = vmul.u32 %v1607, %v1610
        %v1613 = vmul.u32 %v1608, %v1609
        %v1614 = vmul.u32 %v1608, %v1610
        %v1615 = vshll.u32 %v1612, 16
        %v1616 = vshrl.u32 %v1612, 16
        %v1617 = vshll.u32 %v1613, 16
        %v1618 = vshrl.u32 %v1613, 16
        %vm1619 = vc.u32 %v1611, %v1615
        %v1620 = vsel %vm1619, 1, 0
        %v1621 = vadd.s32 %v1611, %v1615
        %v1622 = vadd.s32 %v1614, %v1620
        %vm1623 = vc.u32 %v1621, %v1617
        %v1624 = vsel %vm1623, 1, 0
        %v1625 = vadd.s32 %v1621, %v1617
        %v1626 = vadd.s32 %v1622, %v1624
        %v1627 = vadd.s32 %v1626, %v1616
        %v1628 = vadd.s32 %v1627, %v1618
        %v1629 = vand.u32 %v1606, 65535
        %v1630 = vshrl.u32 %v1606, 16
        %v1631 = vand.u32 %v1601, 65535
        %v1632 = vshrl.u32 %v1601, 16
        %v1633 = vmul.u32 %v1629, %v1631
        %v1634 = vmul.u32 %v1629, %v1632
        %v1635 = vmul.u32 %v1630, %v1631
        %v1636 = vmul.u32 %v1630, %v1632
        %v1637 = vshll.u32 %v1634, 16
        %v1638 = vshrl.u32 %v1634, 16
        %v1639 = vshll.u32 %v1635, 16
        %v1640 = vshrl.u32 %v1635, 16
        %vm1641 = vc.u32 %v1633, %v1637
        %v1642 = vsel %vm1641, 1, 0
        %v1643 = vadd.s32 %v1633, %v1637
        %v1644 = vadd.s32 %v1636, %v1642
        %vm1645 = vc.u32 %v1643, %v1639
        %v1646 = vsel %vm1645, 1, 0
        %v1647 = vadd.s32 %v1643, %v1639
        %v1648 = vadd.s32 %v1644, %v1646
        %v1649 = vadd.s32 %v1648, %v1638
        %v1650 = vadd.s32 %v1649, %v1640
        %v1651 = vmul.u32 %v1606, %v1597
        %v1652 = vadd.s32 %v1628, %v1647
        %vm1653 = vc.u32 %v1628, %v1647
        %v1654 = vadd.s32 %v1650, 1
        %v1655 = vsel %vm1653, %v1654, %v1650
        %v1656 = vadd.s32 %v1651, %v1655
        %v1657 = vadd.s32 %v1656, 536870912
        %v1658 = vshrl.u32 %v1657, 30
        %v1659 = vshll.u32 %v1658, 30
        %v1660 = vsub.s32 %v1656, %v1659
        %vm1661 = vcmp.lt.s32.totalorder %v1660, 0
        %v1662 = vsub.s32 0, %v1660
        %v1663 = vsel %vm1661, %v1662, %v1660
        %v1664 = vclz %v1663
        %v1665 = vsub.s32 %v1664, 2
        %vm1666 = vcmp.gt.s32.totalorder 0, %v1665
        %v1667 = vsel %vm1666, 0, %v1665
        %v1668 = vsub.s32 32, %v1667
        %v1669 = vshll.u32 %v1660, %v1667
        %v1670 = vshrl.u32 %v1652, %v1668
        %v1671 = vor.u32 %v1669, %v1670
        %v1672 = vsub.s32 4294967266, %v1667
        %v1673 = vadd.s32 %v1672, 127
        %v1674 = vshll.u32 %v1673, 23
        %v1675 = vor.u32 4788187, %v1674
        %v1676 = vand.u32 2147483647, %v1675
        %v1678 = vcvt.s32.f32 %v1671
        %v1679 = vmul.f32 %v1678, %v1676
        %v1680 = vxor.u32 %v1679, 2147483648
        %v1681 = vsel %vm1560, %v1680, %v1679
        %v1682 = vsub.s32 4, %v1658
        %v1683 = vsel %vm1560, %v1682, %v1658
        %v1684 = vsel %vm1559, %v780, %v1681
        %v1685 = vsel %vm1559, 0, %v1683
        %v1686 = vmul.f32 %v1684, %v1684
        %v1687 = vmul.f32 %v1686, -0.001358992
        %v1688 = vadd.f32 %v1687, 0.041655596
        %v1689 = vmul.f32 %v1686, %v1688
        %v1690 = vadd.f32 %v1689, -0.4999988
        %v1691 = vmul.f32 %v1686, %v1690
        %v1692 = vadd.f32 1.0, %v1691
        %v1693 = vmul.f32 %v1684, %v1684
        %v1694 = vmul.f32 %v1693, -0.00019511016
        %v1695 = vadd.f32 %v1694, 0.008332121
        %v1696 = vmul.f32 %v1693, %v1695
        %v1697 = vadd.f32 %v1696, -0.16666654
        %v1698 = vmul.f32 %v1693, %v1697
        %v1699 = vadd.f32 %v1698, 1.0
        %v1700 = vmul.f32 %v1699, %v1684
        %vm1701 = vweird.f32 %v780
        %v1702 = vadd.s32 %v1685, 3
        %v1703 = vand.u32 %v1702, 3
        %vm1704 = vcmp.lt.s32.totalorder %v1703, 2
        %vm1705 = vcmp.eq.s32.totalorder %v1703, 0
        %v1706 = vxor.u32 %v1700, 2147483648
        %v1707 = vsel %vm1705, %v1692, %v1706
        %vm1708 = vcmp.eq.s32.totalorder %v1703, 2
        %v1709 = vxor.u32 %v1692, 2147483648
        %v1710 = vsel %vm1708, %v1709, %v1700
        %v1711 = vsel %vm1704, %v1707, %v1710
        %v1712 = vsel %vm1701, nan, %v1711
        %v1713 = vand.u32 2147483647, %v781
        %vm1714 = vcmp.le.f32.partialorder %v1713, 0.7853982
        %vm1715 = vcmp.lt.s32.totalorder %v781, 0
        %v1716 = vand.u32 %v781, 2139095040
        %v1717 = vshrl.u32 %v1716, 23
        %v1718 = vsub.s32 %v1717, 127
        %v1719 = vand.u32 2147483647, %v781
        %v1720 = vand.u32 %v1719, 8388607
        %v1721 = vor.u32 %v1720, 8388608
        %v1722 = vsub.s32 0, %v1721
        %v1723 = vadd.s32 %v1718, 1
        %vm1724 = vcmp.gt.s32.totalorder %v1723, 0
        %v1725 = vsel %vm1724, %v1723, 0
        %v1726 = vshrl.u32 %v1725, 5
        %v1727 = vand.u32 %v1725, 31
        %v1728 = vsub.s32 32, %v1727
        %v1729 = vshrl.u32 683565275, %v1728
        %v1730 = vshll.u32 683565275, %v1727
        %v1731 = vshrl.u32 2475754826, %v1728
        %v1732 = vor.u32 %v1730, %v1731
        %v1733 = vshll.u32 2475754826, %v1727
        %v1734 = vshrl.u32 2131351028, %v1728
        %v1735 = vor.u32 %v1733, %v1734
        %v1736 = vshll.u32 2131351028, %v1727
        %v1737 = vshrl.u32 2102212464, %v1728
        %v1738 = vor.u32 %v1736, %v1737
        %v1739 = vshll.u32 2102212464, %v1727
        %v1740 = vshrl.u32 920167782, %v1728
        %v1741 = vor.u32 %v1739, %v1740
        %v1742 = vshll.u32 920167782, %v1727
        %v1743 = vshrl.u32 1326507024, %v1728
        %v1744 = vor.u32 %v1742, %v1743
        %vm1745 = vcmp.lt.s32.totalorder %v1726, 1
        %vm1746 = vcmp.lt.s32.totalorder %v1726, 2
        %vm1747 = vcmp.lt.s32.totalorder %v1726, 3
        %vm1748 = vcmp.lt.s32.totalorder %v1726, 4
        %v1749 = vsel %vm1745, %v1729, %v1732
        %v1750 = vsel %vm1748, %v1738, 2102212464
        %v1751 = vsel %vm1747, %v1735, %v1750
        %v1752 = vsel %vm1746, %v1749, %v1751
        %v1753 = vsel %vm1745, %v1732, %v1735
        %v1754 = vsel %vm1748, %v1741, 920167782
        %v1755 = vsel %vm1747, %v1738, %v1754
        %v1756 = vsel %vm1746, %v1753, %v1755
        %v1757 = vsel %vm1745, %v1735, %v1738
        %v1758 = vsel %vm1748, %v1744, 1326507024
        %v1759 = vsel %vm1747, %v1741, %v1758
        %v1760 = vsel %vm1746, %v1757, %v1759
        %v1761 = vshll.u32 %v1721, 8
        %v1762 = vand.u32 %v1761, 65535
        %v1763 = vshrl.u32 %v1761, 16
        %v1764 = vand.u32 %v1760, 65535
        %v1765 = vshrl.u32 %v1760, 16
        %v1766 = vmul.u32 %v1762, %v1764
        %v1767 = vmul.u32 %v1762, %v1765
        %v1768 = vmul.u32 %v1763, %v1764
        %v1769 = vmul.u32 %v1763, %v1765
        %v1770 = vshll.u32 %v1767, 16
        %v1771 = vshrl.u32 %v1767, 16
        %v1772 = vshll.u32 %v1768, 16
        %v1773 = vshrl.u32 %v1768, 16
        %vm1774 = vc.u32 %v1766, %v1770
        %v1775 = vsel %vm1774, 1, 0
        %v1776 = vadd.s32 %v1766, %v1770
        %v1777 = vadd.s32 %v1769, %v1775
        %vm1778 = vc.u32 %v1776, %v1772
        %v1779 = vsel %vm1778, 1, 0
        %v1780 = vadd.s32 %v1776, %v1772
        %v1781 = vadd.s32 %v1777, %v1779
        %v1782 = vadd.s32 %v1781, %v1771
        %v1783 = vadd.s32 %v1782, %v1773
        %v1784 = vand.u32 %v1761, 65535
        %v1785 = vshrl.u32 %v1761, 16
        %v1786 = vand.u32 %v1756, 65535
        %v1787 = vshrl.u32 %v1756, 16
        %v1788 = vmul.u32 %v1784, %v1786
        %v1789 = vmul.u32 %v1784, %v1787
        %v1790 = vmul.u32 %v1785, %v1786
        %v1791 = vmul.u32 %v1785, %v1787
        %v1792 = vshll.u32 %v1789, 16
        %v1793 = vshrl.u32 %v1789, 16
        %v1794 = vshll.u32 %v1790, 16
        %v1795 = vshrl.u32 %v1790, 16
        %vm1796 = vc.u32 %v1788, %v1792
        %v1797 = vsel %vm1796, 1, 0
        %v1798 = vadd.s32 %v1788, %v1792
        %v1799 = vadd.s32 %v1791, %v1797
        %vm1800 = vc.u32 %v1798, %v1794
        %v1801 = vsel %vm1800, 1, 0
        %v1802 = vadd.s32 %v1798, %v1794
        %v1803 = vadd.s32 %v1799, %v1801
        %v1804 = vadd.s32 %v1803, %v1793
        %v1805 = vadd.s32 %v1804, %v1795
        %v1806 = vmul.u32 %v1761, %v1752
        %v1807 = vadd.s32 %v1783, %v1802
        %vm1808 = vc.u32 %v1783, %v1802
        %v1809 = vadd.s32 %v1805, 1
        %v1810 = vsel %vm1808, %v1809, %v1805
        %v1811 = vadd.s32 %v1806, %v1810
        %v1812 = vadd.s32 %v1811, 536870912
        %v1813 = vshrl.u32 %v1812, 30
        %v1814 = vshll.u32 %v1813, 30
        %v1815 = vsub.s32 %v1811, %v1814
        %vm1816 = vcmp.lt.s32.totalorder %v1815, 0
        %v1817 = vsub.s32 0, %v1815
        %v1818 = vsel %vm1816, %v1817, %v1815
        %v1819 = vclz %v1818
        %v1820 = vsub.s32 %v1819, 2
        %vm1821 = vcmp.gt.s32.totalorder 0, %v1820
        %v1822 = vsel %vm1821, 0, %v1820
        %v1823 = vsub.s32 32, %v1822
        %v1824 = vshll.u32 %v1815, %v1822
        %v1825 = vshrl.u32 %v1807, %v1823
        %v1826 = vor.u32 %v1824, %v1825
        %v1827 = vsub.s32 4294967266, %v1822
        %v1828 = vadd.s32 %v1827, 127
        %v1829 = vshll.u32 %v1828, 23
        %v1830 = vor.u32 4788187, %v1829
        %v1831 = vand.u32 2147483647, %v1830
        %v1833 = vcvt.s32.f32 %v1826
        %v1834 = vmul.f32 %v1833, %v1831
        %v1835 = vxor.u32 %v1834, 2147483648
        %v1836 = vsel %vm1715, %v1835, %v1834
        %v1837 = vsub.s32 4, %v1813
        %v1838 = vsel %vm1715, %v1837, %v1813
        %v1839 = vsel %vm1714, %v781, %v1836
        %v1840 = vsel %vm1714, 0, %v1838
        %v1841 = vmul.f32 %v1839, %v1839
        %v1842 = vmul.f32 %v1841, -0.001358992
        %v1843 = vadd.f32 %v1842, 0.041655596
        %v1844 = vmul.f32 %v1841, %v1843
        %v1845 = vadd.f32 %v1844, -0.4999988
        %v1846 = vmul.f32 %v1841, %v1845
        %v1847 = vadd.f32 1.0, %v1846
        %v1848 = vmul.f32 %v1839, %v1839
        %v1849 = vmul.f32 %v1848, -0.00019511016
        %v1850 = vadd.f32 %v1849, 0.008332121
        %v1851 = vmul.f32 %v1848, %v1850
        %v1852 = vadd.f32 %v1851, -0.16666654
        %v1853 = vmul.f32 %v1848, %v1852
        %v1854 = vadd.f32 %v1853, 1.0
        %v1855 = vmul.f32 %v1854, %v1839
        %vm1856 = vweird.f32 %v781
        %v1857 = vadd.s32 %v1840, 3
        %v1858 = vand.u32 %v1857, 3
        %vm1859 = vcmp.lt.s32.totalorder %v1858, 2
        %vm1860 = vcmp.eq.s32.totalorder %v1858, 0
        %v1861 = vxor.u32 %v1855, 2147483648
        %v1862 = vsel %vm1860, %v1847, %v1861
        %vm1863 = vcmp.eq.s32.totalorder %v1858, 2
        %v1864 = vxor.u32 %v1847, 2147483648
        %v1865 = vsel %vm1863, %v1864, %v1855
        %v1866 = vsel %vm1859, %v1862, %v1865
        %v1867 = vsel %vm1856, nan, %v1866
        %v1868 = vand.u32 2147483647, %v782
        %vm1869 = vcmp.le.f32.partialorder %v1868, 0.7853982
        %vm1870 = vcmp.lt.s32.totalorder %v782, 0
        %v1871 = vand.u32 %v782, 2139095040
        %v1872 = vshrl.u32 %v1871, 23
        %v1873 = vsub.s32 %v1872, 127
        %v1874 = vand.u32 2147483647, %v782
        %v1875 = vand.u32 %v1874, 8388607
        %v1876 = vor.u32 %v1875, 8388608
        %v1877 = vsub.s32 0, %v1876
        %v1878 = vadd.s32 %v1873, 1
        %vm1879 = vcmp.gt.s32.totalorder %v1878, 0
        %v1880 = vsel %vm1879, %v1878, 0
        %v1881 = vshrl.u32 %v1880, 5
        %v1882 = vand.u32 %v1880, 31
        %v1883 = vsub.s32 32, %v1882
        %v1884 = vshrl.u32 683565275, %v1883
        %v1885 = vshll.u32 683565275, %v1882
        %v1886 = vshrl.u32 2475754826, %v1883
        %v1887 = vor.u32 %v1885, %v1886
        %v1888 = vshll.u32 2475754826, %v1882
        %v1889 = vshrl.u32 2131351028, %v1883
        %v1890 = vor.u32 %v1888, %v1889
        %v1891 = vshll.u32 2131351028, %v1882
        %v1892 = vshrl.u32 2102212464, %v1883
        %v1893 = vor.u32 %v1891, %v1892
        %v1894 = vshll.u32 2102212464, %v1882
        %v1895 = vshrl.u32 920167782, %v1883
        %v1896 = vor.u32 %v1894, %v1895
        %v1897 = vshll.u32 920167782, %v1882
        %v1898 = vshrl.u32 1326507024, %v1883
        %v1899 = vor.u32 %v1897, %v1898
        %vm1900 = vcmp.lt.s32.totalorder %v1881, 1
        %vm1901 = vcmp.lt.s32.totalorder %v1881, 2
        %vm1902 = vcmp.lt.s32.totalorder %v1881, 3
        %vm1903 = vcmp.lt.s32.totalorder %v1881, 4
        %v1904 = vsel %vm1900, %v1884, %v1887
        %v1905 = vsel %vm1903, %v1893, 2102212464
        %v1906 = vsel %vm1902, %v1890, %v1905
        %v1907 = vsel %vm1901, %v1904, %v1906
        %v1908 = vsel %vm1900, %v1887, %v1890
        %v1909 = vsel %vm1903, %v1896, 920167782
        %v1910 = vsel %vm1902, %v1893, %v1909
        %v1911 = vsel %vm1901, %v1908, %v1910
        %v1912 = vsel %vm1900, %v1890, %v1893
        %v1913 = vsel %vm1903, %v1899, 1326507024
        %v1914 = vsel %vm1902, %v1896, %v1913
        %v1915 = vsel %vm1901, %v1912, %v1914
        %v1916 = vshll.u32 %v1876, 8
        %v1917 = vand.u32 %v1916, 65535
        %v1918 = vshrl.u32 %v1916, 16
        %v1919 = vand.u32 %v1915, 65535
        %v1920 = vshrl.u32 %v1915, 16
        %v1921 = vmul.u32 %v1917, %v1919
        %v1922 = vmul.u32 %v1917, %v1920
        %v1923 = vmul.u32 %v1918, %v1919
        %v1924 = vmul.u32 %v1918, %v1920
        %v1925 = vshll.u32 %v1922, 16
        %v1926 = vshrl.u32 %v1922, 16
        %v1927 = vshll.u32 %v1923, 16
        %v1928 = vshrl.u32 %v1923, 16
        %vm1929 = vc.u32 %v1921, %v1925
        %v1930 = vsel %vm1929, 1, 0
        %v1931 = vadd.s32 %v1921, %v1925
        %v1932 = vadd.s32 %v1924, %v1930
        %vm1933 = vc.u32 %v1931, %v1927
        %v1934 = vsel %vm1933, 1, 0
        %v1935 = vadd.s32 %v1931, %v1927
        %v1936 = vadd.s32 %v1932, %v1934
        %v1937 = vadd.s32 %v1936, %v1926
        %v1938 = vadd.s32 %v1937, %v1928
        %v1939 = vand.u32 %v1916, 65535
        %v1940 = vshrl.u32 %v1916, 16
        %v1941 = vand.u32 %v1911, 65535
        %v1942 = vshrl.u32 %v1911, 16
        %v1943 = vmul.u32 %v1939, %v1941
        %v1944 = vmul.u32 %v1939, %v1942
        %v1945 = vmul.u32 %v1940, %v1941
        %v1946 = vmul.u32 %v1940, %v1942
        %v1947 = vshll.u32 %v1944, 16
        %v1948 = vshrl.u32 %v1944, 16
        %v1949 = vshll.u32 %v1945, 16
        %v1950 = vshrl.u32 %v1945, 16
        %vm1951 = vc.u32 %v1943, %v1947
        %v1952 = vsel %vm1951, 1, 0
        %v1953 = vadd.s32 %v1943, %v1947
        %v1954 = vadd.s32 %v1946, %v1952
        %vm1955 = vc.u32 %v1953, %v1949
        %v1956 = vsel %vm1955, 1, 0
        %v1957 = vadd.s32 %v1953, %v1949
        %v1958 = vadd.s32 %v1954, %v1956
        %v1959 = vadd.s32 %v1958, %v1948
        %v1960 = vadd.s32 %v1959, %v1950
        %v1961 = vmul.u32 %v1916, %v1907
        %v1962 = vadd.s32 %v1938, %v1957
        %vm1963 = vc.u32 %v1938, %v1957
        %v1964 = vadd.s32 %v1960, 1
        %v1965 = vsel %vm1963, %v1964, %v1960
        %v1966 = vadd.s32 %v1961, %v1965
        %v1967 = vadd.s32 %v1966, 536870912
        %v1968 = vshrl.u32 %v1967, 30
        %v1969 = vshll.u32 %v1968, 30
        %v1970 = vsub.s32 %v1966, %v1969
        %vm1971 = vcmp.lt.s32.totalorder %v1970, 0
        %v1972 = vsub.s32 0, %v1970
        %v1973 = vsel %vm1971, %v1972, %v1970
        %v1974 = vclz %v1973
        %v1975 = vsub.s32 %v1974, 2
        %vm1976 = vcmp.gt.s32.totalorder 0, %v1975
        %v1977 = vsel %vm1976, 0, %v1975
        %v1978 = vsub.s32 32, %v1977
        %v1979 = vshll.u32 %v1970, %v1977
        %v1980 = vshrl.u32 %v1962, %v1978
        %v1981 = vor.u32 %v1979, %v1980
        %v1982 = vsub.s32 4294967266, %v1977
        %v1983 = vadd.s32 %v1982, 127
        %v1984 = vshll.u32 %v1983, 23
        %v1985 = vor.u32 4788187, %v1984
        %v1986 = vand.u32 2147483647, %v1985
        %v1988 = vcvt.s32.f32 %v1981
        %v1989 = vmul.f32 %v1988, %v1986
        %v1990 = vxor.u32 %v1989, 2147483648
        %v1991 = vsel %vm1870, %v1990, %v1989
        %v1992 = vsub.s32 4, %v1968
        %v1993 = vsel %vm1870, %v1992, %v1968
        %v1994 = vsel %vm1869, %v782, %v1991
        %v1995 = vsel %vm1869, 0, %v1993
        %v1996 = vmul.f32 %v1994, %v1994
        %v1997 = vmul.f32 %v1996, -0.001358992
        %v1998 = vadd.f32 %v1997, 0.041655596
        %v1999 = vmul.f32 %v1996, %v1998
        %v2000 = vadd.f32 %v1999, -0.4999988
        %v2001 = vmul.f32 %v1996, %v2000
        %v2002 = vadd.f32 1.0, %v2001
        %v2003 = vmul.f32 %v1994, %v1994
        %v2004 = vmul.f32 %v2003, -0.00019511016
        %v2005 = vadd.f32 %v2004, 0.008332121
        %v2006 = vmul.f32 %v2003, %v2005
        %v2007 = vadd.f32 %v2006, -0.16666654
        %v2008 = vmul.f32 %v2003, %v2007
        %v2009 = vadd.f32 %v2008, 1.0
        %v2010 = vmul.f32 %v2009, %v1994
        %vm2011 = vweird.f32 %v782
        %v2012 = vadd.s32 %v1995, 3
        %v2013 = vand.u32 %v2012, 3
        %vm2014 = vcmp.lt.s32.totalorder %v2013, 2
        %vm2015 = vcmp.eq.s32.totalorder %v2013, 0
        %v2016 = vxor.u32 %v2010, 2147483648
        %v2017 = vsel %vm2015, %v2002, %v2016
        %vm2018 = vcmp.eq.s32.totalorder %v2013, 2
        %v2019 = vxor.u32 %v2002, 2147483648
        %v2020 = vsel %vm2018, %v2019, %v2010
        %v2021 = vsel %vm2014, %v2017, %v2020
        %v2022 = vsel %vm2011, nan, %v2021
        %2024 = vset.pattern.permute.xlu0 0
        %2025 = vperm.xlu0 %2024, %v723
        %v2026 = vpop.permute.xlu0 %2025
        %2029 = vset.pattern.permute.xlu0 0
        %2030 = vperm.xlu0 %2029, %v724
        %v2031 = vpop.permute.xlu0 %2030
        %2034 = vset.pattern.permute.xlu0 0
        %2035 = vperm.xlu0 %2034, %v725
        %v2036 = vpop.permute.xlu0 %2035
        %2039 = vset.pattern.permute.xlu0 0
        %2040 = vperm.xlu0 %2039, %v726
        %v2041 = vpop.permute.xlu0 %2040
        %2044 = vset.pattern.permute.xlu0 0
        %2045 = vperm.xlu0 %2044, %v727
        %v2046 = vpop.permute.xlu0 %2045
        %2049 = vset.pattern.permute.xlu0 0
        %2050 = vperm.xlu0 %2049, %v728
        %v2051 = vpop.permute.xlu0 %2050
        %2054 = vset.pattern.permute.xlu0 0
        %2055 = vperm.xlu0 %2054, %v729
        %v2056 = vpop.permute.xlu0 %2055
        %2059 = vset.pattern.permute.xlu0 0
        %2060 = vperm.xlu0 %2059, %v730
        %v2061 = vpop.permute.xlu0 %2060
        %v2063 = vmul.f32 %v2026, %v937
        %v2064 = vmul.f32 %v2031, %v1092
        %v2065 = vmul.f32 %v2036, %v1247
        %v2066 = vmul.f32 %v2041, %v1402
        %v2067 = vmul.f32 %v2046, %v1557
        %v2068 = vmul.f32 %v2051, %v1712
        %v2069 = vmul.f32 %v2056, %v1867
        %v2070 = vmul.f32 %v2061, %v2022
        %v2071 = vpack.c.bf16 %v2064, %v2063
        %v2072 = vpack.c.bf16 %v2066, %v2065
        %v2073 = vpack.c.bf16 %v2068, %v2067
        %v2074 = vpack.c.bf16 %v2070, %v2069
        %v2075 = vld [vmem:[%s6] sm:$0x7]
        %vm2076 = vcmask 48128
        %v2078 = vsel %vm2076, %v2071, 0
        %v2081 = vsel %vm2076, %v2072, 0
        %v2084 = vsel %vm2076, %v2073, 0
        %v2087 = vsel %vm2076, %v2074, 0
        %vm2089 = vcmask 1042432
        %v2091 = vsel %vm2089, %v2075, 0
        %2093 = vmatpush.bf16.msra.mxu0 0
        %2094 = vmatpush.bf16.msra.mxu0 0
        %2095 = vmatpush.bf16.msra.mxu0 0
        %2096 = vmatpush.bf16.msra.mxu0 0
        %2097 = vmatpush.bf16.msra.mxu0 0
        %2098 = vmatpush.bf16.msra.mxu0 0
        %2099 = vmatpush.bf16.msra.mxu0 0
        %2100 = vmatpush.bf16.msra.mxu0 %v2091
        %2101 = vmatmul.bf16.gmra.mxu0 %v2078
        %v2102 = vpop.f32.mrf.mxu0
        %v2103 = vadd.f32 0.0, %v2102
        %v2104 = vpop.f32.mrf.mxu0
        %v2105 = vadd.f32 0.0, %v2104
        %2106 = vmatmul.bf16.gmra.mxu0 %v2081
        %v2107 = vpop.f32.mrf.mxu0
        %v2108 = vadd.f32 0.0, %v2107
        %v2109 = vpop.f32.mrf.mxu0
        %v2110 = vadd.f32 0.0, %v2109
        %2111 = vmatmul.bf16.gmra.mxu0 %v2084
        %v2112 = vpop.f32.mrf.mxu0
        %v2113 = vadd.f32 0.0, %v2112
        %v2114 = vpop.f32.mrf.mxu0
        %v2115 = vadd.f32 0.0, %v2114
        %2116 = vmatmul.bf16.gmra.mxu0 %v2087
        %v2117 = vpop.f32.mrf.mxu0
        %v2118 = vadd.f32 0.0, %v2117
        %v2119 = vpop.f32.mrf.mxu0
        %v2120 = vadd.f32 0.0, %v2119
        %2121 = vdwg.mxu0
        %v2122 = vld [vmem:[%s460] sm:$0xff]
        %v2123 = vld [vmem:[%s460 + $0x8] sm:$0xff]
        %v2124 = vld [vmem:[%s460 + $0x10] sm:$0xff]
        %v2125 = vld [vmem:[%s460 + $0x18] sm:$0xff]
        %v2126 = vld [vmem:[%s460 + $0x20] sm:$0xff]
        %v2127 = vld [vmem:[%s460 + $0x28] sm:$0xff]
        %v2128 = vld [vmem:[%s460 + $0x30] sm:$0xff]
        %v2129 = vld [vmem:[%s460 + $0x38] sm:$0xff]
        %v2130 = vmul.f32 %v2103, %v2122
        %v2131 = vmul.f32 %v2105, %v2123
        %v2132 = vmul.f32 %v2108, %v2124
        %v2133 = vmul.f32 %v2110, %v2125
        %v2134 = vmul.f32 %v2113, %v2126
        %v2135 = vmul.f32 %v2115, %v2127
        %v2136 = vmul.f32 %v2118, %v2128
        %v2137 = vmul.f32 %v2120, %v2129
        %v2138 = vlaneseq
        %v2139 = vshrl.u32 %v2138, 7
        %v2140 = vstv %s473
        %v2141 = vadd.s32 %v2140, %v2139
        %v2142 = vld [vmem:[%s449] sm:$0x1]
        %v2143 = vperm.slane %v2142, 0
        %vm2144 = vcmp.eq.s32.totalorder %v2143, %v2141
        %v2145 = vsel %vm2144, 1, 0
        %v2146 = vcvt.s32.f32 %v2145
        %v2147 = vpack.c.bf16 %v2146, %v2146
        %v2148 = vld [vmem:[#allocation2] sm:$0xff]
        %v2149 = vpack.c.bf16 %v2131, %v2130
        %v2150 = vpack.c.bf16 %v2133, %v2132
        %v2151 = vpack.c.bf16 %v2135, %v2134
        %v2152 = vpack.c.bf16 %v2137, %v2136
        %vm2153 = vcmask 523264
        %v2155 = vsel %vm2153, %v2147, 0
        %2157 = vmatpush.bf16.msra.mxu0 0
        %2158 = vmatpush.bf16.msra.mxu0 0
        %2159 = vmatpush.bf16.msra.mxu0 0
        %2160 = vmatpush.bf16.msra.mxu0 0
        %2161 = vmatpush.bf16.msra.mxu0 %v2152
        %2162 = vmatpush.bf16.msra.mxu0 %v2151
        %2163 = vmatpush.bf16.msra.mxu0 %v2150
        %2164 = vmatpush.bf16.msra.mxu0 %v2149
        %2165 = vmatmul.bf16.gmra.mxu0 %v2155
        %v2166 = vpop.f32.mrf.mxu0
        %v2167 = vadd.f32 0.0, %v2166
        %v2168 = vpop.f32.mrf.mxu0
        %2169 = vdwg.mxu0
        %v2170 = vadd.f32 %v2148, %v2167
        %vm2171 = vcmask 261120
        %2172 = vst.msk [vmem:[#allocation2] sm:$0xff] %vm2171, %v2170
      $region76: #{_lambda_.20} parent=67 // pred_fallthru
        _
      // Predicated region
      $region77: #{_lambda_.20} parent=67 // pred_check
        %p2173 = pneg %p467
      $region78: #{_lambda_.20} parent=67 // pred_check_branch
        %2175 = sbr.rel (%p2173) target = $region80
      $region79: #{_lambda_.20} parent=67 // pred_region
        %v2176 = vld [vmem:[#allocation2] sm:$0xff]
        %v2177 = vpack.c.bf16 %v2176, %v2176
        %v2178 = vld [vmem:[%s7] sm:$0xf]
        %v2179 = vld [vmem:[%s7 + $0x4] sm:$0xf]
        %v2180 = vld [vmem:[%s7 + $0x8] sm:$0xf]
        %v2181 = vld [vmem:[%s7 + $0xc] sm:$0xf]
        %v2182 = vld [vmem:[%s8] sm:$0x1]
        %v2184 = vperm.slane %v2182, 0
        %v2190 = vunpack.c.l.b16 %v2178
        %v2191 = vunpack.c.l.b16 %v2179
        %v2192 = vunpack.c.l.b16 %v2180
        %v2193 = vunpack.c.l.b16 %v2181
        %v2194 = vpack.c.b16 %v2191, %v2190
        %v2195 = vpack.c.b16 %v2193, %v2192
        %vm2198 = vcmask 261120
        %v2200 = vsel %vm2198, %v2177, 0
        %2202 = vmatpush.bf16.msra.mxu0 0
        %2203 = vmatpush.bf16.msra.mxu0 0
        %2204 = vmatpush.bf16.msra.mxu0 0
        %2205 = vmatpush.bf16.msra.mxu0 0
        %2206 = vmatpush.bf16.msra.mxu0 0
        %2207 = vmatpush.bf16.msra.mxu0 0
        %2208 = vmatpush.bf16.msra.mxu0 %v2195
        %2209 = vmatpush.bf16.msra.mxu0 %v2194
        %2210 = vmatmul.bf16.gmra.mxu0 %v2200
        %v2211 = vpop.f32.mrf.mxu0
        %v2212 = vadd.f32 %v2184, %v2211
        %v2213 = vpop.f32.mrf.mxu0
        %2214 = vdwg.mxu0
        %v2215 = vxor.u32 %v2212, 2147483648
        %v2216 = vmul.f32 %v2215, 1.442695
        %v2217 = vpow.pop %v2216
        %v2218 = vadd.f32 %v2217, 1.0
        %v2219 = vrcp.pop %v2218
        %v2220 = vmul.f32 %v2218, %v2219
        %v2221 = vsub.f32 1.0, %v2220
        %v2222 = vmul.f32 %v2219, %v2221
        %v2223 = vadd.f32 %v2219, %v2222
        %vm2224 = vweird.f32 %v2218
        %vm2225 = vweird.f32 %v2219
        %vm2226 = vmor %vm2224, %vm2225
        %v2227 = vsel %vm2226, %v2219, %v2223
        %v2228 = vand.u32 2147483647, %v2218
        %vm2229 = vcmp.eq.f32.partialorder %v2228, 8.507059e+37
        %v2230 = vand.u32 %v2218, 2147483648
        %v2231 = vor.u32 1.1754944e-38, %v2230
        %v2232 = vsel %vm2229, %v2231, %v2227
        %v2233 = vmul.f32 1.0, %v2232
        %v2234 = vmul.f32 %v2212, %v2233
        %v2235 = vpack.c.bf16 %v2234, %v2234
        %v2236 = vld [vmem:[%s9] sm:$0xf]
        %v2237 = vld [vmem:[%s9 + $0x4] sm:$0xf]
        %v2238 = vld [vmem:[%s9 + $0x8] sm:$0xf]
        %v2239 = vld [vmem:[%s9 + $0xc] sm:$0xf]
        %v2240 = vld [vmem:[%s10] sm:$0x1]
        %v2242 = vperm.slane %v2240, 0
        %v2248 = vunpack.c.l.b16 %v2236
        %v2249 = vunpack.c.l.b16 %v2237
        %v2250 = vunpack.c.l.b16 %v2238
        %v2251 = vunpack.c.l.b16 %v2239
        %v2252 = vpack.c.b16 %v2249, %v2248
        %v2253 = vpack.c.b16 %v2251, %v2250
        %v2257 = vsel %vm2198, %v2235, 0
        %2259 = vmatpush.bf16.msra.mxu0 0
        %2260 = vmatpush.bf16.msra.mxu0 0
        %2261 = vmatpush.bf16.msra.mxu0 0
        %2262 = vmatpush.bf16.msra.mxu0 0
        %2263 = vmatpush.bf16.msra.mxu0 0
        %2264 = vmatpush.bf16.msra.mxu0 0
        %2265 = vmatpush.bf16.msra.mxu0 %v2253
        %2266 = vmatpush.bf16.msra.mxu0 %v2252
        %2267 = vmatmul.bf16.gmra.mxu0 %v2257
        %v2268 = vpop.f32.mrf.mxu0
        %v2269 = vadd.f32 %v2242, %v2268
        %v2270 = vpop.f32.mrf.mxu0
        %2271 = vdwg.mxu0
        %v2272 = vxor.u32 %v2269, 2147483648
        %v2273 = vmul.f32 %v2272, 1.442695
        %v2274 = vpow.pop %v2273
        %v2275 = vadd.f32 %v2274, 1.0
        %v2276 = vrcp.pop %v2275
        %v2277 = vmul.f32 %v2275, %v2276
        %v2278 = vsub.f32 1.0, %v2277
        %v2279 = vmul.f32 %v2276, %v2278
        %v2280 = vadd.f32 %v2276, %v2279
        %vm2281 = vweird.f32 %v2275
        %vm2282 = vweird.f32 %v2276
        %vm2283 = vmor %vm2281, %vm2282
        %v2284 = vsel %vm2283, %v2276, %v2280
        %v2285 = vand.u32 2147483647, %v2275
        %vm2286 = vcmp.eq.f32.partialorder %v2285, 8.507059e+37
        %v2287 = vand.u32 %v2275, 2147483648
        %v2288 = vor.u32 1.1754944e-38, %v2287
        %v2289 = vsel %vm2286, %v2288, %v2284
        %v2290 = vmul.f32 1.0, %v2289
        %v2291 = vmul.f32 %v2269, %v2290
        %v2292 = vpack.c.bf16 %v2291, %v2291
        %v2293 = vld [vmem:[%s11] sm:$0xf]
        %v2294 = vld [vmem:[%s11 + $0x4] sm:$0xf]
        %v2295 = vld [vmem:[%s11 + $0x8] sm:$0xf]
        %v2296 = vld [vmem:[%s11 + $0xc] sm:$0xf]
        %v2297 = vld [vmem:[%s12] sm:$0x1]
        %v2299 = vperm.slane %v2297, 0
        %v2305 = vunpack.c.l.b16 %v2293
        %v2306 = vunpack.c.l.b16 %v2294
        %v2307 = vunpack.c.l.b16 %v2295
        %v2308 = vunpack.c.l.b16 %v2296
        %v2309 = vpack.c.b16 %v2306, %v2305
        %v2310 = vpack.c.b16 %v2308, %v2307
        %v2314 = vsel %vm2198, %v2292, 0
        %2316 = vmatpush.bf16.msra.mxu0 0
        %2317 = vmatpush.bf16.msra.mxu0 0
        %2318 = vmatpush.bf16.msra.mxu0 0
        %2319 = vmatpush.bf16.msra.mxu0 0
        %2320 = vmatpush.bf16.msra.mxu0 0
        %2321 = vmatpush.bf16.msra.mxu0 0
        %2322 = vmatpush.bf16.msra.mxu0 %v2310
        %2323 = vmatpush.bf16.msra.mxu0 %v2309
        %2324 = vmatmul.bf16.gmra.mxu0 %v2314
        %v2325 = vpop.f32.mrf.mxu0
        %v2326 = vadd.f32 %v2299, %v2325
        %v2327 = vpop.f32.mrf.mxu0
        %2328 = vdwg.mxu0
        %v2329 = vxor.u32 %v2326, 2147483648
        %v2330 = vmul.f32 %v2329, 1.442695
        %v2331 = vpow.pop %v2330
        %v2332 = vadd.f32 %v2331, 1.0
        %v2333 = vrcp.pop %v2332
        %v2334 = vmul.f32 %v2332, %v2333
        %v2335 = vsub.f32 1.0, %v2334
        %v2336 = vmul.f32 %v2333, %v2335
        %v2337 = vadd.f32 %v2333, %v2336
        %vm2338 = vweird.f32 %v2332
        %vm2339 = vweird.f32 %v2333
        %vm2340 = vmor %vm2338, %vm2339
        %v2341 = vsel %vm2340, %v2333, %v2337
        %v2342 = vand.u32 2147483647, %v2332
        %vm2343 = vcmp.eq.f32.partialorder %v2342, 8.507059e+37
        %v2344 = vand.u32 %v2332, 2147483648
        %v2345 = vor.u32 1.1754944e-38, %v2344
        %v2346 = vsel %vm2343, %v2345, %v2341
        %v2347 = vmul.f32 1.0, %v2346
        %v2348 = vmul.f32 %v2326, %v2347
        %v2349 = vpack.c.bf16 %v2348, %v2348
        %v2350 = vld [vmem:[%s13] sm:$0xf]
        %v2351 = vld [vmem:[%s13 + $0x4] sm:$0xf]
        %v2352 = vld [vmem:[%s13 + $0x8] sm:$0xf]
        %v2353 = vld [vmem:[%s13 + $0xc] sm:$0xf]
        %v2358 = vunpack.c.l.b16 %v2350
        %v2359 = vunpack.c.l.b16 %v2351
        %v2360 = vunpack.c.l.b16 %v2352
        %v2361 = vunpack.c.l.b16 %v2353
        %v2362 = vpack.c.b16 %v2359, %v2358
        %v2363 = vpack.c.b16 %v2361, %v2360
        %v2367 = vsel %vm2198, %v2349, 0
        %2369 = vmatpush.bf16.msra.mxu0 0
        %2370 = vmatpush.bf16.msra.mxu0 0
        %2371 = vmatpush.bf16.msra.mxu0 0
        %2372 = vmatpush.bf16.msra.mxu0 0
        %2373 = vmatpush.bf16.msra.mxu0 0
        %2374 = vmatpush.bf16.msra.mxu0 0
        %2375 = vmatpush.bf16.msra.mxu0 %v2363
        %2376 = vmatpush.bf16.msra.mxu0 %v2362
        %2377 = vmatmul.bf16.gmra.mxu0 %v2367
        %v2378 = vpop.f32.mrf.mxu0
        %v2379 = vadd.f32 0.0, %v2378
        %v2380 = vpop.f32.mrf.mxu0
        %2381 = vdwg.mxu0
        %vm2382 = vcmask 31744
        %2383 = vst.msk [vmem:[%s465] sm:$0xff] %vm2382, %v2379
      $region80: #{_lambda_.20} parent=67 // pred_fallthru
        _
      %p2384 = scmp.lt.s32.totalorder %s31, 1
      %s2385 = scalar_select %p2384, %s31, 1
      %s2386 = smul.addr %s2385, 8
      %s2387 = scalar_lea.vmem %s14, %s2386
      // Predicated region
      $region81: #{_lambda_.20} parent=67 // pred_check
        %p2388 = pneg %p324
      $region82: #{_lambda_.20} parent=67 // pred_check_branch
        %2390 = sbr.rel (%p2388) target = $region84
      $region83: #{_lambda_.20} parent=67 // pred_region
        _
      $region84: #{_lambda_.20} parent=67 // pred_fallthru
        _
    $region68: #{_lambda_.20} parent=5 // pred_fallthru
      _
    %p2391 = scmp.le.s32.totalorder 2, %s22
    // Predicated region
    $region85: #{_lambda_.20} parent=5 // pred_check
      %p2392 = pneg %p2391
    $region86: #{_lambda_.20} parent=5 // pred_check_branch
      %2394 = sbr.rel (%p2392) target = $region88
    $region87: #{_lambda_.20} parent=5 // pred_region
      %s2395 = ssub.s32 %s22, 2
      // Predicated region
      $region89: #{_lambda_.20} parent=87 // pred_check
        %p2396 = pneg %p330
      $region90: #{_lambda_.20} parent=87 // pred_check_branch
        %2398 = sbr.rel (%p2396) target = $region92
      $region91: #{_lambda_.20} parent=87 // pred_region
        %p2399 = scmp.lt.s32.totalorder %s33, 1
        %s2400 = scalar_select %p2399, %s33, 1
        %s2401 = smul.addr %s2400, 8
        %s2402 = scalar_lea.vmem %s14, %s2401
      $region92: #{_lambda_.20} parent=87 // pred_fallthru
        _
    $region88: #{_lambda_.20} parent=5 // pred_fallthru
      _
  $region6: #{_lambda_.20} parent=0 // loop_footer
    %s26 = sadd.s32 1, %s22
  $region7: #{_lambda_.20} parent=0 // loop_footer_branch
    %21 = sbr.rel target = $region3
  $region8: #{_lambda_.20} parent=0 // loop_exit
    _

</llo_original>
